<compile_context>
chip_gen: v6e
topology: v6e:2x2x1
jax: 0.10.0
libtpu: 0.0.40
codegen_flags: <defaults>
</compile_context>

<pallas_src>
import math

import jax
import jax.numpy as jnp
import numpy as np
from jax.experimental import pallas as pl
from jax.experimental.pallas import tpu as pltpu

# ----- architecture constants (module defaults) -----
HIDDEN = 1024            # LazyLinear(1024) input projections
D = 8                    # deep_cross_query_dim (feature dim of attention states)
S = HIDDEN // D          # 128 : sequence length after .view(B, -1, 8)
R = 32                   # deep_cross_return_dim (per-tower linear output)
DENSE = 16               # dense_out
OUT_SCORES = 2           # to_score
N_TOWERS = 6
RESID = 0.5              # deep_cross_residual_coef
LN_EPS = 1e-12           # TF-style LayerNorm eps used by the module
INV_SQRT_D = 1.0 / math.sqrt(D)

# tower -> (query input, key/value input); exactly the pairing in forward():
#   t1:(a1,a2) t2:(a1,a3) t3:(a2,a1) t4:(a2,a3) t5:(a3,a1) t6:(a3,a2)
Q_IN = (0, 0, 1, 1, 2, 2)
X_IN = (1, 2, 0, 2, 0, 1)


def _q_towers(i):
    return [t for t in range(N_TOWERS) if Q_IN[t] == i]


def _x_towers(i):
    return [t for t in range(N_TOWERS) if X_IN[t] == i]


# Row offsets of Q / K / V for tower t inside the packed (48, 8) projection
# weight of its query / key-value input (see pack_params for the row layout).
Q_OFF = tuple(D * _q_towers(Q_IN[t]).index(t) for t in range(N_TOWERS))
K_OFF = tuple(2 * D + 2 * D * _x_towers(X_IN[t]).index(t) for t in range(N_TOWERS))
V_OFF = tuple(k + D for k in K_OFF)


# ----- register-level relayout helpers (no masked stores) -----
def _lanes_to_sublanes(row):
    """(1, HIDDEN) with lane index d*S+s  ->  (D, S) tile."""
    return jnp.concatenate([row[:, d * S:(d + 1) * S] for d in range(D)], axis=0)


def _sublanes_to_lanes(tile):
    """(D, S) tile  ->  (1, HIDDEN) with lane index d*S+s."""
    return jnp.concatenate([tile[d:d + 1, :] for d in range(D)], axis=1)


# ---------------------------------------------------------------------------
# The fused kernel: one batch row per grid step.
# ---------------------------------------------------------------------------
def _fused_forward_kernel(
        x1_ref, x2_ref, x3_ref,
        w1_ref, b1_ref, w2_ref, b2_ref, w3_ref, b3_ref,
        wproj_ref,
        wl_ref, bl_ref, wd_ref, bd_ref, ws_ref, bs_ref,
        score_ref,
        proj_ref):
    # ---- 1. input projections -> (D, S) attention-state tiles ---------------
    # Input-projection weights are pre-permuted (column order d*S+s) and the
    # positional embedding is folded into the bias at pack time.
    x_refs = (x1_ref, x2_ref, x3_ref)
    wb_refs = ((w1_ref, b1_ref), (w2_ref, b2_ref), (w3_ref, b3_ref))
    tiles = []
    for i in range(3):
        w_ref, b_ref = wb_refs[i]
        a = jnp.dot(x_refs[i][0], w_ref[...],
                    preferred_element_type=jnp.float32) + b_ref[...]      # (1, 1024)
        tile = _lanes_to_sublanes(a)                                       # (8, 128)
        tiles.append(tile)
        # Packed QKV projection: one (48,8)@(8,128) matmul per input produces
        # (scaled) Q for its two query-towers and K,V for its two kv-towers.
        proj_ref[i] = jnp.dot(wproj_ref[i], tile,
                              preferred_element_type=jnp.float32)          # (48, 128)

    # ---- 2. six cross-attention towers (lane-dense, transposed softmax) -----
    ln_tiles = []
    for t in range(N_TOWERS):
        qi, xi = Q_IN[t], X_IN[t]
        q_t = proj_ref[qi, Q_OFF[t]:Q_OFF[t] + D, :]     # (8,128), 1/sqrt(D) pre-folded
        k_t = proj_ref[xi, K_OFF[t]:K_OFF[t] + D, :]
        v_t = proj_ref[xi, V_OFF[t]:V_OFF[t] + D, :]
        x_t = tiles[xi]

        # scores_T[j, i] = sum_d K[d,j] * Q[d,i]  -> key index j on sublanes, so
        # the softmax max/sum land directly as (1,128) lane vectors.
        scores_T = jax.lax.dot_general(
            k_t, q_t, (((0,), (0,)), ((), ())),
            preferred_element_type=jnp.float32)                            # (128,128)
        m = jnp.max(scores_T, axis=0, keepdims=True)                       # (1,128)
        p_T = jnp.exp(scores_T - m)
        denom = jnp.sum(p_T, axis=0, keepdims=True)                        # (1,128)

        # out[d, i] = sum_j V[d, j] * p_T[j, i]  (native MXU form), then apply
        # the deferred softmax normalization with an EUP reciprocal.
        out = jax.lax.dot_general(
            v_t, p_T, (((1,), (0,)), ((), ())),
            preferred_element_type=jnp.float32)                            # (8,128)
        out = out * pl.reciprocal(denom, approx=True) + RESID * x_t

        # TF-style LayerNorm over the feature dim (sublane axis, size 8).
        # The affine (ln_w, ln_b) is folded into w_lin / b_lin at pack time.
        u = jnp.mean(out, axis=0, keepdims=True)
        var = jnp.mean(jnp.square(out - u), axis=0, keepdims=True)
        ln_tiles.append((out - u) * jax.lax.rsqrt(var + LN_EPS))           # (8,128)

    # ---- 3. batched tower head ----------------------------------------------
    # flat: (6, 1, 1024) in d*S+s order (matches the packed w_lin row order).
    flat = jnp.stack([_sublanes_to_lanes(ln) for ln in ln_tiles], axis=0)
    lin = jnp.einsum("tbf,tfr->tbr", flat, wl_ref[...],
                     preferred_element_type=jnp.float32) + bl_ref[...]     # (6,1,32)
    z = lin * jax.nn.sigmoid(lin)          # CrossAttention output Swish
    z = z * jax.nn.sigmoid(z)              # head Swish applied to `intermediate`
    d_pre = jnp.sum(
        jnp.einsum("tbr,trk->tbk", z, wd_ref[...],
                   preferred_element_type=jnp.float32), axis=0) + bd_ref[...]  # (1,16)

    # CosineNegActivation
    c = jnp.where(d_pre < 0.0, 0.0,
                  jnp.where(d_pre > 1.0, 1.0,
                            (1.0 - jnp.cos(math.pi * d_pre)) * 0.5))
    score_ref[0] = (jnp.dot(c, ws_ref[...], preferred_element_type=jnp.float32)
                    + bs_ref[...])                                         # (1, 2)


# ---------------------------------------------------------------------------
# Wrapper: one pallas_call, grid over the batch.
# ---------------------------------------------------------------------------
def forward(packed, x1, x2, x3):
    B, n1 = x1.shape
    n2 = x2.shape[1]
    n3 = x3.shape[1]
    row3 = lambda b: (b, 0, 0)
    c2 = lambda b: (0, 0)
    c3 = lambda b: (0, 0, 0)
    out = pl.pallas_call(
        _fused_forward_kernel,
        out_shape=jax.ShapeDtypeStruct((B, 1, OUT_SCORES), jnp.float32),
        grid=(B,),
        in_specs=[
            pl.BlockSpec((1, 1, n1), row3),
            pl.BlockSpec((1, 1, n2), row3),
            pl.BlockSpec((1, 1, n3), row3),
            pl.BlockSpec((n1, HIDDEN), c2),
            pl.BlockSpec((1, HIDDEN), c2),
            pl.BlockSpec((n2, HIDDEN), c2),
            pl.BlockSpec((1, HIDDEN), c2),
            pl.BlockSpec((n3, HIDDEN), c2),
            pl.BlockSpec((1, HIDDEN), c2),
            pl.BlockSpec((3, 6 * D, D), c3),              # packed QKV weights (Q pre-scaled)
            pl.BlockSpec((N_TOWERS, HIDDEN, R), c3),      # tower linear W (LN affine folded)
            pl.BlockSpec((N_TOWERS, 1, R), c3),           # tower linear b (LN affine folded)
            pl.BlockSpec((N_TOWERS, R, DENSE), c3),       # dense_out per-tower blocks
            pl.BlockSpec((1, DENSE), c2),                 # dense_out bias
            pl.BlockSpec((DENSE, OUT_SCORES), c2),        # to_score W
            pl.BlockSpec((1, OUT_SCORES), c2),            # to_score b
        ],
        out_specs=pl.BlockSpec((1, 1, OUT_SCORES), row3),
        scratch_shapes=[
            pltpu.VMEM((3, 6 * D, S), jnp.float32),       # per-step packed QKV projections
        ],
        compiler_params=pltpu.CompilerParams(
            dimension_semantics=("parallel",)),
    )(x1.reshape(B, 1, n1), x2.reshape(B, 1, n2), x3.reshape(B, 1, n3),
      packed["w_in1"], packed["b_in1"],
      packed["w_in2"], packed["b_in2"],
      packed["w_in3"], packed["b_in3"],
      packed["wproj"],
      packed["w_lin"], packed["b_lin"],
      packed["w_dense"], packed["b_dense"],
      packed["w_score"], packed["b_score"])
    return out.reshape(B, OUT_SCORES)


# ---------------------------------------------------------------------------
# Parameters: natural (PyTorch-like) layout + one-time re-pack for the kernel.
# ---------------------------------------------------------------------------
def init_params(key, n1, n2, n3):
    ks = jax.random.split(key, 12)

    def linear(k, fan_in, fan_out):
        bound = 1.0 / math.sqrt(fan_in)
        kw, kb = jax.random.split(k)
        w = jax.random.uniform(kw, (fan_in, fan_out), jnp.float32, -bound, bound)
        b = jax.random.uniform(kb, (fan_out,), jnp.float32, -bound, bound)
        return w, b

    def xavier(k, shape):
        bound = math.sqrt(6.0 / (shape[-2] + shape[-1]))
        return jax.random.uniform(k, shape, jnp.float32, -bound, bound)

    w_in1, b_in1 = linear(ks[0], n1, HIDDEN)
    w_in2, b_in2 = linear(ks[1], n2, HIDDEN)
    w_in3, b_in3 = linear(ks[2], n3, HIDDEN)
    wq = xavier(ks[3], (N_TOWERS, D, D))
    wk = xavier(ks[4], (N_TOWERS, D, D))
    wv = xavier(ks[5], (N_TOWERS, D, D))
    bl_bound = 1.0 / math.sqrt(HIDDEN)
    w_lin = jax.random.uniform(ks[6], (N_TOWERS, HIDDEN, R), jnp.float32,
                               -bl_bound, bl_bound)
    b_lin = jax.random.uniform(ks[7], (N_TOWERS, R), jnp.float32,
                               -bl_bound, bl_bound)
    w_dense, b_dense = linear(ks[8], N_TOWERS * R, DENSE)
    w_score, b_score = linear(ks[9], DENSE, OUT_SCORES)
    # Non-trivial LayerNorm affine so the pack-time fold is actually exercised
    # (the module initializes these to ones/zeros; forward semantics unchanged).
    ln_w = 1.0 + 0.25 * jax.random.normal(ks[10], (N_TOWERS, D), jnp.float32)
    ln_b = 0.1 * jax.random.normal(ks[11], (N_TOWERS, D), jnp.float32)
    return dict(
        w_in1=w_in1, b_in1=b_in1, w_in2=w_in2, b_in2=b_in2,
        w_in3=w_in3, b_in3=b_in3,
        wq=wq, wk=wk, wv=wv,
        ln_w=ln_w, ln_b=ln_b,
        w_lin=w_lin, b_lin=b_lin,
        w_dense=w_dense, b_dense=b_dense,
        w_score=w_score, b_score=b_score,
    )


def pack_params(nat):
    """One-time re-layout of the natural parameters into the kernel layout."""
    f64 = np.float64

    def perm_cols(w):                                  # (n,1024): cols s*8+d -> d*128+s
        n = w.shape[0]
        return w.reshape(n, S, D).transpose(0, 2, 1).reshape(n, HIDDEN)

    def eff_bias(w, b):                                # fold pos-emb into the bias
        n = w.shape[0]
        pos = np.arange(n, dtype=f64) / (n - 1)
        be = np.asarray(b, f64) + pos @ np.asarray(w, f64)            # (1024,)
        return be.reshape(S, D).T.reshape(1, HIDDEN)

    out = {}
    for idx, (wname, bname) in enumerate((("w_in1", "b_in1"),
                                          ("w_in2", "b_in2"),
                                          ("w_in3", "b_in3")), start=1):
        w = np.asarray(nat[wname], f64)
        out[f"w_in{idx}"] = jnp.asarray(perm_cols(w), jnp.float32)
        out[f"b_in{idx}"] = jnp.asarray(eff_bias(w, nat[bname]), jnp.float32)

    # Packed QKV: per input i, rows = [WQ^T(qt0); WQ^T(qt1); WK^T(xt0); WV^T(xt0);
    # WK^T(xt1); WV^T(xt1)].  1/sqrt(D) is folded into the Q blocks.
    wq_n = np.asarray(nat["wq"], f64) * INV_SQRT_D
    wk_n = np.asarray(nat["wk"], f64)
    wv_n = np.asarray(nat["wv"], f64)
    blocks = []
    for i in range(3):
        qt, xt = _q_towers(i), _x_towers(i)
        blocks.append(np.concatenate(
            [wq_n[qt[0]].T, wq_n[qt[1]].T,
             wk_n[xt[0]].T, wv_n[xt[0]].T,
             wk_n[xt[1]].T, wv_n[xt[1]].T], axis=0))                  # (48, 8)
    out["wproj"] = jnp.asarray(np.stack(blocks, 0), jnp.float32)      # (3, 48, 8)

    # Tower linear: permute rows (s*8+d -> d*128+s) and fold the LN affine:
    #   w_eff[d*S+s, r] = ln_w[d] * w_lin[s*D+d, r]
    #   b_eff[r]        = b_lin[r] + sum_{s,d} ln_b[d] * w_lin[s*D+d, r]
    wl = np.asarray(nat["w_lin"], f64).reshape(N_TOWERS, S, D, R)
    lnw = np.asarray(nat["ln_w"], f64)
    lnb = np.asarray(nat["ln_b"], f64)
    wl_scaled = wl * lnw[:, None, :, None]
    out["w_lin"] = jnp.asarray(
        wl_scaled.transpose(0, 2, 1, 3).reshape(N_TOWERS, HIDDEN, R), jnp.float32)
    b_eff = np.asarray(nat["b_lin"], f64) + np.einsum("td,tsdr->tr", lnb, wl)
    out["b_lin"] = jnp.asarray(b_eff.reshape(N_TOWERS, 1, R), jnp.float32)

    out["w_dense"] = jnp.asarray(
        np.asarray(nat["w_dense"]).reshape(N_TOWERS, R, DENSE), jnp.float32)
    out["b_dense"] = jnp.asarray(np.asarray(nat["b_dense"]).reshape(1, DENSE),
                                 jnp.float32)
    out["w_score"] = jnp.asarray(nat["w_score"], jnp.float32)
    out["b_score"] = jnp.asarray(np.asarray(nat["b_score"]).reshape(1, OUT_SCORES),
                                 jnp.float32)
    return out


# ---------------------------------------------------------------------------
# Pure numpy/float64 reference (straight transcription of the PyTorch forward).
# ---------------------------------------------------------------------------
def _reference_forward(nat, x1, x2, x3):
    f64 = np.float64

    def sigmoid(v):
        return 1.0 / (1.0 + np.exp(-v))

    xs = [np.asarray(v, f64) for v in (x1, x2, x3)]
    wb = [(np.asarray(nat[f"w_in{i}"], f64), np.asarray(nat[f"b_in{i}"], f64))
          for i in (1, 2, 3)]
    states = []
    for x, (w, b) in zip(xs, wb):
        n = x.shape[1]
        pos = np.arange(n, dtype=f64)
        pos = (pos - pos.min()) / (pos.max() - pos.min())
        a = (x + pos[None, :]) @ w + b
        states.append(a.reshape(x.shape[0], S, D))

    wq = np.asarray(nat["wq"], f64)
    wk = np.asarray(nat["wk"], f64)
    wv = np.asarray(nat["wv"], f64)
    lw = np.asarray(nat["ln_w"], f64)
    lb = np.asarray(nat["ln_b"], f64)
    wl = np.asarray(nat["w_lin"], f64)
    bl = np.asarray(nat["b_lin"], f64)

    towers = []
    for t in range(N_TOWERS):
        q, x = states[Q_IN[t]], states[X_IN[t]]
        Q = q @ wq[t]
        K = x @ wk[t]
        V = x @ wv[t]
        s = Q @ K.transpose(0, 2, 1) / math.sqrt(D)
        s = s - s.max(-1, keepdims=True)
        p = np.exp(s)
        attn = p / p.sum(-1, keepdims=True)
        out = attn @ V + RESID * x
        u = out.mean(-1, keepdims=True)
        var = ((out - u) ** 2).mean(-1, keepdims=True)
        out = (out - u) / np.sqrt(var + LN_EPS)
        out = lw[t] * out + lb[t]
        lin = out.reshape(out.shape[0], -1) @ wl[t] + bl[t]
        towers.append(lin * sigmoid(lin))                    # CrossAttention Swish
    inter = np.concatenate(towers, axis=1)                   # (B, 192)
    z = inter * sigmoid(inter)                               # head Swish
    d = z @ np.asarray(nat["w_dense"], f64) + np.asarray(nat["b_dense"], f64)
    c = np.where(d < 0.0, 0.0,
                 np.where(d > 1.0, 1.0, (1.0 - np.cos(math.pi * d)) * 0.5))
    return c @ np.asarray(nat["w_score"], f64) + np.asarray(nat["b_score"], f64)


if __name__ == "__main__":
    B = 2
    n1, n2, n3 = 16, 24, 32

    key = jax.random.PRNGKey(0)
    kx1, kx2, kx3, kp = jax.random.split(key, 4)
    x1 = jax.random.normal(kx1, (B, n1), jnp.float32)
    x2 = jax.random.normal(kx2, (B, n2), jnp.float32)
    x3 = jax.random.normal(kx3, (B, n3), jnp.float32)

    nat = init_params(kp, n1, n2, n3)
    packed = pack_params(nat)

    score = jax.jit(forward)(packed, x1, x2, x3)
    jax.block_until_ready(score)
    assert score.shape == (B, OUT_SCORES)

    ref = _reference_forward(nat, x1, x2, x3)
    np.testing.assert_allclose(np.asarray(score, np.float64), ref,
                               rtol=2e-2, atol=2e-2)
    print("KERNEL_OK")
</pallas_src>

<mosaic_0001>
module attributes {stable_mosaic.version = 11 : i64} {
  func.func @_fused_forward_kernel(%arg0: i32, %arg1: memref<1x1x16xf32, #tpu.memory_space<vmem>>, %arg2: memref<1x1x24xf32, #tpu.memory_space<vmem>>, %arg3: memref<1x1x32xf32, #tpu.memory_space<vmem>>, %arg4: memref<16x1024xf32, #tpu.memory_space<vmem>>, %arg5: memref<1x1024xf32, #tpu.memory_space<vmem>>, %arg6: memref<24x1024xf32, #tpu.memory_space<vmem>>, %arg7: memref<1x1024xf32, #tpu.memory_space<vmem>>, %arg8: memref<32x1024xf32, #tpu.memory_space<vmem>>, %arg9: memref<1x1024xf32, #tpu.memory_space<vmem>>, %arg10: memref<3x48x8xf32, #tpu.memory_space<vmem>>, %arg11: memref<6x1024x32xf32, #tpu.memory_space<vmem>>, %arg12: memref<6x1x32xf32, #tpu.memory_space<vmem>>, %arg13: memref<6x32x16xf32, #tpu.memory_space<vmem>>, %arg14: memref<1x16xf32, #tpu.memory_space<vmem>>, %arg15: memref<16x2xf32, #tpu.memory_space<vmem>>, %arg16: memref<1x2xf32, #tpu.memory_space<vmem>>, %arg17: memref<1x1x2xf32, #tpu.memory_space<vmem>>, %arg18: memref<3x48x128xf32, #tpu.memory_space<vmem>>) attributes {dimension_semantics = [#tpu.dimension_semantics<parallel>], iteration_bounds = array<i64: 2>, scalar_prefetch = 0 : i64, scratch_operands = 1 : i64, tpu.core_type = #tpu.core_type<tc>, window_params = [{transform_indices = @transform_0, window_bounds = array<i64: 1, 1, 16>}, {transform_indices = @transform_1, window_bounds = array<i64: 1, 1, 24>}, {transform_indices = @transform_2, window_bounds = array<i64: 1, 1, 32>}, {pipeline_mode = #tpu.pipeline_mode<synchronous>, transform_indices = @transform_3, window_bounds = array<i64: 16, 1024>}, {pipeline_mode = #tpu.pipeline_mode<synchronous>, transform_indices = @transform_4, window_bounds = array<i64: 1, 1024>}, {pipeline_mode = #tpu.pipeline_mode<synchronous>, transform_indices = @transform_5, window_bounds = array<i64: 24, 1024>}, {pipeline_mode = #tpu.pipeline_mode<synchronous>, transform_indices = @transform_6, window_bounds = array<i64: 1, 1024>}, {pipeline_mode = #tpu.pipeline_mode<synchronous>, transform_indices = @transform_7, window_bounds = array<i64: 32, 1024>}, {pipeline_mode = #tpu.pipeline_mode<synchronous>, transform_indices = @transform_8, window_bounds = array<i64: 1, 1024>}, {pipeline_mode = #tpu.pipeline_mode<synchronous>, transform_indices = @transform_9, window_bounds = array<i64: 3, 48, 8>}, {pipeline_mode = #tpu.pipeline_mode<synchronous>, transform_indices = @transform_10, window_bounds = array<i64: 6, 1024, 32>}, {pipeline_mode = #tpu.pipeline_mode<synchronous>, transform_indices = @transform_11, window_bounds = array<i64: 6, 1, 32>}, {pipeline_mode = #tpu.pipeline_mode<synchronous>, transform_indices = @transform_12, window_bounds = array<i64: 6, 32, 16>}, {pipeline_mode = #tpu.pipeline_mode<synchronous>, transform_indices = @transform_13, window_bounds = array<i64: 1, 16>}, {pipeline_mode = #tpu.pipeline_mode<synchronous>, transform_indices = @transform_14, window_bounds = array<i64: 16, 2>}, {pipeline_mode = #tpu.pipeline_mode<synchronous>, transform_indices = @transform_15, window_bounds = array<i64: 1, 2>}, {transform_indices = @transform_16, window_bounds = array<i64: 1, 1, 2>}]} {
    %c0 = arith.constant 0 : index
    %c0_0 = arith.constant 0 : index
    %c0_1 = arith.constant 0 : index
    %0 = vector.load %arg1[%c0, %c0_0, %c0_1] : memref<1x1x16xf32, #tpu.memory_space<vmem>>, vector<1x1x16xf32>
    %1 = vector.shape_cast %0 : vector<1x1x16xf32> to vector<1x16xf32>
    %c0_2 = arith.constant 0 : index
    %c0_3 = arith.constant 0 : index
    %2 = vector.load %arg4[%c0_2, %c0_3] : memref<16x1024xf32, #tpu.memory_space<vmem>>, vector<16x1024xf32>
    %cst = arith.constant dense<0.000000e+00> : vector<1x1024xf32>
    %3 = tpu.matmul %1, %2, %cst {dimension_numbers = #tpu.dot_dimension_numbers<[1], [0], [0], [1], [0, 0, 1, 1], [], []>} : vector<1x16xf32>, vector<16x1024xf32>, vector<1x1024xf32> -> vector<1x1024xf32>
    %c0_4 = arith.constant 0 : index
    %c0_5 = arith.constant 0 : index
    %4 = vector.load %arg5[%c0_4, %c0_5] : memref<1x1024xf32, #tpu.memory_space<vmem>>, vector<1x1024xf32>
    %5 = arith.addf %3, %4 : vector<1x1024xf32>
    %6 = vector.extract_strided_slice %5 {offsets = [0, 0], sizes = [1, 128], strides = [1, 1]} : vector<1x1024xf32> to vector<1x128xf32>
    %7 = vector.extract_strided_slice %5 {offsets = [0, 128], sizes = [1, 128], strides = [1, 1]} : vector<1x1024xf32> to vector<1x128xf32>
    %8 = vector.extract_strided_slice %5 {offsets = [0, 256], sizes = [1, 128], strides = [1, 1]} : vector<1x1024xf32> to vector<1x128xf32>
    %9 = vector.extract_strided_slice %5 {offsets = [0, 384], sizes = [1, 128], strides = [1, 1]} : vector<1x1024xf32> to vector<1x128xf32>
    %10 = vector.extract_strided_slice %5 {offsets = [0, 512], sizes = [1, 128], strides = [1, 1]} : vector<1x1024xf32> to vector<1x128xf32>
    %11 = vector.extract_strided_slice %5 {offsets = [0, 640], sizes = [1, 128], strides = [1, 1]} : vector<1x1024xf32> to vector<1x128xf32>
    %12 = vector.extract_strided_slice %5 {offsets = [0, 768], sizes = [1, 128], strides = [1, 1]} : vector<1x1024xf32> to vector<1x128xf32>
    %13 = vector.extract_strided_slice %5 {offsets = [0, 896], sizes = [1, 128], strides = [1, 1]} : vector<1x1024xf32> to vector<1x128xf32>
    %14 = tpu.concatenate %6, %7, %8, %9, %10, %11, %12, %13 in 0 : vector<1x128xf32>, vector<1x128xf32>, vector<1x128xf32>, vector<1x128xf32>, vector<1x128xf32>, vector<1x128xf32>, vector<1x128xf32>, vector<1x128xf32> -> vector<8x128xf32>
    %c0_6 = arith.constant 0 : index
    %c0_7 = arith.constant 0 : index
    %c0_8 = arith.constant 0 : index
    %15 = vector.load %arg10[%c0_6, %c0_7, %c0_8] : memref<3x48x8xf32, #tpu.memory_space<vmem>>, vector<1x48x8xf32>
    %16 = vector.shape_cast %15 : vector<1x48x8xf32> to vector<48x8xf32>
    %cst_9 = arith.constant dense<0.000000e+00> : vector<48x128xf32>
    %17 = tpu.matmul %16, %14, %cst_9 {dimension_numbers = #tpu.dot_dimension_numbers<[1], [0], [0], [1], [0, 0, 1, 1], [], []>} : vector<48x8xf32>, vector<8x128xf32>, vector<48x128xf32> -> vector<48x128xf32>
    %c0_10 = arith.constant 0 : index
    %c0_11 = arith.constant 0 : index
    %c0_12 = arith.constant 0 : index
    %18 = vector.load %arg18[%c0_10, %c0_11, %c0_12] : memref<3x48x128xf32, #tpu.memory_space<vmem>>, vector<1x48x128xf32>
    %19 = vector.shape_cast %18 : vector<1x48x128xf32> to vector<48x128xf32>
    %20 = vector.shape_cast %17 : vector<48x128xf32> to vector<1x48x128xf32>
    tpu.vector_store %arg18[%c0_10, %c0_11, %c0_12], %20 {strides = array<i32>} : memref<3x48x128xf32, #tpu.memory_space<vmem>>, vector<1x48x128xf32>,
    %c0_13 = arith.constant 0 : index
    %c0_14 = arith.constant 0 : index
    %c0_15 = arith.constant 0 : index
    %21 = vector.load %arg2[%c0_13, %c0_14, %c0_15] : memref<1x1x24xf32, #tpu.memory_space<vmem>>, vector<1x1x24xf32>
    %22 = vector.shape_cast %21 : vector<1x1x24xf32> to vector<1x24xf32>
    %c0_16 = arith.constant 0 : index
    %c0_17 = arith.constant 0 : index
    %23 = vector.load %arg6[%c0_16, %c0_17] : memref<24x1024xf32, #tpu.memory_space<vmem>>, vector<24x1024xf32>
    %cst_18 = arith.constant dense<0.000000e+00> : vector<1x1024xf32>
    %24 = tpu.matmul %22, %23, %cst_18 {dimension_numbers = #tpu.dot_dimension_numbers<[1], [0], [0], [1], [0, 0, 1, 1], [], []>} : vector<1x24xf32>, vector<24x1024xf32>, vector<1x1024xf32> -> vector<1x1024xf32>
    %c0_19 = arith.constant 0 : index
    %c0_20 = arith.constant 0 : index
    %25 = vector.load %arg7[%c0_19, %c0_20] : memref<1x1024xf32, #tpu.memory_space<vmem>>, vector<1x1024xf32>
    %26 = arith.addf %24, %25 : vector<1x1024xf32>
    %27 = vector.extract_strided_slice %26 {offsets = [0, 0], sizes = [1, 128], strides = [1, 1]} : vector<1x1024xf32> to vector<1x128xf32>
    %28 = vector.extract_strided_slice %26 {offsets = [0, 128], sizes = [1, 128], strides = [1, 1]} : vector<1x1024xf32> to vector<1x128xf32>
    %29 = vector.extract_strided_slice %26 {offsets = [0, 256], sizes = [1, 128], strides = [1, 1]} : vector<1x1024xf32> to vector<1x128xf32>
    %30 = vector.extract_strided_slice %26 {offsets = [0, 384], sizes = [1, 128], strides = [1, 1]} : vector<1x1024xf32> to vector<1x128xf32>
    %31 = vector.extract_strided_slice %26 {offsets = [0, 512], sizes = [1, 128], strides = [1, 1]} : vector<1x1024xf32> to vector<1x128xf32>
    %32 = vector.extract_strided_slice %26 {offsets = [0, 640], sizes = [1, 128], strides = [1, 1]} : vector<1x1024xf32> to vector<1x128xf32>
    %33 = vector.extract_strided_slice %26 {offsets = [0, 768], sizes = [1, 128], strides = [1, 1]} : vector<1x1024xf32> to vector<1x128xf32>
    %34 = vector.extract_strided_slice %26 {offsets = [0, 896], sizes = [1, 128], strides = [1, 1]} : vector<1x1024xf32> to vector<1x128xf32>
    %35 = tpu.concatenate %27, %28, %29, %30, %31, %32, %33, %34 in 0 : vector<1x128xf32>, vector<1x128xf32>, vector<1x128xf32>, vector<1x128xf32>, vector<1x128xf32>, vector<1x128xf32>, vector<1x128xf32>, vector<1x128xf32> -> vector<8x128xf32>
    %c1 = arith.constant 1 : index
    %c0_21 = arith.constant 0 : index
    %c0_22 = arith.constant 0 : index
    %36 = vector.load %arg10[%c1, %c0_21, %c0_22] : memref<3x48x8xf32, #tpu.memory_space<vmem>>, vector<1x48x8xf32>
    %37 = vector.shape_cast %36 : vector<1x48x8xf32> to vector<48x8xf32>
    %cst_23 = arith.constant dense<0.000000e+00> : vector<48x128xf32>
    %38 = tpu.matmul %37, %35, %cst_23 {dimension_numbers = #tpu.dot_dimension_numbers<[1], [0], [0], [1], [0, 0, 1, 1], [], []>} : vector<48x8xf32>, vector<8x128xf32>, vector<48x128xf32> -> vector<48x128xf32>
    %c1_24 = arith.constant 1 : index
    %c0_25 = arith.constant 0 : index
    %c0_26 = arith.constant 0 : index
    %39 = vector.load %arg18[%c1_24, %c0_25, %c0_26] : memref<3x48x128xf32, #tpu.memory_space<vmem>>, vector<1x48x128xf32>
    %40 = vector.shape_cast %39 : vector<1x48x128xf32> to vector<48x128xf32>
    %41 = vector.shape_cast %38 : vector<48x128xf32> to vector<1x48x128xf32>
    tpu.vector_store %arg18[%c1_24, %c0_25, %c0_26], %41 {strides = array<i32>} : memref<3x48x128xf32, #tpu.memory_space<vmem>>, vector<1x48x128xf32>,
    %c0_27 = arith.constant 0 : index
    %c0_28 = arith.constant 0 : index
    %c0_29 = arith.constant 0 : index
    %42 = vector.load %arg3[%c0_27, %c0_28, %c0_29] : memref<1x1x32xf32, #tpu.memory_space<vmem>>, vector<1x1x32xf32>
    %43 = vector.shape_cast %42 : vector<1x1x32xf32> to vector<1x32xf32>
    %c0_30 = arith.constant 0 : index
    %c0_31 = arith.constant 0 : index
    %44 = vector.load %arg8[%c0_30, %c0_31] : memref<32x1024xf32, #tpu.memory_space<vmem>>, vector<32x1024xf32>
    %cst_32 = arith.constant dense<0.000000e+00> : vector<1x1024xf32>
    %45 = tpu.matmul %43, %44, %cst_32 {dimension_numbers = #tpu.dot_dimension_numbers<[1], [0], [0], [1], [0, 0, 1, 1], [], []>} : vector<1x32xf32>, vector<32x1024xf32>, vector<1x1024xf32> -> vector<1x1024xf32>
    %c0_33 = arith.constant 0 : index
    %c0_34 = arith.constant 0 : index
    %46 = vector.load %arg9[%c0_33, %c0_34] : memref<1x1024xf32, #tpu.memory_space<vmem>>, vector<1x1024xf32>
    %47 = arith.addf %45, %46 : vector<1x1024xf32>
    %48 = vector.extract_strided_slice %47 {offsets = [0, 0], sizes = [1, 128], strides = [1, 1]} : vector<1x1024xf32> to vector<1x128xf32>
    %49 = vector.extract_strided_slice %47 {offsets = [0, 128], sizes = [1, 128], strides = [1, 1]} : vector<1x1024xf32> to vector<1x128xf32>
    %50 = vector.extract_strided_slice %47 {offsets = [0, 256], sizes = [1, 128], strides = [1, 1]} : vector<1x1024xf32> to vector<1x128xf32>
    %51 = vector.extract_strided_slice %47 {offsets = [0, 384], sizes = [1, 128], strides = [1, 1]} : vector<1x1024xf32> to vector<1x128xf32>
    %52 = vector.extract_strided_slice %47 {offsets = [0, 512], sizes = [1, 128], strides = [1, 1]} : vector<1x1024xf32> to vector<1x128xf32>
    %53 = vector.extract_strided_slice %47 {offsets = [0, 640], sizes = [1, 128], strides = [1, 1]} : vector<1x1024xf32> to vector<1x128xf32>
    %54 = vector.extract_strided_slice %47 {offsets = [0, 768], sizes = [1, 128], strides = [1, 1]} : vector<1x1024xf32> to vector<1x128xf32>
    %55 = vector.extract_strided_slice %47 {offsets = [0, 896], sizes = [1, 128], strides = [1, 1]} : vector<1x1024xf32> to vector<1x128xf32>
    %56 = tpu.concatenate %48, %49, %50, %51, %52, %53, %54, %55 in 0 : vector<1x128xf32>, vector<1x128xf32>, vector<1x128xf32>, vector<1x128xf32>, vector<1x128xf32>, vector<1x128xf32>, vector<1x128xf32>, vector<1x128xf32> -> vector<8x128xf32>
    %c2 = arith.constant 2 : index
    %c0_35 = arith.constant 0 : index
    %c0_36 = arith.constant 0 : index
    %57 = vector.load %arg10[%c2, %c0_35, %c0_36] : memref<3x48x8xf32, #tpu.memory_space<vmem>>, vector<1x48x8xf32>
    %58 = vector.shape_cast %57 : vector<1x48x8xf32> to vector<48x8xf32>
    %cst_37 = arith.constant dense<0.000000e+00> : vector<48x128xf32>
    %59 = tpu.matmul %58, %56, %cst_37 {dimension_numbers = #tpu.dot_dimension_numbers<[1], [0], [0], [1], [0, 0, 1, 1], [], []>} : vector<48x8xf32>, vector<8x128xf32>, vector<48x128xf32> -> vector<48x128xf32>
    %c2_38 = arith.constant 2 : index
    %c0_39 = arith.constant 0 : index
    %c0_40 = arith.constant 0 : index
    %60 = vector.load %arg18[%c2_38, %c0_39, %c0_40] : memref<3x48x128xf32, #tpu.memory_space<vmem>>, vector<1x48x128xf32>
    %61 = vector.shape_cast %60 : vector<1x48x128xf32> to vector<48x128xf32>
    %62 = vector.shape_cast %59 : vector<48x128xf32> to vector<1x48x128xf32>
    tpu.vector_store %arg18[%c2_38, %c0_39, %c0_40], %62 {strides = array<i32>} : memref<3x48x128xf32, #tpu.memory_space<vmem>>, vector<1x48x128xf32>,
    %c0_41 = arith.constant 0 : index
    %c0_42 = arith.constant 0 : index
    %c0_43 = arith.constant 0 : index
    %63 = vector.load %arg18[%c0_41, %c0_42, %c0_43] : memref<3x48x128xf32, #tpu.memory_space<vmem>>, vector<1x8x128xf32>
    %64 = vector.shape_cast %63 : vector<1x8x128xf32> to vector<8x128xf32>
    %c1_44 = arith.constant 1 : index
    %c16 = arith.constant 16 : index
    %c0_45 = arith.constant 0 : index
    %65 = vector.load %arg18[%c1_44, %c16, %c0_45] : memref<3x48x128xf32, #tpu.memory_space<vmem>>, vector<1x8x128xf32>
    %66 = vector.shape_cast %65 : vector<1x8x128xf32> to vector<8x128xf32>
    %c1_46 = arith.constant 1 : index
    %c24 = arith.constant 24 : index
    %c0_47 = arith.constant 0 : index
    %67 = vector.load %arg18[%c1_46, %c24, %c0_47] : memref<3x48x128xf32, #tpu.memory_space<vmem>>, vector<1x8x128xf32>
    %68 = vector.shape_cast %67 : vector<1x8x128xf32> to vector<8x128xf32>
    %cst_48 = arith.constant dense<0.000000e+00> : vector<128x128xf32>
    %69 = tpu.matmul %66, %64, %cst_48 {dimension_numbers = #tpu.dot_dimension_numbers<[0], [0], [1], [1], [0, 1, 1, 1], [], []>} : vector<8x128xf32>, vector<8x128xf32>, vector<128x128xf32> -> vector<128x128xf32>
    %cst_49 = arith.constant dense<0xFF800000> : vector<128xf32>
    %70 = vector.multi_reduction <maximumf>, %69, %cst_49 [0] : vector<128x128xf32> to vector<128xf32>
    %71 = vector.shape_cast %70 : vector<128xf32> to vector<1x128xf32>
    %72 = vector.broadcast %71 : vector<1x128xf32> to vector<128x128xf32>
    %73 = arith.subf %69, %72 : vector<128x128xf32>
    %74 = math.exp %73 : vector<128x128xf32>
    %cst_50 = arith.constant dense<0.000000e+00> : vector<128xf32>
    %75 = vector.multi_reduction <add>, %74, %cst_50 [0] : vector<128x128xf32> to vector<128xf32>
    %76 = vector.shape_cast %75 : vector<128xf32> to vector<1x128xf32>
    %cst_51 = arith.constant dense<0.000000e+00> : vector<8x128xf32>
    %77 = tpu.matmul %68, %74, %cst_51 {dimension_numbers = #tpu.dot_dimension_numbers<[1], [0], [0], [1], [0, 0, 1, 1], [], []>} : vector<8x128xf32>, vector<128x128xf32>, vector<8x128xf32> -> vector<8x128xf32>
    %78 = tpu.reciprocal %76 {approx = true} : vector<1x128xf32> -> vector<1x128xf32>
    %79 = vector.broadcast %78 : vector<1x128xf32> to vector<8x128xf32>
    %80 = arith.mulf %77, %79 : vector<8x128xf32>
    %cst_52 = arith.constant 5.000000e-01 : f32
    %81 = vector.broadcast %cst_52 : f32 to vector<8x128xf32>
    %82 = arith.mulf %81, %35 : vector<8x128xf32>
    %83 = arith.addf %80, %82 : vector<8x128xf32>
    %cst_53 = arith.constant dense<0.000000e+00> : vector<128xf32>
    %84 = vector.multi_reduction <add>, %83, %cst_53 [0] : vector<8x128xf32> to vector<128xf32>
    %85 = vector.shape_cast %84 : vector<128xf32> to vector<1x128xf32>
    %cst_54 = arith.constant 8.000000e+00 : f32
    %86 = vector.broadcast %cst_54 : f32 to vector<1x128xf32>
    %87 = arith.divf %85, %86 : vector<1x128xf32>
    %88 = vector.broadcast %87 : vector<1x128xf32> to vector<8x128xf32>
    %89 = arith.subf %83, %88 : vector<8x128xf32>
    %90 = arith.mulf %89, %89 : vector<8x128xf32>
    %cst_55 = arith.constant dense<0.000000e+00> : vector<128xf32>
    %91 = vector.multi_reduction <add>, %90, %cst_55 [0] : vector<8x128xf32> to vector<128xf32>
    %92 = vector.shape_cast %91 : vector<128xf32> to vector<1x128xf32>
    %cst_56 = arith.constant 8.000000e+00 : f32
    %93 = vector.broadcast %cst_56 : f32 to vector<1x128xf32>
    %94 = arith.divf %92, %93 : vector<1x128xf32>
    %95 = vector.broadcast %87 : vector<1x128xf32> to vector<8x128xf32>
    %96 = arith.subf %83, %95 : vector<8x128xf32>
    %cst_57 = arith.constant 9.99999996E-13 : f32
    %97 = vector.broadcast %cst_57 : f32 to vector<1x128xf32>
    %98 = arith.addf %94, %97 : vector<1x128xf32>
    %99 = math.rsqrt %98 : vector<1x128xf32>
    %100 = vector.broadcast %99 : vector<1x128xf32> to vector<8x128xf32>
    %101 = arith.mulf %96, %100 : vector<8x128xf32>
    %c0_58 = arith.constant 0 : index
    %c8 = arith.constant 8 : index
    %c0_59 = arith.constant 0 : index
    %102 = vector.load %arg18[%c0_58, %c8, %c0_59] : memref<3x48x128xf32, #tpu.memory_space<vmem>>, vector<1x8x128xf32>
    %103 = vector.shape_cast %102 : vector<1x8x128xf32> to vector<8x128xf32>
    %c2_60 = arith.constant 2 : index
    %c16_61 = arith.constant 16 : index
    %c0_62 = arith.constant 0 : index
    %104 = vector.load %arg18[%c2_60, %c16_61, %c0_62] : memref<3x48x128xf32, #tpu.memory_space<vmem>>, vector<1x8x128xf32>
    %105 = vector.shape_cast %104 : vector<1x8x128xf32> to vector<8x128xf32>
    %c2_63 = arith.constant 2 : index
    %c24_64 = arith.constant 24 : index
    %c0_65 = arith.constant 0 : index
    %106 = vector.load %arg18[%c2_63, %c24_64, %c0_65] : memref<3x48x128xf32, #tpu.memory_space<vmem>>, vector<1x8x128xf32>
    %107 = vector.shape_cast %106 : vector<1x8x128xf32> to vector<8x128xf32>
    %cst_66 = arith.constant dense<0.000000e+00> : vector<128x128xf32>
    %108 = tpu.matmul %105, %103, %cst_66 {dimension_numbers = #tpu.dot_dimension_numbers<[0], [0], [1], [1], [0, 1, 1, 1], [], []>} : vector<8x128xf32>, vector<8x128xf32>, vector<128x128xf32> -> vector<128x128xf32>
    %cst_67 = arith.constant dense<0xFF800000> : vector<128xf32>
    %109 = vector.multi_reduction <maximumf>, %108, %cst_67 [0] : vector<128x128xf32> to vector<128xf32>
    %110 = vector.shape_cast %109 : vector<128xf32> to vector<1x128xf32>
    %111 = vector.broadcast %110 : vector<1x128xf32> to vector<128x128xf32>
    %112 = arith.subf %108, %111 : vector<128x128xf32>
    %113 = math.exp %112 : vector<128x128xf32>
    %cst_68 = arith.constant dense<0.000000e+00> : vector<128xf32>
    %114 = vector.multi_reduction <add>, %113, %cst_68 [0] : vector<128x128xf32> to vector<128xf32>
    %115 = vector.shape_cast %114 : vector<128xf32> to vector<1x128xf32>
    %cst_69 = arith.constant dense<0.000000e+00> : vector<8x128xf32>
    %116 = tpu.matmul %107, %113, %cst_69 {dimension_numbers = #tpu.dot_dimension_numbers<[1], [0], [0], [1], [0, 0, 1, 1], [], []>} : vector<8x128xf32>, vector<128x128xf32>, vector<8x128xf32> -> vector<8x128xf32>
    %117 = tpu.reciprocal %115 {approx = true} : vector<1x128xf32> -> vector<1x128xf32>
    %118 = vector.broadcast %117 : vector<1x128xf32> to vector<8x128xf32>
    %119 = arith.mulf %116, %118 : vector<8x128xf32>
    %cst_70 = arith.constant 5.000000e-01 : f32
    %120 = vector.broadcast %cst_70 : f32 to vector<8x128xf32>
    %121 = arith.mulf %120, %56 : vector<8x128xf32>
    %122 = arith.addf %119, %121 : vector<8x128xf32>
    %cst_71 = arith.constant dense<0.000000e+00> : vector<128xf32>
    %123 = vector.multi_reduction <add>, %122, %cst_71 [0] : vector<8x128xf32> to vector<128xf32>
    %124 = vector.shape_cast %123 : vector<128xf32> to vector<1x128xf32>
    %cst_72 = arith.constant 8.000000e+00 : f32
    %125 = vector.broadcast %cst_72 : f32 to vector<1x128xf32>
    %126 = arith.divf %124, %125 : vector<1x128xf32>
    %127 = vector.broadcast %126 : vector<1x128xf32> to vector<8x128xf32>
    %128 = arith.subf %122, %127 : vector<8x128xf32>
    %129 = arith.mulf %128, %128 : vector<8x128xf32>
    %cst_73 = arith.constant dense<0.000000e+00> : vector<128xf32>
    %130 = vector.multi_reduction <add>, %129, %cst_73 [0] : vector<8x128xf32> to vector<128xf32>
    %131 = vector.shape_cast %130 : vector<128xf32> to vector<1x128xf32>
    %cst_74 = arith.constant 8.000000e+00 : f32
    %132 = vector.broadcast %cst_74 : f32 to vector<1x128xf32>
    %133 = arith.divf %131, %132 : vector<1x128xf32>
    %134 = vector.broadcast %126 : vector<1x128xf32> to vector<8x128xf32>
    %135 = arith.subf %122, %134 : vector<8x128xf32>
    %cst_75 = arith.constant 9.99999996E-13 : f32
    %136 = vector.broadcast %cst_75 : f32 to vector<1x128xf32>
    %137 = arith.addf %133, %136 : vector<1x128xf32>
    %138 = math.rsqrt %137 : vector<1x128xf32>
    %139 = vector.broadcast %138 : vector<1x128xf32> to vector<8x128xf32>
    %140 = arith.mulf %135, %139 : vector<8x128xf32>
    %c1_76 = arith.constant 1 : index
    %c0_77 = arith.constant 0 : index
    %c0_78 = arith.constant 0 : index
    %141 = vector.load %arg18[%c1_76, %c0_77, %c0_78] : memref<3x48x128xf32, #tpu.memory_space<vmem>>, vector<1x8x128xf32>
    %142 = vector.shape_cast %141 : vector<1x8x128xf32> to vector<8x128xf32>
    %c0_79 = arith.constant 0 : index
    %c16_80 = arith.constant 16 : index
    %c0_81 = arith.constant 0 : index
    %143 = vector.load %arg18[%c0_79, %c16_80, %c0_81] : memref<3x48x128xf32, #tpu.memory_space<vmem>>, vector<1x8x128xf32>
    %144 = vector.shape_cast %143 : vector<1x8x128xf32> to vector<8x128xf32>
    %c0_82 = arith.constant 0 : index
    %c24_83 = arith.constant 24 : index
    %c0_84 = arith.constant 0 : index
    %145 = vector.load %arg18[%c0_82, %c24_83, %c0_84] : memref<3x48x128xf32, #tpu.memory_space<vmem>>, vector<1x8x128xf32>
    %146 = vector.shape_cast %145 : vector<1x8x128xf32> to vector<8x128xf32>
    %cst_85 = arith.constant dense<0.000000e+00> : vector<128x128xf32>
    %147 = tpu.matmul %144, %142, %cst_85 {dimension_numbers = #tpu.dot_dimension_numbers<[0], [0], [1], [1], [0, 1, 1, 1], [], []>} : vector<8x128xf32>, vector<8x128xf32>, vector<128x128xf32> -> vector<128x128xf32>
    %cst_86 = arith.constant dense<0xFF800000> : vector<128xf32>
    %148 = vector.multi_reduction <maximumf>, %147, %cst_86 [0] : vector<128x128xf32> to vector<128xf32>
    %149 = vector.shape_cast %148 : vector<128xf32> to vector<1x128xf32>
    %150 = vector.broadcast %149 : vector<1x128xf32> to vector<128x128xf32>
    %151 = arith.subf %147, %150 : vector<128x128xf32>
    %152 = math.exp %151 : vector<128x128xf32>
    %cst_87 = arith.constant dense<0.000000e+00> : vector<128xf32>
    %153 = vector.multi_reduction <add>, %152, %cst_87 [0] : vector<128x128xf32> to vector<128xf32>
    %154 = vector.shape_cast %153 : vector<128xf32> to vector<1x128xf32>
    %cst_88 = arith.constant dense<0.000000e+00> : vector<8x128xf32>
    %155 = tpu.matmul %146, %152, %cst_88 {dimension_numbers = #tpu.dot_dimension_numbers<[1], [0], [0], [1], [0, 0, 1, 1], [], []>} : vector<8x128xf32>, vector<128x128xf32>, vector<8x128xf32> -> vector<8x128xf32>
    %156 = tpu.reciprocal %154 {approx = true} : vector<1x128xf32> -> vector<1x128xf32>
    %157 = vector.broadcast %156 : vector<1x128xf32> to vector<8x128xf32>
    %158 = arith.mulf %155, %157 : vector<8x128xf32>
    %cst_89 = arith.constant 5.000000e-01 : f32
    %159 = vector.broadcast %cst_89 : f32 to vector<8x128xf32>
    %160 = arith.mulf %159, %14 : vector<8x128xf32>
    %161 = arith.addf %158, %160 : vector<8x128xf32>
    %cst_90 = arith.constant dense<0.000000e+00> : vector<128xf32>
    %162 = vector.multi_reduction <add>, %161, %cst_90 [0] : vector<8x128xf32> to vector<128xf32>
    %163 = vector.shape_cast %162 : vector<128xf32> to vector<1x128xf32>
    %cst_91 = arith.constant 8.000000e+00 : f32
    %164 = vector.broadcast %cst_91 : f32 to vector<1x128xf32>
    %165 = arith.divf %163, %164 : vector<1x128xf32>
    %166 = vector.broadcast %165 : vector<1x128xf32> to vector<8x128xf32>
    %167 = arith.subf %161, %166 : vector<8x128xf32>
    %168 = arith.mulf %167, %167 : vector<8x128xf32>
    %cst_92 = arith.constant dense<0.000000e+00> : vector<128xf32>
    %169 = vector.multi_reduction <add>, %168, %cst_92 [0] : vector<8x128xf32> to vector<128xf32>
    %170 = vector.shape_cast %169 : vector<128xf32> to vector<1x128xf32>
    %cst_93 = arith.constant 8.000000e+00 : f32
    %171 = vector.broadcast %cst_93 : f32 to vector<1x128xf32>
    %172 = arith.divf %170, %171 : vector<1x128xf32>
    %173 = vector.broadcast %165 : vector<1x128xf32> to vector<8x128xf32>
    %174 = arith.subf %161, %173 : vector<8x128xf32>
    %cst_94 = arith.constant 9.99999996E-13 : f32
    %175 = vector.broadcast %cst_94 : f32 to vector<1x128xf32>
    %176 = arith.addf %172, %175 : vector<1x128xf32>
    %177 = math.rsqrt %176 : vector<1x128xf32>
    %178 = vector.broadcast %177 : vector<1x128xf32> to vector<8x128xf32>
    %179 = arith.mulf %174, %178 : vector<8x128xf32>
    %c1_95 = arith.constant 1 : index
    %c8_96 = arith.constant 8 : index
    %c0_97 = arith.constant 0 : index
    %180 = vector.load %arg18[%c1_95, %c8_96, %c0_97] : memref<3x48x128xf32, #tpu.memory_space<vmem>>, vector<1x8x128xf32>
    %181 = vector.shape_cast %180 : vector<1x8x128xf32> to vector<8x128xf32>
    %c2_98 = arith.constant 2 : index
    %c32 = arith.constant 32 : index
    %c0_99 = arith.constant 0 : index
    %182 = vector.load %arg18[%c2_98, %c32, %c0_99] : memref<3x48x128xf32, #tpu.memory_space<vmem>>, vector<1x8x128xf32>
    %183 = vector.shape_cast %182 : vector<1x8x128xf32> to vector<8x128xf32>
    %c2_100 = arith.constant 2 : index
    %c40 = arith.constant 40 : index
    %c0_101 = arith.constant 0 : index
    %184 = vector.load %arg18[%c2_100, %c40, %c0_101] : memref<3x48x128xf32, #tpu.memory_space<vmem>>, vector<1x8x128xf32>
    %185 = vector.shape_cast %184 : vector<1x8x128xf32> to vector<8x128xf32>
    %cst_102 = arith.constant dense<0.000000e+00> : vector<128x128xf32>
    %186 = tpu.matmul %183, %181, %cst_102 {dimension_numbers = #tpu.dot_dimension_numbers<[0], [0], [1], [1], [0, 1, 1, 1], [], []>} : vector<8x128xf32>, vector<8x128xf32>, vector<128x128xf32> -> vector<128x128xf32>
    %cst_103 = arith.constant dense<0xFF800000> : vector<128xf32>
    %187 = vector.multi_reduction <maximumf>, %186, %cst_103 [0] : vector<128x128xf32> to vector<128xf32>
    %188 = vector.shape_cast %187 : vector<128xf32> to vector<1x128xf32>
    %189 = vector.broadcast %188 : vector<1x128xf32> to vector<128x128xf32>
    %190 = arith.subf %186, %189 : vector<128x128xf32>
    %191 = math.exp %190 : vector<128x128xf32>
    %cst_104 = arith.constant dense<0.000000e+00> : vector<128xf32>
    %192 = vector.multi_reduction <add>, %191, %cst_104 [0] : vector<128x128xf32> to vector<128xf32>
    %193 = vector.shape_cast %192 : vector<128xf32> to vector<1x128xf32>
    %cst_105 = arith.constant dense<0.000000e+00> : vector<8x128xf32>
    %194 = tpu.matmul %185, %191, %cst_105 {dimension_numbers = #tpu.dot_dimension_numbers<[1], [0], [0], [1], [0, 0, 1, 1], [], []>} : vector<8x128xf32>, vector<128x128xf32>, vector<8x128xf32> -> vector<8x128xf32>
    %195 = tpu.reciprocal %193 {approx = true} : vector<1x128xf32> -> vector<1x128xf32>
    %196 = vector.broadcast %195 : vector<1x128xf32> to vector<8x128xf32>
    %197 = arith.mulf %194, %196 : vector<8x128xf32>
    %cst_106 = arith.constant 5.000000e-01 : f32
    %198 = vector.broadcast %cst_106 : f32 to vector<8x128xf32>
    %199 = arith.mulf %198, %56 : vector<8x128xf32>
    %200 = arith.addf %197, %199 : vector<8x128xf32>
    %cst_107 = arith.constant dense<0.000000e+00> : vector<128xf32>
    %201 = vector.multi_reduction <add>, %200, %cst_107 [0] : vector<8x128xf32> to vector<128xf32>
    %202 = vector.shape_cast %201 : vector<128xf32> to vector<1x128xf32>
    %cst_108 = arith.constant 8.000000e+00 : f32
    %203 = vector.broadcast %cst_108 : f32 to vector<1x128xf32>
    %204 = arith.divf %202, %203 : vector<1x128xf32>
    %205 = vector.broadcast %204 : vector<1x128xf32> to vector<8x128xf32>
    %206 = arith.subf %200, %205 : vector<8x128xf32>
    %207 = arith.mulf %206, %206 : vector<8x128xf32>
    %cst_109 = arith.constant dense<0.000000e+00> : vector<128xf32>
    %208 = vector.multi_reduction <add>, %207, %cst_109 [0] : vector<8x128xf32> to vector<128xf32>
    %209 = vector.shape_cast %208 : vector<128xf32> to vector<1x128xf32>
    %cst_110 = arith.constant 8.000000e+00 : f32
    %210 = vector.broadcast %cst_110 : f32 to vector<1x128xf32>
    %211 = arith.divf %209, %210 : vector<1x128xf32>
    %212 = vector.broadcast %204 : vector<1x128xf32> to vector<8x128xf32>
    %213 = arith.subf %200, %212 : vector<8x128xf32>
    %cst_111 = arith.constant 9.99999996E-13 : f32
    %214 = vector.broadcast %cst_111 : f32 to vector<1x128xf32>
    %215 = arith.addf %211, %214 : vector<1x128xf32>
    %216 = math.rsqrt %215 : vector<1x128xf32>
    %217 = vector.broadcast %216 : vector<1x128xf32> to vector<8x128xf32>
    %218 = arith.mulf %213, %217 : vector<8x128xf32>
    %c2_112 = arith.constant 2 : index
    %c0_113 = arith.constant 0 : index
    %c0_114 = arith.constant 0 : index
    %219 = vector.load %arg18[%c2_112, %c0_113, %c0_114] : memref<3x48x128xf32, #tpu.memory_space<vmem>>, vector<1x8x128xf32>
    %220 = vector.shape_cast %219 : vector<1x8x128xf32> to vector<8x128xf32>
    %c0_115 = arith.constant 0 : index
    %c32_116 = arith.constant 32 : index
    %c0_117 = arith.constant 0 : index
    %221 = vector.load %arg18[%c0_115, %c32_116, %c0_117] : memref<3x48x128xf32, #tpu.memory_space<vmem>>, vector<1x8x128xf32>
    %222 = vector.shape_cast %221 : vector<1x8x128xf32> to vector<8x128xf32>
    %c0_118 = arith.constant 0 : index
    %c40_119 = arith.constant 40 : index
    %c0_120 = arith.constant 0 : index
    %223 = vector.load %arg18[%c0_118, %c40_119, %c0_120] : memref<3x48x128xf32, #tpu.memory_space<vmem>>, vector<1x8x128xf32>
    %224 = vector.shape_cast %223 : vector<1x8x128xf32> to vector<8x128xf32>
    %cst_121 = arith.constant dense<0.000000e+00> : vector<128x128xf32>
    %225 = tpu.matmul %222, %220, %cst_121 {dimension_numbers = #tpu.dot_dimension_numbers<[0], [0], [1], [1], [0, 1, 1, 1], [], []>} : vector<8x128xf32>, vector<8x128xf32>, vector<128x128xf32> -> vector<128x128xf32>
    %cst_122 = arith.constant dense<0xFF800000> : vector<128xf32>
    %226 = vector.multi_reduction <maximumf>, %225, %cst_122 [0] : vector<128x128xf32> to vector<128xf32>
    %227 = vector.shape_cast %226 : vector<128xf32> to vector<1x128xf32>
    %228 = vector.broadcast %227 : vector<1x128xf32> to vector<128x128xf32>
    %229 = arith.subf %225, %228 : vector<128x128xf32>
    %230 = math.exp %229 : vector<128x128xf32>
    %cst_123 = arith.constant dense<0.000000e+00> : vector<128xf32>
    %231 = vector.multi_reduction <add>, %230, %cst_123 [0] : vector<128x128xf32> to vector<128xf32>
    %232 = vector.shape_cast %231 : vector<128xf32> to vector<1x128xf32>
    %cst_124 = arith.constant dense<0.000000e+00> : vector<8x128xf32>
    %233 = tpu.matmul %224, %230, %cst_124 {dimension_numbers = #tpu.dot_dimension_numbers<[1], [0], [0], [1], [0, 0, 1, 1], [], []>} : vector<8x128xf32>, vector<128x128xf32>, vector<8x128xf32> -> vector<8x128xf32>
    %234 = tpu.reciprocal %232 {approx = true} : vector<1x128xf32> -> vector<1x128xf32>
    %235 = vector.broadcast %234 : vector<1x128xf32> to vector<8x128xf32>
    %236 = arith.mulf %233, %235 : vector<8x128xf32>
    %cst_125 = arith.constant 5.000000e-01 : f32
    %237 = vector.broadcast %cst_125 : f32 to vector<8x128xf32>
    %238 = arith.mulf %237, %14 : vector<8x128xf32>
    %239 = arith.addf %236, %238 : vector<8x128xf32>
    %cst_126 = arith.constant dense<0.000000e+00> : vector<128xf32>
    %240 = vector.multi_reduction <add>, %239, %cst_126 [0] : vector<8x128xf32> to vector<128xf32>
    %241 = vector.shape_cast %240 : vector<128xf32> to vector<1x128xf32>
    %cst_127 = arith.constant 8.000000e+00 : f32
    %242 = vector.broadcast %cst_127 : f32 to vector<1x128xf32>
    %243 = arith.divf %241, %242 : vector<1x128xf32>
    %244 = vector.broadcast %243 : vector<1x128xf32> to vector<8x128xf32>
    %245 = arith.subf %239, %244 : vector<8x128xf32>
    %246 = arith.mulf %245, %245 : vector<8x128xf32>
    %cst_128 = arith.constant dense<0.000000e+00> : vector<128xf32>
    %247 = vector.multi_reduction <add>, %246, %cst_128 [0] : vector<8x128xf32> to vector<128xf32>
    %248 = vector.shape_cast %247 : vector<128xf32> to vector<1x128xf32>
    %cst_129 = arith.constant 8.000000e+00 : f32
    %249 = vector.broadcast %cst_129 : f32 to vector<1x128xf32>
    %250 = arith.divf %248, %249 : vector<1x128xf32>
    %251 = vector.broadcast %243 : vector<1x128xf32> to vector<8x128xf32>
    %252 = arith.subf %239, %251 : vector<8x128xf32>
    %cst_130 = arith.constant 9.99999996E-13 : f32
    %253 = vector.broadcast %cst_130 : f32 to vector<1x128xf32>
    %254 = arith.addf %250, %253 : vector<1x128xf32>
    %255 = math.rsqrt %254 : vector<1x128xf32>
    %256 = vector.broadcast %255 : vector<1x128xf32> to vector<8x128xf32>
    %257 = arith.mulf %252, %256 : vector<8x128xf32>
    %c2_131 = arith.constant 2 : index
    %c8_132 = arith.constant 8 : index
    %c0_133 = arith.constant 0 : index
    %258 = vector.load %arg18[%c2_131, %c8_132, %c0_133] : memref<3x48x128xf32, #tpu.memory_space<vmem>>, vector<1x8x128xf32>
    %259 = vector.shape_cast %258 : vector<1x8x128xf32> to vector<8x128xf32>
    %c1_134 = arith.constant 1 : index
    %c32_135 = arith.constant 32 : index
    %c0_136 = arith.constant 0 : index
    %260 = vector.load %arg18[%c1_134, %c32_135, %c0_136] : memref<3x48x128xf32, #tpu.memory_space<vmem>>, vector<1x8x128xf32>
    %261 = vector.shape_cast %260 : vector<1x8x128xf32> to vector<8x128xf32>
    %c1_137 = arith.constant 1 : index
    %c40_138 = arith.constant 40 : index
    %c0_139 = arith.constant 0 : index
    %262 = vector.load %arg18[%c1_137, %c40_138, %c0_139] : memref<3x48x128xf32, #tpu.memory_space<vmem>>, vector<1x8x128xf32>
    %263 = vector.shape_cast %262 : vector<1x8x128xf32> to vector<8x128xf32>
    %cst_140 = arith.constant dense<0.000000e+00> : vector<128x128xf32>
    %264 = tpu.matmul %261, %259, %cst_140 {dimension_numbers = #tpu.dot_dimension_numbers<[0], [0], [1], [1], [0, 1, 1, 1], [], []>} : vector<8x128xf32>, vector<8x128xf32>, vector<128x128xf32> -> vector<128x128xf32>
    %cst_141 = arith.constant dense<0xFF800000> : vector<128xf32>
    %265 = vector.multi_reduction <maximumf>, %264, %cst_141 [0] : vector<128x128xf32> to vector<128xf32>
    %266 = vector.shape_cast %265 : vector<128xf32> to vector<1x128xf32>
    %267 = vector.broadcast %266 : vector<1x128xf32> to vector<128x128xf32>
    %268 = arith.subf %264, %267 : vector<128x128xf32>
    %269 = math.exp %268 : vector<128x128xf32>
    %cst_142 = arith.constant dense<0.000000e+00> : vector<128xf32>
    %270 = vector.multi_reduction <add>, %269, %cst_142 [0] : vector<128x128xf32> to vector<128xf32>
    %271 = vector.shape_cast %270 : vector<128xf32> to vector<1x128xf32>
    %cst_143 = arith.constant dense<0.000000e+00> : vector<8x128xf32>
    %272 = tpu.matmul %263, %269, %cst_143 {dimension_numbers = #tpu.dot_dimension_numbers<[1], [0], [0], [1], [0, 0, 1, 1], [], []>} : vector<8x128xf32>, vector<128x128xf32>, vector<8x128xf32> -> vector<8x128xf32>
    %273 = tpu.reciprocal %271 {approx = true} : vector<1x128xf32> -> vector<1x128xf32>
    %274 = vector.broadcast %273 : vector<1x128xf32> to vector<8x128xf32>
    %275 = arith.mulf %272, %274 : vector<8x128xf32>
    %cst_144 = arith.constant 5.000000e-01 : f32
    %276 = vector.broadcast %cst_144 : f32 to vector<8x128xf32>
    %277 = arith.mulf %276, %35 : vector<8x128xf32>
    %278 = arith.addf %275, %277 : vector<8x128xf32>
    %cst_145 = arith.constant dense<0.000000e+00> : vector<128xf32>
    %279 = vector.multi_reduction <add>, %278, %cst_145 [0] : vector<8x128xf32> to vector<128xf32>
    %280 = vector.shape_cast %279 : vector<128xf32> to vector<1x128xf32>
    %cst_146 = arith.constant 8.000000e+00 : f32
    %281 = vector.broadcast %cst_146 : f32 to vector<1x128xf32>
    %282 = arith.divf %280, %281 : vector<1x128xf32>
    %283 = vector.broadcast %282 : vector<1x128xf32> to vector<8x128xf32>
    %284 = arith.subf %278, %283 : vector<8x128xf32>
    %285 = arith.mulf %284, %284 : vector<8x128xf32>
    %cst_147 = arith.constant dense<0.000000e+00> : vector<128xf32>
    %286 = vector.multi_reduction <add>, %285, %cst_147 [0] : vector<8x128xf32> to vector<128xf32>
    %287 = vector.shape_cast %286 : vector<128xf32> to vector<1x128xf32>
    %cst_148 = arith.constant 8.000000e+00 : f32
    %288 = vector.broadcast %cst_148 : f32 to vector<1x128xf32>
    %289 = arith.divf %287, %288 : vector<1x128xf32>
    %290 = vector.broadcast %282 : vector<1x128xf32> to vector<8x128xf32>
    %291 = arith.subf %278, %290 : vector<8x128xf32>
    %cst_149 = arith.constant 9.99999996E-13 : f32
    %292 = vector.broadcast %cst_149 : f32 to vector<1x128xf32>
    %293 = arith.addf %289, %292 : vector<1x128xf32>
    %294 = math.rsqrt %293 : vector<1x128xf32>
    %295 = vector.broadcast %294 : vector<1x128xf32> to vector<8x128xf32>
    %296 = arith.mulf %291, %295 : vector<8x128xf32>
    %297 = vector.extract_strided_slice %101 {offsets = [0, 0], sizes = [1, 128], strides = [1, 1]} : vector<8x128xf32> to vector<1x128xf32>
    %298 = vector.extract_strided_slice %101 {offsets = [1, 0], sizes = [1, 128], strides = [1, 1]} : vector<8x128xf32> to vector<1x128xf32>
    %299 = vector.extract_strided_slice %101 {offsets = [2, 0], sizes = [1, 128], strides = [1, 1]} : vector<8x128xf32> to vector<1x128xf32>
    %300 = vector.extract_strided_slice %101 {offsets = [3, 0], sizes = [1, 128], strides = [1, 1]} : vector<8x128xf32> to vector<1x128xf32>
    %301 = vector.extract_strided_slice %101 {offsets = [4, 0], sizes = [1, 128], strides = [1, 1]} : vector<8x128xf32> to vector<1x128xf32>
    %302 = vector.extract_strided_slice %101 {offsets = [5, 0], sizes = [1, 128], strides = [1, 1]} : vector<8x128xf32> to vector<1x128xf32>
    %303 = vector.extract_strided_slice %101 {offsets = [6, 0], sizes = [1, 128], strides = [1, 1]} : vector<8x128xf32> to vector<1x128xf32>
    %304 = vector.extract_strided_slice %101 {offsets = [7, 0], sizes = [1, 128], strides = [1, 1]} : vector<8x128xf32> to vector<1x128xf32>
    %305 = tpu.concatenate %297, %298, %299, %300, %301, %302, %303, %304 in 1 : vector<1x128xf32>, vector<1x128xf32>, vector<1x128xf32>, vector<1x128xf32>, vector<1x128xf32>, vector<1x128xf32>, vector<1x128xf32>, vector<1x128xf32> -> vector<1x1024xf32>
    %306 = vector.extract_strided_slice %140 {offsets = [0, 0], sizes = [1, 128], strides = [1, 1]} : vector<8x128xf32> to vector<1x128xf32>
    %307 = vector.extract_strided_slice %140 {offsets = [1, 0], sizes = [1, 128], strides = [1, 1]} : vector<8x128xf32> to vector<1x128xf32>
    %308 = vector.extract_strided_slice %140 {offsets = [2, 0], sizes = [1, 128], strides = [1, 1]} : vector<8x128xf32> to vector<1x128xf32>
    %309 = vector.extract_strided_slice %140 {offsets = [3, 0], sizes = [1, 128], strides = [1, 1]} : vector<8x128xf32> to vector<1x128xf32>
    %310 = vector.extract_strided_slice %140 {offsets = [4, 0], sizes = [1, 128], strides = [1, 1]} : vector<8x128xf32> to vector<1x128xf32>
    %311 = vector.extract_strided_slice %140 {offsets = [5, 0], sizes = [1, 128], strides = [1, 1]} : vector<8x128xf32> to vector<1x128xf32>
    %312 = vector.extract_strided_slice %140 {offsets = [6, 0], sizes = [1, 128], strides = [1, 1]} : vector<8x128xf32> to vector<1x128xf32>
    %313 = vector.extract_strided_slice %140 {offsets = [7, 0], sizes = [1, 128], strides = [1, 1]} : vector<8x128xf32> to vector<1x128xf32>
    %314 = tpu.concatenate %306, %307, %308, %309, %310, %311, %312, %313 in 1 : vector<1x128xf32>, vector<1x128xf32>, vector<1x128xf32>, vector<1x128xf32>, vector<1x128xf32>, vector<1x128xf32>, vector<1x128xf32>, vector<1x128xf32> -> vector<1x1024xf32>
    %315 = vector.extract_strided_slice %179 {offsets = [0, 0], sizes = [1, 128], strides = [1, 1]} : vector<8x128xf32> to vector<1x128xf32>
    %316 = vector.extract_strided_slice %179 {offsets = [1, 0], sizes = [1, 128], strides = [1, 1]} : vector<8x128xf32> to vector<1x128xf32>
    %317 = vector.extract_strided_slice %179 {offsets = [2, 0], sizes = [1, 128], strides = [1, 1]} : vector<8x128xf32> to vector<1x128xf32>
    %318 = vector.extract_strided_slice %179 {offsets = [3, 0], sizes = [1, 128], strides = [1, 1]} : vector<8x128xf32> to vector<1x128xf32>
    %319 = vector.extract_strided_slice %179 {offsets = [4, 0], sizes = [1, 128], strides = [1, 1]} : vector<8x128xf32> to vector<1x128xf32>
    %320 = vector.extract_strided_slice %179 {offsets = [5, 0], sizes = [1, 128], strides = [1, 1]} : vector<8x128xf32> to vector<1x128xf32>
    %321 = vector.extract_strided_slice %179 {offsets = [6, 0], sizes = [1, 128], strides = [1, 1]} : vector<8x128xf32> to vector<1x128xf32>
    %322 = vector.extract_strided_slice %179 {offsets = [7, 0], sizes = [1, 128], strides = [1, 1]} : vector<8x128xf32> to vector<1x128xf32>
    %323 = tpu.concatenate %315, %316, %317, %318, %319, %320, %321, %322 in 1 : vector<1x128xf32>, vector<1x128xf32>, vector<1x128xf32>, vector<1x128xf32>, vector<1x128xf32>, vector<1x128xf32>, vector<1x128xf32>, vector<1x128xf32> -> vector<1x1024xf32>
    %324 = vector.extract_strided_slice %218 {offsets = [0, 0], sizes = [1, 128], strides = [1, 1]} : vector<8x128xf32> to vector<1x128xf32>
    %325 = vector.extract_strided_slice %218 {offsets = [1, 0], sizes = [1, 128], strides = [1, 1]} : vector<8x128xf32> to vector<1x128xf32>
    %326 = vector.extract_strided_slice %218 {offsets = [2, 0], sizes = [1, 128], strides = [1, 1]} : vector<8x128xf32> to vector<1x128xf32>
    %327 = vector.extract_strided_slice %218 {offsets = [3, 0], sizes = [1, 128], strides = [1, 1]} : vector<8x128xf32> to vector<1x128xf32>
    %328 = vector.extract_strided_slice %218 {offsets = [4, 0], sizes = [1, 128], strides = [1, 1]} : vector<8x128xf32> to vector<1x128xf32>
    %329 = vector.extract_strided_slice %218 {offsets = [5, 0], sizes = [1, 128], strides = [1, 1]} : vector<8x128xf32> to vector<1x128xf32>
    %330 = vector.extract_strided_slice %218 {offsets = [6, 0], sizes = [1, 128], strides = [1, 1]} : vector<8x128xf32> to vector<1x128xf32>
    %331 = vector.extract_strided_slice %218 {offsets = [7, 0], sizes = [1, 128], strides = [1, 1]} : vector<8x128xf32> to vector<1x128xf32>
    %332 = tpu.concatenate %324, %325, %326, %327, %328, %329, %330, %331 in 1 : vector<1x128xf32>, vector<1x128xf32>, vector<1x128xf32>, vector<1x128xf32>, vector<1x128xf32>, vector<1x128xf32>, vector<1x128xf32>, vector<1x128xf32> -> vector<1x1024xf32>
    %333 = vector.extract_strided_slice %257 {offsets = [0, 0], sizes = [1, 128], strides = [1, 1]} : vector<8x128xf32> to vector<1x128xf32>
    %334 = vector.extract_strided_slice %257 {offsets = [1, 0], sizes = [1, 128], strides = [1, 1]} : vector<8x128xf32> to vector<1x128xf32>
    %335 = vector.extract_strided_slice %257 {offsets = [2, 0], sizes = [1, 128], strides = [1, 1]} : vector<8x128xf32> to vector<1x128xf32>
    %336 = vector.extract_strided_slice %257 {offsets = [3, 0], sizes = [1, 128], strides = [1, 1]} : vector<8x128xf32> to vector<1x128xf32>
    %337 = vector.extract_strided_slice %257 {offsets = [4, 0], sizes = [1, 128], strides = [1, 1]} : vector<8x128xf32> to vector<1x128xf32>
    %338 = vector.extract_strided_slice %257 {offsets = [5, 0], sizes = [1, 128], strides = [1, 1]} : vector<8x128xf32> to vector<1x128xf32>
    %339 = vector.extract_strided_slice %257 {offsets = [6, 0], sizes = [1, 128], strides = [1, 1]} : vector<8x128xf32> to vector<1x128xf32>
    %340 = vector.extract_strided_slice %257 {offsets = [7, 0], sizes = [1, 128], strides = [1, 1]} : vector<8x128xf32> to vector<1x128xf32>
    %341 = tpu.concatenate %333, %334, %335, %336, %337, %338, %339, %340 in 1 : vector<1x128xf32>, vector<1x128xf32>, vector<1x128xf32>, vector<1x128xf32>, vector<1x128xf32>, vector<1x128xf32>, vector<1x128xf32>, vector<1x128xf32> -> vector<1x1024xf32>
    %342 = vector.extract_strided_slice %296 {offsets = [0, 0], sizes = [1, 128], strides = [1, 1]} : vector<8x128xf32> to vector<1x128xf32>
    %343 = vector.extract_strided_slice %296 {offsets = [1, 0], sizes = [1, 128], strides = [1, 1]} : vector<8x128xf32> to vector<1x128xf32>
    %344 = vector.extract_strided_slice %296 {offsets = [2, 0], sizes = [1, 128], strides = [1, 1]} : vector<8x128xf32> to vector<1x128xf32>
    %345 = vector.extract_strided_slice %296 {offsets = [3, 0], sizes = [1, 128], strides = [1, 1]} : vector<8x128xf32> to vector<1x128xf32>
    %346 = vector.extract_strided_slice %296 {offsets = [4, 0], sizes = [1, 128], strides = [1, 1]} : vector<8x128xf32> to vector<1x128xf32>
    %347 = vector.extract_strided_slice %296 {offsets = [5, 0], sizes = [1, 128], strides = [1, 1]} : vector<8x128xf32> to vector<1x128xf32>
    %348 = vector.extract_strided_slice %296 {offsets = [6, 0], sizes = [1, 128], strides = [1, 1]} : vector<8x128xf32> to vector<1x128xf32>
    %349 = vector.extract_strided_slice %296 {offsets = [7, 0], sizes = [1, 128], strides = [1, 1]} : vector<8x128xf32> to vector<1x128xf32>
    %350 = tpu.concatenate %342, %343, %344, %345, %346, %347, %348, %349 in 1 : vector<1x128xf32>, vector<1x128xf32>, vector<1x128xf32>, vector<1x128xf32>, vector<1x128xf32>, vector<1x128xf32>, vector<1x128xf32>, vector<1x128xf32> -> vector<1x1024xf32>
    %351 = vector.shape_cast %305 : vector<1x1024xf32> to vector<1x1x1024xf32>
    %352 = vector.shape_cast %314 : vector<1x1024xf32> to vector<1x1x1024xf32>
    %353 = vector.shape_cast %323 : vector<1x1024xf32> to vector<1x1x1024xf32>
    %354 = vector.shape_cast %332 : vector<1x1024xf32> to vector<1x1x1024xf32>
    %355 = vector.shape_cast %341 : vector<1x1024xf32> to vector<1x1x1024xf32>
    %356 = vector.shape_cast %350 : vector<1x1024xf32> to vector<1x1x1024xf32>
    %357 = tpu.concatenate %351, %352, %353, %354, %355, %356 in 0 : vector<1x1x1024xf32>, vector<1x1x1024xf32>, vector<1x1x1024xf32>, vector<1x1x1024xf32>, vector<1x1x1024xf32>, vector<1x1x1024xf32> -> vector<6x1x1024xf32>
    %c0_150 = arith.constant 0 : index
    %c0_151 = arith.constant 0 : index
    %c0_152 = arith.constant 0 : index
    %358 = vector.load %arg11[%c0_150, %c0_151, %c0_152] : memref<6x1024x32xf32, #tpu.memory_space<vmem>>, vector<6x1024x32xf32>
    "tpu.trace_start"() <{level = 10 : i32, message = "tbf,tfr->tbr"}> : () -> ()
    %cst_153 = arith.constant dense<0.000000e+00> : vector<6x1x32xf32>
    %359 = tpu.matmul %357, %358, %cst_153 {dimension_numbers = #tpu.dot_dimension_numbers<[2], [1], [1], [2], [0, 0, 0, 1, 1, 2], [0], [0]>} : vector<6x1x1024xf32>, vector<6x1024x32xf32>, vector<6x1x32xf32> -> vector<6x1x32xf32>
    "tpu.trace_stop"() : () -> ()
    %c0_154 = arith.constant 0 : index
    %c0_155 = arith.constant 0 : index
    %c0_156 = arith.constant 0 : index
    %360 = vector.load %arg12[%c0_154, %c0_155, %c0_156] : memref<6x1x32xf32, #tpu.memory_space<vmem>>, vector<6x1x32xf32>
    %361 = arith.addf %359, %360 : vector<6x1x32xf32>
    %362 = arith.negf %361 : vector<6x1x32xf32>
    %363 = math.exp %362 : vector<6x1x32xf32>
    %cst_157 = arith.constant 1.000000e+00 : f32
    %364 = vector.broadcast %cst_157 : f32 to vector<6x1x32xf32>
    %365 = arith.addf %364, %363 : vector<6x1x32xf32>
    %366 = arith.divf %364, %365 : vector<6x1x32xf32>
    %367 = arith.mulf %361, %366 : vector<6x1x32xf32>
    %368 = arith.negf %367 : vector<6x1x32xf32>
    %369 = math.exp %368 : vector<6x1x32xf32>
    %cst_158 = arith.constant 1.000000e+00 : f32
    %370 = vector.broadcast %cst_158 : f32 to vector<6x1x32xf32>
    %371 = arith.addf %370, %369 : vector<6x1x32xf32>
    %372 = arith.divf %370, %371 : vector<6x1x32xf32>
    %373 = arith.mulf %367, %372 : vector<6x1x32xf32>
    %c0_159 = arith.constant 0 : index
    %c0_160 = arith.constant 0 : index
    %c0_161 = arith.constant 0 : index
    %374 = vector.load %arg13[%c0_159, %c0_160, %c0_161] : memref<6x32x16xf32, #tpu.memory_space<vmem>>, vector<6x32x16xf32>
    "tpu.trace_start"() <{level = 10 : i32, message = "tbr,trk->tbk"}> : () -> ()
    %cst_162 = arith.constant dense<0.000000e+00> : vector<6x1x16xf32>
    %375 = tpu.matmul %373, %374, %cst_162 {dimension_numbers = #tpu.dot_dimension_numbers<[2], [1], [1], [2], [0, 0, 0, 1, 1, 2], [0], [0]>} : vector<6x1x32xf32>, vector<6x32x16xf32>, vector<6x1x16xf32> -> vector<6x1x16xf32>
    "tpu.trace_stop"() : () -> ()
    %cst_163 = arith.constant dense<0.000000e+00> : vector<1x16xf32>
    %376 = vector.multi_reduction <add>, %375, %cst_163 [0] : vector<6x1x16xf32> to vector<1x16xf32>
    %c0_164 = arith.constant 0 : index
    %c0_165 = arith.constant 0 : index
    %377 = vector.load %arg14[%c0_164, %c0_165] : memref<1x16xf32, #tpu.memory_space<vmem>>, vector<1x16xf32>
    %378 = arith.addf %376, %377 : vector<1x16xf32>
    %cst_166 = arith.constant 0.000000e+00 : f32
    %379 = vector.broadcast %cst_166 : f32 to vector<1x16xf32>
    %380 = arith.cmpf olt, %378, %379 : vector<1x16xf32>
    %cst_167 = arith.constant 1.000000e+00 : f32
    %381 = vector.broadcast %cst_167 : f32 to vector<1x16xf32>
    %382 = arith.cmpf ogt, %378, %381 : vector<1x16xf32>
    %cst_168 = arith.constant 3.14159274 : f32
    %383 = vector.broadcast %cst_168 : f32 to vector<1x16xf32>
    %384 = arith.mulf %383, %378 : vector<1x16xf32>
    %385 = math.cos %384 : vector<1x16xf32>
    %cst_169 = arith.constant 1.000000e+00 : f32
    %386 = vector.broadcast %cst_169 : f32 to vector<1x16xf32>
    %387 = arith.subf %386, %385 : vector<1x16xf32>
    %cst_170 = arith.constant 5.000000e-01 : f32
    %388 = vector.broadcast %cst_170 : f32 to vector<1x16xf32>
    %389 = arith.mulf %387, %388 : vector<1x16xf32>
    %cst_171 = arith.constant 1.000000e+00 : f32
    %390 = vector.broadcast %cst_171 : f32 to vector<1x16xf32>
    %391 = arith.select %382, %390, %389 : vector<1x16xi1>, vector<1x16xf32>
    %cst_172 = arith.constant 0.000000e+00 : f32
    %392 = vector.broadcast %cst_172 : f32 to vector<1x16xf32>
    %393 = arith.select %380, %392, %391 : vector<1x16xi1>, vector<1x16xf32>
    %c0_173 = arith.constant 0 : index
    %c0_174 = arith.constant 0 : index
    %394 = vector.load %arg15[%c0_173, %c0_174] : memref<16x2xf32, #tpu.memory_space<vmem>>, vector<16x2xf32>
    %cst_175 = arith.constant dense<0.000000e+00> : vector<1x2xf32>
    %395 = tpu.matmul %393, %394, %cst_175 {dimension_numbers = #tpu.dot_dimension_numbers<[1], [0], [0], [1], [0, 0, 1, 1], [], []>} : vector<1x16xf32>, vector<16x2xf32>, vector<1x2xf32> -> vector<1x2xf32>
    %c0_176 = arith.constant 0 : index
    %c0_177 = arith.constant 0 : index
    %396 = vector.load %arg16[%c0_176, %c0_177] : memref<1x2xf32, #tpu.memory_space<vmem>>, vector<1x2xf32>
    %397 = arith.addf %395, %396 : vector<1x2xf32>
    %c0_178 = arith.constant 0 : index
    %c0_179 = arith.constant 0 : index
    %c0_180 = arith.constant 0 : index
    %398 = vector.load %arg17[%c0_178, %c0_179, %c0_180] : memref<1x1x2xf32, #tpu.memory_space<vmem>>, vector<1x1x2xf32>
    %399 = vector.shape_cast %398 : vector<1x1x2xf32> to vector<1x2xf32>
    %400 = vector.shape_cast %397 : vector<1x2xf32> to vector<1x1x2xf32>
    tpu.vector_store %arg17[%c0_178, %c0_179, %c0_180], %400 {strides = array<i32>} : memref<1x1x2xf32, #tpu.memory_space<vmem>>, vector<1x1x2xf32>,
    return
  }
  func.func @transform_0(%arg0: i32) -> (i32, i32, i32) {
    %c0_i32 = arith.constant 0 : i32
    %c0_i32_0 = arith.constant 0 : i32
    %c0_i32_1 = arith.constant 0 : i32
    return %arg0, %c0_i32, %c0_i32_0 : i32, i32, i32
  }
  func.func @transform_1(%arg0: i32) -> (i32, i32, i32) {
    %c0_i32 = arith.constant 0 : i32
    %c0_i32_0 = arith.constant 0 : i32
    %c0_i32_1 = arith.constant 0 : i32
    return %arg0, %c0_i32, %c0_i32_0 : i32, i32, i32
  }
  func.func @transform_2(%arg0: i32) -> (i32, i32, i32) {
    %c0_i32 = arith.constant 0 : i32
    %c0_i32_0 = arith.constant 0 : i32
    %c0_i32_1 = arith.constant 0 : i32
    return %arg0, %c0_i32, %c0_i32_0 : i32, i32, i32
  }
  func.func @transform_3(%arg0: i32) -> (i32, i32) {
    %c0_i32 = arith.constant 0 : i32
    %c0_i32_0 = arith.constant 0 : i32
    %c0_i32_1 = arith.constant 0 : i32
    return %c0_i32, %c0_i32_0 : i32, i32
  }
  func.func @transform_4(%arg0: i32) -> (i32, i32) {
    %c0_i32 = arith.constant 0 : i32
    %c0_i32_0 = arith.constant 0 : i32
    %c0_i32_1 = arith.constant 0 : i32
    return %c0_i32, %c0_i32_0 : i32, i32
  }
  func.func @transform_5(%arg0: i32) -> (i32, i32) {
    %c0_i32 = arith.constant 0 : i32
    %c0_i32_0 = arith.constant 0 : i32
    %c0_i32_1 = arith.constant 0 : i32
    return %c0_i32, %c0_i32_0 : i32, i32
  }
  func.func @transform_6(%arg0: i32) -> (i32, i32) {
    %c0_i32 = arith.constant 0 : i32
    %c0_i32_0 = arith.constant 0 : i32
    %c0_i32_1 = arith.constant 0 : i32
    return %c0_i32, %c0_i32_0 : i32, i32
  }
  func.func @transform_7(%arg0: i32) -> (i32, i32) {
    %c0_i32 = arith.constant 0 : i32
    %c0_i32_0 = arith.constant 0 : i32
    %c0_i32_1 = arith.constant 0 : i32
    return %c0_i32, %c0_i32_0 : i32, i32
  }
  func.func @transform_8(%arg0: i32) -> (i32, i32) {
    %c0_i32 = arith.constant 0 : i32
    %c0_i32_0 = arith.constant 0 : i32
    %c0_i32_1 = arith.constant 0 : i32
    return %c0_i32, %c0_i32_0 : i32, i32
  }
  func.func @transform_9(%arg0: i32) -> (i32, i32, i32) {
    %c0_i32 = arith.constant 0 : i32
    %c0_i32_0 = arith.constant 0 : i32
    %c0_i32_1 = arith.constant 0 : i32
    %c0_i32_2 = arith.constant 0 : i32
    return %c0_i32, %c0_i32_0, %c0_i32_1 : i32, i32, i32
  }
  func.func @transform_10(%arg0: i32) -> (i32, i32, i32) {
    %c0_i32 = arith.constant 0 : i32
    %c0_i32_0 = arith.constant 0 : i32
    %c0_i32_1 = arith.constant 0 : i32
    %c0_i32_2 = arith.constant 0 : i32
    return %c0_i32, %c0_i32_0, %c0_i32_1 : i32, i32, i32
  }
  func.func @transform_11(%arg0: i32) -> (i32, i32, i32) {
    %c0_i32 = arith.constant 0 : i32
    %c0_i32_0 = arith.constant 0 : i32
    %c0_i32_1 = arith.constant 0 : i32
    %c0_i32_2 = arith.constant 0 : i32
    return %c0_i32, %c0_i32_0, %c0_i32_1 : i32, i32, i32
  }
  func.func @transform_12(%arg0: i32) -> (i32, i32, i32) {
    %c0_i32 = arith.constant 0 : i32
    %c0_i32_0 = arith.constant 0 : i32
    %c0_i32_1 = arith.constant 0 : i32
    %c0_i32_2 = arith.constant 0 : i32
    return %c0_i32, %c0_i32_0, %c0_i32_1 : i32, i32, i32
  }
  func.func @transform_13(%arg0: i32) -> (i32, i32) {
    %c0_i32 = arith.constant 0 : i32
    %c0_i32_0 = arith.constant 0 : i32
    %c0_i32_1 = arith.constant 0 : i32
    return %c0_i32, %c0_i32_0 : i32, i32
  }
  func.func @transform_14(%arg0: i32) -> (i32, i32) {
    %c0_i32 = arith.constant 0 : i32
    %c0_i32_0 = arith.constant 0 : i32
    %c0_i32_1 = arith.constant 0 : i32
    return %c0_i32, %c0_i32_0 : i32, i32
  }
  func.func @transform_15(%arg0: i32) -> (i32, i32) {
    %c0_i32 = arith.constant 0 : i32
    %c0_i32_0 = arith.constant 0 : i32
    %c0_i32_1 = arith.constant 0 : i32
    return %c0_i32, %c0_i32_0 : i32, i32
  }
  func.func @transform_16(%arg0: i32) -> (i32, i32, i32) {
    %c0_i32 = arith.constant 0 : i32
    %c0_i32_0 = arith.constant 0 : i32
    %c0_i32_1 = arith.constant 0 : i32
    return %arg0, %c0_i32, %c0_i32_0 : i32, i32, i32
  }
}

</mosaic_0001>

<llo_original>
// kernel: forward.1
$region0: #{forward.1}
  #allocation0 [shape = 'u32[]', space=smem, size = 0x4, offset = 0x4, fixed_abs, tag = 'smem constant byte address 0x4 - core index']
  #allocation1 [shape = 'u32[144,128]{1,0:T(1,128)}', space=vmem, size = 0x12000, scoped, tag = 'internal scratch']
  #allocation2 [shape = 'f32[3,48,128]{2,1,0:T(8,128)}', space=vmem, size = 0x12000, scoped, tag = 'scratch operand']
  %s0 = inlined_call_operand.vmem [shape: f32[2,1,16], index: 0, kind: input, shape index: {}]
  %s1 = inlined_call_operand.vmem [shape: f32[2,1,24], index: 1, kind: input, shape index: {}]
  %s2 = inlined_call_operand.vmem [shape: f32[2,1,32], index: 2, kind: input, shape index: {}]
  %s3 = inlined_call_operand.vmem [shape: f32[16,1024], index: 3, kind: input, shape index: {}]
  %s4 = inlined_call_operand.vmem [shape: f32[1,1024], index: 4, kind: input, shape index: {}]
  %s5 = inlined_call_operand.vmem [shape: f32[24,1024], index: 5, kind: input, shape index: {}]
  %s6 = inlined_call_operand.vmem [shape: f32[1,1024], index: 6, kind: input, shape index: {}]
  %s7 = inlined_call_operand.vmem [shape: f32[32,1024], index: 7, kind: input, shape index: {}]
  %s8 = inlined_call_operand.vmem [shape: f32[1,1024], index: 8, kind: input, shape index: {}]
  %s9 = inlined_call_operand.vmem [shape: f32[3,48,8], index: 9, kind: input, shape index: {}]
  %s10 = inlined_call_operand.vmem [shape: f32[6,1024,32], index: 10, kind: input, shape index: {}]
  %s11 = inlined_call_operand.vmem [shape: f32[6,1,32], index: 11, kind: input, shape index: {}]
  %s12 = inlined_call_operand.vmem [shape: f32[6,32,16], index: 12, kind: input, shape index: {}]
  %s13 = inlined_call_operand.vmem [shape: f32[1,16], index: 13, kind: input, shape index: {}]
  %s14 = inlined_call_operand.vmem [shape: f32[16,2], index: 14, kind: input, shape index: {}]
  %s15 = inlined_call_operand.vmem [shape: f32[1,2], index: 15, kind: input, shape index: {}]
  %s16 = inlined_call_operand.hbm [shape: f32[2,1,2], index: 16, kind: output, shape index: {}]
  %s17 = sld [smem:[#allocation0]]
  $region97: #{forward.1} parent=0
    _
  %s19 = ssub.s32 1, %s17
  %s20 = scalar_select 0, %s19, %s17
  $region1: #{forward.1} parent=0
    #allocation3 [shape = 'u8[1024]{0}', space=vmem, size = 0x400, scoped, tag = 'output window, operand 0']
    #allocation4 [shape = 's32[2]{0}', space=sflag, size = 0x8, scoped, tag = 'scoped memory for forward.1']
    %21 = vsyncpa [#allocation4], 0
    %s22 = scalar_lea.sflag [#allocation4], 1
    %23 = vsyncpa %s22, 0
    loop: start=0, step=1, limit=4
    $region2: #{forward.1} parent=1 // loop_pre_header
      _
    $region3: #{forward.1} parent=1 // loop_header
      %s25 = sphi 0, %s29
      %p26 = scmp.ge.s32.totalorder %s25, 4
      %s35 = sphi 0, %s37
      %s38 = sphi 0, %s35
      %s39 = sphi 0, %s38
      %s55 = sphi 0, %s39
      %s61 = sphi 0, %s63
      %s64 = sphi 0, %s61
      %s65 = sphi 0, %s64
      %s81 = sphi 0, %s65
      %s87 = sphi 0, %s89
      %s90 = sphi 0, %s87
      %s91 = sphi 0, %s90
      %s107 = sphi 0, %s91
      %s111 = sphi 0, %s111
      %s113 = sphi 0, %s111
      %s114 = sphi 0, %s113
      %s128 = sphi 0, %s114
      %s132 = sphi 0, %s132
      %s134 = sphi 0, %s132
      %s135 = sphi 0, %s134
      %s149 = sphi 0, %s135
      %s153 = sphi 0, %s153
      %s155 = sphi 0, %s153
      %s156 = sphi 0, %s155
      %s170 = sphi 0, %s156
      %s174 = sphi 0, %s174
      %s176 = sphi 0, %s174
      %s177 = sphi 0, %s176
      %s191 = sphi 0, %s177
      %s195 = sphi 0, %s195
      %s197 = sphi 0, %s195
      %s198 = sphi 0, %s197
      %s212 = sphi 0, %s198
      %s216 = sphi 0, %s216
      %s218 = sphi 0, %s216
      %s219 = sphi 0, %s218
      %s233 = sphi 0, %s219
      %s237 = sphi 0, %s237
      %s239 = sphi 0, %s237
      %s240 = sphi 0, %s239
      %s254 = sphi 0, %s240
      %s258 = sphi 0, %s258
      %s260 = sphi 0, %s258
      %s261 = sphi 0, %s260
      %s275 = sphi 0, %s261
      %s279 = sphi 0, %s279
      %s281 = sphi 0, %s279
      %s282 = sphi 0, %s281
      %s296 = sphi 0, %s282
      %s300 = sphi 0, %s300
      %s302 = sphi 0, %s300
      %s303 = sphi 0, %s302
      %s317 = sphi 0, %s303
      %s321 = sphi 0, %s321
      %s323 = sphi 0, %s321
      %s324 = sphi 0, %s323
      %s338 = sphi 0, %s324
      %s342 = sphi 0, %s342
      %s344 = sphi 0, %s342
      %s345 = sphi 0, %s344
      %s359 = sphi 0, %s345
      %s363 = sphi 0, %s363
      %s365 = sphi 0, %s363
      %s366 = sphi 0, %s365
      %s380 = sphi 0, %s366
      %s386 = sphi 0, %s388
      %s389 = sphi 0, %s386
      %s390 = sphi 0, %s389
      %s406 = sphi 0, %s390
    $region4: #{forward.1} parent=1 // loop_header_branch
      %28 = sbr.rel (%p26) target = $region8
    $region5: #{forward.1} parent=1 // loop_body
      %s30 = ssub.s32 %s25, 1
      %s31 = ssub.s32 %s25, 2
      %s32 = sadd.s32 %s25, 1
      %s33 = ssub.s32 %s25, %s32
      %p34 = scmp.eq.s32.totalorder %s33, 0
      %s36 = sadd.s32 %s35, 1
      %s37 = scalar_select %p34, %s35, %s36
      %p40 = pneg %p34
      %p41 = scmp.eq.s32.totalorder %s25, 1
      %p42 = por %p40, %p41
      %p43 = scmp.ne.s32.totalorder %s35, %s38
      %p44 = scmp.eq.s32.totalorder %s25, 0
      %p45 = por %p43, %p44
      %p46 = scmp.ne.s32.totalorder %s35, %s38
      %p47 = scmp.eq.s32.totalorder %s30, 1
      %p48 = por %p46, %p47
      %p49 = scmp.ne.s32.totalorder %s38, %s39
      %p50 = scmp.eq.s32.totalorder %s30, 0
      %p51 = por %p49, %p50
      %p52 = scmp.ne.s32.totalorder %s38, %s39
      %p53 = scmp.eq.s32.totalorder %s31, 1
      %p54 = por %p52, %p53
      %p56 = scmp.ne.s32.totalorder %s39, %s55
      %p57 = scmp.eq.s32.totalorder %s31, 0
      %p58 = por %p56, %p57
      %s59 = ssub.s32 %s25, %s32
      %p60 = scmp.eq.s32.totalorder %s59, 0
      %s62 = sadd.s32 %s61, 1
      %s63 = scalar_select %p60, %s61, %s62
      %p66 = pneg %p60
      %p67 = scmp.eq.s32.totalorder %s25, 1
      %p68 = por %p66, %p67
      %p69 = scmp.ne.s32.totalorder %s61, %s64
      %p70 = scmp.eq.s32.totalorder %s25, 0
      %p71 = por %p69, %p70
      %p72 = scmp.ne.s32.totalorder %s61, %s64
      %p73 = scmp.eq.s32.totalorder %s30, 1
      %p74 = por %p72, %p73
      %p75 = scmp.ne.s32.totalorder %s64, %s65
      %p76 = scmp.eq.s32.totalorder %s30, 0
      %p77 = por %p75, %p76
      %p78 = scmp.ne.s32.totalorder %s64, %s65
      %p79 = scmp.eq.s32.totalorder %s31, 1
      %p80 = por %p78, %p79
      %p82 = scmp.ne.s32.totalorder %s65, %s81
      %p83 = scmp.eq.s32.totalorder %s31, 0
      %p84 = por %p82, %p83
      %s85 = ssub.s32 %s25, %s32
      %p86 = scmp.eq.s32.totalorder %s85, 0
      %s88 = sadd.s32 %s87, 1
      %s89 = scalar_select %p86, %s87, %s88
      %p92 = pneg %p86
      %p93 = scmp.eq.s32.totalorder %s25, 1
      %p94 = por %p92, %p93
      %p95 = scmp.ne.s32.totalorder %s87, %s90
      %p96 = scmp.eq.s32.totalorder %s25, 0
      %p97 = por %p95, %p96
      %p98 = scmp.ne.s32.totalorder %s87, %s90
      %p99 = scmp.eq.s32.totalorder %s30, 1
      %p100 = por %p98, %p99
      %p101 = scmp.ne.s32.totalorder %s90, %s91
      %p102 = scmp.eq.s32.totalorder %s30, 0
      %p103 = por %p101, %p102
      %p104 = scmp.ne.s32.totalorder %s90, %s91
      %p105 = scmp.eq.s32.totalorder %s31, 1
      %p106 = por %p104, %p105
      %p108 = scmp.ne.s32.totalorder %s91, %s107
      %p109 = scmp.eq.s32.totalorder %s31, 0
      %p110 = por %p108, %p109
      %s112 = sadd.s32 %s111, 1
      %p115 = scmp.eq.s32.totalorder %s25, 1
      %p116 = scmp.ne.s32.totalorder %s111, %s113
      %p117 = scmp.eq.s32.totalorder %s25, 0
      %p118 = por %p116, %p117
      %p119 = scmp.ne.s32.totalorder %s111, %s113
      %p120 = scmp.eq.s32.totalorder %s30, 1
      %p121 = por %p119, %p120
      %p122 = scmp.ne.s32.totalorder %s113, %s114
      %p123 = scmp.eq.s32.totalorder %s30, 0
      %p124 = por %p122, %p123
      %p125 = scmp.ne.s32.totalorder %s113, %s114
      %p126 = scmp.eq.s32.totalorder %s31, 1
      %p127 = por %p125, %p126
      %p129 = scmp.ne.s32.totalorder %s114, %s128
      %p130 = scmp.eq.s32.totalorder %s31, 0
      %p131 = por %p129, %p130
      %s133 = sadd.s32 %s132, 1
      %p136 = scmp.eq.s32.totalorder %s25, 1
      %p137 = scmp.ne.s32.totalorder %s132, %s134
      %p138 = scmp.eq.s32.totalorder %s25, 0
      %p139 = por %p137, %p138
      %p140 = scmp.ne.s32.totalorder %s132, %s134
      %p141 = scmp.eq.s32.totalorder %s30, 1
      %p142 = por %p140, %p141
      %p143 = scmp.ne.s32.totalorder %s134, %s135
      %p144 = scmp.eq.s32.totalorder %s30, 0
      %p145 = por %p143, %p144
      %p146 = scmp.ne.s32.totalorder %s134, %s135
      %p147 = scmp.eq.s32.totalorder %s31, 1
      %p148 = por %p146, %p147
      %p150 = scmp.ne.s32.totalorder %s135, %s149
      %p151 = scmp.eq.s32.totalorder %s31, 0
      %p152 = por %p150, %p151
      %s154 = sadd.s32 %s153, 1
      %p157 = scmp.eq.s32.totalorder %s25, 1
      %p158 = scmp.ne.s32.totalorder %s153, %s155
      %p159 = scmp.eq.s32.totalorder %s25, 0
      %p160 = por %p158, %p159
      %p161 = scmp.ne.s32.totalorder %s153, %s155
      %p162 = scmp.eq.s32.totalorder %s30, 1
      %p163 = por %p161, %p162
      %p164 = scmp.ne.s32.totalorder %s155, %s156
      %p165 = scmp.eq.s32.totalorder %s30, 0
      %p166 = por %p164, %p165
      %p167 = scmp.ne.s32.totalorder %s155, %s156
      %p168 = scmp.eq.s32.totalorder %s31, 1
      %p169 = por %p167, %p168
      %p171 = scmp.ne.s32.totalorder %s156, %s170
      %p172 = scmp.eq.s32.totalorder %s31, 0
      %p173 = por %p171, %p172
      %s175 = sadd.s32 %s174, 1
      %p178 = scmp.eq.s32.totalorder %s25, 1
      %p179 = scmp.ne.s32.totalorder %s174, %s176
      %p180 = scmp.eq.s32.totalorder %s25, 0
      %p181 = por %p179, %p180
      %p182 = scmp.ne.s32.totalorder %s174, %s176
      %p183 = scmp.eq.s32.totalorder %s30, 1
      %p184 = por %p182, %p183
      %p185 = scmp.ne.s32.totalorder %s176, %s177
      %p186 = scmp.eq.s32.totalorder %s30, 0
      %p187 = por %p185, %p186
      %p188 = scmp.ne.s32.totalorder %s176, %s177
      %p189 = scmp.eq.s32.totalorder %s31, 1
      %p190 = por %p188, %p189
      %p192 = scmp.ne.s32.totalorder %s177, %s191
      %p193 = scmp.eq.s32.totalorder %s31, 0
      %p194 = por %p192, %p193
      %s196 = sadd.s32 %s195, 1
      %p199 = scmp.eq.s32.totalorder %s25, 1
      %p200 = scmp.ne.s32.totalorder %s195, %s197
      %p201 = scmp.eq.s32.totalorder %s25, 0
      %p202 = por %p200, %p201
      %p203 = scmp.ne.s32.totalorder %s195, %s197
      %p204 = scmp.eq.s32.totalorder %s30, 1
      %p205 = por %p203, %p204
      %p206 = scmp.ne.s32.totalorder %s197, %s198
      %p207 = scmp.eq.s32.totalorder %s30, 0
      %p208 = por %p206, %p207
      %p209 = scmp.ne.s32.totalorder %s197, %s198
      %p210 = scmp.eq.s32.totalorder %s31, 1
      %p211 = por %p209, %p210
      %p213 = scmp.ne.s32.totalorder %s198, %s212
      %p214 = scmp.eq.s32.totalorder %s31, 0
      %p215 = por %p213, %p214
      %s217 = sadd.s32 %s216, 1
      %p220 = scmp.eq.s32.totalorder %s25, 1
      %p221 = scmp.ne.s32.totalorder %s216, %s218
      %p222 = scmp.eq.s32.totalorder %s25, 0
      %p223 = por %p221, %p222
      %p224 = scmp.ne.s32.totalorder %s216, %s218
      %p225 = scmp.eq.s32.totalorder %s30, 1
      %p226 = por %p224, %p225
      %p227 = scmp.ne.s32.totalorder %s218, %s219
      %p228 = scmp.eq.s32.totalorder %s30, 0
      %p229 = por %p227, %p228
      %p230 = scmp.ne.s32.totalorder %s218, %s219
      %p231 = scmp.eq.s32.totalorder %s31, 1
      %p232 = por %p230, %p231
      %p234 = scmp.ne.s32.totalorder %s219, %s233
      %p235 = scmp.eq.s32.totalorder %s31, 0
      %p236 = por %p234, %p235
      %s238 = sadd.s32 %s237, 1
      %p241 = scmp.eq.s32.totalorder %s25, 1
      %p242 = scmp.ne.s32.totalorder %s237, %s239
      %p243 = scmp.eq.s32.totalorder %s25, 0
      %p244 = por %p242, %p243
      %p245 = scmp.ne.s32.totalorder %s237, %s239
      %p246 = scmp.eq.s32.totalorder %s30, 1
      %p247 = por %p245, %p246
      %p248 = scmp.ne.s32.totalorder %s239, %s240
      %p249 = scmp.eq.s32.totalorder %s30, 0
      %p250 = por %p248, %p249
      %p251 = scmp.ne.s32.totalorder %s239, %s240
      %p252 = scmp.eq.s32.totalorder %s31, 1
      %p253 = por %p251, %p252
      %p255 = scmp.ne.s32.totalorder %s240, %s254
      %p256 = scmp.eq.s32.totalorder %s31, 0
      %p257 = por %p255, %p256
      %s259 = sadd.s32 %s258, 1
      %p262 = scmp.eq.s32.totalorder %s25, 1
      %p263 = scmp.ne.s32.totalorder %s258, %s260
      %p264 = scmp.eq.s32.totalorder %s25, 0
      %p265 = por %p263, %p264
      %p266 = scmp.ne.s32.totalorder %s258, %s260
      %p267 = scmp.eq.s32.totalorder %s30, 1
      %p268 = por %p266, %p267
      %p269 = scmp.ne.s32.totalorder %s260, %s261
      %p270 = scmp.eq.s32.totalorder %s30, 0
      %p271 = por %p269, %p270
      %p272 = scmp.ne.s32.totalorder %s260, %s261
      %p273 = scmp.eq.s32.totalorder %s31, 1
      %p274 = por %p272, %p273
      %p276 = scmp.ne.s32.totalorder %s261, %s275
      %p277 = scmp.eq.s32.totalorder %s31, 0
      %p278 = por %p276, %p277
      %s280 = sadd.s32 %s279, 1
      %p283 = scmp.eq.s32.totalorder %s25, 1
      %p284 = scmp.ne.s32.totalorder %s279, %s281
      %p285 = scmp.eq.s32.totalorder %s25, 0
      %p286 = por %p284, %p285
      %p287 = scmp.ne.s32.totalorder %s279, %s281
      %p288 = scmp.eq.s32.totalorder %s30, 1
      %p289 = por %p287, %p288
      %p290 = scmp.ne.s32.totalorder %s281, %s282
      %p291 = scmp.eq.s32.totalorder %s30, 0
      %p292 = por %p290, %p291
      %p293 = scmp.ne.s32.totalorder %s281, %s282
      %p294 = scmp.eq.s32.totalorder %s31, 1
      %p295 = por %p293, %p294
      %p297 = scmp.ne.s32.totalorder %s282, %s296
      %p298 = scmp.eq.s32.totalorder %s31, 0
      %p299 = por %p297, %p298
      %s301 = sadd.s32 %s300, 1
      %p304 = scmp.eq.s32.totalorder %s25, 1
      %p305 = scmp.ne.s32.totalorder %s300, %s302
      %p306 = scmp.eq.s32.totalorder %s25, 0
      %p307 = por %p305, %p306
      %p308 = scmp.ne.s32.totalorder %s300, %s302
      %p309 = scmp.eq.s32.totalorder %s30, 1
      %p310 = por %p308, %p309
      %p311 = scmp.ne.s32.totalorder %s302, %s303
      %p312 = scmp.eq.s32.totalorder %s30, 0
      %p313 = por %p311, %p312
      %p314 = scmp.ne.s32.totalorder %s302, %s303
      %p315 = scmp.eq.s32.totalorder %s31, 1
      %p316 = por %p314, %p315
      %p318 = scmp.ne.s32.totalorder %s303, %s317
      %p319 = scmp.eq.s32.totalorder %s31, 0
      %p320 = por %p318, %p319
      %s322 = sadd.s32 %s321, 1
      %p325 = scmp.eq.s32.totalorder %s25, 1
      %p326 = scmp.ne.s32.totalorder %s321, %s323
      %p327 = scmp.eq.s32.totalorder %s25, 0
      %p328 = por %p326, %p327
      %p329 = scmp.ne.s32.totalorder %s321, %s323
      %p330 = scmp.eq.s32.totalorder %s30, 1
      %p331 = por %p329, %p330
      %p332 = scmp.ne.s32.totalorder %s323, %s324
      %p333 = scmp.eq.s32.totalorder %s30, 0
      %p334 = por %p332, %p333
      %p335 = scmp.ne.s32.totalorder %s323, %s324
      %p336 = scmp.eq.s32.totalorder %s31, 1
      %p337 = por %p335, %p336
      %p339 = scmp.ne.s32.totalorder %s324, %s338
      %p340 = scmp.eq.s32.totalorder %s31, 0
      %p341 = por %p339, %p340
      %s343 = sadd.s32 %s342, 1
      %p346 = scmp.eq.s32.totalorder %s25, 1
      %p347 = scmp.ne.s32.totalorder %s342, %s344
      %p348 = scmp.eq.s32.totalorder %s25, 0
      %p349 = por %p347, %p348
      %p350 = scmp.ne.s32.totalorder %s342, %s344
      %p351 = scmp.eq.s32.totalorder %s30, 1
      %p352 = por %p350, %p351
      %p353 = scmp.ne.s32.totalorder %s344, %s345
      %p354 = scmp.eq.s32.totalorder %s30, 0
      %p355 = por %p353, %p354
      %p356 = scmp.ne.s32.totalorder %s344, %s345
      %p357 = scmp.eq.s32.totalorder %s31, 1
      %p358 = por %p356, %p357
      %p360 = scmp.ne.s32.totalorder %s345, %s359
      %p361 = scmp.eq.s32.totalorder %s31, 0
      %p362 = por %p360, %p361
      %s364 = sadd.s32 %s363, 1
      %p367 = scmp.eq.s32.totalorder %s25, 1
      %p368 = scmp.ne.s32.totalorder %s363, %s365
      %p369 = scmp.eq.s32.totalorder %s25, 0
      %p370 = por %p368, %p369
      %p371 = scmp.ne.s32.totalorder %s363, %s365
      %p372 = scmp.eq.s32.totalorder %s30, 1
      %p373 = por %p371, %p372
      %p374 = scmp.ne.s32.totalorder %s365, %s366
      %p375 = scmp.eq.s32.totalorder %s30, 0
      %p376 = por %p374, %p375
      %p377 = scmp.ne.s32.totalorder %s365, %s366
      %p378 = scmp.eq.s32.totalorder %s31, 1
      %p379 = por %p377, %p378
      %p381 = scmp.ne.s32.totalorder %s366, %s380
      %p382 = scmp.eq.s32.totalorder %s31, 0
      %p383 = por %p381, %p382
      %s384 = ssub.s32 %s25, %s32
      %p385 = scmp.eq.s32.totalorder %s384, 0
      %s387 = sadd.s32 %s386, 1
      %s388 = scalar_select %p385, %s386, %s387
      %p391 = pneg %p385
      %p392 = scmp.eq.s32.totalorder %s25, 1
      %p393 = por %p391, %p392
      %p394 = scmp.ne.s32.totalorder %s386, %s389
      %p395 = scmp.eq.s32.totalorder %s25, 0
      %p396 = por %p394, %p395
      %p397 = scmp.ne.s32.totalorder %s386, %s389
      %p398 = scmp.eq.s32.totalorder %s30, 1
      %p399 = por %p397, %p398
      %p400 = scmp.ne.s32.totalorder %s389, %s390
      %p401 = scmp.eq.s32.totalorder %s30, 0
      %p402 = por %p400, %p401
      %p403 = scmp.ne.s32.totalorder %s389, %s390
      %p404 = scmp.eq.s32.totalorder %s31, 1
      %p405 = por %p403, %p404
      %p407 = scmp.ne.s32.totalorder %s390, %s406
      %p408 = scmp.eq.s32.totalorder %s31, 0
      %p409 = por %p407, %p408
      %p410 = scmp.le.s32.totalorder 1, %s25
      %p411 = scmp.lt.s32.totalorder %s25, 3
      %p412 = pnand %p410, %p411
      %p413 = pneg %p412
      // Predicated region
      $region9: #{forward.1} parent=5 // pred_check
        _
      $region10: #{forward.1} parent=5 // pred_check_branch
        %415 = sbr.rel (%p412) target = $region12
      $region11: #{forward.1} parent=5 // pred_region
        %s416 = ssub.s32 %s25, 1
        // Predicated region
        $region13: #{forward.1} parent=11 // pred_check
          %p417 = pneg %p124
        $region14: #{forward.1} parent=11 // pred_check_branch
          %419 = sbr.rel (%p417) target = $region16
        $region15: #{forward.1} parent=11 // pred_region
          _
        $region16: #{forward.1} parent=11 // pred_fallthru
          _
        // Predicated region
        $region17: #{forward.1} parent=11 // pred_check
          %p420 = pneg %p145
        $region18: #{forward.1} parent=11 // pred_check_branch
          %422 = sbr.rel (%p420) target = $region20
        $region19: #{forward.1} parent=11 // pred_region
          _
        $region20: #{forward.1} parent=11 // pred_fallthru
          _
        // Predicated region
        $region21: #{forward.1} parent=11 // pred_check
          %p423 = pneg %p166
        $region22: #{forward.1} parent=11 // pred_check_branch
          %425 = sbr.rel (%p423) target = $region24
        $region23: #{forward.1} parent=11 // pred_region
          _
        $region24: #{forward.1} parent=11 // pred_fallthru
          _
        // Predicated region
        $region25: #{forward.1} parent=11 // pred_check
          %p426 = pneg %p187
        $region26: #{forward.1} parent=11 // pred_check_branch
          %428 = sbr.rel (%p426) target = $region28
        $region27: #{forward.1} parent=11 // pred_region
          _
        $region28: #{forward.1} parent=11 // pred_fallthru
          _
        // Predicated region
        $region29: #{forward.1} parent=11 // pred_check
          %p429 = pneg %p208
        $region30: #{forward.1} parent=11 // pred_check_branch
          %431 = sbr.rel (%p429) target = $region32
        $region31: #{forward.1} parent=11 // pred_region
          _
        $region32: #{forward.1} parent=11 // pred_fallthru
          _
        // Predicated region
        $region33: #{forward.1} parent=11 // pred_check
          %p432 = pneg %p229
        $region34: #{forward.1} parent=11 // pred_check_branch
          %434 = sbr.rel (%p432) target = $region36
        $region35: #{forward.1} parent=11 // pred_region
          _
        $region36: #{forward.1} parent=11 // pred_fallthru
          _
        // Predicated region
        $region37: #{forward.1} parent=11 // pred_check
          %p435 = pneg %p250
        $region38: #{forward.1} parent=11 // pred_check_branch
          %437 = sbr.rel (%p435) target = $region40
        $region39: #{forward.1} parent=11 // pred_region
          _
        $region40: #{forward.1} parent=11 // pred_fallthru
          _
        // Predicated region
        $region41: #{forward.1} parent=11 // pred_check
          %p438 = pneg %p271
        $region42: #{forward.1} parent=11 // pred_check_branch
          %440 = sbr.rel (%p438) target = $region44
        $region43: #{forward.1} parent=11 // pred_region
          _
        $region44: #{forward.1} parent=11 // pred_fallthru
          _
        // Predicated region
        $region45: #{forward.1} parent=11 // pred_check
          %p441 = pneg %p292
        $region46: #{forward.1} parent=11 // pred_check_branch
          %443 = sbr.rel (%p441) target = $region48
        $region47: #{forward.1} parent=11 // pred_region
          _
        $region48: #{forward.1} parent=11 // pred_fallthru
          _
        // Predicated region
        $region49: #{forward.1} parent=11 // pred_check
          %p444 = pneg %p313
        $region50: #{forward.1} parent=11 // pred_check_branch
          %446 = sbr.rel (%p444) target = $region52
        $region51: #{forward.1} parent=11 // pred_region
          _
        $region52: #{forward.1} parent=11 // pred_fallthru
          _
        // Predicated region
        $region53: #{forward.1} parent=11 // pred_check
          %p447 = pneg %p334
        $region54: #{forward.1} parent=11 // pred_check_branch
          %449 = sbr.rel (%p447) target = $region56
        $region55: #{forward.1} parent=11 // pred_region
          _
        $region56: #{forward.1} parent=11 // pred_fallthru
          _
        // Predicated region
        $region57: #{forward.1} parent=11 // pred_check
          %p450 = pneg %p355
        $region58: #{forward.1} parent=11 // pred_check_branch
          %452 = sbr.rel (%p450) target = $region60
        $region59: #{forward.1} parent=11 // pred_region
          _
        $region60: #{forward.1} parent=11 // pred_fallthru
          _
        // Predicated region
        $region61: #{forward.1} parent=11 // pred_check
          %p453 = pneg %p376
        $region62: #{forward.1} parent=11 // pred_check_branch
          %455 = sbr.rel (%p453) target = $region64
        $region63: #{forward.1} parent=11 // pred_region
          _
        $region64: #{forward.1} parent=11 // pred_fallthru
          _
      $region12: #{forward.1} parent=5 // pred_fallthru
        _
      %p456 = scmp.lt.s32.totalorder %s25, 2
      // Predicated region
      $region65: #{forward.1} parent=5 // pred_check
        %p457 = pneg %p456
      $region66: #{forward.1} parent=5 // pred_check_branch
        %459 = sbr.rel (%p457) target = $region68
      $region67: #{forward.1} parent=5 // pred_region
        // Predicated region
        $region69: #{forward.1} parent=67 // pred_check
          %p460 = pneg %p45
        $region70: #{forward.1} parent=67 // pred_check_branch
          %462 = sbr.rel (%p460) target = $region72
        $region71: #{forward.1} parent=67 // pred_region
          %p463 = scmp.lt.s32.totalorder %s25, 1
          %s464 = scalar_select %p463, %s25, 1
          %s465 = scalar_lea.vmem %s0, %s464
        $region72: #{forward.1} parent=67 // pred_fallthru
          _
        // Predicated region
        $region73: #{forward.1} parent=67 // pred_check
          %p466 = pneg %p71
        $region74: #{forward.1} parent=67 // pred_check_branch
          %468 = sbr.rel (%p466) target = $region76
        $region75: #{forward.1} parent=67 // pred_region
          %p469 = scmp.lt.s32.totalorder %s25, 1
          %s470 = scalar_select %p469, %s25, 1
          %s471 = scalar_lea.vmem %s1, %s470
        $region76: #{forward.1} parent=67 // pred_fallthru
          _
        // Predicated region
        $region77: #{forward.1} parent=67 // pred_check
          %p472 = pneg %p97
        $region78: #{forward.1} parent=67 // pred_check_branch
          %474 = sbr.rel (%p472) target = $region80
        $region79: #{forward.1} parent=67 // pred_region
          %p475 = scmp.lt.s32.totalorder %s25, 1
          %s476 = scalar_select %p475, %s25, 1
          %s477 = scalar_lea.vmem %s2, %s476
        $region80: #{forward.1} parent=67 // pred_fallthru
          _
      $region68: #{forward.1} parent=5 // pred_fallthru
        _
      %p478 = scmp.le.s32.totalorder 1, %s25
      %p479 = scmp.lt.s32.totalorder %s25, 3
      %p480 = pnand %p478, %p479
      %p481 = pneg %p480
      // Predicated region
      $region81: #{forward.1} parent=5 // pred_check
        _
      $region82: #{forward.1} parent=5 // pred_check_branch
        %483 = sbr.rel (%p480) target = $region84
      $region83: #{forward.1} parent=5 // pred_region
        %s484 = ssub.s32 %s25, 1
        %p485 = scmp.lt.s32.totalorder %s30, 1
        %s486 = scalar_select %p485, %s30, 1
        %s487 = scalar_lea.vmem %s0, %s486
        %p488 = pneg %p51
        %p489 = pneg %p48
        %p490 = scmp.lt.s32.totalorder %s30, 1
        %s491 = scalar_select %p490, %s30, 1
        %s492 = scalar_lea.vmem %s1, %s491
        %p493 = pneg %p77
        %p494 = pneg %p74
        %p495 = scmp.lt.s32.totalorder %s30, 1
        %s496 = scalar_select %p495, %s30, 1
        %s497 = scalar_lea.vmem %s2, %s496
        %p498 = pneg %p103
        %p499 = pneg %p100
        %p500 = pneg %p124
        %p501 = pneg %p121
        %p502 = pneg %p145
        %p503 = pneg %p142
        %p504 = pneg %p166
        %p505 = pneg %p163
        %p506 = pneg %p187
        %p507 = pneg %p184
        %p508 = pneg %p208
        %p509 = pneg %p205
        %p510 = pneg %p229
        %p511 = pneg %p226
        %p512 = pneg %p250
        %p513 = pneg %p247
        %p514 = pneg %p271
        %p515 = pneg %p268
        %p516 = pneg %p292
        %p517 = pneg %p289
        %p518 = pneg %p313
        %p519 = pneg %p310
        %p520 = pneg %p334
        %p521 = pneg %p331
        %p522 = pneg %p355
        %p523 = pneg %p352
        %p524 = pneg %p376
        %p525 = pneg %p373
        %p526 = pneg %p402
        %p527 = pneg %p399
        %s528 = sand.u32 %s389, 1
        %s529 = scalar_lea.sflag [#allocation4], %s528
        %s530 = sand.u32 %s389, 1
        %s531 = scalar_lea.vmem [#allocation3], %s530
        %p532 = scmp.lt.s32.totalorder %s30, 1
        %s533 = scalar_select %p532, %s30, 1
        %s534 = scalar_lea.vmem %s0, %s533
        %p535 = scmp.lt.s32.totalorder %s30, 1
        %s536 = scalar_select %p535, %s30, 1
        %s537 = scalar_lea.vmem %s1, %s536
        %p538 = scmp.lt.s32.totalorder %s30, 1
        %s539 = scalar_select %p538, %s30, 1
        %s540 = scalar_lea.vmem %s2, %s539
        %v541 = vld [vmem:[%s534] sm:$0x1]
        %v542 = vld [vmem:[%s3] sm:$0xff]
        %v543 = vld [vmem:[%s3 + $0x8] sm:$0xff]
        %v544 = vld [vmem:[%s3 + $0x10] sm:$0xff]
        %v545 = vld [vmem:[%s3 + $0x18] sm:$0xff]
        %v546 = vld [vmem:[%s3 + $0x20] sm:$0xff]
        %v547 = vld [vmem:[%s3 + $0x28] sm:$0xff]
        %v548 = vld [vmem:[%s3 + $0x30] sm:$0xff]
        %v549 = vld [vmem:[%s3 + $0x38] sm:$0xff]
        %v550 = vld [vmem:[%s3 + $0x40] sm:$0xff]
        %v551 = vld [vmem:[%s3 + $0x48] sm:$0xff]
        %v552 = vld [vmem:[%s3 + $0x50] sm:$0xff]
        %v553 = vld [vmem:[%s3 + $0x58] sm:$0xff]
        %v554 = vld [vmem:[%s3 + $0x60] sm:$0xff]
        %v555 = vld [vmem:[%s3 + $0x68] sm:$0xff]
        %v556 = vld [vmem:[%s3 + $0x70] sm:$0xff]
        %v557 = vld [vmem:[%s3 + $0x78] sm:$0xff]
        %v558 = vld [vmem:[%s4] sm:$0xff]
        %v560 = vlaneseq
        %v561 = vshrl.u32 %v560, 7
        %v562 = vsub.s32 0, %v561
        %v563 = vrot.slane %v558, %v562
        %v564 = vlaneseq
        %v565 = vshrl.u32 %v564, 7
        %v566 = vsub.s32 1, %v565
        %v567 = vrot.slane %v558, %v566
        %v568 = vlaneseq
        %v569 = vshrl.u32 %v568, 7
        %v570 = vsub.s32 2, %v569
        %v571 = vrot.slane %v558, %v570
        %v572 = vlaneseq
        %v573 = vshrl.u32 %v572, 7
        %v574 = vsub.s32 3, %v573
        %v575 = vrot.slane %v558, %v574
        %v576 = vlaneseq
        %v577 = vshrl.u32 %v576, 7
        %v578 = vsub.s32 4, %v577
        %v579 = vrot.slane %v558, %v578
        %v580 = vlaneseq
        %v581 = vshrl.u32 %v580, 7
        %v582 = vsub.s32 5, %v581
        %v583 = vrot.slane %v558, %v582
        %v584 = vlaneseq
        %v585 = vshrl.u32 %v584, 7
        %v586 = vsub.s32 6, %v585
        %v587 = vrot.slane %v558, %v586
        %v588 = vlaneseq
        %v589 = vshrl.u32 %v588, 7
        %v590 = vsub.s32 7, %v589
        %v591 = vrot.slane %v558, %v590
        %vm600 = vcmask 130048
        %v602 = vsel %vm600, %v541, 0
        %604 = vmatprep.subr.mxu0 0.0
        %605 = vmatpush1.msra.mxu0 0.0
        %606 = vmatprep.subr.mxu0 0.0
        %607 = vmatpush1.msra.mxu0 0.0
        %608 = vmatprep.subr.mxu0 0.0
        %609 = vmatpush1.msra.mxu0 0.0
        %610 = vmatprep.subr.mxu0 0.0
        %611 = vmatpush1.msra.mxu0 0.0
        %612 = vmatprep.subr.mxu0 0.0
        %613 = vmatpush1.msra.mxu0 0.0
        %614 = vmatprep.subr.mxu0 0.0
        %615 = vmatpush1.msra.mxu0 0.0
        %616 = vmatprep.subr.mxu0 0.0
        %617 = vmatpush1.msra.mxu0 0.0
        %618 = vmatprep.subr.mxu0 0.0
        %619 = vmatpush1.msra.mxu0 0.0
        %620 = vmatprep.subr.mxu0 0.0
        %621 = vmatpush1.msra.mxu0 0.0
        %622 = vmatprep.subr.mxu0 0.0
        %623 = vmatpush1.msra.mxu0 0.0
        %624 = vmatprep.subr.mxu0 0.0
        %625 = vmatpush1.msra.mxu0 0.0
        %626 = vmatprep.subr.mxu0 0.0
        %627 = vmatpush1.msra.mxu0 0.0
        %628 = vmatprep.subr.mxu0 0.0
        %629 = vmatpush1.msra.mxu0 0.0
        %630 = vmatprep.subr.mxu0 0.0
        %631 = vmatpush1.msra.mxu0 0.0
        %632 = vmatprep.subr.mxu0 %v551
        %633 = vmatpush1.msra.mxu0 %v550
        %634 = vmatprep.subr.mxu0 %v543
        %635 = vmatpush1.msra.mxu0 %v542
        %636 = vmatprep.subr.mxu0 0.0
        %637 = vmatpush2.msra.mxu0 0.0
        %638 = vmatprep.subr.mxu0 0.0
        %639 = vmatpush2.msra.mxu0 0.0
        %640 = vmatprep.subr.mxu0 0.0
        %641 = vmatpush2.msra.mxu0 0.0
        %642 = vmatprep.subr.mxu0 0.0
        %643 = vmatpush2.msra.mxu0 0.0
        %644 = vmatprep.subr.mxu0 0.0
        %645 = vmatpush2.msra.mxu0 0.0
        %646 = vmatprep.subr.mxu0 0.0
        %647 = vmatpush2.msra.mxu0 0.0
        %648 = vmatprep.subr.mxu0 0.0
        %649 = vmatpush2.msra.mxu0 0.0
        %650 = vmatprep.subr.mxu0 0.0
        %651 = vmatpush2.msra.mxu0 0.0
        %652 = vmatprep.subr.mxu0 0.0
        %653 = vmatpush2.msra.mxu0 0.0
        %654 = vmatprep.subr.mxu0 0.0
        %655 = vmatpush2.msra.mxu0 0.0
        %656 = vmatprep.subr.mxu0 0.0
        %657 = vmatpush2.msra.mxu0 0.0
        %658 = vmatprep.subr.mxu0 0.0
        %659 = vmatpush2.msra.mxu0 0.0
        %660 = vmatprep.subr.mxu0 0.0
        %661 = vmatpush2.msra.mxu0 0.0
        %662 = vmatprep.subr.mxu0 0.0
        %663 = vmatpush2.msra.mxu0 0.0
        %664 = vmatprep.subr.mxu0 0.0
        %665 = vmatpush2.msra.mxu0 0.0
        %666 = vmatprep.subr.mxu0 0.0
        %667 = vmatpush2.msra.mxu0 0.0
        %668 = vmatprep.mubr.f32.mxu0 0.0
        %669 = vmatmul.mubr.f32.gmra.mxu0 %v602
        %v670 = vpop.f32.mrf.mxu0
        %v671 = vadd.f32 %v563, %v670
        %v672 = vpop.f32.mrf.mxu0
        %v673 = vadd.f32 %v567, %v672
        %674 = vdwg.mxu0
        %675 = vmatprep.subr.mxu0 0.0
        %676 = vmatpush1.msra.mxu0 0.0
        %677 = vmatprep.subr.mxu0 0.0
        %678 = vmatpush1.msra.mxu0 0.0
        %679 = vmatprep.subr.mxu0 0.0
        %680 = vmatpush1.msra.mxu0 0.0
        %681 = vmatprep.subr.mxu0 0.0
        %682 = vmatpush1.msra.mxu0 0.0
        %683 = vmatprep.subr.mxu0 0.0
        %684 = vmatpush1.msra.mxu0 0.0
        %685 = vmatprep.subr.mxu0 0.0
        %686 = vmatpush1.msra.mxu0 0.0
        %687 = vmatprep.subr.mxu0 0.0
        %688 = vmatpush1.msra.mxu0 0.0
        %689 = vmatprep.subr.mxu0 0.0
        %690 = vmatpush1.msra.mxu0 0.0
        %691 = vmatprep.subr.mxu0 0.0
        %692 = vmatpush1.msra.mxu0 0.0
        %693 = vmatprep.subr.mxu0 0.0
        %694 = vmatpush1.msra.mxu0 0.0
        %695 = vmatprep.subr.mxu0 0.0
        %696 = vmatpush1.msra.mxu0 0.0
        %697 = vmatprep.subr.mxu0 0.0
        %698 = vmatpush1.msra.mxu0 0.0
        %699 = vmatprep.subr.mxu0 0.0
        %700 = vmatpush1.msra.mxu0 0.0
        %701 = vmatprep.subr.mxu0 0.0
        %702 = vmatpush1.msra.mxu0 0.0
        %703 = vmatprep.subr.mxu0 %v553
        %704 = vmatpush1.msra.mxu0 %v552
        %705 = vmatprep.subr.mxu0 %v545
        %706 = vmatpush1.msra.mxu0 %v544
        %707 = vmatprep.subr.mxu0 0.0
        %708 = vmatpush2.msra.mxu0 0.0
        %709 = vmatprep.subr.mxu0 0.0
        %710 = vmatpush2.msra.mxu0 0.0
        %711 = vmatprep.subr.mxu0 0.0
        %712 = vmatpush2.msra.mxu0 0.0
        %713 = vmatprep.subr.mxu0 0.0
        %714 = vmatpush2.msra.mxu0 0.0
        %715 = vmatprep.subr.mxu0 0.0
        %716 = vmatpush2.msra.mxu0 0.0
        %717 = vmatprep.subr.mxu0 0.0
        %718 = vmatpush2.msra.mxu0 0.0
        %719 = vmatprep.subr.mxu0 0.0
        %720 = vmatpush2.msra.mxu0 0.0
        %721 = vmatprep.subr.mxu0 0.0
        %722 = vmatpush2.msra.mxu0 0.0
        %723 = vmatprep.subr.mxu0 0.0
        %724 = vmatpush2.msra.mxu0 0.0
        %725 = vmatprep.subr.mxu0 0.0
        %726 = vmatpush2.msra.mxu0 0.0
        %727 = vmatprep.subr.mxu0 0.0
        %728 = vmatpush2.msra.mxu0 0.0
        %729 = vmatprep.subr.mxu0 0.0
        %730 = vmatpush2.msra.mxu0 0.0
        %731 = vmatprep.subr.mxu0 0.0
        %732 = vmatpush2.msra.mxu0 0.0
        %733 = vmatprep.subr.mxu0 0.0
        %734 = vmatpush2.msra.mxu0 0.0
        %735 = vmatprep.subr.mxu0 0.0
        %736 = vmatpush2.msra.mxu0 0.0
        %737 = vmatprep.subr.mxu0 0.0
        %738 = vmatpush2.msra.mxu0 0.0
        %739 = vmatprep.mubr.f32.mxu0 0.0
        %740 = vmatmul.mubr.f32.gmra.mxu0 %v602
        %v741 = vpop.f32.mrf.mxu0
        %v742 = vadd.f32 %v571, %v741
        %v743 = vpop.f32.mrf.mxu0
        %v744 = vadd.f32 %v575, %v743
        %745 = vdwg.mxu0
        %746 = vmatprep.subr.mxu0 0.0
        %747 = vmatpush1.msra.mxu0 0.0
        %748 = vmatprep.subr.mxu0 0.0
        %749 = vmatpush1.msra.mxu0 0.0
        %750 = vmatprep.subr.mxu0 0.0
        %751 = vmatpush1.msra.mxu0 0.0
        %752 = vmatprep.subr.mxu0 0.0
        %753 = vmatpush1.msra.mxu0 0.0
        %754 = vmatprep.subr.mxu0 0.0
        %755 = vmatpush1.msra.mxu0 0.0
        %756 = vmatprep.subr.mxu0 0.0
        %757 = vmatpush1.msra.mxu0 0.0
        %758 = vmatprep.subr.mxu0 0.0
        %759 = vmatpush1.msra.mxu0 0.0
        %760 = vmatprep.subr.mxu0 0.0
        %761 = vmatpush1.msra.mxu0 0.0
        %762 = vmatprep.subr.mxu0 0.0
        %763 = vmatpush1.msra.mxu0 0.0
        %764 = vmatprep.subr.mxu0 0.0
        %765 = vmatpush1.msra.mxu0 0.0
        %766 = vmatprep.subr.mxu0 0.0
        %767 = vmatpush1.msra.mxu0 0.0
        %768 = vmatprep.subr.mxu0 0.0
        %769 = vmatpush1.msra.mxu0 0.0
        %770 = vmatprep.subr.mxu0 0.0
        %771 = vmatpush1.msra.mxu0 0.0
        %772 = vmatprep.subr.mxu0 0.0
        %773 = vmatpush1.msra.mxu0 0.0
        %774 = vmatprep.subr.mxu0 %v555
        %775 = vmatpush1.msra.mxu0 %v554
        %776 = vmatprep.subr.mxu0 %v547
        %777 = vmatpush1.msra.mxu0 %v546
        %778 = vmatprep.subr.mxu0 0.0
        %779 = vmatpush2.msra.mxu0 0.0
        %780 = vmatprep.subr.mxu0 0.0
        %781 = vmatpush2.msra.mxu0 0.0
        %782 = vmatprep.subr.mxu0 0.0
        %783 = vmatpush2.msra.mxu0 0.0
        %784 = vmatprep.subr.mxu0 0.0
        %785 = vmatpush2.msra.mxu0 0.0
        %786 = vmatprep.subr.mxu0 0.0
        %787 = vmatpush2.msra.mxu0 0.0
        %788 = vmatprep.subr.mxu0 0.0
        %789 = vmatpush2.msra.mxu0 0.0
        %790 = vmatprep.subr.mxu0 0.0
        %791 = vmatpush2.msra.mxu0 0.0
        %792 = vmatprep.subr.mxu0 0.0
        %793 = vmatpush2.msra.mxu0 0.0
        %794 = vmatprep.subr.mxu0 0.0
        %795 = vmatpush2.msra.mxu0 0.0
        %796 = vmatprep.subr.mxu0 0.0
        %797 = vmatpush2.msra.mxu0 0.0
        %798 = vmatprep.subr.mxu0 0.0
        %799 = vmatpush2.msra.mxu0 0.0
        %800 = vmatprep.subr.mxu0 0.0
        %801 = vmatpush2.msra.mxu0 0.0
        %802 = vmatprep.subr.mxu0 0.0
        %803 = vmatpush2.msra.mxu0 0.0
        %804 = vmatprep.subr.mxu0 0.0
        %805 = vmatpush2.msra.mxu0 0.0
        %806 = vmatprep.subr.mxu0 0.0
        %807 = vmatpush2.msra.mxu0 0.0
        %808 = vmatprep.subr.mxu0 0.0
        %809 = vmatpush2.msra.mxu0 0.0
        %810 = vmatprep.mubr.f32.mxu0 0.0
        %811 = vmatmul.mubr.f32.gmra.mxu0 %v602
        %v812 = vpop.f32.mrf.mxu0
        %v813 = vadd.f32 %v579, %v812
        %v814 = vpop.f32.mrf.mxu0
        %v815 = vadd.f32 %v583, %v814
        %816 = vdwg.mxu0
        %817 = vmatprep.subr.mxu0 0.0
        %818 = vmatpush1.msra.mxu0 0.0
        %819 = vmatprep.subr.mxu0 0.0
        %820 = vmatpush1.msra.mxu0 0.0
        %821 = vmatprep.subr.mxu0 0.0
        %822 = vmatpush1.msra.mxu0 0.0
        %823 = vmatprep.subr.mxu0 0.0
        %824 = vmatpush1.msra.mxu0 0.0
        %825 = vmatprep.subr.mxu0 0.0
        %826 = vmatpush1.msra.mxu0 0.0
        %827 = vmatprep.subr.mxu0 0.0
        %828 = vmatpush1.msra.mxu0 0.0
        %829 = vmatprep.subr.mxu0 0.0
        %830 = vmatpush1.msra.mxu0 0.0
        %831 = vmatprep.subr.mxu0 0.0
        %832 = vmatpush1.msra.mxu0 0.0
        %833 = vmatprep.subr.mxu0 0.0
        %834 = vmatpush1.msra.mxu0 0.0
        %835 = vmatprep.subr.mxu0 0.0
        %836 = vmatpush1.msra.mxu0 0.0
        %837 = vmatprep.subr.mxu0 0.0
        %838 = vmatpush1.msra.mxu0 0.0
        %839 = vmatprep.subr.mxu0 0.0
        %840 = vmatpush1.msra.mxu0 0.0
        %841 = vmatprep.subr.mxu0 0.0
        %842 = vmatpush1.msra.mxu0 0.0
        %843 = vmatprep.subr.mxu0 0.0
        %844 = vmatpush1.msra.mxu0 0.0
        %845 = vmatprep.subr.mxu0 %v557
        %846 = vmatpush1.msra.mxu0 %v556
        %847 = vmatprep.subr.mxu0 %v549
        %848 = vmatpush1.msra.mxu0 %v548
        %849 = vmatprep.subr.mxu0 0.0
        %850 = vmatpush2.msra.mxu0 0.0
        %851 = vmatprep.subr.mxu0 0.0
        %852 = vmatpush2.msra.mxu0 0.0
        %853 = vmatprep.subr.mxu0 0.0
        %854 = vmatpush2.msra.mxu0 0.0
        %855 = vmatprep.subr.mxu0 0.0
        %856 = vmatpush2.msra.mxu0 0.0
        %857 = vmatprep.subr.mxu0 0.0
        %858 = vmatpush2.msra.mxu0 0.0
        %859 = vmatprep.subr.mxu0 0.0
        %860 = vmatpush2.msra.mxu0 0.0
        %861 = vmatprep.subr.mxu0 0.0
        %862 = vmatpush2.msra.mxu0 0.0
        %863 = vmatprep.subr.mxu0 0.0
        %864 = vmatpush2.msra.mxu0 0.0
        %865 = vmatprep.subr.mxu0 0.0
        %866 = vmatpush2.msra.mxu0 0.0
        %867 = vmatprep.subr.mxu0 0.0
        %868 = vmatpush2.msra.mxu0 0.0
        %869 = vmatprep.subr.mxu0 0.0
        %870 = vmatpush2.msra.mxu0 0.0
        %871 = vmatprep.subr.mxu0 0.0
        %872 = vmatpush2.msra.mxu0 0.0
        %873 = vmatprep.subr.mxu0 0.0
        %874 = vmatpush2.msra.mxu0 0.0
        %875 = vmatprep.subr.mxu0 0.0
        %876 = vmatpush2.msra.mxu0 0.0
        %877 = vmatprep.subr.mxu0 0.0
        %878 = vmatpush2.msra.mxu0 0.0
        %879 = vmatprep.subr.mxu0 0.0
        %880 = vmatpush2.msra.mxu0 0.0
        %881 = vmatprep.mubr.f32.mxu0 0.0
        %882 = vmatmul.mubr.f32.gmra.mxu0 %v602
        %v883 = vpop.f32.mrf.mxu0
        %v884 = vadd.f32 %v587, %v883
        %v885 = vpop.f32.mrf.mxu0
        %v886 = vadd.f32 %v591, %v885
        %887 = vdwg.mxu0
        %v889 = vrot.slane %v673, 7
        %v892 = vrot.slane %v742, 6
        %v895 = vrot.slane %v744, 5
        %v898 = vrot.slane %v813, 4
        %v901 = vrot.slane %v815, 3
        %v904 = vrot.slane %v884, 2
        %v907 = vrot.slane %v886, 1
        %vm909 = vcmask 1040384
        %v910 = vsel %vm909, %v671, %v889
        %vm911 = vcmask 1041408
        %v912 = vsel %vm911, %v910, %v892
        %vm913 = vcmask 1042432
        %v914 = vsel %vm913, %v912, %v895
        %vm915 = vcmask 1043456
        %v916 = vsel %vm915, %v914, %v898
        %vm917 = vcmask 1044480
        %v918 = vsel %vm917, %v916, %v901
        %vm919 = vcmask 1045504
        %v920 = vsel %vm919, %v918, %v904
        %vm921 = vcmask 1046528
        %v922 = vsel %vm921, %v920, %v907
        %v923 = vld [vmem:[%s9] sm:$0xff]
        %v924 = vld [vmem:[%s9 + $0x8] sm:$0xff]
        %v925 = vld [vmem:[%s9 + $0x10] sm:$0xff]
        %v926 = vld [vmem:[%s9 + $0x18] sm:$0xff]
        %v927 = vld [vmem:[%s9 + $0x20] sm:$0xff]
        %v928 = vld [vmem:[%s9 + $0x28] sm:$0xff]
        %vm929 = vcmask 64512
        %v931 = vsel %vm929, %v923, 0
        %v934 = vsel %vm929, %v924, 0
        %v937 = vsel %vm929, %v925, 0
        %v940 = vsel %vm929, %v926, 0
        %v943 = vsel %vm929, %v927, 0
        %v946 = vsel %vm929, %v928, 0
        %948 = vmatprep.subr.mxu0 0.0
        %949 = vmatpush1.msra.mxu0 0.0
        %950 = vmatprep.subr.mxu0 0.0
        %951 = vmatpush1.msra.mxu0 0.0
        %952 = vmatprep.subr.mxu0 0.0
        %953 = vmatpush1.msra.mxu0 0.0
        %954 = vmatprep.subr.mxu0 0.0
        %955 = vmatpush1.msra.mxu0 0.0
        %956 = vmatprep.subr.mxu0 0.0
        %957 = vmatpush1.msra.mxu0 0.0
        %958 = vmatprep.subr.mxu0 0.0
        %959 = vmatpush1.msra.mxu0 0.0
        %960 = vmatprep.subr.mxu0 0.0
        %961 = vmatpush1.msra.mxu0 0.0
        %962 = vmatprep.subr.mxu0 0.0
        %963 = vmatpush1.msra.mxu0 0.0
        %964 = vmatprep.subr.mxu0 0.0
        %965 = vmatpush1.msra.mxu0 0.0
        %966 = vmatprep.subr.mxu0 0.0
        %967 = vmatpush1.msra.mxu0 0.0
        %968 = vmatprep.subr.mxu0 0.0
        %969 = vmatpush1.msra.mxu0 0.0
        %970 = vmatprep.subr.mxu0 0.0
        %971 = vmatpush1.msra.mxu0 0.0
        %972 = vmatprep.subr.mxu0 0.0
        %973 = vmatpush1.msra.mxu0 0.0
        %974 = vmatprep.subr.mxu0 0.0
        %975 = vmatpush1.msra.mxu0 0.0
        %976 = vmatprep.subr.mxu0 0.0
        %977 = vmatpush1.msra.mxu0 0.0
        %978 = vmatprep.subr.mxu0 0.0
        %979 = vmatpush1.msra.mxu0 %v922
        %980 = vmatprep.subr.mxu0 0.0
        %981 = vmatpush2.msra.mxu0 0.0
        %982 = vmatprep.subr.mxu0 0.0
        %983 = vmatpush2.msra.mxu0 0.0
        %984 = vmatprep.subr.mxu0 0.0
        %985 = vmatpush2.msra.mxu0 0.0
        %986 = vmatprep.subr.mxu0 0.0
        %987 = vmatpush2.msra.mxu0 0.0
        %988 = vmatprep.subr.mxu0 0.0
        %989 = vmatpush2.msra.mxu0 0.0
        %990 = vmatprep.subr.mxu0 0.0
        %991 = vmatpush2.msra.mxu0 0.0
        %992 = vmatprep.subr.mxu0 0.0
        %993 = vmatpush2.msra.mxu0 0.0
        %994 = vmatprep.subr.mxu0 0.0
        %995 = vmatpush2.msra.mxu0 0.0
        %996 = vmatprep.subr.mxu0 0.0
        %997 = vmatpush2.msra.mxu0 0.0
        %998 = vmatprep.subr.mxu0 0.0
        %999 = vmatpush2.msra.mxu0 0.0
        %1000 = vmatprep.subr.mxu0 0.0
        %1001 = vmatpush2.msra.mxu0 0.0
        %1002 = vmatprep.subr.mxu0 0.0
        %1003 = vmatpush2.msra.mxu0 0.0
        %1004 = vmatprep.subr.mxu0 0.0
        %1005 = vmatpush2.msra.mxu0 0.0
        %1006 = vmatprep.subr.mxu0 0.0
        %1007 = vmatpush2.msra.mxu0 0.0
        %1008 = vmatprep.subr.mxu0 0.0
        %1009 = vmatpush2.msra.mxu0 0.0
        %1010 = vmatprep.subr.mxu0 0.0
        %1011 = vmatpush2.msra.mxu0 0.0
        %1012 = vmatprep.mubr.f32.mxu0 0.0
        %1013 = vmatmul.mubr.f32.gmra.mxu0 %v931
        %v1014 = vpop.f32.mrf.mxu0
        %v1015 = vadd.f32 0.0, %v1014
        %v1016 = vpop.f32.mrf.mxu0
        %1017 = vmatprep.mubr.f32.mxu0 0.0
        %1018 = vmatmul.mubr.f32.gmra.mxu0 %v934
        %v1019 = vpop.f32.mrf.mxu0
        %v1020 = vadd.f32 0.0, %v1019
        %v1021 = vpop.f32.mrf.mxu0
        %1022 = vmatprep.mubr.f32.mxu0 0.0
        %1023 = vmatmul.mubr.f32.gmra.mxu0 %v937
        %v1024 = vpop.f32.mrf.mxu0
        %v1025 = vadd.f32 0.0, %v1024
        %v1026 = vpop.f32.mrf.mxu0
        %1027 = vmatprep.mubr.f32.mxu0 0.0
        %1028 = vmatmul.mubr.f32.gmra.mxu0 %v940
        %v1029 = vpop.f32.mrf.mxu0
        %v1030 = vadd.f32 0.0, %v1029
        %v1031 = vpop.f32.mrf.mxu0
        %1032 = vmatprep.mubr.f32.mxu0 0.0
        %1033 = vmatmul.mubr.f32.gmra.mxu0 %v943
        %v1034 = vpop.f32.mrf.mxu0
        %v1035 = vadd.f32 0.0, %v1034
        %v1036 = vpop.f32.mrf.mxu0
        %1037 = vmatprep.mubr.f32.mxu0 0.0
        %1038 = vmatmul.mubr.f32.gmra.mxu0 %v946
        %v1039 = vpop.f32.mrf.mxu0
        %v1040 = vadd.f32 0.0, %v1039
        %v1041 = vpop.f32.mrf.mxu0
        %1042 = vdwg.mxu0
        %1043 = vst [vmem:[#allocation2] sm:$0xff] %v1015
        %1044 = vst [vmem:[#allocation2 + $0x8] sm:$0xff] %v1020
        %1045 = vst [vmem:[#allocation2 + $0x10] sm:$0xff] %v1025
        %1046 = vst [vmem:[#allocation2 + $0x18] sm:$0xff] %v1030
        %1047 = vst [vmem:[#allocation2 + $0x20] sm:$0xff] %v1035
        %1048 = vst [vmem:[#allocation2 + $0x28] sm:$0xff] %v1040
        %v1049 = vld [vmem:[%s537] sm:$0x1]
        %v1050 = vld [vmem:[%s5] sm:$0xff]
        %v1051 = vld [vmem:[%s5 + $0x8] sm:$0xff]
        %v1052 = vld [vmem:[%s5 + $0x10] sm:$0xff]
        %v1053 = vld [vmem:[%s5 + $0x18] sm:$0xff]
        %v1054 = vld [vmem:[%s5 + $0x20] sm:$0xff]
        %v1055 = vld [vmem:[%s5 + $0x28] sm:$0xff]
        %v1056 = vld [vmem:[%s5 + $0x30] sm:$0xff]
        %v1057 = vld [vmem:[%s5 + $0x38] sm:$0xff]
        %v1058 = vld [vmem:[%s5 + $0x40] sm:$0xff]
        %v1059 = vld [vmem:[%s5 + $0x48] sm:$0xff]
        %v1060 = vld [vmem:[%s5 + $0x50] sm:$0xff]
        %v1061 = vld [vmem:[%s5 + $0x58] sm:$0xff]
        %v1062 = vld [vmem:[%s5 + $0x60] sm:$0xff]
        %v1063 = vld [vmem:[%s5 + $0x68] sm:$0xff]
        %v1064 = vld [vmem:[%s5 + $0x70] sm:$0xff]
        %v1065 = vld [vmem:[%s5 + $0x78] sm:$0xff]
        %v1066 = vld [vmem:[%s5 + $0x80] sm:$0xff]
        %v1067 = vld [vmem:[%s5 + $0x88] sm:$0xff]
        %v1068 = vld [vmem:[%s5 + $0x90] sm:$0xff]
        %v1069 = vld [vmem:[%s5 + $0x98] sm:$0xff]
        %v1070 = vld [vmem:[%s5 + $0xa0] sm:$0xff]
        %v1071 = vld [vmem:[%s5 + $0xa8] sm:$0xff]
        %v1072 = vld [vmem:[%s5 + $0xb0] sm:$0xff]
        %v1073 = vld [vmem:[%s5 + $0xb8] sm:$0xff]
        %v1074 = vld [vmem:[%s6] sm:$0xff]
        %v1076 = vlaneseq
        %v1077 = vshrl.u32 %v1076, 7
        %v1078 = vsub.s32 0, %v1077
        %v1079 = vrot.slane %v1074, %v1078
        %v1080 = vlaneseq
        %v1081 = vshrl.u32 %v1080, 7
        %v1082 = vsub.s32 1, %v1081
        %v1083 = vrot.slane %v1074, %v1082
        %v1084 = vlaneseq
        %v1085 = vshrl.u32 %v1084, 7
        %v1086 = vsub.s32 2, %v1085
        %v1087 = vrot.slane %v1074, %v1086
        %v1088 = vlaneseq
        %v1089 = vshrl.u32 %v1088, 7
        %v1090 = vsub.s32 3, %v1089
        %v1091 = vrot.slane %v1074, %v1090
        %v1092 = vlaneseq
        %v1093 = vshrl.u32 %v1092, 7
        %v1094 = vsub.s32 4, %v1093
        %v1095 = vrot.slane %v1074, %v1094
        %v1096 = vlaneseq
        %v1097 = vshrl.u32 %v1096, 7
        %v1098 = vsub.s32 5, %v1097
        %v1099 = vrot.slane %v1074, %v1098
        %v1100 = vlaneseq
        %v1101 = vshrl.u32 %v1100, 7
        %v1102 = vsub.s32 6, %v1101
        %v1103 = vrot.slane %v1074, %v1102
        %v1104 = vlaneseq
        %v1105 = vshrl.u32 %v1104, 7
        %v1106 = vsub.s32 7, %v1105
        %v1107 = vrot.slane %v1074, %v1106
        %vm1116 = vcmask 195584
        %v1118 = vsel %vm1116, %v1049, 0
        %1120 = vmatprep.subr.mxu0 0.0
        %1121 = vmatpush1.msra.mxu0 0.0
        %1122 = vmatprep.subr.mxu0 0.0
        %1123 = vmatpush1.msra.mxu0 0.0
        %1124 = vmatprep.subr.mxu0 0.0
        %1125 = vmatpush1.msra.mxu0 0.0
        %1126 = vmatprep.subr.mxu0 0.0
        %1127 = vmatpush1.msra.mxu0 0.0
        %1128 = vmatprep.subr.mxu0 0.0
        %1129 = vmatpush1.msra.mxu0 0.0
        %1130 = vmatprep.subr.mxu0 0.0
        %1131 = vmatpush1.msra.mxu0 0.0
        %1132 = vmatprep.subr.mxu0 0.0
        %1133 = vmatpush1.msra.mxu0 0.0
        %1134 = vmatprep.subr.mxu0 0.0
        %1135 = vmatpush1.msra.mxu0 0.0
        %1136 = vmatprep.subr.mxu0 0.0
        %1137 = vmatpush1.msra.mxu0 0.0
        %1138 = vmatprep.subr.mxu0 0.0
        %1139 = vmatpush1.msra.mxu0 0.0
        %1140 = vmatprep.subr.mxu0 0.0
        %1141 = vmatpush1.msra.mxu0 0.0
        %1142 = vmatprep.subr.mxu0 0.0
        %1143 = vmatpush1.msra.mxu0 0.0
        %1144 = vmatprep.subr.mxu0 0.0
        %1145 = vmatpush1.msra.mxu0 0.0
        %1146 = vmatprep.subr.mxu0 %v1067
        %1147 = vmatpush1.msra.mxu0 %v1066
        %1148 = vmatprep.subr.mxu0 %v1059
        %1149 = vmatpush1.msra.mxu0 %v1058
        %1150 = vmatprep.subr.mxu0 %v1051
        %1151 = vmatpush1.msra.mxu0 %v1050
        %1152 = vmatprep.subr.mxu0 0.0
        %1153 = vmatpush2.msra.mxu0 0.0
        %1154 = vmatprep.subr.mxu0 0.0
        %1155 = vmatpush2.msra.mxu0 0.0
        %1156 = vmatprep.subr.mxu0 0.0
        %1157 = vmatpush2.msra.mxu0 0.0
        %1158 = vmatprep.subr.mxu0 0.0
        %1159 = vmatpush2.msra.mxu0 0.0
        %1160 = vmatprep.subr.mxu0 0.0
        %1161 = vmatpush2.msra.mxu0 0.0
        %1162 = vmatprep.subr.mxu0 0.0
        %1163 = vmatpush2.msra.mxu0 0.0
        %1164 = vmatprep.subr.mxu0 0.0
        %1165 = vmatpush2.msra.mxu0 0.0
        %1166 = vmatprep.subr.mxu0 0.0
        %1167 = vmatpush2.msra.mxu0 0.0
        %1168 = vmatprep.subr.mxu0 0.0
        %1169 = vmatpush2.msra.mxu0 0.0
        %1170 = vmatprep.subr.mxu0 0.0
        %1171 = vmatpush2.msra.mxu0 0.0
        %1172 = vmatprep.subr.mxu0 0.0
        %1173 = vmatpush2.msra.mxu0 0.0
        %1174 = vmatprep.subr.mxu0 0.0
        %1175 = vmatpush2.msra.mxu0 0.0
        %1176 = vmatprep.subr.mxu0 0.0
        %1177 = vmatpush2.msra.mxu0 0.0
        %1178 = vmatprep.subr.mxu0 0.0
        %1179 = vmatpush2.msra.mxu0 0.0
        %1180 = vmatprep.subr.mxu0 0.0
        %1181 = vmatpush2.msra.mxu0 0.0
        %1182 = vmatprep.subr.mxu0 0.0
        %1183 = vmatpush2.msra.mxu0 0.0
        %1184 = vmatprep.mubr.f32.mxu0 0.0
        %1185 = vmatmul.mubr.f32.gmra.mxu0 %v1118
        %v1186 = vpop.f32.mrf.mxu0
        %v1187 = vadd.f32 %v1079, %v1186
        %v1188 = vpop.f32.mrf.mxu0
        %v1189 = vadd.f32 %v1083, %v1188
        %1190 = vdwg.mxu0
        %1191 = vmatprep.subr.mxu0 0.0
        %1192 = vmatpush1.msra.mxu0 0.0
        %1193 = vmatprep.subr.mxu0 0.0
        %1194 = vmatpush1.msra.mxu0 0.0
        %1195 = vmatprep.subr.mxu0 0.0
        %1196 = vmatpush1.msra.mxu0 0.0
        %1197 = vmatprep.subr.mxu0 0.0
        %1198 = vmatpush1.msra.mxu0 0.0
        %1199 = vmatprep.subr.mxu0 0.0
        %1200 = vmatpush1.msra.mxu0 0.0
        %1201 = vmatprep.subr.mxu0 0.0
        %1202 = vmatpush1.msra.mxu0 0.0
        %1203 = vmatprep.subr.mxu0 0.0
        %1204 = vmatpush1.msra.mxu0 0.0
        %1205 = vmatprep.subr.mxu0 0.0
        %1206 = vmatpush1.msra.mxu0 0.0
        %1207 = vmatprep.subr.mxu0 0.0
        %1208 = vmatpush1.msra.mxu0 0.0
        %1209 = vmatprep.subr.mxu0 0.0
        %1210 = vmatpush1.msra.mxu0 0.0
        %1211 = vmatprep.subr.mxu0 0.0
        %1212 = vmatpush1.msra.mxu0 0.0
        %1213 = vmatprep.subr.mxu0 0.0
        %1214 = vmatpush1.msra.mxu0 0.0
        %1215 = vmatprep.subr.mxu0 0.0
        %1216 = vmatpush1.msra.mxu0 0.0
        %1217 = vmatprep.subr.mxu0 %v1069
        %1218 = vmatpush1.msra.mxu0 %v1068
        %1219 = vmatprep.subr.mxu0 %v1061
        %1220 = vmatpush1.msra.mxu0 %v1060
        %1221 = vmatprep.subr.mxu0 %v1053
        %1222 = vmatpush1.msra.mxu0 %v1052
        %1223 = vmatprep.subr.mxu0 0.0
        %1224 = vmatpush2.msra.mxu0 0.0
        %1225 = vmatprep.subr.mxu0 0.0
        %1226 = vmatpush2.msra.mxu0 0.0
        %1227 = vmatprep.subr.mxu0 0.0
        %1228 = vmatpush2.msra.mxu0 0.0
        %1229 = vmatprep.subr.mxu0 0.0
        %1230 = vmatpush2.msra.mxu0 0.0
        %1231 = vmatprep.subr.mxu0 0.0
        %1232 = vmatpush2.msra.mxu0 0.0
        %1233 = vmatprep.subr.mxu0 0.0
        %1234 = vmatpush2.msra.mxu0 0.0
        %1235 = vmatprep.subr.mxu0 0.0
        %1236 = vmatpush2.msra.mxu0 0.0
        %1237 = vmatprep.subr.mxu0 0.0
        %1238 = vmatpush2.msra.mxu0 0.0
        %1239 = vmatprep.subr.mxu0 0.0
        %1240 = vmatpush2.msra.mxu0 0.0
        %1241 = vmatprep.subr.mxu0 0.0
        %1242 = vmatpush2.msra.mxu0 0.0
        %1243 = vmatprep.subr.mxu0 0.0
        %1244 = vmatpush2.msra.mxu0 0.0
        %1245 = vmatprep.subr.mxu0 0.0
        %1246 = vmatpush2.msra.mxu0 0.0
        %1247 = vmatprep.subr.mxu0 0.0
        %1248 = vmatpush2.msra.mxu0 0.0
        %1249 = vmatprep.subr.mxu0 0.0
        %1250 = vmatpush2.msra.mxu0 0.0
        %1251 = vmatprep.subr.mxu0 0.0
        %1252 = vmatpush2.msra.mxu0 0.0
        %1253 = vmatprep.subr.mxu0 0.0
        %1254 = vmatpush2.msra.mxu0 0.0
        %1255 = vmatprep.mubr.f32.mxu0 0.0
        %1256 = vmatmul.mubr.f32.gmra.mxu0 %v1118
        %v1257 = vpop.f32.mrf.mxu0
        %v1258 = vadd.f32 %v1087, %v1257
        %v1259 = vpop.f32.mrf.mxu0
        %v1260 = vadd.f32 %v1091, %v1259
        %1261 = vdwg.mxu0
        %1262 = vmatprep.subr.mxu0 0.0
        %1263 = vmatpush1.msra.mxu0 0.0
        %1264 = vmatprep.subr.mxu0 0.0
        %1265 = vmatpush1.msra.mxu0 0.0
        %1266 = vmatprep.subr.mxu0 0.0
        %1267 = vmatpush1.msra.mxu0 0.0
        %1268 = vmatprep.subr.mxu0 0.0
        %1269 = vmatpush1.msra.mxu0 0.0
        %1270 = vmatprep.subr.mxu0 0.0
        %1271 = vmatpush1.msra.mxu0 0.0
        %1272 = vmatprep.subr.mxu0 0.0
        %1273 = vmatpush1.msra.mxu0 0.0
        %1274 = vmatprep.subr.mxu0 0.0
        %1275 = vmatpush1.msra.mxu0 0.0
        %1276 = vmatprep.subr.mxu0 0.0
        %1277 = vmatpush1.msra.mxu0 0.0
        %1278 = vmatprep.subr.mxu0 0.0
        %1279 = vmatpush1.msra.mxu0 0.0
        %1280 = vmatprep.subr.mxu0 0.0
        %1281 = vmatpush1.msra.mxu0 0.0
        %1282 = vmatprep.subr.mxu0 0.0
        %1283 = vmatpush1.msra.mxu0 0.0
        %1284 = vmatprep.subr.mxu0 0.0
        %1285 = vmatpush1.msra.mxu0 0.0
        %1286 = vmatprep.subr.mxu0 0.0
        %1287 = vmatpush1.msra.mxu0 0.0
        %1288 = vmatprep.subr.mxu0 %v1071
        %1289 = vmatpush1.msra.mxu0 %v1070
        %1290 = vmatprep.subr.mxu0 %v1063
        %1291 = vmatpush1.msra.mxu0 %v1062
        %1292 = vmatprep.subr.mxu0 %v1055
        %1293 = vmatpush1.msra.mxu0 %v1054
        %1294 = vmatprep.subr.mxu0 0.0
        %1295 = vmatpush2.msra.mxu0 0.0
        %1296 = vmatprep.subr.mxu0 0.0
        %1297 = vmatpush2.msra.mxu0 0.0
        %1298 = vmatprep.subr.mxu0 0.0
        %1299 = vmatpush2.msra.mxu0 0.0
        %1300 = vmatprep.subr.mxu0 0.0
        %1301 = vmatpush2.msra.mxu0 0.0
        %1302 = vmatprep.subr.mxu0 0.0
        %1303 = vmatpush2.msra.mxu0 0.0
        %1304 = vmatprep.subr.mxu0 0.0
        %1305 = vmatpush2.msra.mxu0 0.0
        %1306 = vmatprep.subr.mxu0 0.0
        %1307 = vmatpush2.msra.mxu0 0.0
        %1308 = vmatprep.subr.mxu0 0.0
        %1309 = vmatpush2.msra.mxu0 0.0
        %1310 = vmatprep.subr.mxu0 0.0
        %1311 = vmatpush2.msra.mxu0 0.0
        %1312 = vmatprep.subr.mxu0 0.0
        %1313 = vmatpush2.msra.mxu0 0.0
        %1314 = vmatprep.subr.mxu0 0.0
        %1315 = vmatpush2.msra.mxu0 0.0
        %1316 = vmatprep.subr.mxu0 0.0
        %1317 = vmatpush2.msra.mxu0 0.0
        %1318 = vmatprep.subr.mxu0 0.0
        %1319 = vmatpush2.msra.mxu0 0.0
        %1320 = vmatprep.subr.mxu0 0.0
        %1321 = vmatpush2.msra.mxu0 0.0
        %1322 = vmatprep.subr.mxu0 0.0
        %1323 = vmatpush2.msra.mxu0 0.0
        %1324 = vmatprep.subr.mxu0 0.0
        %1325 = vmatpush2.msra.mxu0 0.0
        %1326 = vmatprep.mubr.f32.mxu0 0.0
        %1327 = vmatmul.mubr.f32.gmra.mxu0 %v1118
        %v1328 = vpop.f32.mrf.mxu0
        %v1329 = vadd.f32 %v1095, %v1328
        %v1330 = vpop.f32.mrf.mxu0
        %v1331 = vadd.f32 %v1099, %v1330
        %1332 = vdwg.mxu0
        %1333 = vmatprep.subr.mxu0 0.0
        %1334 = vmatpush1.msra.mxu0 0.0
        %1335 = vmatprep.subr.mxu0 0.0
        %1336 = vmatpush1.msra.mxu0 0.0
        %1337 = vmatprep.subr.mxu0 0.0
        %1338 = vmatpush1.msra.mxu0 0.0
        %1339 = vmatprep.subr.mxu0 0.0
        %1340 = vmatpush1.msra.mxu0 0.0
        %1341 = vmatprep.subr.mxu0 0.0
        %1342 = vmatpush1.msra.mxu0 0.0
        %1343 = vmatprep.subr.mxu0 0.0
        %1344 = vmatpush1.msra.mxu0 0.0
        %1345 = vmatprep.subr.mxu0 0.0
        %1346 = vmatpush1.msra.mxu0 0.0
        %1347 = vmatprep.subr.mxu0 0.0
        %1348 = vmatpush1.msra.mxu0 0.0
        %1349 = vmatprep.subr.mxu0 0.0
        %1350 = vmatpush1.msra.mxu0 0.0
        %1351 = vmatprep.subr.mxu0 0.0
        %1352 = vmatpush1.msra.mxu0 0.0
        %1353 = vmatprep.subr.mxu0 0.0
        %1354 = vmatpush1.msra.mxu0 0.0
        %1355 = vmatprep.subr.mxu0 0.0
        %1356 = vmatpush1.msra.mxu0 0.0
        %1357 = vmatprep.subr.mxu0 0.0
        %1358 = vmatpush1.msra.mxu0 0.0
        %1359 = vmatprep.subr.mxu0 %v1073
        %1360 = vmatpush1.msra.mxu0 %v1072
        %1361 = vmatprep.subr.mxu0 %v1065
        %1362 = vmatpush1.msra.mxu0 %v1064
        %1363 = vmatprep.subr.mxu0 %v1057
        %1364 = vmatpush1.msra.mxu0 %v1056
        %1365 = vmatprep.subr.mxu0 0.0
        %1366 = vmatpush2.msra.mxu0 0.0
        %1367 = vmatprep.subr.mxu0 0.0
        %1368 = vmatpush2.msra.mxu0 0.0
        %1369 = vmatprep.subr.mxu0 0.0
        %1370 = vmatpush2.msra.mxu0 0.0
        %1371 = vmatprep.subr.mxu0 0.0
        %1372 = vmatpush2.msra.mxu0 0.0
        %1373 = vmatprep.subr.mxu0 0.0
        %1374 = vmatpush2.msra.mxu0 0.0
        %1375 = vmatprep.subr.mxu0 0.0
        %1376 = vmatpush2.msra.mxu0 0.0
        %1377 = vmatprep.subr.mxu0 0.0
        %1378 = vmatpush2.msra.mxu0 0.0
        %1379 = vmatprep.subr.mxu0 0.0
        %1380 = vmatpush2.msra.mxu0 0.0
        %1381 = vmatprep.subr.mxu0 0.0
        %1382 = vmatpush2.msra.mxu0 0.0
        %1383 = vmatprep.subr.mxu0 0.0
        %1384 = vmatpush2.msra.mxu0 0.0
        %1385 = vmatprep.subr.mxu0 0.0
        %1386 = vmatpush2.msra.mxu0 0.0
        %1387 = vmatprep.subr.mxu0 0.0
        %1388 = vmatpush2.msra.mxu0 0.0
        %1389 = vmatprep.subr.mxu0 0.0
        %1390 = vmatpush2.msra.mxu0 0.0
        %1391 = vmatprep.subr.mxu0 0.0
        %1392 = vmatpush2.msra.mxu0 0.0
        %1393 = vmatprep.subr.mxu0 0.0
        %1394 = vmatpush2.msra.mxu0 0.0
        %1395 = vmatprep.subr.mxu0 0.0
        %1396 = vmatpush2.msra.mxu0 0.0
        %1397 = vmatprep.mubr.f32.mxu0 0.0
        %1398 = vmatmul.mubr.f32.gmra.mxu0 %v1118
        %v1399 = vpop.f32.mrf.mxu0
        %v1400 = vadd.f32 %v1103, %v1399
        %v1401 = vpop.f32.mrf.mxu0
        %v1402 = vadd.f32 %v1107, %v1401
        %1403 = vdwg.mxu0
        %v1405 = vrot.slane %v1189, 7
        %v1408 = vrot.slane %v1258, 6
        %v1411 = vrot.slane %v1260, 5
        %v1414 = vrot.slane %v1329, 4
        %v1417 = vrot.slane %v1331, 3
        %v1420 = vrot.slane %v1400, 2
        %v1423 = vrot.slane %v1402, 1
        %v1425 = vsel %vm909, %v1187, %v1405
        %v1426 = vsel %vm911, %v1425, %v1408
        %v1427 = vsel %vm913, %v1426, %v1411
        %v1428 = vsel %vm915, %v1427, %v1414
        %v1429 = vsel %vm917, %v1428, %v1417
        %v1430 = vsel %vm919, %v1429, %v1420
        %v1431 = vsel %vm921, %v1430, %v1423
        %s1432 = scalar_lea.vmem %s9, 48
        %v1433 = vld [vmem:[%s1432] sm:$0xff]
        %v1434 = vld [vmem:[%s1432 + $0x8] sm:$0xff]
        %v1435 = vld [vmem:[%s1432 + $0x10] sm:$0xff]
        %v1436 = vld [vmem:[%s1432 + $0x18] sm:$0xff]
        %v1437 = vld [vmem:[%s1432 + $0x20] sm:$0xff]
        %v1438 = vld [vmem:[%s1432 + $0x28] sm:$0xff]
        %v1440 = vsel %vm929, %v1433, 0
        %v1443 = vsel %vm929, %v1434, 0
        %v1446 = vsel %vm929, %v1435, 0
        %v1449 = vsel %vm929, %v1436, 0
        %v1452 = vsel %vm929, %v1437, 0
        %v1455 = vsel %vm929, %v1438, 0
        %1457 = vmatprep.subr.mxu0 0.0
        %1458 = vmatpush1.msra.mxu0 0.0
        %1459 = vmatprep.subr.mxu0 0.0
        %1460 = vmatpush1.msra.mxu0 0.0
        %1461 = vmatprep.subr.mxu0 0.0
        %1462 = vmatpush1.msra.mxu0 0.0
        %1463 = vmatprep.subr.mxu0 0.0
        %1464 = vmatpush1.msra.mxu0 0.0
        %1465 = vmatprep.subr.mxu0 0.0
        %1466 = vmatpush1.msra.mxu0 0.0
        %1467 = vmatprep.subr.mxu0 0.0
        %1468 = vmatpush1.msra.mxu0 0.0
        %1469 = vmatprep.subr.mxu0 0.0
        %1470 = vmatpush1.msra.mxu0 0.0
        %1471 = vmatprep.subr.mxu0 0.0
        %1472 = vmatpush1.msra.mxu0 0.0
        %1473 = vmatprep.subr.mxu0 0.0
        %1474 = vmatpush1.msra.mxu0 0.0
        %1475 = vmatprep.subr.mxu0 0.0
        %1476 = vmatpush1.msra.mxu0 0.0
        %1477 = vmatprep.subr.mxu0 0.0
        %1478 = vmatpush1.msra.mxu0 0.0
        %1479 = vmatprep.subr.mxu0 0.0
        %1480 = vmatpush1.msra.mxu0 0.0
        %1481 = vmatprep.subr.mxu0 0.0
        %1482 = vmatpush1.msra.mxu0 0.0
        %1483 = vmatprep.subr.mxu0 0.0
        %1484 = vmatpush1.msra.mxu0 0.0
        %1485 = vmatprep.subr.mxu0 0.0
        %1486 = vmatpush1.msra.mxu0 0.0
        %1487 = vmatprep.subr.mxu0 0.0
        %1488 = vmatpush1.msra.mxu0 %v1431
        %1489 = vmatprep.subr.mxu0 0.0
        %1490 = vmatpush2.msra.mxu0 0.0
        %1491 = vmatprep.subr.mxu0 0.0
        %1492 = vmatpush2.msra.mxu0 0.0
        %1493 = vmatprep.subr.mxu0 0.0
        %1494 = vmatpush2.msra.mxu0 0.0
        %1495 = vmatprep.subr.mxu0 0.0
        %1496 = vmatpush2.msra.mxu0 0.0
        %1497 = vmatprep.subr.mxu0 0.0
        %1498 = vmatpush2.msra.mxu0 0.0
        %1499 = vmatprep.subr.mxu0 0.0
        %1500 = vmatpush2.msra.mxu0 0.0
        %1501 = vmatprep.subr.mxu0 0.0
        %1502 = vmatpush2.msra.mxu0 0.0
        %1503 = vmatprep.subr.mxu0 0.0
        %1504 = vmatpush2.msra.mxu0 0.0
        %1505 = vmatprep.subr.mxu0 0.0
        %1506 = vmatpush2.msra.mxu0 0.0
        %1507 = vmatprep.subr.mxu0 0.0
        %1508 = vmatpush2.msra.mxu0 0.0
        %1509 = vmatprep.subr.mxu0 0.0
        %1510 = vmatpush2.msra.mxu0 0.0
        %1511 = vmatprep.subr.mxu0 0.0
        %1512 = vmatpush2.msra.mxu0 0.0
        %1513 = vmatprep.subr.mxu0 0.0
        %1514 = vmatpush2.msra.mxu0 0.0
        %1515 = vmatprep.subr.mxu0 0.0
        %1516 = vmatpush2.msra.mxu0 0.0
        %1517 = vmatprep.subr.mxu0 0.0
        %1518 = vmatpush2.msra.mxu0 0.0
        %1519 = vmatprep.subr.mxu0 0.0
        %1520 = vmatpush2.msra.mxu0 0.0
        %1521 = vmatprep.mubr.f32.mxu0 0.0
        %1522 = vmatmul.mubr.f32.gmra.mxu0 %v1440
        %v1523 = vpop.f32.mrf.mxu0
        %v1524 = vadd.f32 0.0, %v1523
        %v1525 = vpop.f32.mrf.mxu0
        %1526 = vmatprep.mubr.f32.mxu0 0.0
        %1527 = vmatmul.mubr.f32.gmra.mxu0 %v1443
        %v1528 = vpop.f32.mrf.mxu0
        %v1529 = vadd.f32 0.0, %v1528
        %v1530 = vpop.f32.mrf.mxu0
        %1531 = vmatprep.mubr.f32.mxu0 0.0
        %1532 = vmatmul.mubr.f32.gmra.mxu0 %v1446
        %v1533 = vpop.f32.mrf.mxu0
        %v1534 = vadd.f32 0.0, %v1533
        %v1535 = vpop.f32.mrf.mxu0
        %1536 = vmatprep.mubr.f32.mxu0 0.0
        %1537 = vmatmul.mubr.f32.gmra.mxu0 %v1449
        %v1538 = vpop.f32.mrf.mxu0
        %v1539 = vadd.f32 0.0, %v1538
        %v1540 = vpop.f32.mrf.mxu0
        %1541 = vmatprep.mubr.f32.mxu0 0.0
        %1542 = vmatmul.mubr.f32.gmra.mxu0 %v1452
        %v1543 = vpop.f32.mrf.mxu0
        %v1544 = vadd.f32 0.0, %v1543
        %v1545 = vpop.f32.mrf.mxu0
        %1546 = vmatprep.mubr.f32.mxu0 0.0
        %1547 = vmatmul.mubr.f32.gmra.mxu0 %v1455
        %v1548 = vpop.f32.mrf.mxu0
        %v1549 = vadd.f32 0.0, %v1548
        %v1550 = vpop.f32.mrf.mxu0
        %1551 = vdwg.mxu0
        %s1552 = scalar_lea.vmem [#allocation2], 48
        %1553 = vst [vmem:[%s1552] sm:$0xff] %v1524
        %1554 = vst [vmem:[%s1552 + $0x8] sm:$0xff] %v1529
        %1555 = vst [vmem:[%s1552 + $0x10] sm:$0xff] %v1534
        %1556 = vst [vmem:[%s1552 + $0x18] sm:$0xff] %v1539
        %1557 = vst [vmem:[%s1552 + $0x20] sm:$0xff] %v1544
        %1558 = vst [vmem:[%s1552 + $0x28] sm:$0xff] %v1549
        %v1559 = vld [vmem:[%s540] sm:$0x1]
        %v1560 = vld [vmem:[%s7] sm:$0xff]
        %v1561 = vld [vmem:[%s7 + $0x8] sm:$0xff]
        %v1562 = vld [vmem:[%s7 + $0x10] sm:$0xff]
        %v1563 = vld [vmem:[%s7 + $0x18] sm:$0xff]
        %v1564 = vld [vmem:[%s7 + $0x20] sm:$0xff]
        %v1565 = vld [vmem:[%s7 + $0x28] sm:$0xff]
        %v1566 = vld [vmem:[%s7 + $0x30] sm:$0xff]
        %v1567 = vld [vmem:[%s7 + $0x38] sm:$0xff]
        %v1568 = vld [vmem:[%s7 + $0x40] sm:$0xff]
        %v1569 = vld [vmem:[%s7 + $0x48] sm:$0xff]
        %v1570 = vld [vmem:[%s7 + $0x50] sm:$0xff]
        %v1571 = vld [vmem:[%s7 + $0x58] sm:$0xff]
        %v1572 = vld [vmem:[%s7 + $0x60] sm:$0xff]
        %v1573 = vld [vmem:[%s7 + $0x68] sm:$0xff]
        %v1574 = vld [vmem:[%s7 + $0x70] sm:$0xff]
        %v1575 = vld [vmem:[%s7 + $0x78] sm:$0xff]
        %v1576 = vld [vmem:[%s7 + $0x80] sm:$0xff]
        %v1577 = vld [vmem:[%s7 + $0x88] sm:$0xff]
        %v1578 = vld [vmem:[%s7 + $0x90] sm:$0xff]
        %v1579 = vld [vmem:[%s7 + $0x98] sm:$0xff]
        %v1580 = vld [vmem:[%s7 + $0xa0] sm:$0xff]
        %v1581 = vld [vmem:[%s7 + $0xa8] sm:$0xff]
        %v1582 = vld [vmem:[%s7 + $0xb0] sm:$0xff]
        %v1583 = vld [vmem:[%s7 + $0xb8] sm:$0xff]
        %v1584 = vld [vmem:[%s7 + $0xc0] sm:$0xff]
        %v1585 = vld [vmem:[%s7 + $0xc8] sm:$0xff]
        %v1586 = vld [vmem:[%s7 + $0xd0] sm:$0xff]
        %v1587 = vld [vmem:[%s7 + $0xd8] sm:$0xff]
        %v1588 = vld [vmem:[%s7 + $0xe0] sm:$0xff]
        %v1589 = vld [vmem:[%s7 + $0xe8] sm:$0xff]
        %v1590 = vld [vmem:[%s7 + $0xf0] sm:$0xff]
        %v1591 = vld [vmem:[%s7 + $0xf8] sm:$0xff]
        %v1592 = vld [vmem:[%s8] sm:$0xff]
        %v1594 = vlaneseq
        %v1595 = vshrl.u32 %v1594, 7
        %v1596 = vsub.s32 0, %v1595
        %v1597 = vrot.slane %v1592, %v1596
        %v1598 = vlaneseq
        %v1599 = vshrl.u32 %v1598, 7
        %v1600 = vsub.s32 1, %v1599
        %v1601 = vrot.slane %v1592, %v1600
        %v1602 = vlaneseq
        %v1603 = vshrl.u32 %v1602, 7
        %v1604 = vsub.s32 2, %v1603
        %v1605 = vrot.slane %v1592, %v1604
        %v1606 = vlaneseq
        %v1607 = vshrl.u32 %v1606, 7
        %v1608 = vsub.s32 3, %v1607
        %v1609 = vrot.slane %v1592, %v1608
        %v1610 = vlaneseq
        %v1611 = vshrl.u32 %v1610, 7
        %v1612 = vsub.s32 4, %v1611
        %v1613 = vrot.slane %v1592, %v1612
        %v1614 = vlaneseq
        %v1615 = vshrl.u32 %v1614, 7
        %v1616 = vsub.s32 5, %v1615
        %v1617 = vrot.slane %v1592, %v1616
        %v1618 = vlaneseq
        %v1619 = vshrl.u32 %v1618, 7
        %v1620 = vsub.s32 6, %v1619
        %v1621 = vrot.slane %v1592, %v1620
        %v1622 = vlaneseq
        %v1623 = vshrl.u32 %v1622, 7
        %v1624 = vsub.s32 7, %v1623
        %v1625 = vrot.slane %v1592, %v1624
        %vm1634 = vcmask 261120
        %v1636 = vsel %vm1634, %v1559, 0
        %1638 = vmatprep.subr.mxu0 0.0
        %1639 = vmatpush1.msra.mxu0 0.0
        %1640 = vmatprep.subr.mxu0 0.0
        %1641 = vmatpush1.msra.mxu0 0.0
        %1642 = vmatprep.subr.mxu0 0.0
        %1643 = vmatpush1.msra.mxu0 0.0
        %1644 = vmatprep.subr.mxu0 0.0
        %1645 = vmatpush1.msra.mxu0 0.0
        %1646 = vmatprep.subr.mxu0 0.0
        %1647 = vmatpush1.msra.mxu0 0.0
        %1648 = vmatprep.subr.mxu0 0.0
        %1649 = vmatpush1.msra.mxu0 0.0
        %1650 = vmatprep.subr.mxu0 0.0
        %1651 = vmatpush1.msra.mxu0 0.0
        %1652 = vmatprep.subr.mxu0 0.0
        %1653 = vmatpush1.msra.mxu0 0.0
        %1654 = vmatprep.subr.mxu0 0.0
        %1655 = vmatpush1.msra.mxu0 0.0
        %1656 = vmatprep.subr.mxu0 0.0
        %1657 = vmatpush1.msra.mxu0 0.0
        %1658 = vmatprep.subr.mxu0 0.0
        %1659 = vmatpush1.msra.mxu0 0.0
        %1660 = vmatprep.subr.mxu0 0.0
        %1661 = vmatpush1.msra.mxu0 0.0
        %1662 = vmatprep.subr.mxu0 %v1585
        %1663 = vmatpush1.msra.mxu0 %v1584
        %1664 = vmatprep.subr.mxu0 %v1577
        %1665 = vmatpush1.msra.mxu0 %v1576
        %1666 = vmatprep.subr.mxu0 %v1569
        %1667 = vmatpush1.msra.mxu0 %v1568
        %1668 = vmatprep.subr.mxu0 %v1561
        %1669 = vmatpush1.msra.mxu0 %v1560
        %1670 = vmatprep.subr.mxu0 0.0
        %1671 = vmatpush2.msra.mxu0 0.0
        %1672 = vmatprep.subr.mxu0 0.0
        %1673 = vmatpush2.msra.mxu0 0.0
        %1674 = vmatprep.subr.mxu0 0.0
        %1675 = vmatpush2.msra.mxu0 0.0
        %1676 = vmatprep.subr.mxu0 0.0
        %1677 = vmatpush2.msra.mxu0 0.0
        %1678 = vmatprep.subr.mxu0 0.0
        %1679 = vmatpush2.msra.mxu0 0.0
        %1680 = vmatprep.subr.mxu0 0.0
        %1681 = vmatpush2.msra.mxu0 0.0
        %1682 = vmatprep.subr.mxu0 0.0
        %1683 = vmatpush2.msra.mxu0 0.0
        %1684 = vmatprep.subr.mxu0 0.0
        %1685 = vmatpush2.msra.mxu0 0.0
        %1686 = vmatprep.subr.mxu0 0.0
        %1687 = vmatpush2.msra.mxu0 0.0
        %1688 = vmatprep.subr.mxu0 0.0
        %1689 = vmatpush2.msra.mxu0 0.0
        %1690 = vmatprep.subr.mxu0 0.0
        %1691 = vmatpush2.msra.mxu0 0.0
        %1692 = vmatprep.subr.mxu0 0.0
        %1693 = vmatpush2.msra.mxu0 0.0
        %1694 = vmatprep.subr.mxu0 0.0
        %1695 = vmatpush2.msra.mxu0 0.0
        %1696 = vmatprep.subr.mxu0 0.0
        %1697 = vmatpush2.msra.mxu0 0.0
        %1698 = vmatprep.subr.mxu0 0.0
        %1699 = vmatpush2.msra.mxu0 0.0
        %1700 = vmatprep.subr.mxu0 0.0
        %1701 = vmatpush2.msra.mxu0 0.0
        %1702 = vmatprep.mubr.f32.mxu0 0.0
        %1703 = vmatmul.mubr.f32.gmra.mxu0 %v1636
        %v1704 = vpop.f32.mrf.mxu0
        %v1705 = vadd.f32 %v1597, %v1704
        %v1706 = vpop.f32.mrf.mxu0
        %v1707 = vadd.f32 %v1601, %v1706
        %1708 = vdwg.mxu0
        %1709 = vmatprep.subr.mxu0 0.0
        %1710 = vmatpush1.msra.mxu0 0.0
        %1711 = vmatprep.subr.mxu0 0.0
        %1712 = vmatpush1.msra.mxu0 0.0
        %1713 = vmatprep.subr.mxu0 0.0
        %1714 = vmatpush1.msra.mxu0 0.0
        %1715 = vmatprep.subr.mxu0 0.0
        %1716 = vmatpush1.msra.mxu0 0.0
        %1717 = vmatprep.subr.mxu0 0.0
        %1718 = vmatpush1.msra.mxu0 0.0
        %1719 = vmatprep.subr.mxu0 0.0
        %1720 = vmatpush1.msra.mxu0 0.0
        %1721 = vmatprep.subr.mxu0 0.0
        %1722 = vmatpush1.msra.mxu0 0.0
        %1723 = vmatprep.subr.mxu0 0.0
        %1724 = vmatpush1.msra.mxu0 0.0
        %1725 = vmatprep.subr.mxu0 0.0
        %1726 = vmatpush1.msra.mxu0 0.0
        %1727 = vmatprep.subr.mxu0 0.0
        %1728 = vmatpush1.msra.mxu0 0.0
        %1729 = vmatprep.subr.mxu0 0.0
        %1730 = vmatpush1.msra.mxu0 0.0
        %1731 = vmatprep.subr.mxu0 0.0
        %1732 = vmatpush1.msra.mxu0 0.0
        %1733 = vmatprep.subr.mxu0 %v1587
        %1734 = vmatpush1.msra.mxu0 %v1586
        %1735 = vmatprep.subr.mxu0 %v1579
        %1736 = vmatpush1.msra.mxu0 %v1578
        %1737 = vmatprep.subr.mxu0 %v1571
        %1738 = vmatpush1.msra.mxu0 %v1570
        %1739 = vmatprep.subr.mxu0 %v1563
        %1740 = vmatpush1.msra.mxu0 %v1562
        %1741 = vmatprep.subr.mxu0 0.0
        %1742 = vmatpush2.msra.mxu0 0.0
        %1743 = vmatprep.subr.mxu0 0.0
        %1744 = vmatpush2.msra.mxu0 0.0
        %1745 = vmatprep.subr.mxu0 0.0
        %1746 = vmatpush2.msra.mxu0 0.0
        %1747 = vmatprep.subr.mxu0 0.0
        %1748 = vmatpush2.msra.mxu0 0.0
        %1749 = vmatprep.subr.mxu0 0.0
        %1750 = vmatpush2.msra.mxu0 0.0
        %1751 = vmatprep.subr.mxu0 0.0
        %1752 = vmatpush2.msra.mxu0 0.0
        %1753 = vmatprep.subr.mxu0 0.0
        %1754 = vmatpush2.msra.mxu0 0.0
        %1755 = vmatprep.subr.mxu0 0.0
        %1756 = vmatpush2.msra.mxu0 0.0
        %1757 = vmatprep.subr.mxu0 0.0
        %1758 = vmatpush2.msra.mxu0 0.0
        %1759 = vmatprep.subr.mxu0 0.0
        %1760 = vmatpush2.msra.mxu0 0.0
        %1761 = vmatprep.subr.mxu0 0.0
        %1762 = vmatpush2.msra.mxu0 0.0
        %1763 = vmatprep.subr.mxu0 0.0
        %1764 = vmatpush2.msra.mxu0 0.0
        %1765 = vmatprep.subr.mxu0 0.0
        %1766 = vmatpush2.msra.mxu0 0.0
        %1767 = vmatprep.subr.mxu0 0.0
        %1768 = vmatpush2.msra.mxu0 0.0
        %1769 = vmatprep.subr.mxu0 0.0
        %1770 = vmatpush2.msra.mxu0 0.0
        %1771 = vmatprep.subr.mxu0 0.0
        %1772 = vmatpush2.msra.mxu0 0.0
        %1773 = vmatprep.mubr.f32.mxu0 0.0
        %1774 = vmatmul.mubr.f32.gmra.mxu0 %v1636
        %v1775 = vpop.f32.mrf.mxu0
        %v1776 = vadd.f32 %v1605, %v1775
        %v1777 = vpop.f32.mrf.mxu0
        %v1778 = vadd.f32 %v1609, %v1777
        %1779 = vdwg.mxu0
        %1780 = vmatprep.subr.mxu0 0.0
        %1781 = vmatpush1.msra.mxu0 0.0
        %1782 = vmatprep.subr.mxu0 0.0
        %1783 = vmatpush1.msra.mxu0 0.0
        %1784 = vmatprep.subr.mxu0 0.0
        %1785 = vmatpush1.msra.mxu0 0.0
        %1786 = vmatprep.subr.mxu0 0.0
        %1787 = vmatpush1.msra.mxu0 0.0
        %1788 = vmatprep.subr.mxu0 0.0
        %1789 = vmatpush1.msra.mxu0 0.0
        %1790 = vmatprep.subr.mxu0 0.0
        %1791 = vmatpush1.msra.mxu0 0.0
        %1792 = vmatprep.subr.mxu0 0.0
        %1793 = vmatpush1.msra.mxu0 0.0
        %1794 = vmatprep.subr.mxu0 0.0
        %1795 = vmatpush1.msra.mxu0 0.0
        %1796 = vmatprep.subr.mxu0 0.0
        %1797 = vmatpush1.msra.mxu0 0.0
        %1798 = vmatprep.subr.mxu0 0.0
        %1799 = vmatpush1.msra.mxu0 0.0
        %1800 = vmatprep.subr.mxu0 0.0
        %1801 = vmatpush1.msra.mxu0 0.0
        %1802 = vmatprep.subr.mxu0 0.0
        %1803 = vmatpush1.msra.mxu0 0.0
        %1804 = vmatprep.subr.mxu0 %v1589
        %1805 = vmatpush1.msra.mxu0 %v1588
        %1806 = vmatprep.subr.mxu0 %v1581
        %1807 = vmatpush1.msra.mxu0 %v1580
        %1808 = vmatprep.subr.mxu0 %v1573
        %1809 = vmatpush1.msra.mxu0 %v1572
        %1810 = vmatprep.subr.mxu0 %v1565
        %1811 = vmatpush1.msra.mxu0 %v1564
        %1812 = vmatprep.subr.mxu0 0.0
        %1813 = vmatpush2.msra.mxu0 0.0
        %1814 = vmatprep.subr.mxu0 0.0
        %1815 = vmatpush2.msra.mxu0 0.0
        %1816 = vmatprep.subr.mxu0 0.0
        %1817 = vmatpush2.msra.mxu0 0.0
        %1818 = vmatprep.subr.mxu0 0.0
        %1819 = vmatpush2.msra.mxu0 0.0
        %1820 = vmatprep.subr.mxu0 0.0
        %1821 = vmatpush2.msra.mxu0 0.0
        %1822 = vmatprep.subr.mxu0 0.0
        %1823 = vmatpush2.msra.mxu0 0.0
        %1824 = vmatprep.subr.mxu0 0.0
        %1825 = vmatpush2.msra.mxu0 0.0
        %1826 = vmatprep.subr.mxu0 0.0
        %1827 = vmatpush2.msra.mxu0 0.0
        %1828 = vmatprep.subr.mxu0 0.0
        %1829 = vmatpush2.msra.mxu0 0.0
        %1830 = vmatprep.subr.mxu0 0.0
        %1831 = vmatpush2.msra.mxu0 0.0
        %1832 = vmatprep.subr.mxu0 0.0
        %1833 = vmatpush2.msra.mxu0 0.0
        %1834 = vmatprep.subr.mxu0 0.0
        %1835 = vmatpush2.msra.mxu0 0.0
        %1836 = vmatprep.subr.mxu0 0.0
        %1837 = vmatpush2.msra.mxu0 0.0
        %1838 = vmatprep.subr.mxu0 0.0
        %1839 = vmatpush2.msra.mxu0 0.0
        %1840 = vmatprep.subr.mxu0 0.0
        %1841 = vmatpush2.msra.mxu0 0.0
        %1842 = vmatprep.subr.mxu0 0.0
        %1843 = vmatpush2.msra.mxu0 0.0
        %1844 = vmatprep.mubr.f32.mxu0 0.0
        %1845 = vmatmul.mubr.f32.gmra.mxu0 %v1636
        %v1846 = vpop.f32.mrf.mxu0
        %v1847 = vadd.f32 %v1613, %v1846
        %v1848 = vpop.f32.mrf.mxu0
        %v1849 = vadd.f32 %v1617, %v1848
        %1850 = vdwg.mxu0
        %1851 = vmatprep.subr.mxu0 0.0
        %1852 = vmatpush1.msra.mxu0 0.0
        %1853 = vmatprep.subr.mxu0 0.0
        %1854 = vmatpush1.msra.mxu0 0.0
        %1855 = vmatprep.subr.mxu0 0.0
        %1856 = vmatpush1.msra.mxu0 0.0
        %1857 = vmatprep.subr.mxu0 0.0
        %1858 = vmatpush1.msra.mxu0 0.0
        %1859 = vmatprep.subr.mxu0 0.0
        %1860 = vmatpush1.msra.mxu0 0.0
        %1861 = vmatprep.subr.mxu0 0.0
        %1862 = vmatpush1.msra.mxu0 0.0
        %1863 = vmatprep.subr.mxu0 0.0
        %1864 = vmatpush1.msra.mxu0 0.0
        %1865 = vmatprep.subr.mxu0 0.0
        %1866 = vmatpush1.msra.mxu0 0.0
        %1867 = vmatprep.subr.mxu0 0.0
        %1868 = vmatpush1.msra.mxu0 0.0
        %1869 = vmatprep.subr.mxu0 0.0
        %1870 = vmatpush1.msra.mxu0 0.0
        %1871 = vmatprep.subr.mxu0 0.0
        %1872 = vmatpush1.msra.mxu0 0.0
        %1873 = vmatprep.subr.mxu0 0.0
        %1874 = vmatpush1.msra.mxu0 0.0
        %1875 = vmatprep.subr.mxu0 %v1591
        %1876 = vmatpush1.msra.mxu0 %v1590
        %1877 = vmatprep.subr.mxu0 %v1583
        %1878 = vmatpush1.msra.mxu0 %v1582
        %1879 = vmatprep.subr.mxu0 %v1575
        %1880 = vmatpush1.msra.mxu0 %v1574
        %1881 = vmatprep.subr.mxu0 %v1567
        %1882 = vmatpush1.msra.mxu0 %v1566
        %1883 = vmatprep.subr.mxu0 0.0
        %1884 = vmatpush2.msra.mxu0 0.0
        %1885 = vmatprep.subr.mxu0 0.0
        %1886 = vmatpush2.msra.mxu0 0.0
        %1887 = vmatprep.subr.mxu0 0.0
        %1888 = vmatpush2.msra.mxu0 0.0
        %1889 = vmatprep.subr.mxu0 0.0
        %1890 = vmatpush2.msra.mxu0 0.0
        %1891 = vmatprep.subr.mxu0 0.0
        %1892 = vmatpush2.msra.mxu0 0.0
        %1893 = vmatprep.subr.mxu0 0.0
        %1894 = vmatpush2.msra.mxu0 0.0
        %1895 = vmatprep.subr.mxu0 0.0
        %1896 = vmatpush2.msra.mxu0 0.0
        %1897 = vmatprep.subr.mxu0 0.0
        %1898 = vmatpush2.msra.mxu0 0.0
        %1899 = vmatprep.subr.mxu0 0.0
        %1900 = vmatpush2.msra.mxu0 0.0
        %1901 = vmatprep.subr.mxu0 0.0
        %1902 = vmatpush2.msra.mxu0 0.0
        %1903 = vmatprep.subr.mxu0 0.0
        %1904 = vmatpush2.msra.mxu0 0.0
        %1905 = vmatprep.subr.mxu0 0.0
        %1906 = vmatpush2.msra.mxu0 0.0
        %1907 = vmatprep.subr.mxu0 0.0
        %1908 = vmatpush2.msra.mxu0 0.0
        %1909 = vmatprep.subr.mxu0 0.0
        %1910 = vmatpush2.msra.mxu0 0.0
        %1911 = vmatprep.subr.mxu0 0.0
        %1912 = vmatpush2.msra.mxu0 0.0
        %1913 = vmatprep.subr.mxu0 0.0
        %1914 = vmatpush2.msra.mxu0 0.0
        %1915 = vmatprep.mubr.f32.mxu0 0.0
        %1916 = vmatmul.mubr.f32.gmra.mxu0 %v1636
        %v1917 = vpop.f32.mrf.mxu0
        %v1918 = vadd.f32 %v1621, %v1917
        %v1919 = vpop.f32.mrf.mxu0
        %v1920 = vadd.f32 %v1625, %v1919
        %1921 = vdwg.mxu0
        %v1923 = vrot.slane %v1707, 7
        %v1926 = vrot.slane %v1776, 6
        %v1929 = vrot.slane %v1778, 5
        %v1932 = vrot.slane %v1847, 4
        %v1935 = vrot.slane %v1849, 3
        %v1938 = vrot.slane %v1918, 2
        %v1941 = vrot.slane %v1920, 1
        %v1943 = vsel %vm909, %v1705, %v1923
        %v1944 = vsel %vm911, %v1943, %v1926
        %v1945 = vsel %vm913, %v1944, %v1929
        %v1946 = vsel %vm915, %v1945, %v1932
        %v1947 = vsel %vm917, %v1946, %v1935
        %v1948 = vsel %vm919, %v1947, %v1938
        %v1949 = vsel %vm921, %v1948, %v1941
        %s1950 = scalar_lea.vmem %s9, 96
        %v1951 = vld [vmem:[%s1950] sm:$0xff]
        %v1952 = vld [vmem:[%s1950 + $0x8] sm:$0xff]
        %v1953 = vld [vmem:[%s1950 + $0x10] sm:$0xff]
        %v1954 = vld [vmem:[%s1950 + $0x18] sm:$0xff]
        %v1955 = vld [vmem:[%s1950 + $0x20] sm:$0xff]
        %v1956 = vld [vmem:[%s1950 + $0x28] sm:$0xff]
        %v1958 = vsel %vm929, %v1951, 0
        %v1961 = vsel %vm929, %v1952, 0
        %v1964 = vsel %vm929, %v1953, 0
        %v1967 = vsel %vm929, %v1954, 0
        %v1970 = vsel %vm929, %v1955, 0
        %v1973 = vsel %vm929, %v1956, 0
        %1975 = vmatprep.subr.mxu0 0.0
        %1976 = vmatpush1.msra.mxu0 0.0
        %1977 = vmatprep.subr.mxu0 0.0
        %1978 = vmatpush1.msra.mxu0 0.0
        %1979 = vmatprep.subr.mxu0 0.0
        %1980 = vmatpush1.msra.mxu0 0.0
        %1981 = vmatprep.subr.mxu0 0.0
        %1982 = vmatpush1.msra.mxu0 0.0
        %1983 = vmatprep.subr.mxu0 0.0
        %1984 = vmatpush1.msra.mxu0 0.0
        %1985 = vmatprep.subr.mxu0 0.0
        %1986 = vmatpush1.msra.mxu0 0.0
        %1987 = vmatprep.subr.mxu0 0.0
        %1988 = vmatpush1.msra.mxu0 0.0
        %1989 = vmatprep.subr.mxu0 0.0
        %1990 = vmatpush1.msra.mxu0 0.0
        %1991 = vmatprep.subr.mxu0 0.0
        %1992 = vmatpush1.msra.mxu0 0.0
        %1993 = vmatprep.subr.mxu0 0.0
        %1994 = vmatpush1.msra.mxu0 0.0
        %1995 = vmatprep.subr.mxu0 0.0
        %1996 = vmatpush1.msra.mxu0 0.0
        %1997 = vmatprep.subr.mxu0 0.0
        %1998 = vmatpush1.msra.mxu0 0.0
        %1999 = vmatprep.subr.mxu0 0.0
        %2000 = vmatpush1.msra.mxu0 0.0
        %2001 = vmatprep.subr.mxu0 0.0
        %2002 = vmatpush1.msra.mxu0 0.0
        %2003 = vmatprep.subr.mxu0 0.0
        %2004 = vmatpush1.msra.mxu0 0.0
        %2005 = vmatprep.subr.mxu0 0.0
        %2006 = vmatpush1.msra.mxu0 %v1949
        %2007 = vmatprep.subr.mxu0 0.0
        %2008 = vmatpush2.msra.mxu0 0.0
        %2009 = vmatprep.subr.mxu0 0.0
        %2010 = vmatpush2.msra.mxu0 0.0
        %2011 = vmatprep.subr.mxu0 0.0
        %2012 = vmatpush2.msra.mxu0 0.0
        %2013 = vmatprep.subr.mxu0 0.0
        %2014 = vmatpush2.msra.mxu0 0.0
        %2015 = vmatprep.subr.mxu0 0.0
        %2016 = vmatpush2.msra.mxu0 0.0
        %2017 = vmatprep.subr.mxu0 0.0
        %2018 = vmatpush2.msra.mxu0 0.0
        %2019 = vmatprep.subr.mxu0 0.0
        %2020 = vmatpush2.msra.mxu0 0.0
        %2021 = vmatprep.subr.mxu0 0.0
        %2022 = vmatpush2.msra.mxu0 0.0
        %2023 = vmatprep.subr.mxu0 0.0
        %2024 = vmatpush2.msra.mxu0 0.0
        %2025 = vmatprep.subr.mxu0 0.0
        %2026 = vmatpush2.msra.mxu0 0.0
        %2027 = vmatprep.subr.mxu0 0.0
        %2028 = vmatpush2.msra.mxu0 0.0
        %2029 = vmatprep.subr.mxu0 0.0
        %2030 = vmatpush2.msra.mxu0 0.0
        %2031 = vmatprep.subr.mxu0 0.0
        %2032 = vmatpush2.msra.mxu0 0.0
        %2033 = vmatprep.subr.mxu0 0.0
        %2034 = vmatpush2.msra.mxu0 0.0
        %2035 = vmatprep.subr.mxu0 0.0
        %2036 = vmatpush2.msra.mxu0 0.0
        %2037 = vmatprep.subr.mxu0 0.0
        %2038 = vmatpush2.msra.mxu0 0.0
        %2039 = vmatprep.mubr.f32.mxu0 0.0
        %2040 = vmatmul.mubr.f32.gmra.mxu0 %v1958
        %v2041 = vpop.f32.mrf.mxu0
        %v2042 = vadd.f32 0.0, %v2041
        %v2043 = vpop.f32.mrf.mxu0
        %2044 = vmatprep.mubr.f32.mxu0 0.0
        %2045 = vmatmul.mubr.f32.gmra.mxu0 %v1961
        %v2046 = vpop.f32.mrf.mxu0
        %v2047 = vadd.f32 0.0, %v2046
        %v2048 = vpop.f32.mrf.mxu0
        %2049 = vmatprep.mubr.f32.mxu0 0.0
        %2050 = vmatmul.mubr.f32.gmra.mxu0 %v1964
        %v2051 = vpop.f32.mrf.mxu0
        %v2052 = vadd.f32 0.0, %v2051
        %v2053 = vpop.f32.mrf.mxu0
        %2054 = vmatprep.mubr.f32.mxu0 0.0
        %2055 = vmatmul.mubr.f32.gmra.mxu0 %v1967
        %v2056 = vpop.f32.mrf.mxu0
        %v2057 = vadd.f32 0.0, %v2056
        %v2058 = vpop.f32.mrf.mxu0
        %2059 = vmatprep.mubr.f32.mxu0 0.0
        %2060 = vmatmul.mubr.f32.gmra.mxu0 %v1970
        %v2061 = vpop.f32.mrf.mxu0
        %v2062 = vadd.f32 0.0, %v2061
        %v2063 = vpop.f32.mrf.mxu0
        %2064 = vmatprep.mubr.f32.mxu0 0.0
        %2065 = vmatmul.mubr.f32.gmra.mxu0 %v1973
        %v2066 = vpop.f32.mrf.mxu0
        %v2067 = vadd.f32 0.0, %v2066
        %v2068 = vpop.f32.mrf.mxu0
        %2069 = vdwg.mxu0
        %s2070 = scalar_lea.vmem [#allocation2], 96
        %2071 = vst [vmem:[%s2070] sm:$0xff] %v2042
        %2072 = vst [vmem:[%s2070 + $0x8] sm:$0xff] %v2047
        %2073 = vst [vmem:[%s2070 + $0x10] sm:$0xff] %v2052
        %2074 = vst [vmem:[%s2070 + $0x18] sm:$0xff] %v2057
        %2075 = vst [vmem:[%s2070 + $0x20] sm:$0xff] %v2062
        %2076 = vst [vmem:[%s2070 + $0x28] sm:$0xff] %v2067
        %v2077 = vld [vmem:[#allocation2] sm:$0xff]
        %v2078 = vld [vmem:[%s1552 + $0x10] sm:$0xff]
        %v2079 = vld [vmem:[%s1552 + $0x18] sm:$0xff]
        %2080 = vxpose.xlu0.b32.start [1/16] %v2078, 128
        %2081 = vxpose.xlu0.b32.cont [2/16] 0.0, 128
        %2082 = vxpose.xlu0.b32.cont [3/16] 0.0, 128
        %2083 = vxpose.xlu0.b32.cont [4/16] 0.0, 128
        %2084 = vxpose.xlu0.b32.cont [5/16] 0.0, 128
        %2085 = vxpose.xlu0.b32.cont [6/16] 0.0, 128
        %2086 = vxpose.xlu0.b32.cont [7/16] 0.0, 128
        %2087 = vxpose.xlu0.b32.cont [8/16] 0.0, 128
        %2088 = vxpose.xlu0.b32.cont [9/16] 0.0, 128
        %2089 = vxpose.xlu0.b32.cont [10/16] 0.0, 128
        %2090 = vxpose.xlu0.b32.cont [11/16] 0.0, 128
        %2091 = vxpose.xlu0.b32.cont [12/16] 0.0, 128
        %2092 = vxpose.xlu0.b32.cont [13/16] 0.0, 128
        %2093 = vxpose.xlu0.b32.cont [14/16] 0.0, 128
        %2094 = vxpose.xlu0.b32.cont [15/16] 0.0, 128
        %2095 = vxpose.xlu0.b32.end [16/16] 0.0, 128
        %v2096 = vpop.trf.xlu0
        %v2097 = vpop.trf.xlu0
        %v2098 = vpop.trf.xlu0
        %v2099 = vpop.trf.xlu0
        %v2100 = vpop.trf.xlu0
        %v2101 = vpop.trf.xlu0
        %v2102 = vpop.trf.xlu0
        %v2103 = vpop.trf.xlu0
        %v2104 = vpop.trf.xlu0
        %v2105 = vpop.trf.xlu0
        %v2106 = vpop.trf.xlu0
        %v2107 = vpop.trf.xlu0
        %v2108 = vpop.trf.xlu0
        %v2109 = vpop.trf.xlu0
        %v2110 = vpop.trf.xlu0
        %v2111 = vpop.trf.xlu0
        %v2113 = vsel %vm929, %v2096, 0
        %v2116 = vsel %vm929, %v2097, 0
        %v2119 = vsel %vm929, %v2098, 0
        %v2122 = vsel %vm929, %v2099, 0
        %v2125 = vsel %vm929, %v2100, 0
        %v2128 = vsel %vm929, %v2101, 0
        %v2131 = vsel %vm929, %v2102, 0
        %v2134 = vsel %vm929, %v2103, 0
        %v2137 = vsel %vm929, %v2104, 0
        %v2140 = vsel %vm929, %v2105, 0
        %v2143 = vsel %vm929, %v2106, 0
        %v2146 = vsel %vm929, %v2107, 0
        %v2149 = vsel %vm929, %v2108, 0
        %v2152 = vsel %vm929, %v2109, 0
        %v2155 = vsel %vm929, %v2110, 0
        %v2158 = vsel %vm929, %v2111, 0
        %2160 = vmatprep.subr.mxu0 0.0
        %2161 = vmatpush1.msra.mxu0 0.0
        %2162 = vmatprep.subr.mxu0 0.0
        %2163 = vmatpush1.msra.mxu0 0.0
        %2164 = vmatprep.subr.mxu0 0.0
        %2165 = vmatpush1.msra.mxu0 0.0
        %2166 = vmatprep.subr.mxu0 0.0
        %2167 = vmatpush1.msra.mxu0 0.0
        %2168 = vmatprep.subr.mxu0 0.0
        %2169 = vmatpush1.msra.mxu0 0.0
        %2170 = vmatprep.subr.mxu0 0.0
        %2171 = vmatpush1.msra.mxu0 0.0
        %2172 = vmatprep.subr.mxu0 0.0
        %2173 = vmatpush1.msra.mxu0 0.0
        %2174 = vmatprep.subr.mxu0 0.0
        %2175 = vmatpush1.msra.mxu0 0.0
        %2176 = vmatprep.subr.mxu0 0.0
        %2177 = vmatpush1.msra.mxu0 0.0
        %2178 = vmatprep.subr.mxu0 0.0
        %2179 = vmatpush1.msra.mxu0 0.0
        %2180 = vmatprep.subr.mxu0 0.0
        %2181 = vmatpush1.msra.mxu0 0.0
        %2182 = vmatprep.subr.mxu0 0.0
        %2183 = vmatpush1.msra.mxu0 0.0
        %2184 = vmatprep.subr.mxu0 0.0
        %2185 = vmatpush1.msra.mxu0 0.0
        %2186 = vmatprep.subr.mxu0 0.0
        %2187 = vmatpush1.msra.mxu0 0.0
        %2188 = vmatprep.subr.mxu0 0.0
        %2189 = vmatpush1.msra.mxu0 0.0
        %2190 = vmatprep.subr.mxu0 0.0
        %2191 = vmatpush1.msra.mxu0 %v2077
        %2192 = vmatprep.subr.mxu0 0.0
        %2193 = vmatpush2.msra.mxu0 0.0
        %2194 = vmatprep.subr.mxu0 0.0
        %2195 = vmatpush2.msra.mxu0 0.0
        %2196 = vmatprep.subr.mxu0 0.0
        %2197 = vmatpush2.msra.mxu0 0.0
        %2198 = vmatprep.subr.mxu0 0.0
        %2199 = vmatpush2.msra.mxu0 0.0
        %2200 = vmatprep.subr.mxu0 0.0
        %2201 = vmatpush2.msra.mxu0 0.0
        %2202 = vmatprep.subr.mxu0 0.0
        %2203 = vmatpush2.msra.mxu0 0.0
        %2204 = vmatprep.subr.mxu0 0.0
        %2205 = vmatpush2.msra.mxu0 0.0
        %2206 = vmatprep.subr.mxu0 0.0
        %2207 = vmatpush2.msra.mxu0 0.0
        %2208 = vmatprep.subr.mxu0 0.0
        %2209 = vmatpush2.msra.mxu0 0.0
        %2210 = vmatprep.subr.mxu0 0.0
        %2211 = vmatpush2.msra.mxu0 0.0
        %2212 = vmatprep.subr.mxu0 0.0
        %2213 = vmatpush2.msra.mxu0 0.0
        %2214 = vmatprep.subr.mxu0 0.0
        %2215 = vmatpush2.msra.mxu0 0.0
        %2216 = vmatprep.subr.mxu0 0.0
        %2217 = vmatpush2.msra.mxu0 0.0
        %2218 = vmatprep.subr.mxu0 0.0
        %2219 = vmatpush2.msra.mxu0 0.0
        %2220 = vmatprep.subr.mxu0 0.0
        %2221 = vmatpush2.msra.mxu0 0.0
        %2222 = vmatprep.subr.mxu0 0.0
        %2223 = vmatpush2.msra.mxu0 0.0
        %2224 = vmatprep.mubr.f32.mxu0 0.0
        %2225 = vmatmul.mubr.f32.gmra.mxu0 %v2113
        %v2226 = vpop.f32.mrf.mxu0
        %v2227 = vadd.f32 0.0, %v2226
        %v2228 = vpop.f32.mrf.mxu0
        %2229 = vmatprep.mubr.f32.mxu0 0.0
        %2230 = vmatmul.mubr.f32.gmra.mxu0 %v2116
        %v2231 = vpop.f32.mrf.mxu0
        %v2232 = vadd.f32 0.0, %v2231
        %v2233 = vpop.f32.mrf.mxu0
        %2234 = vmatprep.mubr.f32.mxu0 0.0
        %2235 = vmatmul.mubr.f32.gmra.mxu0 %v2119
        %v2236 = vpop.f32.mrf.mxu0
        %v2237 = vadd.f32 0.0, %v2236
        %v2238 = vpop.f32.mrf.mxu0
        %2239 = vmatprep.mubr.f32.mxu0 0.0
        %2240 = vmatmul.mubr.f32.gmra.mxu0 %v2122
        %v2241 = vpop.f32.mrf.mxu0
        %v2242 = vadd.f32 0.0, %v2241
        %v2243 = vpop.f32.mrf.mxu0
        %2244 = vmatprep.mubr.f32.mxu0 0.0
        %2245 = vmatmul.mubr.f32.gmra.mxu0 %v2125
        %v2246 = vpop.f32.mrf.mxu0
        %v2247 = vadd.f32 0.0, %v2246
        %v2248 = vpop.f32.mrf.mxu0
        %2249 = vmatprep.mubr.f32.mxu0 0.0
        %2250 = vmatmul.mubr.f32.gmra.mxu0 %v2128
        %v2251 = vpop.f32.mrf.mxu0
        %v2252 = vadd.f32 0.0, %v2251
        %v2253 = vpop.f32.mrf.mxu0
        %2254 = vmatprep.mubr.f32.mxu0 0.0
        %2255 = vmatmul.mubr.f32.gmra.mxu0 %v2131
        %v2256 = vpop.f32.mrf.mxu0
        %v2257 = vadd.f32 0.0, %v2256
        %v2258 = vpop.f32.mrf.mxu0
        %2259 = vmatprep.mubr.f32.mxu0 0.0
        %2260 = vmatmul.mubr.f32.gmra.mxu0 %v2134
        %v2261 = vpop.f32.mrf.mxu0
        %v2262 = vadd.f32 0.0, %v2261
        %v2263 = vpop.f32.mrf.mxu0
        %2264 = vmatprep.mubr.f32.mxu0 0.0
        %2265 = vmatmul.mubr.f32.gmra.mxu0 %v2137
        %v2266 = vpop.f32.mrf.mxu0
        %v2267 = vadd.f32 0.0, %v2266
        %v2268 = vpop.f32.mrf.mxu0
        %2269 = vmatprep.mubr.f32.mxu0 0.0
        %2270 = vmatmul.mubr.f32.gmra.mxu0 %v2140
        %v2271 = vpop.f32.mrf.mxu0
        %v2272 = vadd.f32 0.0, %v2271
        %v2273 = vpop.f32.mrf.mxu0
        %2274 = vmatprep.mubr.f32.mxu0 0.0
        %2275 = vmatmul.mubr.f32.gmra.mxu0 %v2143
        %v2276 = vpop.f32.mrf.mxu0
        %v2277 = vadd.f32 0.0, %v2276
        %v2278 = vpop.f32.mrf.mxu0
        %2279 = vmatprep.mubr.f32.mxu0 0.0
        %2280 = vmatmul.mubr.f32.gmra.mxu0 %v2146
        %v2281 = vpop.f32.mrf.mxu0
        %v2282 = vadd.f32 0.0, %v2281
        %v2283 = vpop.f32.mrf.mxu0
        %2284 = vmatprep.mubr.f32.mxu0 0.0
        %2285 = vmatmul.mubr.f32.gmra.mxu0 %v2149
        %v2286 = vpop.f32.mrf.mxu0
        %v2287 = vadd.f32 0.0, %v2286
        %v2288 = vpop.f32.mrf.mxu0
        %2289 = vmatprep.mubr.f32.mxu0 0.0
        %2290 = vmatmul.mubr.f32.gmra.mxu0 %v2152
        %v2291 = vpop.f32.mrf.mxu0
        %v2292 = vadd.f32 0.0, %v2291
        %v2293 = vpop.f32.mrf.mxu0
        %2294 = vmatprep.mubr.f32.mxu0 0.0
        %2295 = vmatmul.mubr.f32.gmra.mxu0 %v2155
        %v2296 = vpop.f32.mrf.mxu0
        %v2297 = vadd.f32 0.0, %v2296
        %v2298 = vpop.f32.mrf.mxu0
        %2299 = vmatprep.mubr.f32.mxu0 0.0
        %2300 = vmatmul.mubr.f32.gmra.mxu0 %v2158
        %v2301 = vpop.f32.mrf.mxu0
        %v2302 = vadd.f32 0.0, %v2301
        %v2303 = vpop.f32.mrf.mxu0
        %2304 = vdwg.mxu0
        %v2305 = vmax.f32 %v2227, %v2247
        %v2306 = vmax.f32 %v2232, %v2252
        %v2307 = vmax.f32 %v2237, %v2257
        %v2308 = vmax.f32 %v2242, %v2262
        %v2309 = vmax.f32 %v2305, %v2267
        %v2310 = vmax.f32 %v2306, %v2272
        %v2311 = vmax.f32 %v2307, %v2277
        %v2312 = vmax.f32 %v2308, %v2282
        %v2313 = vmax.f32 %v2309, %v2287
        %v2314 = vmax.f32 %v2310, %v2292
        %v2315 = vmax.f32 %v2311, %v2297
        %v2316 = vmax.f32 %v2312, %v2302
        %v2317 = vmax.f32 %v2313, %v2314
        %v2318 = vmax.f32 %v2315, %v2316
        %v2319 = vmax.f32 %v2317, %v2318
        %v2320 = vrot.slane %v2319, 4
        %v2321 = vmax.f32 %v2319, %v2320
        %v2322 = vrot.slane %v2321, 2
        %v2323 = vmax.f32 %v2321, %v2322
        %v2324 = vrot.slane %v2323, 1
        %v2325 = vmax.f32 %v2323, %v2324
        %v2326 = vsub.f32 %v2227, %v2325
        %v2327 = vsub.f32 %v2232, %v2325
        %v2328 = vsub.f32 %v2237, %v2325
        %v2329 = vsub.f32 %v2242, %v2325
        %v2330 = vsub.f32 %v2247, %v2325
        %v2331 = vsub.f32 %v2252, %v2325
        %v2332 = vsub.f32 %v2257, %v2325
        %v2333 = vsub.f32 %v2262, %v2325
        %v2334 = vsub.f32 %v2267, %v2325
        %v2335 = vsub.f32 %v2272, %v2325
        %v2336 = vsub.f32 %v2277, %v2325
        %v2337 = vsub.f32 %v2282, %v2325
        %v2338 = vsub.f32 %v2287, %v2325
        %v2339 = vsub.f32 %v2292, %v2325
        %v2340 = vsub.f32 %v2297, %v2325
        %v2341 = vsub.f32 %v2302, %v2325
        %v2342 = vmul.f32 %v2326, 1.442695
        %v2343 = vpow.pop %v2342
        %v2344 = vmul.f32 %v2327, 1.442695
        %v2345 = vpow.pop %v2344
        %v2346 = vmul.f32 %v2328, 1.442695
        %v2347 = vpow.pop %v2346
        %v2348 = vmul.f32 %v2329, 1.442695
        %v2349 = vpow.pop %v2348
        %v2350 = vmul.f32 %v2330, 1.442695
        %v2351 = vpow.pop %v2350
        %v2352 = vmul.f32 %v2331, 1.442695
        %v2353 = vpow.pop %v2352
        %v2354 = vmul.f32 %v2332, 1.442695
        %v2355 = vpow.pop %v2354
        %v2356 = vmul.f32 %v2333, 1.442695
        %v2357 = vpow.pop %v2356
        %v2358 = vmul.f32 %v2334, 1.442695
        %v2359 = vpow.pop %v2358
        %v2360 = vmul.f32 %v2335, 1.442695
        %v2361 = vpow.pop %v2360
        %v2362 = vmul.f32 %v2336, 1.442695
        %v2363 = vpow.pop %v2362
        %v2364 = vmul.f32 %v2337, 1.442695
        %v2365 = vpow.pop %v2364
        %v2366 = vmul.f32 %v2338, 1.442695
        %v2367 = vpow.pop %v2366
        %v2368 = vmul.f32 %v2339, 1.442695
        %v2369 = vpow.pop %v2368
        %v2370 = vmul.f32 %v2340, 1.442695
        %v2371 = vpow.pop %v2370
        %v2372 = vmul.f32 %v2341, 1.442695
        %v2373 = vpow.pop %v2372
        %v2374 = vadd.f32 %v2343, %v2345
        %v2375 = vadd.f32 %v2374, %v2347
        %v2376 = vadd.f32 %v2375, %v2349
        %v2377 = vadd.f32 %v2376, %v2351
        %v2378 = vadd.f32 %v2377, %v2353
        %v2379 = vadd.f32 %v2378, %v2355
        %v2380 = vadd.f32 %v2379, %v2357
        %v2381 = vadd.f32 %v2380, %v2359
        %v2382 = vadd.f32 %v2381, %v2361
        %v2383 = vadd.f32 %v2382, %v2363
        %v2384 = vadd.f32 %v2383, %v2365
        %v2385 = vadd.f32 %v2384, %v2367
        %v2386 = vadd.f32 %v2385, %v2369
        %v2387 = vadd.f32 %v2386, %v2371
        %v2388 = vadd.f32 %v2387, %v2373
        %v2389 = vrot.slane %v2388, 4
        %v2390 = vadd.f32 %v2388, %v2389
        %v2391 = vrot.slane %v2390, 2
        %v2392 = vadd.f32 %v2390, %v2391
        %v2393 = vrot.slane %v2392, 1
        %v2394 = vadd.f32 %v2392, %v2393
        %2395 = vmatprep.subr.mxu0 0.0
        %2396 = vmatpush1.msra.mxu0 %v2373
        %2397 = vmatprep.subr.mxu0 0.0
        %2398 = vmatpush1.msra.mxu0 %v2371
        %2399 = vmatprep.subr.mxu0 0.0
        %2400 = vmatpush1.msra.mxu0 %v2369
        %2401 = vmatprep.subr.mxu0 0.0
        %2402 = vmatpush1.msra.mxu0 %v2367
        %2403 = vmatprep.subr.mxu0 0.0
        %2404 = vmatpush1.msra.mxu0 %v2365
        %2405 = vmatprep.subr.mxu0 0.0
        %2406 = vmatpush1.msra.mxu0 %v2363
        %2407 = vmatprep.subr.mxu0 0.0
        %2408 = vmatpush1.msra.mxu0 %v2361
        %2409 = vmatprep.subr.mxu0 0.0
        %2410 = vmatpush1.msra.mxu0 %v2359
        %2411 = vmatprep.subr.mxu0 0.0
        %2412 = vmatpush1.msra.mxu0 %v2357
        %2413 = vmatprep.subr.mxu0 0.0
        %2414 = vmatpush1.msra.mxu0 %v2355
        %2415 = vmatprep.subr.mxu0 0.0
        %2416 = vmatpush1.msra.mxu0 %v2353
        %2417 = vmatprep.subr.mxu0 0.0
        %2418 = vmatpush1.msra.mxu0 %v2351
        %2419 = vmatprep.subr.mxu0 0.0
        %2420 = vmatpush1.msra.mxu0 %v2349
        %2421 = vmatprep.subr.mxu0 0.0
        %2422 = vmatpush1.msra.mxu0 %v2347
        %2423 = vmatprep.subr.mxu0 0.0
        %2424 = vmatpush1.msra.mxu0 %v2345
        %2425 = vmatprep.subr.mxu0 0.0
        %2426 = vmatpush1.msra.mxu0 %v2343
        %2427 = vmatprep.subr.mxu0 0.0
        %2428 = vmatpush2.msra.mxu0 0.0
        %2429 = vmatprep.subr.mxu0 0.0
        %2430 = vmatpush2.msra.mxu0 0.0
        %2431 = vmatprep.subr.mxu0 0.0
        %2432 = vmatpush2.msra.mxu0 0.0
        %2433 = vmatprep.subr.mxu0 0.0
        %2434 = vmatpush2.msra.mxu0 0.0
        %2435 = vmatprep.subr.mxu0 0.0
        %2436 = vmatpush2.msra.mxu0 0.0
        %2437 = vmatprep.subr.mxu0 0.0
        %2438 = vmatpush2.msra.mxu0 0.0
        %2439 = vmatprep.subr.mxu0 0.0
        %2440 = vmatpush2.msra.mxu0 0.0
        %2441 = vmatprep.subr.mxu0 0.0
        %2442 = vmatpush2.msra.mxu0 0.0
        %2443 = vmatprep.subr.mxu0 0.0
        %2444 = vmatpush2.msra.mxu0 0.0
        %2445 = vmatprep.subr.mxu0 0.0
        %2446 = vmatpush2.msra.mxu0 0.0
        %2447 = vmatprep.subr.mxu0 0.0
        %2448 = vmatpush2.msra.mxu0 0.0
        %2449 = vmatprep.subr.mxu0 0.0
        %2450 = vmatpush2.msra.mxu0 0.0
        %2451 = vmatprep.subr.mxu0 0.0
        %2452 = vmatpush2.msra.mxu0 0.0
        %2453 = vmatprep.subr.mxu0 0.0
        %2454 = vmatpush2.msra.mxu0 0.0
        %2455 = vmatprep.subr.mxu0 0.0
        %2456 = vmatpush2.msra.mxu0 0.0
        %2457 = vmatprep.subr.mxu0 0.0
        %2458 = vmatpush2.msra.mxu0 0.0
        %2459 = vmatprep.mubr.f32.mxu0 0.0
        %2460 = vmatmul.mubr.f32.gmra.mxu0 %v2079
        %v2461 = vpop.f32.mrf.mxu0
        %v2462 = vadd.f32 0.0, %v2461
        %v2463 = vpop.f32.mrf.mxu0
        %2464 = vdwg.mxu0
        %v2465 = vrcp.pop %v2394
        %v2466 = vmul.f32 %v2462, %v2465
        %v2467 = vmul.f32 %v1431, 0.5
        %v2468 = vadd.f32 %v2466, %v2467
        %v2469 = vrot.slane %v2468, 4
        %v2470 = vadd.f32 %v2468, %v2469
        %v2471 = vrot.slane %v2470, 2
        %v2472 = vadd.f32 %v2470, %v2471
        %v2473 = vrot.slane %v2472, 1
        %v2474 = vadd.f32 %v2472, %v2473
        %v2475 = vrcp.pop 8.0
        %v2476 = vmul.f32 %v2474, %v2475
        %v2477 = vsub.f32 %v2468, %v2476
        %v2478 = vmul.f32 %v2477, %v2477
        %v2479 = vrot.slane %v2478, 4
        %v2480 = vadd.f32 %v2478, %v2479
        %v2481 = vrot.slane %v2480, 2
        %v2482 = vadd.f32 %v2480, %v2481
        %v2483 = vrot.slane %v2482, 1
        %v2484 = vadd.f32 %v2482, %v2483
        %v2485 = vmul.f32 %v2484, %v2475
        %v2486 = vadd.f32 %v2485, 1e-12
        %v2487 = vrsqrt.pop %v2486
        %v2488 = vmul.f32 %v2477, %v2487
        %v2489 = vld [vmem:[#allocation2 + $0x8] sm:$0xff]
        %v2490 = vld [vmem:[%s2070 + $0x10] sm:$0xff]
        %v2491 = vld [vmem:[%s2070 + $0x18] sm:$0xff]
        %2492 = vxpose.xlu0.b32.start [1/16] %v2490, 128
        %2493 = vxpose.xlu0.b32.cont [2/16] 0.0, 128
        %2494 = vxpose.xlu0.b32.cont [3/16] 0.0, 128
        %2495 = vxpose.xlu0.b32.cont [4/16] 0.0, 128
        %2496 = vxpose.xlu0.b32.cont [5/16] 0.0, 128
        %2497 = vxpose.xlu0.b32.cont [6/16] 0.0, 128
        %2498 = vxpose.xlu0.b32.cont [7/16] 0.0, 128
        %2499 = vxpose.xlu0.b32.cont [8/16] 0.0, 128
        %2500 = vxpose.xlu0.b32.cont [9/16] 0.0, 128
        %2501 = vxpose.xlu0.b32.cont [10/16] 0.0, 128
        %2502 = vxpose.xlu0.b32.cont [11/16] 0.0, 128
        %2503 = vxpose.xlu0.b32.cont [12/16] 0.0, 128
        %2504 = vxpose.xlu0.b32.cont [13/16] 0.0, 128
        %2505 = vxpose.xlu0.b32.cont [14/16] 0.0, 128
        %2506 = vxpose.xlu0.b32.cont [15/16] 0.0, 128
        %2507 = vxpose.xlu0.b32.end [16/16] 0.0, 128
        %v2508 = vpop.trf.xlu0
        %v2509 = vpop.trf.xlu0
        %v2510 = vpop.trf.xlu0
        %v2511 = vpop.trf.xlu0
        %v2512 = vpop.trf.xlu0
        %v2513 = vpop.trf.xlu0
        %v2514 = vpop.trf.xlu0
        %v2515 = vpop.trf.xlu0
        %v2516 = vpop.trf.xlu0
        %v2517 = vpop.trf.xlu0
        %v2518 = vpop.trf.xlu0
        %v2519 = vpop.trf.xlu0
        %v2520 = vpop.trf.xlu0
        %v2521 = vpop.trf.xlu0
        %v2522 = vpop.trf.xlu0
        %v2523 = vpop.trf.xlu0
        %v2525 = vsel %vm929, %v2508, 0
        %v2528 = vsel %vm929, %v2509, 0
        %v2531 = vsel %vm929, %v2510, 0
        %v2534 = vsel %vm929, %v2511, 0
        %v2537 = vsel %vm929, %v2512, 0
        %v2540 = vsel %vm929, %v2513, 0
        %v2543 = vsel %vm929, %v2514, 0
        %v2546 = vsel %vm929, %v2515, 0
        %v2549 = vsel %vm929, %v2516, 0
        %v2552 = vsel %vm929, %v2517, 0
        %v2555 = vsel %vm929, %v2518, 0
        %v2558 = vsel %vm929, %v2519, 0
        %v2561 = vsel %vm929, %v2520, 0
        %v2564 = vsel %vm929, %v2521, 0
        %v2567 = vsel %vm929, %v2522, 0
        %v2570 = vsel %vm929, %v2523, 0
        %2572 = vmatprep.subr.mxu0 0.0
        %2573 = vmatpush1.msra.mxu0 0.0
        %2574 = vmatprep.subr.mxu0 0.0
        %2575 = vmatpush1.msra.mxu0 0.0
        %2576 = vmatprep.subr.mxu0 0.0
        %2577 = vmatpush1.msra.mxu0 0.0
        %2578 = vmatprep.subr.mxu0 0.0
        %2579 = vmatpush1.msra.mxu0 0.0
        %2580 = vmatprep.subr.mxu0 0.0
        %2581 = vmatpush1.msra.mxu0 0.0
        %2582 = vmatprep.subr.mxu0 0.0
        %2583 = vmatpush1.msra.mxu0 0.0
        %2584 = vmatprep.subr.mxu0 0.0
        %2585 = vmatpush1.msra.mxu0 0.0
        %2586 = vmatprep.subr.mxu0 0.0
        %2587 = vmatpush1.msra.mxu0 0.0
        %2588 = vmatprep.subr.mxu0 0.0
        %2589 = vmatpush1.msra.mxu0 0.0
        %2590 = vmatprep.subr.mxu0 0.0
        %2591 = vmatpush1.msra.mxu0 0.0
        %2592 = vmatprep.subr.mxu0 0.0
        %2593 = vmatpush1.msra.mxu0 0.0
        %2594 = vmatprep.subr.mxu0 0.0
        %2595 = vmatpush1.msra.mxu0 0.0
        %2596 = vmatprep.subr.mxu0 0.0
        %2597 = vmatpush1.msra.mxu0 0.0
        %2598 = vmatprep.subr.mxu0 0.0
        %2599 = vmatpush1.msra.mxu0 0.0
        %2600 = vmatprep.subr.mxu0 0.0
        %2601 = vmatpush1.msra.mxu0 0.0
        %2602 = vmatprep.subr.mxu0 0.0
        %2603 = vmatpush1.msra.mxu0 %v2489
        %2604 = vmatprep.subr.mxu0 0.0
        %2605 = vmatpush2.msra.mxu0 0.0
        %2606 = vmatprep.subr.mxu0 0.0
        %2607 = vmatpush2.msra.mxu0 0.0
        %2608 = vmatprep.subr.mxu0 0.0
        %2609 = vmatpush2.msra.mxu0 0.0
        %2610 = vmatprep.subr.mxu0 0.0
        %2611 = vmatpush2.msra.mxu0 0.0
        %2612 = vmatprep.subr.mxu0 0.0
        %2613 = vmatpush2.msra.mxu0 0.0
        %2614 = vmatprep.subr.mxu0 0.0
        %2615 = vmatpush2.msra.mxu0 0.0
        %2616 = vmatprep.subr.mxu0 0.0
        %2617 = vmatpush2.msra.mxu0 0.0
        %2618 = vmatprep.subr.mxu0 0.0
        %2619 = vmatpush2.msra.mxu0 0.0
        %2620 = vmatprep.subr.mxu0 0.0
        %2621 = vmatpush2.msra.mxu0 0.0
        %2622 = vmatprep.subr.mxu0 0.0
        %2623 = vmatpush2.msra.mxu0 0.0
        %2624 = vmatprep.subr.mxu0 0.0
        %2625 = vmatpush2.msra.mxu0 0.0
        %2626 = vmatprep.subr.mxu0 0.0
        %2627 = vmatpush2.msra.mxu0 0.0
        %2628 = vmatprep.subr.mxu0 0.0
        %2629 = vmatpush2.msra.mxu0 0.0
        %2630 = vmatprep.subr.mxu0 0.0
        %2631 = vmatpush2.msra.mxu0 0.0
        %2632 = vmatprep.subr.mxu0 0.0
        %2633 = vmatpush2.msra.mxu0 0.0
        %2634 = vmatprep.subr.mxu0 0.0
        %2635 = vmatpush2.msra.mxu0 0.0
        %2636 = vmatprep.mubr.f32.mxu0 0.0
        %2637 = vmatmul.mubr.f32.gmra.mxu0 %v2525
        %v2638 = vpop.f32.mrf.mxu0
        %v2639 = vadd.f32 0.0, %v2638
        %v2640 = vpop.f32.mrf.mxu0
        %2641 = vmatprep.mubr.f32.mxu0 0.0
        %2642 = vmatmul.mubr.f32.gmra.mxu0 %v2528
        %v2643 = vpop.f32.mrf.mxu0
        %v2644 = vadd.f32 0.0, %v2643
        %v2645 = vpop.f32.mrf.mxu0
        %2646 = vmatprep.mubr.f32.mxu0 0.0
        %2647 = vmatmul.mubr.f32.gmra.mxu0 %v2531
        %v2648 = vpop.f32.mrf.mxu0
        %v2649 = vadd.f32 0.0, %v2648
        %v2650 = vpop.f32.mrf.mxu0
        %2651 = vmatprep.mubr.f32.mxu0 0.0
        %2652 = vmatmul.mubr.f32.gmra.mxu0 %v2534
        %v2653 = vpop.f32.mrf.mxu0
        %v2654 = vadd.f32 0.0, %v2653
        %v2655 = vpop.f32.mrf.mxu0
        %2656 = vmatprep.mubr.f32.mxu0 0.0
        %2657 = vmatmul.mubr.f32.gmra.mxu0 %v2537
        %v2658 = vpop.f32.mrf.mxu0
        %v2659 = vadd.f32 0.0, %v2658
        %v2660 = vpop.f32.mrf.mxu0
        %2661 = vmatprep.mubr.f32.mxu0 0.0
        %2662 = vmatmul.mubr.f32.gmra.mxu0 %v2540
        %v2663 = vpop.f32.mrf.mxu0
        %v2664 = vadd.f32 0.0, %v2663
        %v2665 = vpop.f32.mrf.mxu0
        %2666 = vmatprep.mubr.f32.mxu0 0.0
        %2667 = vmatmul.mubr.f32.gmra.mxu0 %v2543
        %v2668 = vpop.f32.mrf.mxu0
        %v2669 = vadd.f32 0.0, %v2668
        %v2670 = vpop.f32.mrf.mxu0
        %2671 = vmatprep.mubr.f32.mxu0 0.0
        %2672 = vmatmul.mubr.f32.gmra.mxu0 %v2546
        %v2673 = vpop.f32.mrf.mxu0
        %v2674 = vadd.f32 0.0, %v2673
        %v2675 = vpop.f32.mrf.mxu0
        %2676 = vmatprep.mubr.f32.mxu0 0.0
        %2677 = vmatmul.mubr.f32.gmra.mxu0 %v2549
        %v2678 = vpop.f32.mrf.mxu0
        %v2679 = vadd.f32 0.0, %v2678
        %v2680 = vpop.f32.mrf.mxu0
        %2681 = vmatprep.mubr.f32.mxu0 0.0
        %2682 = vmatmul.mubr.f32.gmra.mxu0 %v2552
        %v2683 = vpop.f32.mrf.mxu0
        %v2684 = vadd.f32 0.0, %v2683
        %v2685 = vpop.f32.mrf.mxu0
        %2686 = vmatprep.mubr.f32.mxu0 0.0
        %2687 = vmatmul.mubr.f32.gmra.mxu0 %v2555
        %v2688 = vpop.f32.mrf.mxu0
        %v2689 = vadd.f32 0.0, %v2688
        %v2690 = vpop.f32.mrf.mxu0
        %2691 = vmatprep.mubr.f32.mxu0 0.0
        %2692 = vmatmul.mubr.f32.gmra.mxu0 %v2558
        %v2693 = vpop.f32.mrf.mxu0
        %v2694 = vadd.f32 0.0, %v2693
        %v2695 = vpop.f32.mrf.mxu0
        %2696 = vmatprep.mubr.f32.mxu0 0.0
        %2697 = vmatmul.mubr.f32.gmra.mxu0 %v2561
        %v2698 = vpop.f32.mrf.mxu0
        %v2699 = vadd.f32 0.0, %v2698
        %v2700 = vpop.f32.mrf.mxu0
        %2701 = vmatprep.mubr.f32.mxu0 0.0
        %2702 = vmatmul.mubr.f32.gmra.mxu0 %v2564
        %v2703 = vpop.f32.mrf.mxu0
        %v2704 = vadd.f32 0.0, %v2703
        %v2705 = vpop.f32.mrf.mxu0
        %2706 = vmatprep.mubr.f32.mxu0 0.0
        %2707 = vmatmul.mubr.f32.gmra.mxu0 %v2567
        %v2708 = vpop.f32.mrf.mxu0
        %v2709 = vadd.f32 0.0, %v2708
        %v2710 = vpop.f32.mrf.mxu0
        %2711 = vmatprep.mubr.f32.mxu0 0.0
        %2712 = vmatmul.mubr.f32.gmra.mxu0 %v2570
        %v2713 = vpop.f32.mrf.mxu0
        %v2714 = vadd.f32 0.0, %v2713
        %v2715 = vpop.f32.mrf.mxu0
        %2716 = vdwg.mxu0
        %v2717 = vmax.f32 %v2639, %v2659
        %v2718 = vmax.f32 %v2644, %v2664
        %v2719 = vmax.f32 %v2649, %v2669
        %v2720 = vmax.f32 %v2654, %v2674
        %v2721 = vmax.f32 %v2717, %v2679
        %v2722 = vmax.f32 %v2718, %v2684
        %v2723 = vmax.f32 %v2719, %v2689
        %v2724 = vmax.f32 %v2720, %v2694
        %v2725 = vmax.f32 %v2721, %v2699
        %v2726 = vmax.f32 %v2722, %v2704
        %v2727 = vmax.f32 %v2723, %v2709
        %v2728 = vmax.f32 %v2724, %v2714
        %v2729 = vmax.f32 %v2725, %v2726
        %v2730 = vmax.f32 %v2727, %v2728
        %v2731 = vmax.f32 %v2729, %v2730
        %v2732 = vrot.slane %v2731, 4
        %v2733 = vmax.f32 %v2731, %v2732
        %v2734 = vrot.slane %v2733, 2
        %v2735 = vmax.f32 %v2733, %v2734
        %v2736 = vrot.slane %v2735, 1
        %v2737 = vmax.f32 %v2735, %v2736
        %v2738 = vsub.f32 %v2639, %v2737
        %v2739 = vsub.f32 %v2644, %v2737
        %v2740 = vsub.f32 %v2649, %v2737
        %v2741 = vsub.f32 %v2654, %v2737
        %v2742 = vsub.f32 %v2659, %v2737
        %v2743 = vsub.f32 %v2664, %v2737
        %v2744 = vsub.f32 %v2669, %v2737
        %v2745 = vsub.f32 %v2674, %v2737
        %v2746 = vsub.f32 %v2679, %v2737
        %v2747 = vsub.f32 %v2684, %v2737
        %v2748 = vsub.f32 %v2689, %v2737
        %v2749 = vsub.f32 %v2694, %v2737
        %v2750 = vsub.f32 %v2699, %v2737
        %v2751 = vsub.f32 %v2704, %v2737
        %v2752 = vsub.f32 %v2709, %v2737
        %v2753 = vsub.f32 %v2714, %v2737
        %v2754 = vmul.f32 %v2738, 1.442695
        %v2755 = vpow.pop %v2754
        %v2756 = vmul.f32 %v2739, 1.442695
        %v2757 = vpow.pop %v2756
        %v2758 = vmul.f32 %v2740, 1.442695
        %v2759 = vpow.pop %v2758
        %v2760 = vmul.f32 %v2741, 1.442695
        %v2761 = vpow.pop %v2760
        %v2762 = vmul.f32 %v2742, 1.442695
        %v2763 = vpow.pop %v2762
        %v2764 = vmul.f32 %v2743, 1.442695
        %v2765 = vpow.pop %v2764
        %v2766 = vmul.f32 %v2744, 1.442695
        %v2767 = vpow.pop %v2766
        %v2768 = vmul.f32 %v2745, 1.442695
        %v2769 = vpow.pop %v2768
        %v2770 = vmul.f32 %v2746, 1.442695
        %v2771 = vpow.pop %v2770
        %v2772 = vmul.f32 %v2747, 1.442695
        %v2773 = vpow.pop %v2772
        %v2774 = vmul.f32 %v2748, 1.442695
        %v2775 = vpow.pop %v2774
        %v2776 = vmul.f32 %v2749, 1.442695
        %v2777 = vpow.pop %v2776
        %v2778 = vmul.f32 %v2750, 1.442695
        %v2779 = vpow.pop %v2778
        %v2780 = vmul.f32 %v2751, 1.442695
        %v2781 = vpow.pop %v2780
        %v2782 = vmul.f32 %v2752, 1.442695
        %v2783 = vpow.pop %v2782
        %v2784 = vmul.f32 %v2753, 1.442695
        %v2785 = vpow.pop %v2784
        %v2786 = vadd.f32 %v2755, %v2757
        %v2787 = vadd.f32 %v2786, %v2759
        %v2788 = vadd.f32 %v2787, %v2761
        %v2789 = vadd.f32 %v2788, %v2763
        %v2790 = vadd.f32 %v2789, %v2765
        %v2791 = vadd.f32 %v2790, %v2767
        %v2792 = vadd.f32 %v2791, %v2769
        %v2793 = vadd.f32 %v2792, %v2771
        %v2794 = vadd.f32 %v2793, %v2773
        %v2795 = vadd.f32 %v2794, %v2775
        %v2796 = vadd.f32 %v2795, %v2777
        %v2797 = vadd.f32 %v2796, %v2779
        %v2798 = vadd.f32 %v2797, %v2781
        %v2799 = vadd.f32 %v2798, %v2783
        %v2800 = vadd.f32 %v2799, %v2785
        %v2801 = vrot.slane %v2800, 4
        %v2802 = vadd.f32 %v2800, %v2801
        %v2803 = vrot.slane %v2802, 2
        %v2804 = vadd.f32 %v2802, %v2803
        %v2805 = vrot.slane %v2804, 1
        %v2806 = vadd.f32 %v2804, %v2805
        %2807 = vmatprep.subr.mxu0 0.0
        %2808 = vmatpush1.msra.mxu0 %v2785
        %2809 = vmatprep.subr.mxu0 0.0
        %2810 = vmatpush1.msra.mxu0 %v2783
        %2811 = vmatprep.subr.mxu0 0.0
        %2812 = vmatpush1.msra.mxu0 %v2781
        %2813 = vmatprep.subr.mxu0 0.0
        %2814 = vmatpush1.msra.mxu0 %v2779
        %2815 = vmatprep.subr.mxu0 0.0
        %2816 = vmatpush1.msra.mxu0 %v2777
        %2817 = vmatprep.subr.mxu0 0.0
        %2818 = vmatpush1.msra.mxu0 %v2775
        %2819 = vmatprep.subr.mxu0 0.0
        %2820 = vmatpush1.msra.mxu0 %v2773
        %2821 = vmatprep.subr.mxu0 0.0
        %2822 = vmatpush1.msra.mxu0 %v2771
        %2823 = vmatprep.subr.mxu0 0.0
        %2824 = vmatpush1.msra.mxu0 %v2769
        %2825 = vmatprep.subr.mxu0 0.0
        %2826 = vmatpush1.msra.mxu0 %v2767
        %2827 = vmatprep.subr.mxu0 0.0
        %2828 = vmatpush1.msra.mxu0 %v2765
        %2829 = vmatprep.subr.mxu0 0.0
        %2830 = vmatpush1.msra.mxu0 %v2763
        %2831 = vmatprep.subr.mxu0 0.0
        %2832 = vmatpush1.msra.mxu0 %v2761
        %2833 = vmatprep.subr.mxu0 0.0
        %2834 = vmatpush1.msra.mxu0 %v2759
        %2835 = vmatprep.subr.mxu0 0.0
        %2836 = vmatpush1.msra.mxu0 %v2757
        %2837 = vmatprep.subr.mxu0 0.0
        %2838 = vmatpush1.msra.mxu0 %v2755
        %2839 = vmatprep.subr.mxu0 0.0
        %2840 = vmatpush2.msra.mxu0 0.0
        %2841 = vmatprep.subr.mxu0 0.0
        %2842 = vmatpush2.msra.mxu0 0.0
        %2843 = vmatprep.subr.mxu0 0.0
        %2844 = vmatpush2.msra.mxu0 0.0
        %2845 = vmatprep.subr.mxu0 0.0
        %2846 = vmatpush2.msra.mxu0 0.0
        %2847 = vmatprep.subr.mxu0 0.0
        %2848 = vmatpush2.msra.mxu0 0.0
        %2849 = vmatprep.subr.mxu0 0.0
        %2850 = vmatpush2.msra.mxu0 0.0
        %2851 = vmatprep.subr.mxu0 0.0
        %2852 = vmatpush2.msra.mxu0 0.0
        %2853 = vmatprep.subr.mxu0 0.0
        %2854 = vmatpush2.msra.mxu0 0.0
        %2855 = vmatprep.subr.mxu0 0.0
        %2856 = vmatpush2.msra.mxu0 0.0
        %2857 = vmatprep.subr.mxu0 0.0
        %2858 = vmatpush2.msra.mxu0 0.0
        %2859 = vmatprep.subr.mxu0 0.0
        %2860 = vmatpush2.msra.mxu0 0.0
        %2861 = vmatprep.subr.mxu0 0.0
        %2862 = vmatpush2.msra.mxu0 0.0
        %2863 = vmatprep.subr.mxu0 0.0
        %2864 = vmatpush2.msra.mxu0 0.0
        %2865 = vmatprep.subr.mxu0 0.0
        %2866 = vmatpush2.msra.mxu0 0.0
        %2867 = vmatprep.subr.mxu0 0.0
        %2868 = vmatpush2.msra.mxu0 0.0
        %2869 = vmatprep.subr.mxu0 0.0
        %2870 = vmatpush2.msra.mxu0 0.0
        %2871 = vmatprep.mubr.f32.mxu0 0.0
        %2872 = vmatmul.mubr.f32.gmra.mxu0 %v2491
        %v2873 = vpop.f32.mrf.mxu0
        %v2874 = vadd.f32 0.0, %v2873
        %v2875 = vpop.f32.mrf.mxu0
        %2876 = vdwg.mxu0
        %v2877 = vrcp.pop %v2806
        %v2878 = vmul.f32 %v2874, %v2877
        %v2879 = vmul.f32 %v1949, 0.5
        %v2880 = vadd.f32 %v2878, %v2879
        %v2881 = vrot.slane %v2880, 4
        %v2882 = vadd.f32 %v2880, %v2881
        %v2883 = vrot.slane %v2882, 2
        %v2884 = vadd.f32 %v2882, %v2883
        %v2885 = vrot.slane %v2884, 1
        %v2886 = vadd.f32 %v2884, %v2885
        %v2887 = vmul.f32 %v2886, %v2475
        %v2888 = vsub.f32 %v2880, %v2887
        %v2889 = vmul.f32 %v2888, %v2888
        %v2890 = vrot.slane %v2889, 4
        %v2891 = vadd.f32 %v2889, %v2890
        %v2892 = vrot.slane %v2891, 2
        %v2893 = vadd.f32 %v2891, %v2892
        %v2894 = vrot.slane %v2893, 1
        %v2895 = vadd.f32 %v2893, %v2894
        %v2896 = vmul.f32 %v2895, %v2475
        %v2897 = vadd.f32 %v2896, 1e-12
        %v2898 = vrsqrt.pop %v2897
        %v2899 = vmul.f32 %v2888, %v2898
        %v2900 = vld [vmem:[%s1552] sm:$0xff]
        %v2901 = vld [vmem:[#allocation2 + $0x10] sm:$0xff]
        %v2902 = vld [vmem:[#allocation2 + $0x18] sm:$0xff]
        %2903 = vxpose.xlu0.b32.start [1/16] %v2901, 128
        %2904 = vxpose.xlu0.b32.cont [2/16] 0.0, 128
        %2905 = vxpose.xlu0.b32.cont [3/16] 0.0, 128
        %2906 = vxpose.xlu0.b32.cont [4/16] 0.0, 128
        %2907 = vxpose.xlu0.b32.cont [5/16] 0.0, 128
        %2908 = vxpose.xlu0.b32.cont [6/16] 0.0, 128
        %2909 = vxpose.xlu0.b32.cont [7/16] 0.0, 128
        %2910 = vxpose.xlu0.b32.cont [8/16] 0.0, 128
        %2911 = vxpose.xlu0.b32.cont [9/16] 0.0, 128
        %2912 = vxpose.xlu0.b32.cont [10/16] 0.0, 128
        %2913 = vxpose.xlu0.b32.cont [11/16] 0.0, 128
        %2914 = vxpose.xlu0.b32.cont [12/16] 0.0, 128
        %2915 = vxpose.xlu0.b32.cont [13/16] 0.0, 128
        %2916 = vxpose.xlu0.b32.cont [14/16] 0.0, 128
        %2917 = vxpose.xlu0.b32.cont [15/16] 0.0, 128
        %2918 = vxpose.xlu0.b32.end [16/16] 0.0, 128
        %v2919 = vpop.trf.xlu0
        %v2920 = vpop.trf.xlu0
        %v2921 = vpop.trf.xlu0
        %v2922 = vpop.trf.xlu0
        %v2923 = vpop.trf.xlu0
        %v2924 = vpop.trf.xlu0
        %v2925 = vpop.trf.xlu0
        %v2926 = vpop.trf.xlu0
        %v2927 = vpop.trf.xlu0
        %v2928 = vpop.trf.xlu0
        %v2929 = vpop.trf.xlu0
        %v2930 = vpop.trf.xlu0
        %v2931 = vpop.trf.xlu0
        %v2932 = vpop.trf.xlu0
        %v2933 = vpop.trf.xlu0
        %v2934 = vpop.trf.xlu0
        %v2936 = vsel %vm929, %v2919, 0
        %v2939 = vsel %vm929, %v2920, 0
        %v2942 = vsel %vm929, %v2921, 0
        %v2945 = vsel %vm929, %v2922, 0
        %v2948 = vsel %vm929, %v2923, 0
        %v2951 = vsel %vm929, %v2924, 0
        %v2954 = vsel %vm929, %v2925, 0
        %v2957 = vsel %vm929, %v2926, 0
        %v2960 = vsel %vm929, %v2927, 0
        %v2963 = vsel %vm929, %v2928, 0
        %v2966 = vsel %vm929, %v2929, 0
        %v2969 = vsel %vm929, %v2930, 0
        %v2972 = vsel %vm929, %v2931, 0
        %v2975 = vsel %vm929, %v2932, 0
        %v2978 = vsel %vm929, %v2933, 0
        %v2981 = vsel %vm929, %v2934, 0
        %2983 = vmatprep.subr.mxu0 0.0
        %2984 = vmatpush1.msra.mxu0 0.0
        %2985 = vmatprep.subr.mxu0 0.0
        %2986 = vmatpush1.msra.mxu0 0.0
        %2987 = vmatprep.subr.mxu0 0.0
        %2988 = vmatpush1.msra.mxu0 0.0
        %2989 = vmatprep.subr.mxu0 0.0
        %2990 = vmatpush1.msra.mxu0 0.0
        %2991 = vmatprep.subr.mxu0 0.0
        %2992 = vmatpush1.msra.mxu0 0.0
        %2993 = vmatprep.subr.mxu0 0.0
        %2994 = vmatpush1.msra.mxu0 0.0
        %2995 = vmatprep.subr.mxu0 0.0
        %2996 = vmatpush1.msra.mxu0 0.0
        %2997 = vmatprep.subr.mxu0 0.0
        %2998 = vmatpush1.msra.mxu0 0.0
        %2999 = vmatprep.subr.mxu0 0.0
        %3000 = vmatpush1.msra.mxu0 0.0
        %3001 = vmatprep.subr.mxu0 0.0
        %3002 = vmatpush1.msra.mxu0 0.0
        %3003 = vmatprep.subr.mxu0 0.0
        %3004 = vmatpush1.msra.mxu0 0.0
        %3005 = vmatprep.subr.mxu0 0.0
        %3006 = vmatpush1.msra.mxu0 0.0
        %3007 = vmatprep.subr.mxu0 0.0
        %3008 = vmatpush1.msra.mxu0 0.0
        %3009 = vmatprep.subr.mxu0 0.0
        %3010 = vmatpush1.msra.mxu0 0.0
        %3011 = vmatprep.subr.mxu0 0.0
        %3012 = vmatpush1.msra.mxu0 0.0
        %3013 = vmatprep.subr.mxu0 0.0
        %3014 = vmatpush1.msra.mxu0 %v2900
        %3015 = vmatprep.subr.mxu0 0.0
        %3016 = vmatpush2.msra.mxu0 0.0
        %3017 = vmatprep.subr.mxu0 0.0
        %3018 = vmatpush2.msra.mxu0 0.0
        %3019 = vmatprep.subr.mxu0 0.0
        %3020 = vmatpush2.msra.mxu0 0.0
        %3021 = vmatprep.subr.mxu0 0.0
        %3022 = vmatpush2.msra.mxu0 0.0
        %3023 = vmatprep.subr.mxu0 0.0
        %3024 = vmatpush2.msra.mxu0 0.0
        %3025 = vmatprep.subr.mxu0 0.0
        %3026 = vmatpush2.msra.mxu0 0.0
        %3027 = vmatprep.subr.mxu0 0.0
        %3028 = vmatpush2.msra.mxu0 0.0
        %3029 = vmatprep.subr.mxu0 0.0
        %3030 = vmatpush2.msra.mxu0 0.0
        %3031 = vmatprep.subr.mxu0 0.0
        %3032 = vmatpush2.msra.mxu0 0.0
        %3033 = vmatprep.subr.mxu0 0.0
        %3034 = vmatpush2.msra.mxu0 0.0
        %3035 = vmatprep.subr.mxu0 0.0
        %3036 = vmatpush2.msra.mxu0 0.0
        %3037 = vmatprep.subr.mxu0 0.0
        %3038 = vmatpush2.msra.mxu0 0.0
        %3039 = vmatprep.subr.mxu0 0.0
        %3040 = vmatpush2.msra.mxu0 0.0
        %3041 = vmatprep.subr.mxu0 0.0
        %3042 = vmatpush2.msra.mxu0 0.0
        %3043 = vmatprep.subr.mxu0 0.0
        %3044 = vmatpush2.msra.mxu0 0.0
        %3045 = vmatprep.subr.mxu0 0.0
        %3046 = vmatpush2.msra.mxu0 0.0
        %3047 = vmatprep.mubr.f32.mxu0 0.0
        %3048 = vmatmul.mubr.f32.gmra.mxu0 %v2936
        %v3049 = vpop.f32.mrf.mxu0
        %v3050 = vadd.f32 0.0, %v3049
        %v3051 = vpop.f32.mrf.mxu0
        %3052 = vmatprep.mubr.f32.mxu0 0.0
        %3053 = vmatmul.mubr.f32.gmra.mxu0 %v2939
        %v3054 = vpop.f32.mrf.mxu0
        %v3055 = vadd.f32 0.0, %v3054
        %v3056 = vpop.f32.mrf.mxu0
        %3057 = vmatprep.mubr.f32.mxu0 0.0
        %3058 = vmatmul.mubr.f32.gmra.mxu0 %v2942
        %v3059 = vpop.f32.mrf.mxu0
        %v3060 = vadd.f32 0.0, %v3059
        %v3061 = vpop.f32.mrf.mxu0
        %3062 = vmatprep.mubr.f32.mxu0 0.0
        %3063 = vmatmul.mubr.f32.gmra.mxu0 %v2945
        %v3064 = vpop.f32.mrf.mxu0
        %v3065 = vadd.f32 0.0, %v3064
        %v3066 = vpop.f32.mrf.mxu0
        %3067 = vmatprep.mubr.f32.mxu0 0.0
        %3068 = vmatmul.mubr.f32.gmra.mxu0 %v2948
        %v3069 = vpop.f32.mrf.mxu0
        %v3070 = vadd.f32 0.0, %v3069
        %v3071 = vpop.f32.mrf.mxu0
        %3072 = vmatprep.mubr.f32.mxu0 0.0
        %3073 = vmatmul.mubr.f32.gmra.mxu0 %v2951
        %v3074 = vpop.f32.mrf.mxu0
        %v3075 = vadd.f32 0.0, %v3074
        %v3076 = vpop.f32.mrf.mxu0
        %3077 = vmatprep.mubr.f32.mxu0 0.0
        %3078 = vmatmul.mubr.f32.gmra.mxu0 %v2954
        %v3079 = vpop.f32.mrf.mxu0
        %v3080 = vadd.f32 0.0, %v3079
        %v3081 = vpop.f32.mrf.mxu0
        %3082 = vmatprep.mubr.f32.mxu0 0.0
        %3083 = vmatmul.mubr.f32.gmra.mxu0 %v2957
        %v3084 = vpop.f32.mrf.mxu0
        %v3085 = vadd.f32 0.0, %v3084
        %v3086 = vpop.f32.mrf.mxu0
        %3087 = vmatprep.mubr.f32.mxu0 0.0
        %3088 = vmatmul.mubr.f32.gmra.mxu0 %v2960
        %v3089 = vpop.f32.mrf.mxu0
        %v3090 = vadd.f32 0.0, %v3089
        %v3091 = vpop.f32.mrf.mxu0
        %3092 = vmatprep.mubr.f32.mxu0 0.0
        %3093 = vmatmul.mubr.f32.gmra.mxu0 %v2963
        %v3094 = vpop.f32.mrf.mxu0
        %v3095 = vadd.f32 0.0, %v3094
        %v3096 = vpop.f32.mrf.mxu0
        %3097 = vmatprep.mubr.f32.mxu0 0.0
        %3098 = vmatmul.mubr.f32.gmra.mxu0 %v2966
        %v3099 = vpop.f32.mrf.mxu0
        %v3100 = vadd.f32 0.0, %v3099
        %v3101 = vpop.f32.mrf.mxu0
        %3102 = vmatprep.mubr.f32.mxu0 0.0
        %3103 = vmatmul.mubr.f32.gmra.mxu0 %v2969
        %v3104 = vpop.f32.mrf.mxu0
        %v3105 = vadd.f32 0.0, %v3104
        %v3106 = vpop.f32.mrf.mxu0
        %3107 = vmatprep.mubr.f32.mxu0 0.0
        %3108 = vmatmul.mubr.f32.gmra.mxu0 %v2972
        %v3109 = vpop.f32.mrf.mxu0
        %v3110 = vadd.f32 0.0, %v3109
        %v3111 = vpop.f32.mrf.mxu0
        %3112 = vmatprep.mubr.f32.mxu0 0.0
        %3113 = vmatmul.mubr.f32.gmra.mxu0 %v2975
        %v3114 = vpop.f32.mrf.mxu0
        %v3115 = vadd.f32 0.0, %v3114
        %v3116 = vpop.f32.mrf.mxu0
        %3117 = vmatprep.mubr.f32.mxu0 0.0
        %3118 = vmatmul.mubr.f32.gmra.mxu0 %v2978
        %v3119 = vpop.f32.mrf.mxu0
        %v3120 = vadd.f32 0.0, %v3119
        %v3121 = vpop.f32.mrf.mxu0
        %3122 = vmatprep.mubr.f32.mxu0 0.0
        %3123 = vmatmul.mubr.f32.gmra.mxu0 %v2981
        %v3124 = vpop.f32.mrf.mxu0
        %v3125 = vadd.f32 0.0, %v3124
        %v3126 = vpop.f32.mrf.mxu0
        %3127 = vdwg.mxu0
        %v3128 = vmax.f32 %v3050, %v3070
        %v3129 = vmax.f32 %v3055, %v3075
        %v3130 = vmax.f32 %v3060, %v3080
        %v3131 = vmax.f32 %v3065, %v3085
        %v3132 = vmax.f32 %v3128, %v3090
        %v3133 = vmax.f32 %v3129, %v3095
        %v3134 = vmax.f32 %v3130, %v3100
        %v3135 = vmax.f32 %v3131, %v3105
        %v3136 = vmax.f32 %v3132, %v3110
        %v3137 = vmax.f32 %v3133, %v3115
        %v3138 = vmax.f32 %v3134, %v3120
        %v3139 = vmax.f32 %v3135, %v3125
        %v3140 = vmax.f32 %v3136, %v3137
        %v3141 = vmax.f32 %v3138, %v3139
        %v3142 = vmax.f32 %v3140, %v3141
        %v3143 = vrot.slane %v3142, 4
        %v3144 = vmax.f32 %v3142, %v3143
        %v3145 = vrot.slane %v3144, 2
        %v3146 = vmax.f32 %v3144, %v3145
        %v3147 = vrot.slane %v3146, 1
        %v3148 = vmax.f32 %v3146, %v3147
        %v3149 = vsub.f32 %v3050, %v3148
        %v3150 = vsub.f32 %v3055, %v3148
        %v3151 = vsub.f32 %v3060, %v3148
        %v3152 = vsub.f32 %v3065, %v3148
        %v3153 = vsub.f32 %v3070, %v3148
        %v3154 = vsub.f32 %v3075, %v3148
        %v3155 = vsub.f32 %v3080, %v3148
        %v3156 = vsub.f32 %v3085, %v3148
        %v3157 = vsub.f32 %v3090, %v3148
        %v3158 = vsub.f32 %v3095, %v3148
        %v3159 = vsub.f32 %v3100, %v3148
        %v3160 = vsub.f32 %v3105, %v3148
        %v3161 = vsub.f32 %v3110, %v3148
        %v3162 = vsub.f32 %v3115, %v3148
        %v3163 = vsub.f32 %v3120, %v3148
        %v3164 = vsub.f32 %v3125, %v3148
        %v3165 = vmul.f32 %v3149, 1.442695
        %v3166 = vpow.pop %v3165
        %v3167 = vmul.f32 %v3150, 1.442695
        %v3168 = vpow.pop %v3167
        %v3169 = vmul.f32 %v3151, 1.442695
        %v3170 = vpow.pop %v3169
        %v3171 = vmul.f32 %v3152, 1.442695
        %v3172 = vpow.pop %v3171
        %v3173 = vmul.f32 %v3153, 1.442695
        %v3174 = vpow.pop %v3173
        %v3175 = vmul.f32 %v3154, 1.442695
        %v3176 = vpow.pop %v3175
        %v3177 = vmul.f32 %v3155, 1.442695
        %v3178 = vpow.pop %v3177
        %v3179 = vmul.f32 %v3156, 1.442695
        %v3180 = vpow.pop %v3179
        %v3181 = vmul.f32 %v3157, 1.442695
        %v3182 = vpow.pop %v3181
        %v3183 = vmul.f32 %v3158, 1.442695
        %v3184 = vpow.pop %v3183
        %v3185 = vmul.f32 %v3159, 1.442695
        %v3186 = vpow.pop %v3185
        %v3187 = vmul.f32 %v3160, 1.442695
        %v3188 = vpow.pop %v3187
        %v3189 = vmul.f32 %v3161, 1.442695
        %v3190 = vpow.pop %v3189
        %v3191 = vmul.f32 %v3162, 1.442695
        %v3192 = vpow.pop %v3191
        %v3193 = vmul.f32 %v3163, 1.442695
        %v3194 = vpow.pop %v3193
        %v3195 = vmul.f32 %v3164, 1.442695
        %v3196 = vpow.pop %v3195
        %v3197 = vadd.f32 %v3166, %v3168
        %v3198 = vadd.f32 %v3197, %v3170
        %v3199 = vadd.f32 %v3198, %v3172
        %v3200 = vadd.f32 %v3199, %v3174
        %v3201 = vadd.f32 %v3200, %v3176
        %v3202 = vadd.f32 %v3201, %v3178
        %v3203 = vadd.f32 %v3202, %v3180
        %v3204 = vadd.f32 %v3203, %v3182
        %v3205 = vadd.f32 %v3204, %v3184
        %v3206 = vadd.f32 %v3205, %v3186
        %v3207 = vadd.f32 %v3206, %v3188
        %v3208 = vadd.f32 %v3207, %v3190
        %v3209 = vadd.f32 %v3208, %v3192
        %v3210 = vadd.f32 %v3209, %v3194
        %v3211 = vadd.f32 %v3210, %v3196
        %v3212 = vrot.slane %v3211, 4
        %v3213 = vadd.f32 %v3211, %v3212
        %v3214 = vrot.slane %v3213, 2
        %v3215 = vadd.f32 %v3213, %v3214
        %v3216 = vrot.slane %v3215, 1
        %v3217 = vadd.f32 %v3215, %v3216
        %3218 = vmatprep.subr.mxu0 0.0
        %3219 = vmatpush1.msra.mxu0 %v3196
        %3220 = vmatprep.subr.mxu0 0.0
        %3221 = vmatpush1.msra.mxu0 %v3194
        %3222 = vmatprep.subr.mxu0 0.0
        %3223 = vmatpush1.msra.mxu0 %v3192
        %3224 = vmatprep.subr.mxu0 0.0
        %3225 = vmatpush1.msra.mxu0 %v3190
        %3226 = vmatprep.subr.mxu0 0.0
        %3227 = vmatpush1.msra.mxu0 %v3188
        %3228 = vmatprep.subr.mxu0 0.0
        %3229 = vmatpush1.msra.mxu0 %v3186
        %3230 = vmatprep.subr.mxu0 0.0
        %3231 = vmatpush1.msra.mxu0 %v3184
        %3232 = vmatprep.subr.mxu0 0.0
        %3233 = vmatpush1.msra.mxu0 %v3182
        %3234 = vmatprep.subr.mxu0 0.0
        %3235 = vmatpush1.msra.mxu0 %v3180
        %3236 = vmatprep.subr.mxu0 0.0
        %3237 = vmatpush1.msra.mxu0 %v3178
        %3238 = vmatprep.subr.mxu0 0.0
        %3239 = vmatpush1.msra.mxu0 %v3176
        %3240 = vmatprep.subr.mxu0 0.0
        %3241 = vmatpush1.msra.mxu0 %v3174
        %3242 = vmatprep.subr.mxu0 0.0
        %3243 = vmatpush1.msra.mxu0 %v3172
        %3244 = vmatprep.subr.mxu0 0.0
        %3245 = vmatpush1.msra.mxu0 %v3170
        %3246 = vmatprep.subr.mxu0 0.0
        %3247 = vmatpush1.msra.mxu0 %v3168
        %3248 = vmatprep.subr.mxu0 0.0
        %3249 = vmatpush1.msra.mxu0 %v3166
        %3250 = vmatprep.subr.mxu0 0.0
        %3251 = vmatpush2.msra.mxu0 0.0
        %3252 = vmatprep.subr.mxu0 0.0
        %3253 = vmatpush2.msra.mxu0 0.0
        %3254 = vmatprep.subr.mxu0 0.0
        %3255 = vmatpush2.msra.mxu0 0.0
        %3256 = vmatprep.subr.mxu0 0.0
        %3257 = vmatpush2.msra.mxu0 0.0
        %3258 = vmatprep.subr.mxu0 0.0
        %3259 = vmatpush2.msra.mxu0 0.0
        %3260 = vmatprep.subr.mxu0 0.0
        %3261 = vmatpush2.msra.mxu0 0.0
        %3262 = vmatprep.subr.mxu0 0.0
        %3263 = vmatpush2.msra.mxu0 0.0
        %3264 = vmatprep.subr.mxu0 0.0
        %3265 = vmatpush2.msra.mxu0 0.0
        %3266 = vmatprep.subr.mxu0 0.0
        %3267 = vmatpush2.msra.mxu0 0.0
        %3268 = vmatprep.subr.mxu0 0.0
        %3269 = vmatpush2.msra.mxu0 0.0
        %3270 = vmatprep.subr.mxu0 0.0
        %3271 = vmatpush2.msra.mxu0 0.0
        %3272 = vmatprep.subr.mxu0 0.0
        %3273 = vmatpush2.msra.mxu0 0.0
        %3274 = vmatprep.subr.mxu0 0.0
        %3275 = vmatpush2.msra.mxu0 0.0
        %3276 = vmatprep.subr.mxu0 0.0
        %3277 = vmatpush2.msra.mxu0 0.0
        %3278 = vmatprep.subr.mxu0 0.0
        %3279 = vmatpush2.msra.mxu0 0.0
        %3280 = vmatprep.subr.mxu0 0.0
        %3281 = vmatpush2.msra.mxu0 0.0
        %3282 = vmatprep.mubr.f32.mxu0 0.0
        %3283 = vmatmul.mubr.f32.gmra.mxu0 %v2902
        %v3284 = vpop.f32.mrf.mxu0
        %v3285 = vadd.f32 0.0, %v3284
        %v3286 = vpop.f32.mrf.mxu0
        %3287 = vdwg.mxu0
        %v3288 = vrcp.pop %v3217
        %v3289 = vmul.f32 %v3285, %v3288
        %v3290 = vmul.f32 %v922, 0.5
        %v3291 = vadd.f32 %v3289, %v3290
        %v3292 = vrot.slane %v3291, 4
        %v3293 = vadd.f32 %v3291, %v3292
        %v3294 = vrot.slane %v3293, 2
        %v3295 = vadd.f32 %v3293, %v3294
        %v3296 = vrot.slane %v3295, 1
        %v3297 = vadd.f32 %v3295, %v3296
        %v3298 = vmul.f32 %v3297, %v2475
        %v3299 = vsub.f32 %v3291, %v3298
        %v3300 = vmul.f32 %v3299, %v3299
        %v3301 = vrot.slane %v3300, 4
        %v3302 = vadd.f32 %v3300, %v3301
        %v3303 = vrot.slane %v3302, 2
        %v3304 = vadd.f32 %v3302, %v3303
        %v3305 = vrot.slane %v3304, 1
        %v3306 = vadd.f32 %v3304, %v3305
        %v3307 = vmul.f32 %v3306, %v2475
        %v3308 = vadd.f32 %v3307, 1e-12
        %v3309 = vrsqrt.pop %v3308
        %v3310 = vmul.f32 %v3299, %v3309
        %v3311 = vld [vmem:[%s1552 + $0x8] sm:$0xff]
        %v3312 = vld [vmem:[%s2070 + $0x20] sm:$0xff]
        %v3313 = vld [vmem:[%s2070 + $0x28] sm:$0xff]
        %3314 = vxpose.xlu0.b32.start [1/16] %v3312, 128
        %3315 = vxpose.xlu0.b32.cont [2/16] 0.0, 128
        %3316 = vxpose.xlu0.b32.cont [3/16] 0.0, 128
        %3317 = vxpose.xlu0.b32.cont [4/16] 0.0, 128
        %3318 = vxpose.xlu0.b32.cont [5/16] 0.0, 128
        %3319 = vxpose.xlu0.b32.cont [6/16] 0.0, 128
        %3320 = vxpose.xlu0.b32.cont [7/16] 0.0, 128
        %3321 = vxpose.xlu0.b32.cont [8/16] 0.0, 128
        %3322 = vxpose.xlu0.b32.cont [9/16] 0.0, 128
        %3323 = vxpose.xlu0.b32.cont [10/16] 0.0, 128
        %3324 = vxpose.xlu0.b32.cont [11/16] 0.0, 128
        %3325 = vxpose.xlu0.b32.cont [12/16] 0.0, 128
        %3326 = vxpose.xlu0.b32.cont [13/16] 0.0, 128
        %3327 = vxpose.xlu0.b32.cont [14/16] 0.0, 128
        %3328 = vxpose.xlu0.b32.cont [15/16] 0.0, 128
        %3329 = vxpose.xlu0.b32.end [16/16] 0.0, 128
        %v3330 = vpop.trf.xlu0
        %v3331 = vpop.trf.xlu0
        %v3332 = vpop.trf.xlu0
        %v3333 = vpop.trf.xlu0
        %v3334 = vpop.trf.xlu0
        %v3335 = vpop.trf.xlu0
        %v3336 = vpop.trf.xlu0
        %v3337 = vpop.trf.xlu0
        %v3338 = vpop.trf.xlu0
        %v3339 = vpop.trf.xlu0
        %v3340 = vpop.trf.xlu0
        %v3341 = vpop.trf.xlu0
        %v3342 = vpop.trf.xlu0
        %v3343 = vpop.trf.xlu0
        %v3344 = vpop.trf.xlu0
        %v3345 = vpop.trf.xlu0
        %v3347 = vsel %vm929, %v3330, 0
        %v3350 = vsel %vm929, %v3331, 0
        %v3353 = vsel %vm929, %v3332, 0
        %v3356 = vsel %vm929, %v3333, 0
        %v3359 = vsel %vm929, %v3334, 0
        %v3362 = vsel %vm929, %v3335, 0
        %v3365 = vsel %vm929, %v3336, 0
        %v3368 = vsel %vm929, %v3337, 0
        %v3371 = vsel %vm929, %v3338, 0
        %v3374 = vsel %vm929, %v3339, 0
        %v3377 = vsel %vm929, %v3340, 0
        %v3380 = vsel %vm929, %v3341, 0
        %v3383 = vsel %vm929, %v3342, 0
        %v3386 = vsel %vm929, %v3343, 0
        %v3389 = vsel %vm929, %v3344, 0
        %v3392 = vsel %vm929, %v3345, 0
        %3394 = vmatprep.subr.mxu0 0.0
        %3395 = vmatpush1.msra.mxu0 0.0
        %3396 = vmatprep.subr.mxu0 0.0
        %3397 = vmatpush1.msra.mxu0 0.0
        %3398 = vmatprep.subr.mxu0 0.0
        %3399 = vmatpush1.msra.mxu0 0.0
        %3400 = vmatprep.subr.mxu0 0.0
        %3401 = vmatpush1.msra.mxu0 0.0
        %3402 = vmatprep.subr.mxu0 0.0
        %3403 = vmatpush1.msra.mxu0 0.0
        %3404 = vmatprep.subr.mxu0 0.0
        %3405 = vmatpush1.msra.mxu0 0.0
        %3406 = vmatprep.subr.mxu0 0.0
        %3407 = vmatpush1.msra.mxu0 0.0
        %3408 = vmatprep.subr.mxu0 0.0
        %3409 = vmatpush1.msra.mxu0 0.0
        %3410 = vmatprep.subr.mxu0 0.0
        %3411 = vmatpush1.msra.mxu0 0.0
        %3412 = vmatprep.subr.mxu0 0.0
        %3413 = vmatpush1.msra.mxu0 0.0
        %3414 = vmatprep.subr.mxu0 0.0
        %3415 = vmatpush1.msra.mxu0 0.0
        %3416 = vmatprep.subr.mxu0 0.0
        %3417 = vmatpush1.msra.mxu0 0.0
        %3418 = vmatprep.subr.mxu0 0.0
        %3419 = vmatpush1.msra.mxu0 0.0
        %3420 = vmatprep.subr.mxu0 0.0
        %3421 = vmatpush1.msra.mxu0 0.0
        %3422 = vmatprep.subr.mxu0 0.0
        %3423 = vmatpush1.msra.mxu0 0.0
        %3424 = vmatprep.subr.mxu0 0.0
        %3425 = vmatpush1.msra.mxu0 %v3311
        %3426 = vmatprep.subr.mxu0 0.0
        %3427 = vmatpush2.msra.mxu0 0.0
        %3428 = vmatprep.subr.mxu0 0.0
        %3429 = vmatpush2.msra.mxu0 0.0
        %3430 = vmatprep.subr.mxu0 0.0
        %3431 = vmatpush2.msra.mxu0 0.0
        %3432 = vmatprep.subr.mxu0 0.0
        %3433 = vmatpush2.msra.mxu0 0.0
        %3434 = vmatprep.subr.mxu0 0.0
        %3435 = vmatpush2.msra.mxu0 0.0
        %3436 = vmatprep.subr.mxu0 0.0
        %3437 = vmatpush2.msra.mxu0 0.0
        %3438 = vmatprep.subr.mxu0 0.0
        %3439 = vmatpush2.msra.mxu0 0.0
        %3440 = vmatprep.subr.mxu0 0.0
        %3441 = vmatpush2.msra.mxu0 0.0
        %3442 = vmatprep.subr.mxu0 0.0
        %3443 = vmatpush2.msra.mxu0 0.0
        %3444 = vmatprep.subr.mxu0 0.0
        %3445 = vmatpush2.msra.mxu0 0.0
        %3446 = vmatprep.subr.mxu0 0.0
        %3447 = vmatpush2.msra.mxu0 0.0
        %3448 = vmatprep.subr.mxu0 0.0
        %3449 = vmatpush2.msra.mxu0 0.0
        %3450 = vmatprep.subr.mxu0 0.0
        %3451 = vmatpush2.msra.mxu0 0.0
        %3452 = vmatprep.subr.mxu0 0.0
        %3453 = vmatpush2.msra.mxu0 0.0
        %3454 = vmatprep.subr.mxu0 0.0
        %3455 = vmatpush2.msra.mxu0 0.0
        %3456 = vmatprep.subr.mxu0 0.0
        %3457 = vmatpush2.msra.mxu0 0.0
        %3458 = vmatprep.mubr.f32.mxu0 0.0
        %3459 = vmatmul.mubr.f32.gmra.mxu0 %v3347
        %v3460 = vpop.f32.mrf.mxu0
        %v3461 = vadd.f32 0.0, %v3460
        %v3462 = vpop.f32.mrf.mxu0
        %3463 = vmatprep.mubr.f32.mxu0 0.0
        %3464 = vmatmul.mubr.f32.gmra.mxu0 %v3350
        %v3465 = vpop.f32.mrf.mxu0
        %v3466 = vadd.f32 0.0, %v3465
        %v3467 = vpop.f32.mrf.mxu0
        %3468 = vmatprep.mubr.f32.mxu0 0.0
        %3469 = vmatmul.mubr.f32.gmra.mxu0 %v3353
        %v3470 = vpop.f32.mrf.mxu0
        %v3471 = vadd.f32 0.0, %v3470
        %v3472 = vpop.f32.mrf.mxu0
        %3473 = vmatprep.mubr.f32.mxu0 0.0
        %3474 = vmatmul.mubr.f32.gmra.mxu0 %v3356
        %v3475 = vpop.f32.mrf.mxu0
        %v3476 = vadd.f32 0.0, %v3475
        %v3477 = vpop.f32.mrf.mxu0
        %3478 = vmatprep.mubr.f32.mxu0 0.0
        %3479 = vmatmul.mubr.f32.gmra.mxu0 %v3359
        %v3480 = vpop.f32.mrf.mxu0
        %v3481 = vadd.f32 0.0, %v3480
        %v3482 = vpop.f32.mrf.mxu0
        %3483 = vmatprep.mubr.f32.mxu0 0.0
        %3484 = vmatmul.mubr.f32.gmra.mxu0 %v3362
        %v3485 = vpop.f32.mrf.mxu0
        %v3486 = vadd.f32 0.0, %v3485
        %v3487 = vpop.f32.mrf.mxu0
        %3488 = vmatprep.mubr.f32.mxu0 0.0
        %3489 = vmatmul.mubr.f32.gmra.mxu0 %v3365
        %v3490 = vpop.f32.mrf.mxu0
        %v3491 = vadd.f32 0.0, %v3490
        %v3492 = vpop.f32.mrf.mxu0
        %3493 = vmatprep.mubr.f32.mxu0 0.0
        %3494 = vmatmul.mubr.f32.gmra.mxu0 %v3368
        %v3495 = vpop.f32.mrf.mxu0
        %v3496 = vadd.f32 0.0, %v3495
        %v3497 = vpop.f32.mrf.mxu0
        %3498 = vmatprep.mubr.f32.mxu0 0.0
        %3499 = vmatmul.mubr.f32.gmra.mxu0 %v3371
        %v3500 = vpop.f32.mrf.mxu0
        %v3501 = vadd.f32 0.0, %v3500
        %v3502 = vpop.f32.mrf.mxu0
        %3503 = vmatprep.mubr.f32.mxu0 0.0
        %3504 = vmatmul.mubr.f32.gmra.mxu0 %v3374
        %v3505 = vpop.f32.mrf.mxu0
        %v3506 = vadd.f32 0.0, %v3505
        %v3507 = vpop.f32.mrf.mxu0
        %3508 = vmatprep.mubr.f32.mxu0 0.0
        %3509 = vmatmul.mubr.f32.gmra.mxu0 %v3377
        %v3510 = vpop.f32.mrf.mxu0
        %v3511 = vadd.f32 0.0, %v3510
        %v3512 = vpop.f32.mrf.mxu0
        %3513 = vmatprep.mubr.f32.mxu0 0.0
        %3514 = vmatmul.mubr.f32.gmra.mxu0 %v3380
        %v3515 = vpop.f32.mrf.mxu0
        %v3516 = vadd.f32 0.0, %v3515
        %v3517 = vpop.f32.mrf.mxu0
        %3518 = vmatprep.mubr.f32.mxu0 0.0
        %3519 = vmatmul.mubr.f32.gmra.mxu0 %v3383
        %v3520 = vpop.f32.mrf.mxu0
        %v3521 = vadd.f32 0.0, %v3520
        %v3522 = vpop.f32.mrf.mxu0
        %3523 = vmatprep.mubr.f32.mxu0 0.0
        %3524 = vmatmul.mubr.f32.gmra.mxu0 %v3386
        %v3525 = vpop.f32.mrf.mxu0
        %v3526 = vadd.f32 0.0, %v3525
        %v3527 = vpop.f32.mrf.mxu0
        %3528 = vmatprep.mubr.f32.mxu0 0.0
        %3529 = vmatmul.mubr.f32.gmra.mxu0 %v3389
        %v3530 = vpop.f32.mrf.mxu0
        %v3531 = vadd.f32 0.0, %v3530
        %v3532 = vpop.f32.mrf.mxu0
        %3533 = vmatprep.mubr.f32.mxu0 0.0
        %3534 = vmatmul.mubr.f32.gmra.mxu0 %v3392
        %v3535 = vpop.f32.mrf.mxu0
        %v3536 = vadd.f32 0.0, %v3535
        %v3537 = vpop.f32.mrf.mxu0
        %3538 = vdwg.mxu0
        %v3539 = vmax.f32 %v3461, %v3481
        %v3540 = vmax.f32 %v3466, %v3486
        %v3541 = vmax.f32 %v3471, %v3491
        %v3542 = vmax.f32 %v3476, %v3496
        %v3543 = vmax.f32 %v3539, %v3501
        %v3544 = vmax.f32 %v3540, %v3506
        %v3545 = vmax.f32 %v3541, %v3511
        %v3546 = vmax.f32 %v3542, %v3516
        %v3547 = vmax.f32 %v3543, %v3521
        %v3548 = vmax.f32 %v3544, %v3526
        %v3549 = vmax.f32 %v3545, %v3531
        %v3550 = vmax.f32 %v3546, %v3536
        %v3551 = vmax.f32 %v3547, %v3548
        %v3552 = vmax.f32 %v3549, %v3550
        %v3553 = vmax.f32 %v3551, %v3552
        %v3554 = vrot.slane %v3553, 4
        %v3555 = vmax.f32 %v3553, %v3554
        %v3556 = vrot.slane %v3555, 2
        %v3557 = vmax.f32 %v3555, %v3556
        %v3558 = vrot.slane %v3557, 1
        %v3559 = vmax.f32 %v3557, %v3558
        %v3560 = vsub.f32 %v3461, %v3559
        %v3561 = vsub.f32 %v3466, %v3559
        %v3562 = vsub.f32 %v3471, %v3559
        %v3563 = vsub.f32 %v3476, %v3559
        %v3564 = vsub.f32 %v3481, %v3559
        %v3565 = vsub.f32 %v3486, %v3559
        %v3566 = vsub.f32 %v3491, %v3559
        %v3567 = vsub.f32 %v3496, %v3559
        %v3568 = vsub.f32 %v3501, %v3559
        %v3569 = vsub.f32 %v3506, %v3559
        %v3570 = vsub.f32 %v3511, %v3559
        %v3571 = vsub.f32 %v3516, %v3559
        %v3572 = vsub.f32 %v3521, %v3559
        %v3573 = vsub.f32 %v3526, %v3559
        %v3574 = vsub.f32 %v3531, %v3559
        %v3575 = vsub.f32 %v3536, %v3559
        %v3576 = vmul.f32 %v3560, 1.442695
        %v3577 = vpow.pop %v3576
        %v3578 = vmul.f32 %v3561, 1.442695
        %v3579 = vpow.pop %v3578
        %v3580 = vmul.f32 %v3562, 1.442695
        %v3581 = vpow.pop %v3580
        %v3582 = vmul.f32 %v3563, 1.442695
        %v3583 = vpow.pop %v3582
        %v3584 = vmul.f32 %v3564, 1.442695
        %v3585 = vpow.pop %v3584
        %v3586 = vmul.f32 %v3565, 1.442695
        %v3587 = vpow.pop %v3586
        %v3588 = vmul.f32 %v3566, 1.442695
        %v3589 = vpow.pop %v3588
        %v3590 = vmul.f32 %v3567, 1.442695
        %v3591 = vpow.pop %v3590
        %v3592 = vmul.f32 %v3568, 1.442695
        %v3593 = vpow.pop %v3592
        %v3594 = vmul.f32 %v3569, 1.442695
        %v3595 = vpow.pop %v3594
        %v3596 = vmul.f32 %v3570, 1.442695
        %v3597 = vpow.pop %v3596
        %v3598 = vmul.f32 %v3571, 1.442695
        %v3599 = vpow.pop %v3598
        %v3600 = vmul.f32 %v3572, 1.442695
        %v3601 = vpow.pop %v3600
        %v3602 = vmul.f32 %v3573, 1.442695
        %v3603 = vpow.pop %v3602
        %v3604 = vmul.f32 %v3574, 1.442695
        %v3605 = vpow.pop %v3604
        %v3606 = vmul.f32 %v3575, 1.442695
        %v3607 = vpow.pop %v3606
        %v3608 = vadd.f32 %v3577, %v3579
        %v3609 = vadd.f32 %v3608, %v3581
        %v3610 = vadd.f32 %v3609, %v3583
        %v3611 = vadd.f32 %v3610, %v3585
        %v3612 = vadd.f32 %v3611, %v3587
        %v3613 = vadd.f32 %v3612, %v3589
        %v3614 = vadd.f32 %v3613, %v3591
        %v3615 = vadd.f32 %v3614, %v3593
        %v3616 = vadd.f32 %v3615, %v3595
        %v3617 = vadd.f32 %v3616, %v3597
        %v3618 = vadd.f32 %v3617, %v3599
        %v3619 = vadd.f32 %v3618, %v3601
        %v3620 = vadd.f32 %v3619, %v3603
        %v3621 = vadd.f32 %v3620, %v3605
        %v3622 = vadd.f32 %v3621, %v3607
        %v3623 = vrot.slane %v3622, 4
        %v3624 = vadd.f32 %v3622, %v3623
        %v3625 = vrot.slane %v3624, 2
        %v3626 = vadd.f32 %v3624, %v3625
        %v3627 = vrot.slane %v3626, 1
        %v3628 = vadd.f32 %v3626, %v3627
        %3629 = vmatprep.subr.mxu0 0.0
        %3630 = vmatpush1.msra.mxu0 %v3607
        %3631 = vmatprep.subr.mxu0 0.0
        %3632 = vmatpush1.msra.mxu0 %v3605
        %3633 = vmatprep.subr.mxu0 0.0
        %3634 = vmatpush1.msra.mxu0 %v3603
        %3635 = vmatprep.subr.mxu0 0.0
        %3636 = vmatpush1.msra.mxu0 %v3601
        %3637 = vmatprep.subr.mxu0 0.0
        %3638 = vmatpush1.msra.mxu0 %v3599
        %3639 = vmatprep.subr.mxu0 0.0
        %3640 = vmatpush1.msra.mxu0 %v3597
        %3641 = vmatprep.subr.mxu0 0.0
        %3642 = vmatpush1.msra.mxu0 %v3595
        %3643 = vmatprep.subr.mxu0 0.0
        %3644 = vmatpush1.msra.mxu0 %v3593
        %3645 = vmatprep.subr.mxu0 0.0
        %3646 = vmatpush1.msra.mxu0 %v3591
        %3647 = vmatprep.subr.mxu0 0.0
        %3648 = vmatpush1.msra.mxu0 %v3589
        %3649 = vmatprep.subr.mxu0 0.0
        %3650 = vmatpush1.msra.mxu0 %v3587
        %3651 = vmatprep.subr.mxu0 0.0
        %3652 = vmatpush1.msra.mxu0 %v3585
        %3653 = vmatprep.subr.mxu0 0.0
        %3654 = vmatpush1.msra.mxu0 %v3583
        %3655 = vmatprep.subr.mxu0 0.0
        %3656 = vmatpush1.msra.mxu0 %v3581
        %3657 = vmatprep.subr.mxu0 0.0
        %3658 = vmatpush1.msra.mxu0 %v3579
        %3659 = vmatprep.subr.mxu0 0.0
        %3660 = vmatpush1.msra.mxu0 %v3577
        %3661 = vmatprep.subr.mxu0 0.0
        %3662 = vmatpush2.msra.mxu0 0.0
        %3663 = vmatprep.subr.mxu0 0.0
        %3664 = vmatpush2.msra.mxu0 0.0
        %3665 = vmatprep.subr.mxu0 0.0
        %3666 = vmatpush2.msra.mxu0 0.0
        %3667 = vmatprep.subr.mxu0 0.0
        %3668 = vmatpush2.msra.mxu0 0.0
        %3669 = vmatprep.subr.mxu0 0.0
        %3670 = vmatpush2.msra.mxu0 0.0
        %3671 = vmatprep.subr.mxu0 0.0
        %3672 = vmatpush2.msra.mxu0 0.0
        %3673 = vmatprep.subr.mxu0 0.0
        %3674 = vmatpush2.msra.mxu0 0.0
        %3675 = vmatprep.subr.mxu0 0.0
        %3676 = vmatpush2.msra.mxu0 0.0
        %3677 = vmatprep.subr.mxu0 0.0
        %3678 = vmatpush2.msra.mxu0 0.0
        %3679 = vmatprep.subr.mxu0 0.0
        %3680 = vmatpush2.msra.mxu0 0.0
        %3681 = vmatprep.subr.mxu0 0.0
        %3682 = vmatpush2.msra.mxu0 0.0
        %3683 = vmatprep.subr.mxu0 0.0
        %3684 = vmatpush2.msra.mxu0 0.0
        %3685 = vmatprep.subr.mxu0 0.0
        %3686 = vmatpush2.msra.mxu0 0.0
        %3687 = vmatprep.subr.mxu0 0.0
        %3688 = vmatpush2.msra.mxu0 0.0
        %3689 = vmatprep.subr.mxu0 0.0
        %3690 = vmatpush2.msra.mxu0 0.0
        %3691 = vmatprep.subr.mxu0 0.0
        %3692 = vmatpush2.msra.mxu0 0.0
        %3693 = vmatprep.mubr.f32.mxu0 0.0
        %3694 = vmatmul.mubr.f32.gmra.mxu0 %v3313
        %v3695 = vpop.f32.mrf.mxu0
        %v3696 = vadd.f32 0.0, %v3695
        %v3697 = vpop.f32.mrf.mxu0
        %3698 = vdwg.mxu0
        %v3699 = vrcp.pop %v3628
        %v3700 = vmul.f32 %v3696, %v3699
        %v3701 = vadd.f32 %v3700, %v2879
        %v3702 = vrot.slane %v3701, 4
        %v3703 = vadd.f32 %v3701, %v3702
        %v3704 = vrot.slane %v3703, 2
        %v3705 = vadd.f32 %v3703, %v3704
        %v3706 = vrot.slane %v3705, 1
        %v3707 = vadd.f32 %v3705, %v3706
        %v3708 = vmul.f32 %v3707, %v2475
        %v3709 = vsub.f32 %v3701, %v3708
        %v3710 = vmul.f32 %v3709, %v3709
        %v3711 = vrot.slane %v3710, 4
        %v3712 = vadd.f32 %v3710, %v3711
        %v3713 = vrot.slane %v3712, 2
        %v3714 = vadd.f32 %v3712, %v3713
        %v3715 = vrot.slane %v3714, 1
        %v3716 = vadd.f32 %v3714, %v3715
        %v3717 = vmul.f32 %v3716, %v2475
        %v3718 = vadd.f32 %v3717, 1e-12
        %v3719 = vrsqrt.pop %v3718
        %v3720 = vmul.f32 %v3709, %v3719
        %v3721 = vld [vmem:[%s2070] sm:$0xff]
        %v3722 = vld [vmem:[#allocation2 + $0x20] sm:$0xff]
        %v3723 = vld [vmem:[#allocation2 + $0x28] sm:$0xff]
        %3724 = vxpose.xlu0.b32.start [1/16] %v3722, 128
        %3725 = vxpose.xlu0.b32.cont [2/16] 0.0, 128
        %3726 = vxpose.xlu0.b32.cont [3/16] 0.0, 128
        %3727 = vxpose.xlu0.b32.cont [4/16] 0.0, 128
        %3728 = vxpose.xlu0.b32.cont [5/16] 0.0, 128
        %3729 = vxpose.xlu0.b32.cont [6/16] 0.0, 128
        %3730 = vxpose.xlu0.b32.cont [7/16] 0.0, 128
        %3731 = vxpose.xlu0.b32.cont [8/16] 0.0, 128
        %3732 = vxpose.xlu0.b32.cont [9/16] 0.0, 128
        %3733 = vxpose.xlu0.b32.cont [10/16] 0.0, 128
        %3734 = vxpose.xlu0.b32.cont [11/16] 0.0, 128
        %3735 = vxpose.xlu0.b32.cont [12/16] 0.0, 128
        %3736 = vxpose.xlu0.b32.cont [13/16] 0.0, 128
        %3737 = vxpose.xlu0.b32.cont [14/16] 0.0, 128
        %3738 = vxpose.xlu0.b32.cont [15/16] 0.0, 128
        %3739 = vxpose.xlu0.b32.end [16/16] 0.0, 128
        %v3740 = vpop.trf.xlu0
        %v3741 = vpop.trf.xlu0
        %v3742 = vpop.trf.xlu0
        %v3743 = vpop.trf.xlu0
        %v3744 = vpop.trf.xlu0
        %v3745 = vpop.trf.xlu0
        %v3746 = vpop.trf.xlu0
        %v3747 = vpop.trf.xlu0
        %v3748 = vpop.trf.xlu0
        %v3749 = vpop.trf.xlu0
        %v3750 = vpop.trf.xlu0
        %v3751 = vpop.trf.xlu0
        %v3752 = vpop.trf.xlu0
        %v3753 = vpop.trf.xlu0
        %v3754 = vpop.trf.xlu0
        %v3755 = vpop.trf.xlu0
        %v3757 = vsel %vm929, %v3740, 0
        %v3760 = vsel %vm929, %v3741, 0
        %v3763 = vsel %vm929, %v3742, 0
        %v3766 = vsel %vm929, %v3743, 0
        %v3769 = vsel %vm929, %v3744, 0
        %v3772 = vsel %vm929, %v3745, 0
        %v3775 = vsel %vm929, %v3746, 0
        %v3778 = vsel %vm929, %v3747, 0
        %v3781 = vsel %vm929, %v3748, 0
        %v3784 = vsel %vm929, %v3749, 0
        %v3787 = vsel %vm929, %v3750, 0
        %v3790 = vsel %vm929, %v3751, 0
        %v3793 = vsel %vm929, %v3752, 0
        %v3796 = vsel %vm929, %v3753, 0
        %v3799 = vsel %vm929, %v3754, 0
        %v3802 = vsel %vm929, %v3755, 0
        %3804 = vmatprep.subr.mxu0 0.0
        %3805 = vmatpush1.msra.mxu0 0.0
        %3806 = vmatprep.subr.mxu0 0.0
        %3807 = vmatpush1.msra.mxu0 0.0
        %3808 = vmatprep.subr.mxu0 0.0
        %3809 = vmatpush1.msra.mxu0 0.0
        %3810 = vmatprep.subr.mxu0 0.0
        %3811 = vmatpush1.msra.mxu0 0.0
        %3812 = vmatprep.subr.mxu0 0.0
        %3813 = vmatpush1.msra.mxu0 0.0
        %3814 = vmatprep.subr.mxu0 0.0
        %3815 = vmatpush1.msra.mxu0 0.0
        %3816 = vmatprep.subr.mxu0 0.0
        %3817 = vmatpush1.msra.mxu0 0.0
        %3818 = vmatprep.subr.mxu0 0.0
        %3819 = vmatpush1.msra.mxu0 0.0
        %3820 = vmatprep.subr.mxu0 0.0
        %3821 = vmatpush1.msra.mxu0 0.0
        %3822 = vmatprep.subr.mxu0 0.0
        %3823 = vmatpush1.msra.mxu0 0.0
        %3824 = vmatprep.subr.mxu0 0.0
        %3825 = vmatpush1.msra.mxu0 0.0
        %3826 = vmatprep.subr.mxu0 0.0
        %3827 = vmatpush1.msra.mxu0 0.0
        %3828 = vmatprep.subr.mxu0 0.0
        %3829 = vmatpush1.msra.mxu0 0.0
        %3830 = vmatprep.subr.mxu0 0.0
        %3831 = vmatpush1.msra.mxu0 0.0
        %3832 = vmatprep.subr.mxu0 0.0
        %3833 = vmatpush1.msra.mxu0 0.0
        %3834 = vmatprep.subr.mxu0 0.0
        %3835 = vmatpush1.msra.mxu0 %v3721
        %3836 = vmatprep.subr.mxu0 0.0
        %3837 = vmatpush2.msra.mxu0 0.0
        %3838 = vmatprep.subr.mxu0 0.0
        %3839 = vmatpush2.msra.mxu0 0.0
        %3840 = vmatprep.subr.mxu0 0.0
        %3841 = vmatpush2.msra.mxu0 0.0
        %3842 = vmatprep.subr.mxu0 0.0
        %3843 = vmatpush2.msra.mxu0 0.0
        %3844 = vmatprep.subr.mxu0 0.0
        %3845 = vmatpush2.msra.mxu0 0.0
        %3846 = vmatprep.subr.mxu0 0.0
        %3847 = vmatpush2.msra.mxu0 0.0
        %3848 = vmatprep.subr.mxu0 0.0
        %3849 = vmatpush2.msra.mxu0 0.0
        %3850 = vmatprep.subr.mxu0 0.0
        %3851 = vmatpush2.msra.mxu0 0.0
        %3852 = vmatprep.subr.mxu0 0.0
        %3853 = vmatpush2.msra.mxu0 0.0
        %3854 = vmatprep.subr.mxu0 0.0
        %3855 = vmatpush2.msra.mxu0 0.0
        %3856 = vmatprep.subr.mxu0 0.0
        %3857 = vmatpush2.msra.mxu0 0.0
        %3858 = vmatprep.subr.mxu0 0.0
        %3859 = vmatpush2.msra.mxu0 0.0
        %3860 = vmatprep.subr.mxu0 0.0
        %3861 = vmatpush2.msra.mxu0 0.0
        %3862 = vmatprep.subr.mxu0 0.0
        %3863 = vmatpush2.msra.mxu0 0.0
        %3864 = vmatprep.subr.mxu0 0.0
        %3865 = vmatpush2.msra.mxu0 0.0
        %3866 = vmatprep.subr.mxu0 0.0
        %3867 = vmatpush2.msra.mxu0 0.0
        %3868 = vmatprep.mubr.f32.mxu0 0.0
        %3869 = vmatmul.mubr.f32.gmra.mxu0 %v3757
        %v3870 = vpop.f32.mrf.mxu0
        %v3871 = vadd.f32 0.0, %v3870
        %v3872 = vpop.f32.mrf.mxu0
        %3873 = vmatprep.mubr.f32.mxu0 0.0
        %3874 = vmatmul.mubr.f32.gmra.mxu0 %v3760
        %v3875 = vpop.f32.mrf.mxu0
        %v3876 = vadd.f32 0.0, %v3875
        %v3877 = vpop.f32.mrf.mxu0
        %3878 = vmatprep.mubr.f32.mxu0 0.0
        %3879 = vmatmul.mubr.f32.gmra.mxu0 %v3763
        %v3880 = vpop.f32.mrf.mxu0
        %v3881 = vadd.f32 0.0, %v3880
        %v3882 = vpop.f32.mrf.mxu0
        %3883 = vmatprep.mubr.f32.mxu0 0.0
        %3884 = vmatmul.mubr.f32.gmra.mxu0 %v3766
        %v3885 = vpop.f32.mrf.mxu0
        %v3886 = vadd.f32 0.0, %v3885
        %v3887 = vpop.f32.mrf.mxu0
        %3888 = vmatprep.mubr.f32.mxu0 0.0
        %3889 = vmatmul.mubr.f32.gmra.mxu0 %v3769
        %v3890 = vpop.f32.mrf.mxu0
        %v3891 = vadd.f32 0.0, %v3890
        %v3892 = vpop.f32.mrf.mxu0
        %3893 = vmatprep.mubr.f32.mxu0 0.0
        %3894 = vmatmul.mubr.f32.gmra.mxu0 %v3772
        %v3895 = vpop.f32.mrf.mxu0
        %v3896 = vadd.f32 0.0, %v3895
        %v3897 = vpop.f32.mrf.mxu0
        %3898 = vmatprep.mubr.f32.mxu0 0.0
        %3899 = vmatmul.mubr.f32.gmra.mxu0 %v3775
        %v3900 = vpop.f32.mrf.mxu0
        %v3901 = vadd.f32 0.0, %v3900
        %v3902 = vpop.f32.mrf.mxu0
        %3903 = vmatprep.mubr.f32.mxu0 0.0
        %3904 = vmatmul.mubr.f32.gmra.mxu0 %v3778
        %v3905 = vpop.f32.mrf.mxu0
        %v3906 = vadd.f32 0.0, %v3905
        %v3907 = vpop.f32.mrf.mxu0
        %3908 = vmatprep.mubr.f32.mxu0 0.0
        %3909 = vmatmul.mubr.f32.gmra.mxu0 %v3781
        %v3910 = vpop.f32.mrf.mxu0
        %v3911 = vadd.f32 0.0, %v3910
        %v3912 = vpop.f32.mrf.mxu0
        %3913 = vmatprep.mubr.f32.mxu0 0.0
        %3914 = vmatmul.mubr.f32.gmra.mxu0 %v3784
        %v3915 = vpop.f32.mrf.mxu0
        %v3916 = vadd.f32 0.0, %v3915
        %v3917 = vpop.f32.mrf.mxu0
        %3918 = vmatprep.mubr.f32.mxu0 0.0
        %3919 = vmatmul.mubr.f32.gmra.mxu0 %v3787
        %v3920 = vpop.f32.mrf.mxu0
        %v3921 = vadd.f32 0.0, %v3920
        %v3922 = vpop.f32.mrf.mxu0
        %3923 = vmatprep.mubr.f32.mxu0 0.0
        %3924 = vmatmul.mubr.f32.gmra.mxu0 %v3790
        %v3925 = vpop.f32.mrf.mxu0
        %v3926 = vadd.f32 0.0, %v3925
        %v3927 = vpop.f32.mrf.mxu0
        %3928 = vmatprep.mubr.f32.mxu0 0.0
        %3929 = vmatmul.mubr.f32.gmra.mxu0 %v3793
        %v3930 = vpop.f32.mrf.mxu0
        %v3931 = vadd.f32 0.0, %v3930
        %v3932 = vpop.f32.mrf.mxu0
        %3933 = vmatprep.mubr.f32.mxu0 0.0
        %3934 = vmatmul.mubr.f32.gmra.mxu0 %v3796
        %v3935 = vpop.f32.mrf.mxu0
        %v3936 = vadd.f32 0.0, %v3935
        %v3937 = vpop.f32.mrf.mxu0
        %3938 = vmatprep.mubr.f32.mxu0 0.0
        %3939 = vmatmul.mubr.f32.gmra.mxu0 %v3799
        %v3940 = vpop.f32.mrf.mxu0
        %v3941 = vadd.f32 0.0, %v3940
        %v3942 = vpop.f32.mrf.mxu0
        %3943 = vmatprep.mubr.f32.mxu0 0.0
        %3944 = vmatmul.mubr.f32.gmra.mxu0 %v3802
        %v3945 = vpop.f32.mrf.mxu0
        %v3946 = vadd.f32 0.0, %v3945
        %v3947 = vpop.f32.mrf.mxu0
        %3948 = vdwg.mxu0
        %v3949 = vmax.f32 %v3871, %v3891
        %v3950 = vmax.f32 %v3876, %v3896
        %v3951 = vmax.f32 %v3881, %v3901
        %v3952 = vmax.f32 %v3886, %v3906
        %v3953 = vmax.f32 %v3949, %v3911
        %v3954 = vmax.f32 %v3950, %v3916
        %v3955 = vmax.f32 %v3951, %v3921
        %v3956 = vmax.f32 %v3952, %v3926
        %v3957 = vmax.f32 %v3953, %v3931
        %v3958 = vmax.f32 %v3954, %v3936
        %v3959 = vmax.f32 %v3955, %v3941
        %v3960 = vmax.f32 %v3956, %v3946
        %v3961 = vmax.f32 %v3957, %v3958
        %v3962 = vmax.f32 %v3959, %v3960
        %v3963 = vmax.f32 %v3961, %v3962
        %v3964 = vrot.slane %v3963, 4
        %v3965 = vmax.f32 %v3963, %v3964
        %v3966 = vrot.slane %v3965, 2
        %v3967 = vmax.f32 %v3965, %v3966
        %v3968 = vrot.slane %v3967, 1
        %v3969 = vmax.f32 %v3967, %v3968
        %v3970 = vsub.f32 %v3871, %v3969
        %v3971 = vsub.f32 %v3876, %v3969
        %v3972 = vsub.f32 %v3881, %v3969
        %v3973 = vsub.f32 %v3886, %v3969
        %v3974 = vsub.f32 %v3891, %v3969
        %v3975 = vsub.f32 %v3896, %v3969
        %v3976 = vsub.f32 %v3901, %v3969
        %v3977 = vsub.f32 %v3906, %v3969
        %v3978 = vsub.f32 %v3911, %v3969
        %v3979 = vsub.f32 %v3916, %v3969
        %v3980 = vsub.f32 %v3921, %v3969
        %v3981 = vsub.f32 %v3926, %v3969
        %v3982 = vsub.f32 %v3931, %v3969
        %v3983 = vsub.f32 %v3936, %v3969
        %v3984 = vsub.f32 %v3941, %v3969
        %v3985 = vsub.f32 %v3946, %v3969
        %v3986 = vmul.f32 %v3970, 1.442695
        %v3987 = vpow.pop %v3986
        %v3988 = vmul.f32 %v3971, 1.442695
        %v3989 = vpow.pop %v3988
        %v3990 = vmul.f32 %v3972, 1.442695
        %v3991 = vpow.pop %v3990
        %v3992 = vmul.f32 %v3973, 1.442695
        %v3993 = vpow.pop %v3992
        %v3994 = vmul.f32 %v3974, 1.442695
        %v3995 = vpow.pop %v3994
        %v3996 = vmul.f32 %v3975, 1.442695
        %v3997 = vpow.pop %v3996
        %v3998 = vmul.f32 %v3976, 1.442695
        %v3999 = vpow.pop %v3998
        %v4000 = vmul.f32 %v3977, 1.442695
        %v4001 = vpow.pop %v4000
        %v4002 = vmul.f32 %v3978, 1.442695
        %v4003 = vpow.pop %v4002
        %v4004 = vmul.f32 %v3979, 1.442695
        %v4005 = vpow.pop %v4004
        %v4006 = vmul.f32 %v3980, 1.442695
        %v4007 = vpow.pop %v4006
        %v4008 = vmul.f32 %v3981, 1.442695
        %v4009 = vpow.pop %v4008
        %v4010 = vmul.f32 %v3982, 1.442695
        %v4011 = vpow.pop %v4010
        %v4012 = vmul.f32 %v3983, 1.442695
        %v4013 = vpow.pop %v4012
        %v4014 = vmul.f32 %v3984, 1.442695
        %v4015 = vpow.pop %v4014
        %v4016 = vmul.f32 %v3985, 1.442695
        %v4017 = vpow.pop %v4016
        %v4018 = vadd.f32 %v3987, %v3989
        %v4019 = vadd.f32 %v4018, %v3991
        %v4020 = vadd.f32 %v4019, %v3993
        %v4021 = vadd.f32 %v4020, %v3995
        %v4022 = vadd.f32 %v4021, %v3997
        %v4023 = vadd.f32 %v4022, %v3999
        %v4024 = vadd.f32 %v4023, %v4001
        %v4025 = vadd.f32 %v4024, %v4003
        %v4026 = vadd.f32 %v4025, %v4005
        %v4027 = vadd.f32 %v4026, %v4007
        %v4028 = vadd.f32 %v4027, %v4009
        %v4029 = vadd.f32 %v4028, %v4011
        %v4030 = vadd.f32 %v4029, %v4013
        %v4031 = vadd.f32 %v4030, %v4015
        %v4032 = vadd.f32 %v4031, %v4017
        %v4033 = vrot.slane %v4032, 4
        %v4034 = vadd.f32 %v4032, %v4033
        %v4035 = vrot.slane %v4034, 2
        %v4036 = vadd.f32 %v4034, %v4035
        %v4037 = vrot.slane %v4036, 1
        %v4038 = vadd.f32 %v4036, %v4037
        %4039 = vmatprep.subr.mxu0 0.0
        %4040 = vmatpush1.msra.mxu0 %v4017
        %4041 = vmatprep.subr.mxu0 0.0
        %4042 = vmatpush1.msra.mxu0 %v4015
        %4043 = vmatprep.subr.mxu0 0.0
        %4044 = vmatpush1.msra.mxu0 %v4013
        %4045 = vmatprep.subr.mxu0 0.0
        %4046 = vmatpush1.msra.mxu0 %v4011
        %4047 = vmatprep.subr.mxu0 0.0
        %4048 = vmatpush1.msra.mxu0 %v4009
        %4049 = vmatprep.subr.mxu0 0.0
        %4050 = vmatpush1.msra.mxu0 %v4007
        %4051 = vmatprep.subr.mxu0 0.0
        %4052 = vmatpush1.msra.mxu0 %v4005
        %4053 = vmatprep.subr.mxu0 0.0
        %4054 = vmatpush1.msra.mxu0 %v4003
        %4055 = vmatprep.subr.mxu0 0.0
        %4056 = vmatpush1.msra.mxu0 %v4001
        %4057 = vmatprep.subr.mxu0 0.0
        %4058 = vmatpush1.msra.mxu0 %v3999
        %4059 = vmatprep.subr.mxu0 0.0
        %4060 = vmatpush1.msra.mxu0 %v3997
        %4061 = vmatprep.subr.mxu0 0.0
        %4062 = vmatpush1.msra.mxu0 %v3995
        %4063 = vmatprep.subr.mxu0 0.0
        %4064 = vmatpush1.msra.mxu0 %v3993
        %4065 = vmatprep.subr.mxu0 0.0
        %4066 = vmatpush1.msra.mxu0 %v3991
        %4067 = vmatprep.subr.mxu0 0.0
        %4068 = vmatpush1.msra.mxu0 %v3989
        %4069 = vmatprep.subr.mxu0 0.0
        %4070 = vmatpush1.msra.mxu0 %v3987
        %4071 = vmatprep.subr.mxu0 0.0
        %4072 = vmatpush2.msra.mxu0 0.0
        %4073 = vmatprep.subr.mxu0 0.0
        %4074 = vmatpush2.msra.mxu0 0.0
        %4075 = vmatprep.subr.mxu0 0.0
        %4076 = vmatpush2.msra.mxu0 0.0
        %4077 = vmatprep.subr.mxu0 0.0
        %4078 = vmatpush2.msra.mxu0 0.0
        %4079 = vmatprep.subr.mxu0 0.0
        %4080 = vmatpush2.msra.mxu0 0.0
        %4081 = vmatprep.subr.mxu0 0.0
        %4082 = vmatpush2.msra.mxu0 0.0
        %4083 = vmatprep.subr.mxu0 0.0
        %4084 = vmatpush2.msra.mxu0 0.0
        %4085 = vmatprep.subr.mxu0 0.0
        %4086 = vmatpush2.msra.mxu0 0.0
        %4087 = vmatprep.subr.mxu0 0.0
        %4088 = vmatpush2.msra.mxu0 0.0
        %4089 = vmatprep.subr.mxu0 0.0
        %4090 = vmatpush2.msra.mxu0 0.0
        %4091 = vmatprep.subr.mxu0 0.0
        %4092 = vmatpush2.msra.mxu0 0.0
        %4093 = vmatprep.subr.mxu0 0.0
        %4094 = vmatpush2.msra.mxu0 0.0
        %4095 = vmatprep.subr.mxu0 0.0
        %4096 = vmatpush2.msra.mxu0 0.0
        %4097 = vmatprep.subr.mxu0 0.0
        %4098 = vmatpush2.msra.mxu0 0.0
        %4099 = vmatprep.subr.mxu0 0.0
        %4100 = vmatpush2.msra.mxu0 0.0
        %4101 = vmatprep.subr.mxu0 0.0
        %4102 = vmatpush2.msra.mxu0 0.0
        %4103 = vmatprep.mubr.f32.mxu0 0.0
        %4104 = vmatmul.mubr.f32.gmra.mxu0 %v3723
        %v4105 = vpop.f32.mrf.mxu0
        %v4106 = vadd.f32 0.0, %v4105
        %v4107 = vpop.f32.mrf.mxu0
        %4108 = vdwg.mxu0
        %v4109 = vrcp.pop %v4038
        %v4110 = vmul.f32 %v4106, %v4109
        %v4111 = vadd.f32 %v4110, %v3290
        %v4112 = vrot.slane %v4111, 4
        %v4113 = vadd.f32 %v4111, %v4112
        %v4114 = vrot.slane %v4113, 2
        %v4115 = vadd.f32 %v4113, %v4114
        %v4116 = vrot.slane %v4115, 1
        %v4117 = vadd.f32 %v4115, %v4116
        %v4118 = vmul.f32 %v4117, %v2475
        %v4119 = vsub.f32 %v4111, %v4118
        %v4120 = vmul.f32 %v4119, %v4119
        %v4121 = vrot.slane %v4120, 4
        %v4122 = vadd.f32 %v4120, %v4121
        %v4123 = vrot.slane %v4122, 2
        %v4124 = vadd.f32 %v4122, %v4123
        %v4125 = vrot.slane %v4124, 1
        %v4126 = vadd.f32 %v4124, %v4125
        %v4127 = vmul.f32 %v4126, %v2475
        %v4128 = vadd.f32 %v4127, 1e-12
        %v4129 = vrsqrt.pop %v4128
        %v4130 = vmul.f32 %v4119, %v4129
        %v4131 = vld [vmem:[%s2070 + $0x8] sm:$0xff]
        %v4132 = vld [vmem:[%s1552 + $0x20] sm:$0xff]
        %v4133 = vld [vmem:[%s1552 + $0x28] sm:$0xff]
        %4134 = vxpose.xlu0.b32.start [1/16] %v4132, 128
        %4135 = vxpose.xlu0.b32.cont [2/16] 0.0, 128
        %4136 = vxpose.xlu0.b32.cont [3/16] 0.0, 128
        %4137 = vxpose.xlu0.b32.cont [4/16] 0.0, 128
        %4138 = vxpose.xlu0.b32.cont [5/16] 0.0, 128
        %4139 = vxpose.xlu0.b32.cont [6/16] 0.0, 128
        %4140 = vxpose.xlu0.b32.cont [7/16] 0.0, 128
        %4141 = vxpose.xlu0.b32.cont [8/16] 0.0, 128
        %4142 = vxpose.xlu0.b32.cont [9/16] 0.0, 128
        %4143 = vxpose.xlu0.b32.cont [10/16] 0.0, 128
        %4144 = vxpose.xlu0.b32.cont [11/16] 0.0, 128
        %4145 = vxpose.xlu0.b32.cont [12/16] 0.0, 128
        %4146 = vxpose.xlu0.b32.cont [13/16] 0.0, 128
        %4147 = vxpose.xlu0.b32.cont [14/16] 0.0, 128
        %4148 = vxpose.xlu0.b32.cont [15/16] 0.0, 128
        %4149 = vxpose.xlu0.b32.end [16/16] 0.0, 128
        %v4150 = vpop.trf.xlu0
        %v4151 = vpop.trf.xlu0
        %v4152 = vpop.trf.xlu0
        %v4153 = vpop.trf.xlu0
        %v4154 = vpop.trf.xlu0
        %v4155 = vpop.trf.xlu0
        %v4156 = vpop.trf.xlu0
        %v4157 = vpop.trf.xlu0
        %v4158 = vpop.trf.xlu0
        %v4159 = vpop.trf.xlu0
        %v4160 = vpop.trf.xlu0
        %v4161 = vpop.trf.xlu0
        %v4162 = vpop.trf.xlu0
        %v4163 = vpop.trf.xlu0
        %v4164 = vpop.trf.xlu0
        %v4165 = vpop.trf.xlu0
        %v4167 = vsel %vm929, %v4150, 0
        %v4170 = vsel %vm929, %v4151, 0
        %v4173 = vsel %vm929, %v4152, 0
        %v4176 = vsel %vm929, %v4153, 0
        %v4179 = vsel %vm929, %v4154, 0
        %v4182 = vsel %vm929, %v4155, 0
        %v4185 = vsel %vm929, %v4156, 0
        %v4188 = vsel %vm929, %v4157, 0
        %v4191 = vsel %vm929, %v4158, 0
        %v4194 = vsel %vm929, %v4159, 0
        %v4197 = vsel %vm929, %v4160, 0
        %v4200 = vsel %vm929, %v4161, 0
        %v4203 = vsel %vm929, %v4162, 0
        %v4206 = vsel %vm929, %v4163, 0
        %v4209 = vsel %vm929, %v4164, 0
        %v4212 = vsel %vm929, %v4165, 0
        %4214 = vmatprep.subr.mxu0 0.0
        %4215 = vmatpush1.msra.mxu0 0.0
        %4216 = vmatprep.subr.mxu0 0.0
        %4217 = vmatpush1.msra.mxu0 0.0
        %4218 = vmatprep.subr.mxu0 0.0
        %4219 = vmatpush1.msra.mxu0 0.0
        %4220 = vmatprep.subr.mxu0 0.0
        %4221 = vmatpush1.msra.mxu0 0.0
        %4222 = vmatprep.subr.mxu0 0.0
        %4223 = vmatpush1.msra.mxu0 0.0
        %4224 = vmatprep.subr.mxu0 0.0
        %4225 = vmatpush1.msra.mxu0 0.0
        %4226 = vmatprep.subr.mxu0 0.0
        %4227 = vmatpush1.msra.mxu0 0.0
        %4228 = vmatprep.subr.mxu0 0.0
        %4229 = vmatpush1.msra.mxu0 0.0
        %4230 = vmatprep.subr.mxu0 0.0
        %4231 = vmatpush1.msra.mxu0 0.0
        %4232 = vmatprep.subr.mxu0 0.0
        %4233 = vmatpush1.msra.mxu0 0.0
        %4234 = vmatprep.subr.mxu0 0.0
        %4235 = vmatpush1.msra.mxu0 0.0
        %4236 = vmatprep.subr.mxu0 0.0
        %4237 = vmatpush1.msra.mxu0 0.0
        %4238 = vmatprep.subr.mxu0 0.0
        %4239 = vmatpush1.msra.mxu0 0.0
        %4240 = vmatprep.subr.mxu0 0.0
        %4241 = vmatpush1.msra.mxu0 0.0
        %4242 = vmatprep.subr.mxu0 0.0
        %4243 = vmatpush1.msra.mxu0 0.0
        %4244 = vmatprep.subr.mxu0 0.0
        %4245 = vmatpush1.msra.mxu0 %v4131
        %4246 = vmatprep.subr.mxu0 0.0
        %4247 = vmatpush2.msra.mxu0 0.0
        %4248 = vmatprep.subr.mxu0 0.0
        %4249 = vmatpush2.msra.mxu0 0.0
        %4250 = vmatprep.subr.mxu0 0.0
        %4251 = vmatpush2.msra.mxu0 0.0
        %4252 = vmatprep.subr.mxu0 0.0
        %4253 = vmatpush2.msra.mxu0 0.0
        %4254 = vmatprep.subr.mxu0 0.0
        %4255 = vmatpush2.msra.mxu0 0.0
        %4256 = vmatprep.subr.mxu0 0.0
        %4257 = vmatpush2.msra.mxu0 0.0
        %4258 = vmatprep.subr.mxu0 0.0
        %4259 = vmatpush2.msra.mxu0 0.0
        %4260 = vmatprep.subr.mxu0 0.0
        %4261 = vmatpush2.msra.mxu0 0.0
        %4262 = vmatprep.subr.mxu0 0.0
        %4263 = vmatpush2.msra.mxu0 0.0
        %4264 = vmatprep.subr.mxu0 0.0
        %4265 = vmatpush2.msra.mxu0 0.0
        %4266 = vmatprep.subr.mxu0 0.0
        %4267 = vmatpush2.msra.mxu0 0.0
        %4268 = vmatprep.subr.mxu0 0.0
        %4269 = vmatpush2.msra.mxu0 0.0
        %4270 = vmatprep.subr.mxu0 0.0
        %4271 = vmatpush2.msra.mxu0 0.0
        %4272 = vmatprep.subr.mxu0 0.0
        %4273 = vmatpush2.msra.mxu0 0.0
        %4274 = vmatprep.subr.mxu0 0.0
        %4275 = vmatpush2.msra.mxu0 0.0
        %4276 = vmatprep.subr.mxu0 0.0
        %4277 = vmatpush2.msra.mxu0 0.0
        %4278 = vmatprep.mubr.f32.mxu0 0.0
        %4279 = vmatmul.mubr.f32.gmra.mxu0 %v4167
        %v4280 = vpop.f32.mrf.mxu0
        %v4281 = vadd.f32 0.0, %v4280
        %v4282 = vpop.f32.mrf.mxu0
        %4283 = vmatprep.mubr.f32.mxu0 0.0
        %4284 = vmatmul.mubr.f32.gmra.mxu0 %v4170
        %v4285 = vpop.f32.mrf.mxu0
        %v4286 = vadd.f32 0.0, %v4285
        %v4287 = vpop.f32.mrf.mxu0
        %4288 = vmatprep.mubr.f32.mxu0 0.0
        %4289 = vmatmul.mubr.f32.gmra.mxu0 %v4173
        %v4290 = vpop.f32.mrf.mxu0
        %v4291 = vadd.f32 0.0, %v4290
        %v4292 = vpop.f32.mrf.mxu0
        %4293 = vmatprep.mubr.f32.mxu0 0.0
        %4294 = vmatmul.mubr.f32.gmra.mxu0 %v4176
        %v4295 = vpop.f32.mrf.mxu0
        %v4296 = vadd.f32 0.0, %v4295
        %v4297 = vpop.f32.mrf.mxu0
        %4298 = vmatprep.mubr.f32.mxu0 0.0
        %4299 = vmatmul.mubr.f32.gmra.mxu0 %v4179
        %v4300 = vpop.f32.mrf.mxu0
        %v4301 = vadd.f32 0.0, %v4300
        %v4302 = vpop.f32.mrf.mxu0
        %4303 = vmatprep.mubr.f32.mxu0 0.0
        %4304 = vmatmul.mubr.f32.gmra.mxu0 %v4182
        %v4305 = vpop.f32.mrf.mxu0
        %v4306 = vadd.f32 0.0, %v4305
        %v4307 = vpop.f32.mrf.mxu0
        %4308 = vmatprep.mubr.f32.mxu0 0.0
        %4309 = vmatmul.mubr.f32.gmra.mxu0 %v4185
        %v4310 = vpop.f32.mrf.mxu0
        %v4311 = vadd.f32 0.0, %v4310
        %v4312 = vpop.f32.mrf.mxu0
        %4313 = vmatprep.mubr.f32.mxu0 0.0
        %4314 = vmatmul.mubr.f32.gmra.mxu0 %v4188
        %v4315 = vpop.f32.mrf.mxu0
        %v4316 = vadd.f32 0.0, %v4315
        %v4317 = vpop.f32.mrf.mxu0
        %4318 = vmatprep.mubr.f32.mxu0 0.0
        %4319 = vmatmul.mubr.f32.gmra.mxu0 %v4191
        %v4320 = vpop.f32.mrf.mxu0
        %v4321 = vadd.f32 0.0, %v4320
        %v4322 = vpop.f32.mrf.mxu0
        %4323 = vmatprep.mubr.f32.mxu0 0.0
        %4324 = vmatmul.mubr.f32.gmra.mxu0 %v4194
        %v4325 = vpop.f32.mrf.mxu0
        %v4326 = vadd.f32 0.0, %v4325
        %v4327 = vpop.f32.mrf.mxu0
        %4328 = vmatprep.mubr.f32.mxu0 0.0
        %4329 = vmatmul.mubr.f32.gmra.mxu0 %v4197
        %v4330 = vpop.f32.mrf.mxu0
        %v4331 = vadd.f32 0.0, %v4330
        %v4332 = vpop.f32.mrf.mxu0
        %4333 = vmatprep.mubr.f32.mxu0 0.0
        %4334 = vmatmul.mubr.f32.gmra.mxu0 %v4200
        %v4335 = vpop.f32.mrf.mxu0
        %v4336 = vadd.f32 0.0, %v4335
        %v4337 = vpop.f32.mrf.mxu0
        %4338 = vmatprep.mubr.f32.mxu0 0.0
        %4339 = vmatmul.mubr.f32.gmra.mxu0 %v4203
        %v4340 = vpop.f32.mrf.mxu0
        %v4341 = vadd.f32 0.0, %v4340
        %v4342 = vpop.f32.mrf.mxu0
        %4343 = vmatprep.mubr.f32.mxu0 0.0
        %4344 = vmatmul.mubr.f32.gmra.mxu0 %v4206
        %v4345 = vpop.f32.mrf.mxu0
        %v4346 = vadd.f32 0.0, %v4345
        %v4347 = vpop.f32.mrf.mxu0
        %4348 = vmatprep.mubr.f32.mxu0 0.0
        %4349 = vmatmul.mubr.f32.gmra.mxu0 %v4209
        %v4350 = vpop.f32.mrf.mxu0
        %v4351 = vadd.f32 0.0, %v4350
        %v4352 = vpop.f32.mrf.mxu0
        %4353 = vmatprep.mubr.f32.mxu0 0.0
        %4354 = vmatmul.mubr.f32.gmra.mxu0 %v4212
        %v4355 = vpop.f32.mrf.mxu0
        %v4356 = vadd.f32 0.0, %v4355
        %v4357 = vpop.f32.mrf.mxu0
        %4358 = vdwg.mxu0
        %v4359 = vmax.f32 %v4281, %v4301
        %v4360 = vmax.f32 %v4286, %v4306
        %v4361 = vmax.f32 %v4291, %v4311
        %v4362 = vmax.f32 %v4296, %v4316
        %v4363 = vmax.f32 %v4359, %v4321
        %v4364 = vmax.f32 %v4360, %v4326
        %v4365 = vmax.f32 %v4361, %v4331
        %v4366 = vmax.f32 %v4362, %v4336
        %v4367 = vmax.f32 %v4363, %v4341
        %v4368 = vmax.f32 %v4364, %v4346
        %v4369 = vmax.f32 %v4365, %v4351
        %v4370 = vmax.f32 %v4366, %v4356
        %v4371 = vmax.f32 %v4367, %v4368
        %v4372 = vmax.f32 %v4369, %v4370
        %v4373 = vmax.f32 %v4371, %v4372
        %v4374 = vrot.slane %v4373, 4
        %v4375 = vmax.f32 %v4373, %v4374
        %v4376 = vrot.slane %v4375, 2
        %v4377 = vmax.f32 %v4375, %v4376
        %v4378 = vrot.slane %v4377, 1
        %v4379 = vmax.f32 %v4377, %v4378
        %v4380 = vsub.f32 %v4281, %v4379
        %v4381 = vsub.f32 %v4286, %v4379
        %v4382 = vsub.f32 %v4291, %v4379
        %v4383 = vsub.f32 %v4296, %v4379
        %v4384 = vsub.f32 %v4301, %v4379
        %v4385 = vsub.f32 %v4306, %v4379
        %v4386 = vsub.f32 %v4311, %v4379
        %v4387 = vsub.f32 %v4316, %v4379
        %v4388 = vsub.f32 %v4321, %v4379
        %v4389 = vsub.f32 %v4326, %v4379
        %v4390 = vsub.f32 %v4331, %v4379
        %v4391 = vsub.f32 %v4336, %v4379
        %v4392 = vsub.f32 %v4341, %v4379
        %v4393 = vsub.f32 %v4346, %v4379
        %v4394 = vsub.f32 %v4351, %v4379
        %v4395 = vsub.f32 %v4356, %v4379
        %v4396 = vmul.f32 %v4380, 1.442695
        %v4397 = vpow.pop %v4396
        %v4398 = vmul.f32 %v4381, 1.442695
        %v4399 = vpow.pop %v4398
        %v4400 = vmul.f32 %v4382, 1.442695
        %v4401 = vpow.pop %v4400
        %v4402 = vmul.f32 %v4383, 1.442695
        %v4403 = vpow.pop %v4402
        %v4404 = vmul.f32 %v4384, 1.442695
        %v4405 = vpow.pop %v4404
        %v4406 = vmul.f32 %v4385, 1.442695
        %v4407 = vpow.pop %v4406
        %v4408 = vmul.f32 %v4386, 1.442695
        %v4409 = vpow.pop %v4408
        %v4410 = vmul.f32 %v4387, 1.442695
        %v4411 = vpow.pop %v4410
        %v4412 = vmul.f32 %v4388, 1.442695
        %v4413 = vpow.pop %v4412
        %v4414 = vmul.f32 %v4389, 1.442695
        %v4415 = vpow.pop %v4414
        %v4416 = vmul.f32 %v4390, 1.442695
        %v4417 = vpow.pop %v4416
        %v4418 = vmul.f32 %v4391, 1.442695
        %v4419 = vpow.pop %v4418
        %v4420 = vmul.f32 %v4392, 1.442695
        %v4421 = vpow.pop %v4420
        %v4422 = vmul.f32 %v4393, 1.442695
        %v4423 = vpow.pop %v4422
        %v4424 = vmul.f32 %v4394, 1.442695
        %v4425 = vpow.pop %v4424
        %v4426 = vmul.f32 %v4395, 1.442695
        %v4427 = vpow.pop %v4426
        %v4428 = vadd.f32 %v4397, %v4399
        %v4429 = vadd.f32 %v4428, %v4401
        %v4430 = vadd.f32 %v4429, %v4403
        %v4431 = vadd.f32 %v4430, %v4405
        %v4432 = vadd.f32 %v4431, %v4407
        %v4433 = vadd.f32 %v4432, %v4409
        %v4434 = vadd.f32 %v4433, %v4411
        %v4435 = vadd.f32 %v4434, %v4413
        %v4436 = vadd.f32 %v4435, %v4415
        %v4437 = vadd.f32 %v4436, %v4417
        %v4438 = vadd.f32 %v4437, %v4419
        %v4439 = vadd.f32 %v4438, %v4421
        %v4440 = vadd.f32 %v4439, %v4423
        %v4441 = vadd.f32 %v4440, %v4425
        %v4442 = vadd.f32 %v4441, %v4427
        %v4443 = vrot.slane %v4442, 4
        %v4444 = vadd.f32 %v4442, %v4443
        %v4445 = vrot.slane %v4444, 2
        %v4446 = vadd.f32 %v4444, %v4445
        %v4447 = vrot.slane %v4446, 1
        %v4448 = vadd.f32 %v4446, %v4447
        %4449 = vmatprep.subr.mxu0 0.0
        %4450 = vmatpush1.msra.mxu0 %v4427
        %4451 = vmatprep.subr.mxu0 0.0
        %4452 = vmatpush1.msra.mxu0 %v4425
        %4453 = vmatprep.subr.mxu0 0.0
        %4454 = vmatpush1.msra.mxu0 %v4423
        %4455 = vmatprep.subr.mxu0 0.0
        %4456 = vmatpush1.msra.mxu0 %v4421
        %4457 = vmatprep.subr.mxu0 0.0
        %4458 = vmatpush1.msra.mxu0 %v4419
        %4459 = vmatprep.subr.mxu0 0.0
        %4460 = vmatpush1.msra.mxu0 %v4417
        %4461 = vmatprep.subr.mxu0 0.0
        %4462 = vmatpush1.msra.mxu0 %v4415
        %4463 = vmatprep.subr.mxu0 0.0
        %4464 = vmatpush1.msra.mxu0 %v4413
        %4465 = vmatprep.subr.mxu0 0.0
        %4466 = vmatpush1.msra.mxu0 %v4411
        %4467 = vmatprep.subr.mxu0 0.0
        %4468 = vmatpush1.msra.mxu0 %v4409
        %4469 = vmatprep.subr.mxu0 0.0
        %4470 = vmatpush1.msra.mxu0 %v4407
        %4471 = vmatprep.subr.mxu0 0.0
        %4472 = vmatpush1.msra.mxu0 %v4405
        %4473 = vmatprep.subr.mxu0 0.0
        %4474 = vmatpush1.msra.mxu0 %v4403
        %4475 = vmatprep.subr.mxu0 0.0
        %4476 = vmatpush1.msra.mxu0 %v4401
        %4477 = vmatprep.subr.mxu0 0.0
        %4478 = vmatpush1.msra.mxu0 %v4399
        %4479 = vmatprep.subr.mxu0 0.0
        %4480 = vmatpush1.msra.mxu0 %v4397
        %4481 = vmatprep.subr.mxu0 0.0
        %4482 = vmatpush2.msra.mxu0 0.0
        %4483 = vmatprep.subr.mxu0 0.0
        %4484 = vmatpush2.msra.mxu0 0.0
        %4485 = vmatprep.subr.mxu0 0.0
        %4486 = vmatpush2.msra.mxu0 0.0
        %4487 = vmatprep.subr.mxu0 0.0
        %4488 = vmatpush2.msra.mxu0 0.0
        %4489 = vmatprep.subr.mxu0 0.0
        %4490 = vmatpush2.msra.mxu0 0.0
        %4491 = vmatprep.subr.mxu0 0.0
        %4492 = vmatpush2.msra.mxu0 0.0
        %4493 = vmatprep.subr.mxu0 0.0
        %4494 = vmatpush2.msra.mxu0 0.0
        %4495 = vmatprep.subr.mxu0 0.0
        %4496 = vmatpush2.msra.mxu0 0.0
        %4497 = vmatprep.subr.mxu0 0.0
        %4498 = vmatpush2.msra.mxu0 0.0
        %4499 = vmatprep.subr.mxu0 0.0
        %4500 = vmatpush2.msra.mxu0 0.0
        %4501 = vmatprep.subr.mxu0 0.0
        %4502 = vmatpush2.msra.mxu0 0.0
        %4503 = vmatprep.subr.mxu0 0.0
        %4504 = vmatpush2.msra.mxu0 0.0
        %4505 = vmatprep.subr.mxu0 0.0
        %4506 = vmatpush2.msra.mxu0 0.0
        %4507 = vmatprep.subr.mxu0 0.0
        %4508 = vmatpush2.msra.mxu0 0.0
        %4509 = vmatprep.subr.mxu0 0.0
        %4510 = vmatpush2.msra.mxu0 0.0
        %4511 = vmatprep.subr.mxu0 0.0
        %4512 = vmatpush2.msra.mxu0 0.0
        %4513 = vmatprep.mubr.f32.mxu0 0.0
        %4514 = vmatmul.mubr.f32.gmra.mxu0 %v4133
        %v4515 = vpop.f32.mrf.mxu0
        %v4516 = vadd.f32 0.0, %v4515
        %v4517 = vpop.f32.mrf.mxu0
        %4518 = vdwg.mxu0
        %v4519 = vrcp.pop %v4448
        %v4520 = vmul.f32 %v4516, %v4519
        %v4521 = vadd.f32 %v4520, %v2467
        %v4522 = vrot.slane %v4521, 4
        %v4523 = vadd.f32 %v4521, %v4522
        %v4524 = vrot.slane %v4523, 2
        %v4525 = vadd.f32 %v4523, %v4524
        %v4526 = vrot.slane %v4525, 1
        %v4527 = vadd.f32 %v4525, %v4526
        %v4528 = vmul.f32 %v4527, %v2475
        %v4529 = vsub.f32 %v4521, %v4528
        %v4530 = vmul.f32 %v4529, %v4529
        %v4531 = vrot.slane %v4530, 4
        %v4532 = vadd.f32 %v4530, %v4531
        %v4533 = vrot.slane %v4532, 2
        %v4534 = vadd.f32 %v4532, %v4533
        %v4535 = vrot.slane %v4534, 1
        %v4536 = vadd.f32 %v4534, %v4535
        %v4537 = vmul.f32 %v4536, %v2475
        %v4538 = vadd.f32 %v4537, 1e-12
        %v4539 = vrsqrt.pop %v4538
        %v4540 = vmul.f32 %v4529, %v4539
        %v4542 = vrot.slane %v2488, 1
        %v4544 = vrot.slane %v2488, 2
        %v4546 = vrot.slane %v2488, 3
        %v4548 = vrot.slane %v2488, 4
        %v4550 = vrot.slane %v2488, 5
        %v4552 = vrot.slane %v2488, 6
        %v4554 = vrot.slane %v2488, 7
        %v4557 = vrot.slane %v2899, 1
        %v4559 = vrot.slane %v2899, 2
        %v4561 = vrot.slane %v2899, 3
        %v4563 = vrot.slane %v2899, 4
        %v4565 = vrot.slane %v2899, 5
        %v4567 = vrot.slane %v2899, 6
        %v4569 = vrot.slane %v2899, 7
        %v4572 = vrot.slane %v3310, 1
        %v4574 = vrot.slane %v3310, 2
        %v4576 = vrot.slane %v3310, 3
        %v4578 = vrot.slane %v3310, 4
        %v4580 = vrot.slane %v3310, 5
        %v4582 = vrot.slane %v3310, 6
        %v4584 = vrot.slane %v3310, 7
        %v4587 = vrot.slane %v3720, 1
        %v4589 = vrot.slane %v3720, 2
        %v4591 = vrot.slane %v3720, 3
        %v4593 = vrot.slane %v3720, 4
        %v4595 = vrot.slane %v3720, 5
        %v4597 = vrot.slane %v3720, 6
        %v4599 = vrot.slane %v3720, 7
        %v4602 = vrot.slane %v4130, 1
        %v4604 = vrot.slane %v4130, 2
        %v4606 = vrot.slane %v4130, 3
        %v4608 = vrot.slane %v4130, 4
        %v4610 = vrot.slane %v4130, 5
        %v4612 = vrot.slane %v4130, 6
        %v4614 = vrot.slane %v4130, 7
        %v4617 = vrot.slane %v4540, 1
        %v4619 = vrot.slane %v4540, 2
        %v4621 = vrot.slane %v4540, 3
        %v4623 = vrot.slane %v4540, 4
        %v4625 = vrot.slane %v4540, 5
        %v4627 = vrot.slane %v4540, 6
        %v4629 = vrot.slane %v4540, 7
        %v4631 = vld [vmem:[%s10] sm:$0xff]
        %v4632 = vld [vmem:[%s10 + $0x8] sm:$0xff]
        %v4633 = vld [vmem:[%s10 + $0x10] sm:$0xff]
        %v4634 = vld [vmem:[%s10 + $0x18] sm:$0xff]
        %v4635 = vld [vmem:[%s10 + $0x20] sm:$0xff]
        %v4636 = vld [vmem:[%s10 + $0x28] sm:$0xff]
        %v4637 = vld [vmem:[%s10 + $0x30] sm:$0xff]
        %v4638 = vld [vmem:[%s10 + $0x38] sm:$0xff]
        %v4639 = vld [vmem:[%s10 + $0x40] sm:$0xff]
        %v4640 = vld [vmem:[%s10 + $0x48] sm:$0xff]
        %v4641 = vld [vmem:[%s10 + $0x50] sm:$0xff]
        %v4642 = vld [vmem:[%s10 + $0x58] sm:$0xff]
        %v4643 = vld [vmem:[%s10 + $0x60] sm:$0xff]
        %v4644 = vld [vmem:[%s10 + $0x68] sm:$0xff]
        %v4645 = vld [vmem:[%s10 + $0x70] sm:$0xff]
        %v4646 = vld [vmem:[%s10 + $0x78] sm:$0xff]
        %v4647 = vld [vmem:[%s10 + $0x80] sm:$0xff]
        %v4648 = vld [vmem:[%s10 + $0x88] sm:$0xff]
        %v4649 = vld [vmem:[%s10 + $0x90] sm:$0xff]
        %v4650 = vld [vmem:[%s10 + $0x98] sm:$0xff]
        %v4651 = vld [vmem:[%s10 + $0xa0] sm:$0xff]
        %v4652 = vld [vmem:[%s10 + $0xa8] sm:$0xff]
        %v4653 = vld [vmem:[%s10 + $0xb0] sm:$0xff]
        %v4654 = vld [vmem:[%s10 + $0xb8] sm:$0xff]
        %v4655 = vld [vmem:[%s10 + $0xc0] sm:$0xff]
        %v4656 = vld [vmem:[%s10 + $0xc8] sm:$0xff]
        %v4657 = vld [vmem:[%s10 + $0xd0] sm:$0xff]
        %v4658 = vld [vmem:[%s10 + $0xd8] sm:$0xff]
        %v4659 = vld [vmem:[%s10 + $0xe0] sm:$0xff]
        %v4660 = vld [vmem:[%s10 + $0xe8] sm:$0xff]
        %v4661 = vld [vmem:[%s10 + $0xf0] sm:$0xff]
        %v4662 = vld [vmem:[%s10 + $0xf8] sm:$0xff]
        %v4663 = vld [vmem:[%s10 + $0x100] sm:$0xff]
        %v4664 = vld [vmem:[%s10 + $0x108] sm:$0xff]
        %v4665 = vld [vmem:[%s10 + $0x110] sm:$0xff]
        %v4666 = vld [vmem:[%s10 + $0x118] sm:$0xff]
        %v4667 = vld [vmem:[%s10 + $0x120] sm:$0xff]
        %v4668 = vld [vmem:[%s10 + $0x128] sm:$0xff]
        %v4669 = vld [vmem:[%s10 + $0x130] sm:$0xff]
        %v4670 = vld [vmem:[%s10 + $0x138] sm:$0xff]
        %v4671 = vld [vmem:[%s10 + $0x140] sm:$0xff]
        %v4672 = vld [vmem:[%s10 + $0x148] sm:$0xff]
        %v4673 = vld [vmem:[%s10 + $0x150] sm:$0xff]
        %v4674 = vld [vmem:[%s10 + $0x158] sm:$0xff]
        %v4675 = vld [vmem:[%s10 + $0x160] sm:$0xff]
        %v4676 = vld [vmem:[%s10 + $0x168] sm:$0xff]
        %v4677 = vld [vmem:[%s10 + $0x170] sm:$0xff]
        %v4678 = vld [vmem:[%s10 + $0x178] sm:$0xff]
        %v4679 = vld [vmem:[%s10 + $0x180] sm:$0xff]
        %v4680 = vld [vmem:[%s10 + $0x188] sm:$0xff]
        %v4681 = vld [vmem:[%s10 + $0x190] sm:$0xff]
        %v4682 = vld [vmem:[%s10 + $0x198] sm:$0xff]
        %v4683 = vld [vmem:[%s10 + $0x1a0] sm:$0xff]
        %v4684 = vld [vmem:[%s10 + $0x1a8] sm:$0xff]
        %v4685 = vld [vmem:[%s10 + $0x1b0] sm:$0xff]
        %v4686 = vld [vmem:[%s10 + $0x1b8] sm:$0xff]
        %v4687 = vld [vmem:[%s10 + $0x1c0] sm:$0xff]
        %v4688 = vld [vmem:[%s10 + $0x1c8] sm:$0xff]
        %v4689 = vld [vmem:[%s10 + $0x1d0] sm:$0xff]
        %v4690 = vld [vmem:[%s10 + $0x1d8] sm:$0xff]
        %v4691 = vld [vmem:[%s10 + $0x1e0] sm:$0xff]
        %v4692 = vld [vmem:[%s10 + $0x1e8] sm:$0xff]
        %v4693 = vld [vmem:[%s10 + $0x1f0] sm:$0xff]
        %v4694 = vld [vmem:[%s10 + $0x1f8] sm:$0xff]
        %v4695 = vld [vmem:[%s10 + $0x200] sm:$0xff]
        %v4696 = vld [vmem:[%s10 + $0x208] sm:$0xff]
        %v4697 = vld [vmem:[%s10 + $0x210] sm:$0xff]
        %v4698 = vld [vmem:[%s10 + $0x218] sm:$0xff]
        %v4699 = vld [vmem:[%s10 + $0x220] sm:$0xff]
        %v4700 = vld [vmem:[%s10 + $0x228] sm:$0xff]
        %v4701 = vld [vmem:[%s10 + $0x230] sm:$0xff]
        %v4702 = vld [vmem:[%s10 + $0x238] sm:$0xff]
        %v4703 = vld [vmem:[%s10 + $0x240] sm:$0xff]
        %v4704 = vld [vmem:[%s10 + $0x248] sm:$0xff]
        %v4705 = vld [vmem:[%s10 + $0x250] sm:$0xff]
        %v4706 = vld [vmem:[%s10 + $0x258] sm:$0xff]
        %v4707 = vld [vmem:[%s10 + $0x260] sm:$0xff]
        %v4708 = vld [vmem:[%s10 + $0x268] sm:$0xff]
        %v4709 = vld [vmem:[%s10 + $0x270] sm:$0xff]
        %v4710 = vld [vmem:[%s10 + $0x278] sm:$0xff]
        %v4711 = vld [vmem:[%s10 + $0x280] sm:$0xff]
        %v4712 = vld [vmem:[%s10 + $0x288] sm:$0xff]
        %v4713 = vld [vmem:[%s10 + $0x290] sm:$0xff]
        %v4714 = vld [vmem:[%s10 + $0x298] sm:$0xff]
        %v4715 = vld [vmem:[%s10 + $0x2a0] sm:$0xff]
        %v4716 = vld [vmem:[%s10 + $0x2a8] sm:$0xff]
        %v4717 = vld [vmem:[%s10 + $0x2b0] sm:$0xff]
        %v4718 = vld [vmem:[%s10 + $0x2b8] sm:$0xff]
        %v4719 = vld [vmem:[%s10 + $0x2c0] sm:$0xff]
        %v4720 = vld [vmem:[%s10 + $0x2c8] sm:$0xff]
        %v4721 = vld [vmem:[%s10 + $0x2d0] sm:$0xff]
        %v4722 = vld [vmem:[%s10 + $0x2d8] sm:$0xff]
        %v4723 = vld [vmem:[%s10 + $0x2e0] sm:$0xff]
        %v4724 = vld [vmem:[%s10 + $0x2e8] sm:$0xff]
        %v4725 = vld [vmem:[%s10 + $0x2f0] sm:$0xff]
        %v4726 = vld [vmem:[%s10 + $0x2f8] sm:$0xff]
        %v4727 = vld [vmem:[%s10 + $0x300] sm:$0xff]
        %v4728 = vld [vmem:[%s10 + $0x308] sm:$0xff]
        %v4729 = vld [vmem:[%s10 + $0x310] sm:$0xff]
        %v4730 = vld [vmem:[%s10 + $0x318] sm:$0xff]
        %v4731 = vld [vmem:[%s10 + $0x320] sm:$0xff]
        %v4732 = vld [vmem:[%s10 + $0x328] sm:$0xff]
        %v4733 = vld [vmem:[%s10 + $0x330] sm:$0xff]
        %v4734 = vld [vmem:[%s10 + $0x338] sm:$0xff]
        %v4735 = vld [vmem:[%s10 + $0x340] sm:$0xff]
        %v4736 = vld [vmem:[%s10 + $0x348] sm:$0xff]
        %v4737 = vld [vmem:[%s10 + $0x350] sm:$0xff]
        %v4738 = vld [vmem:[%s10 + $0x358] sm:$0xff]
        %v4739 = vld [vmem:[%s10 + $0x360] sm:$0xff]
        %v4740 = vld [vmem:[%s10 + $0x368] sm:$0xff]
        %v4741 = vld [vmem:[%s10 + $0x370] sm:$0xff]
        %v4742 = vld [vmem:[%s10 + $0x378] sm:$0xff]
        %v4743 = vld [vmem:[%s10 + $0x380] sm:$0xff]
        %v4744 = vld [vmem:[%s10 + $0x388] sm:$0xff]
        %v4745 = vld [vmem:[%s10 + $0x390] sm:$0xff]
        %v4746 = vld [vmem:[%s10 + $0x398] sm:$0xff]
        %v4747 = vld [vmem:[%s10 + $0x3a0] sm:$0xff]
        %v4748 = vld [vmem:[%s10 + $0x3a8] sm:$0xff]
        %v4749 = vld [vmem:[%s10 + $0x3b0] sm:$0xff]
        %v4750 = vld [vmem:[%s10 + $0x3b8] sm:$0xff]
        %v4751 = vld [vmem:[%s10 + $0x3c0] sm:$0xff]
        %v4752 = vld [vmem:[%s10 + $0x3c8] sm:$0xff]
        %v4753 = vld [vmem:[%s10 + $0x3d0] sm:$0xff]
        %v4754 = vld [vmem:[%s10 + $0x3d8] sm:$0xff]
        %v4755 = vld [vmem:[%s10 + $0x3e0] sm:$0xff]
        %v4756 = vld [vmem:[%s10 + $0x3e8] sm:$0xff]
        %v4757 = vld [vmem:[%s10 + $0x3f0] sm:$0xff]
        %v4758 = vld [vmem:[%s10 + $0x3f8] sm:$0xff]
        %v4759 = vld [vmem:[%s10 + $0x400] sm:$0xff]
        %v4760 = vld [vmem:[%s10 + $0x408] sm:$0xff]
        %v4761 = vld [vmem:[%s10 + $0x410] sm:$0xff]
        %v4762 = vld [vmem:[%s10 + $0x418] sm:$0xff]
        %v4763 = vld [vmem:[%s10 + $0x420] sm:$0xff]
        %v4764 = vld [vmem:[%s10 + $0x428] sm:$0xff]
        %v4765 = vld [vmem:[%s10 + $0x430] sm:$0xff]
        %v4766 = vld [vmem:[%s10 + $0x438] sm:$0xff]
        %v4767 = vld [vmem:[%s10 + $0x440] sm:$0xff]
        %v4768 = vld [vmem:[%s10 + $0x448] sm:$0xff]
        %v4769 = vld [vmem:[%s10 + $0x450] sm:$0xff]
        %v4770 = vld [vmem:[%s10 + $0x458] sm:$0xff]
        %v4771 = vld [vmem:[%s10 + $0x460] sm:$0xff]
        %v4772 = vld [vmem:[%s10 + $0x468] sm:$0xff]
        %v4773 = vld [vmem:[%s10 + $0x470] sm:$0xff]
        %v4774 = vld [vmem:[%s10 + $0x478] sm:$0xff]
        %v4775 = vld [vmem:[%s10 + $0x480] sm:$0xff]
        %v4776 = vld [vmem:[%s10 + $0x488] sm:$0xff]
        %v4777 = vld [vmem:[%s10 + $0x490] sm:$0xff]
        %v4778 = vld [vmem:[%s10 + $0x498] sm:$0xff]
        %v4779 = vld [vmem:[%s10 + $0x4a0] sm:$0xff]
        %v4780 = vld [vmem:[%s10 + $0x4a8] sm:$0xff]
        %v4781 = vld [vmem:[%s10 + $0x4b0] sm:$0xff]
        %v4782 = vld [vmem:[%s10 + $0x4b8] sm:$0xff]
        %v4783 = vld [vmem:[%s10 + $0x4c0] sm:$0xff]
        %v4784 = vld [vmem:[%s10 + $0x4c8] sm:$0xff]
        %v4785 = vld [vmem:[%s10 + $0x4d0] sm:$0xff]
        %v4786 = vld [vmem:[%s10 + $0x4d8] sm:$0xff]
        %v4787 = vld [vmem:[%s10 + $0x4e0] sm:$0xff]
        %v4788 = vld [vmem:[%s10 + $0x4e8] sm:$0xff]
        %v4789 = vld [vmem:[%s10 + $0x4f0] sm:$0xff]
        %v4790 = vld [vmem:[%s10 + $0x4f8] sm:$0xff]
        %v4791 = vld [vmem:[%s10 + $0x500] sm:$0xff]
        %v4792 = vld [vmem:[%s10 + $0x508] sm:$0xff]
        %v4793 = vld [vmem:[%s10 + $0x510] sm:$0xff]
        %v4794 = vld [vmem:[%s10 + $0x518] sm:$0xff]
        %v4795 = vld [vmem:[%s10 + $0x520] sm:$0xff]
        %v4796 = vld [vmem:[%s10 + $0x528] sm:$0xff]
        %v4797 = vld [vmem:[%s10 + $0x530] sm:$0xff]
        %v4798 = vld [vmem:[%s10 + $0x538] sm:$0xff]
        %v4799 = vld [vmem:[%s10 + $0x540] sm:$0xff]
        %v4800 = vld [vmem:[%s10 + $0x548] sm:$0xff]
        %v4801 = vld [vmem:[%s10 + $0x550] sm:$0xff]
        %v4802 = vld [vmem:[%s10 + $0x558] sm:$0xff]
        %v4803 = vld [vmem:[%s10 + $0x560] sm:$0xff]
        %v4804 = vld [vmem:[%s10 + $0x568] sm:$0xff]
        %v4805 = vld [vmem:[%s10 + $0x570] sm:$0xff]
        %v4806 = vld [vmem:[%s10 + $0x578] sm:$0xff]
        %v4807 = vld [vmem:[%s10 + $0x580] sm:$0xff]
        %v4808 = vld [vmem:[%s10 + $0x588] sm:$0xff]
        %v4809 = vld [vmem:[%s10 + $0x590] sm:$0xff]
        %v4810 = vld [vmem:[%s10 + $0x598] sm:$0xff]
        %v4811 = vld [vmem:[%s10 + $0x5a0] sm:$0xff]
        %v4812 = vld [vmem:[%s10 + $0x5a8] sm:$0xff]
        %v4813 = vld [vmem:[%s10 + $0x5b0] sm:$0xff]
        %v4814 = vld [vmem:[%s10 + $0x5b8] sm:$0xff]
        %v4815 = vld [vmem:[%s10 + $0x5c0] sm:$0xff]
        %v4816 = vld [vmem:[%s10 + $0x5c8] sm:$0xff]
        %v4817 = vld [vmem:[%s10 + $0x5d0] sm:$0xff]
        %v4818 = vld [vmem:[%s10 + $0x5d8] sm:$0xff]
        %v4819 = vld [vmem:[%s10 + $0x5e0] sm:$0xff]
        %v4820 = vld [vmem:[%s10 + $0x5e8] sm:$0xff]
        %v4821 = vld [vmem:[%s10 + $0x5f0] sm:$0xff]
        %v4822 = vld [vmem:[%s10 + $0x5f8] sm:$0xff]
        %v4823 = vld [vmem:[%s10 + $0x600] sm:$0xff]
        %v4824 = vld [vmem:[%s10 + $0x608] sm:$0xff]
        %v4825 = vld [vmem:[%s10 + $0x610] sm:$0xff]
        %v4826 = vld [vmem:[%s10 + $0x618] sm:$0xff]
        %v4827 = vld [vmem:[%s10 + $0x620] sm:$0xff]
        %v4828 = vld [vmem:[%s10 + $0x628] sm:$0xff]
        %v4829 = vld [vmem:[%s10 + $0x630] sm:$0xff]
        %v4830 = vld [vmem:[%s10 + $0x638] sm:$0xff]
        %v4831 = vld [vmem:[%s10 + $0x640] sm:$0xff]
        %v4832 = vld [vmem:[%s10 + $0x648] sm:$0xff]
        %v4833 = vld [vmem:[%s10 + $0x650] sm:$0xff]
        %v4834 = vld [vmem:[%s10 + $0x658] sm:$0xff]
        %v4835 = vld [vmem:[%s10 + $0x660] sm:$0xff]
        %v4836 = vld [vmem:[%s10 + $0x668] sm:$0xff]
        %v4837 = vld [vmem:[%s10 + $0x670] sm:$0xff]
        %v4838 = vld [vmem:[%s10 + $0x678] sm:$0xff]
        %v4839 = vld [vmem:[%s10 + $0x680] sm:$0xff]
        %v4840 = vld [vmem:[%s10 + $0x688] sm:$0xff]
        %v4841 = vld [vmem:[%s10 + $0x690] sm:$0xff]
        %v4842 = vld [vmem:[%s10 + $0x698] sm:$0xff]
        %v4843 = vld [vmem:[%s10 + $0x6a0] sm:$0xff]
        %v4844 = vld [vmem:[%s10 + $0x6a8] sm:$0xff]
        %v4845 = vld [vmem:[%s10 + $0x6b0] sm:$0xff]
        %v4846 = vld [vmem:[%s10 + $0x6b8] sm:$0xff]
        %v4847 = vld [vmem:[%s10 + $0x6c0] sm:$0xff]
        %v4848 = vld [vmem:[%s10 + $0x6c8] sm:$0xff]
        %v4849 = vld [vmem:[%s10 + $0x6d0] sm:$0xff]
        %v4850 = vld [vmem:[%s10 + $0x6d8] sm:$0xff]
        %v4851 = vld [vmem:[%s10 + $0x6e0] sm:$0xff]
        %v4852 = vld [vmem:[%s10 + $0x6e8] sm:$0xff]
        %v4853 = vld [vmem:[%s10 + $0x6f0] sm:$0xff]
        %v4854 = vld [vmem:[%s10 + $0x6f8] sm:$0xff]
        %v4855 = vld [vmem:[%s10 + $0x700] sm:$0xff]
        %v4856 = vld [vmem:[%s10 + $0x708] sm:$0xff]
        %v4857 = vld [vmem:[%s10 + $0x710] sm:$0xff]
        %v4858 = vld [vmem:[%s10 + $0x718] sm:$0xff]
        %v4859 = vld [vmem:[%s10 + $0x720] sm:$0xff]
        %v4860 = vld [vmem:[%s10 + $0x728] sm:$0xff]
        %v4861 = vld [vmem:[%s10 + $0x730] sm:$0xff]
        %v4862 = vld [vmem:[%s10 + $0x738] sm:$0xff]
        %v4863 = vld [vmem:[%s10 + $0x740] sm:$0xff]
        %v4864 = vld [vmem:[%s10 + $0x748] sm:$0xff]
        %v4865 = vld [vmem:[%s10 + $0x750] sm:$0xff]
        %v4866 = vld [vmem:[%s10 + $0x758] sm:$0xff]
        %v4867 = vld [vmem:[%s10 + $0x760] sm:$0xff]
        %v4868 = vld [vmem:[%s10 + $0x768] sm:$0xff]
        %v4869 = vld [vmem:[%s10 + $0x770] sm:$0xff]
        %v4870 = vld [vmem:[%s10 + $0x778] sm:$0xff]
        %v4871 = vld [vmem:[%s10 + $0x780] sm:$0xff]
        %v4872 = vld [vmem:[%s10 + $0x788] sm:$0xff]
        %v4873 = vld [vmem:[%s10 + $0x790] sm:$0xff]
        %v4874 = vld [vmem:[%s10 + $0x798] sm:$0xff]
        %v4875 = vld [vmem:[%s10 + $0x7a0] sm:$0xff]
        %v4876 = vld [vmem:[%s10 + $0x7a8] sm:$0xff]
        %v4877 = vld [vmem:[%s10 + $0x7b0] sm:$0xff]
        %v4878 = vld [vmem:[%s10 + $0x7b8] sm:$0xff]
        %v4879 = vld [vmem:[%s10 + $0x7c0] sm:$0xff]
        %v4880 = vld [vmem:[%s10 + $0x7c8] sm:$0xff]
        %v4881 = vld [vmem:[%s10 + $0x7d0] sm:$0xff]
        %v4882 = vld [vmem:[%s10 + $0x7d8] sm:$0xff]
        %v4883 = vld [vmem:[%s10 + $0x7e0] sm:$0xff]
        %v4884 = vld [vmem:[%s10 + $0x7e8] sm:$0xff]
        %v4885 = vld [vmem:[%s10 + $0x7f0] sm:$0xff]
        %v4886 = vld [vmem:[%s10 + $0x7f8] sm:$0xff]
        %v4887 = vld [vmem:[%s10 + $0x800] sm:$0xff]
        %v4888 = vld [vmem:[%s10 + $0x808] sm:$0xff]
        %v4889 = vld [vmem:[%s10 + $0x810] sm:$0xff]
        %v4890 = vld [vmem:[%s10 + $0x818] sm:$0xff]
        %v4891 = vld [vmem:[%s10 + $0x820] sm:$0xff]
        %v4892 = vld [vmem:[%s10 + $0x828] sm:$0xff]
        %v4893 = vld [vmem:[%s10 + $0x830] sm:$0xff]
        %v4894 = vld [vmem:[%s10 + $0x838] sm:$0xff]
        %v4895 = vld [vmem:[%s10 + $0x840] sm:$0xff]
        %v4896 = vld [vmem:[%s10 + $0x848] sm:$0xff]
        %v4897 = vld [vmem:[%s10 + $0x850] sm:$0xff]
        %v4898 = vld [vmem:[%s10 + $0x858] sm:$0xff]
        %v4899 = vld [vmem:[%s10 + $0x860] sm:$0xff]
        %v4900 = vld [vmem:[%s10 + $0x868] sm:$0xff]
        %v4901 = vld [vmem:[%s10 + $0x870] sm:$0xff]
        %v4902 = vld [vmem:[%s10 + $0x878] sm:$0xff]
        %v4903 = vld [vmem:[%s10 + $0x880] sm:$0xff]
        %v4904 = vld [vmem:[%s10 + $0x888] sm:$0xff]
        %v4905 = vld [vmem:[%s10 + $0x890] sm:$0xff]
        %v4906 = vld [vmem:[%s10 + $0x898] sm:$0xff]
        %v4907 = vld [vmem:[%s10 + $0x8a0] sm:$0xff]
        %v4908 = vld [vmem:[%s10 + $0x8a8] sm:$0xff]
        %v4909 = vld [vmem:[%s10 + $0x8b0] sm:$0xff]
        %v4910 = vld [vmem:[%s10 + $0x8b8] sm:$0xff]
        %v4911 = vld [vmem:[%s10 + $0x8c0] sm:$0xff]
        %v4912 = vld [vmem:[%s10 + $0x8c8] sm:$0xff]
        %v4913 = vld [vmem:[%s10 + $0x8d0] sm:$0xff]
        %v4914 = vld [vmem:[%s10 + $0x8d8] sm:$0xff]
        %v4915 = vld [vmem:[%s10 + $0x8e0] sm:$0xff]
        %v4916 = vld [vmem:[%s10 + $0x8e8] sm:$0xff]
        %v4917 = vld [vmem:[%s10 + $0x8f0] sm:$0xff]
        %v4918 = vld [vmem:[%s10 + $0x8f8] sm:$0xff]
        %v4919 = vld [vmem:[%s10 + $0x900] sm:$0xff]
        %v4920 = vld [vmem:[%s10 + $0x908] sm:$0xff]
        %v4921 = vld [vmem:[%s10 + $0x910] sm:$0xff]
        %v4922 = vld [vmem:[%s10 + $0x918] sm:$0xff]
        %v4923 = vld [vmem:[%s10 + $0x920] sm:$0xff]
        %v4924 = vld [vmem:[%s10 + $0x928] sm:$0xff]
        %v4925 = vld [vmem:[%s10 + $0x930] sm:$0xff]
        %v4926 = vld [vmem:[%s10 + $0x938] sm:$0xff]
        %v4927 = vld [vmem:[%s10 + $0x940] sm:$0xff]
        %v4928 = vld [vmem:[%s10 + $0x948] sm:$0xff]
        %v4929 = vld [vmem:[%s10 + $0x950] sm:$0xff]
        %v4930 = vld [vmem:[%s10 + $0x958] sm:$0xff]
        %v4931 = vld [vmem:[%s10 + $0x960] sm:$0xff]
        %v4932 = vld [vmem:[%s10 + $0x968] sm:$0xff]
        %v4933 = vld [vmem:[%s10 + $0x970] sm:$0xff]
        %v4934 = vld [vmem:[%s10 + $0x978] sm:$0xff]
        %v4935 = vld [vmem:[%s10 + $0x980] sm:$0xff]
        %v4936 = vld [vmem:[%s10 + $0x988] sm:$0xff]
        %v4937 = vld [vmem:[%s10 + $0x990] sm:$0xff]
        %v4938 = vld [vmem:[%s10 + $0x998] sm:$0xff]
        %v4939 = vld [vmem:[%s10 + $0x9a0] sm:$0xff]
        %v4940 = vld [vmem:[%s10 + $0x9a8] sm:$0xff]
        %v4941 = vld [vmem:[%s10 + $0x9b0] sm:$0xff]
        %v4942 = vld [vmem:[%s10 + $0x9b8] sm:$0xff]
        %v4943 = vld [vmem:[%s10 + $0x9c0] sm:$0xff]
        %v4944 = vld [vmem:[%s10 + $0x9c8] sm:$0xff]
        %v4945 = vld [vmem:[%s10 + $0x9d0] sm:$0xff]
        %v4946 = vld [vmem:[%s10 + $0x9d8] sm:$0xff]
        %v4947 = vld [vmem:[%s10 + $0x9e0] sm:$0xff]
        %v4948 = vld [vmem:[%s10 + $0x9e8] sm:$0xff]
        %v4949 = vld [vmem:[%s10 + $0x9f0] sm:$0xff]
        %v4950 = vld [vmem:[%s10 + $0x9f8] sm:$0xff]
        %v4951 = vld [vmem:[%s10 + $0xa00] sm:$0xff]
        %v4952 = vld [vmem:[%s10 + $0xa08] sm:$0xff]
        %v4953 = vld [vmem:[%s10 + $0xa10] sm:$0xff]
        %v4954 = vld [vmem:[%s10 + $0xa18] sm:$0xff]
        %v4955 = vld [vmem:[%s10 + $0xa20] sm:$0xff]
        %v4956 = vld [vmem:[%s10 + $0xa28] sm:$0xff]
        %v4957 = vld [vmem:[%s10 + $0xa30] sm:$0xff]
        %v4958 = vld [vmem:[%s10 + $0xa38] sm:$0xff]
        %v4959 = vld [vmem:[%s10 + $0xa40] sm:$0xff]
        %v4960 = vld [vmem:[%s10 + $0xa48] sm:$0xff]
        %v4961 = vld [vmem:[%s10 + $0xa50] sm:$0xff]
        %v4962 = vld [vmem:[%s10 + $0xa58] sm:$0xff]
        %v4963 = vld [vmem:[%s10 + $0xa60] sm:$0xff]
        %v4964 = vld [vmem:[%s10 + $0xa68] sm:$0xff]
        %v4965 = vld [vmem:[%s10 + $0xa70] sm:$0xff]
        %v4966 = vld [vmem:[%s10 + $0xa78] sm:$0xff]
        %v4967 = vld [vmem:[%s10 + $0xa80] sm:$0xff]
        %v4968 = vld [vmem:[%s10 + $0xa88] sm:$0xff]
        %v4969 = vld [vmem:[%s10 + $0xa90] sm:$0xff]
        %v4970 = vld [vmem:[%s10 + $0xa98] sm:$0xff]
        %v4971 = vld [vmem:[%s10 + $0xaa0] sm:$0xff]
        %v4972 = vld [vmem:[%s10 + $0xaa8] sm:$0xff]
        %v4973 = vld [vmem:[%s10 + $0xab0] sm:$0xff]
        %v4974 = vld [vmem:[%s10 + $0xab8] sm:$0xff]
        %v4975 = vld [vmem:[%s10 + $0xac0] sm:$0xff]
        %v4976 = vld [vmem:[%s10 + $0xac8] sm:$0xff]
        %v4977 = vld [vmem:[%s10 + $0xad0] sm:$0xff]
        %v4978 = vld [vmem:[%s10 + $0xad8] sm:$0xff]
        %v4979 = vld [vmem:[%s10 + $0xae0] sm:$0xff]
        %v4980 = vld [vmem:[%s10 + $0xae8] sm:$0xff]
        %v4981 = vld [vmem:[%s10 + $0xaf0] sm:$0xff]
        %v4982 = vld [vmem:[%s10 + $0xaf8] sm:$0xff]
        %v4983 = vld [vmem:[%s10 + $0xb00] sm:$0xff]
        %v4984 = vld [vmem:[%s10 + $0xb08] sm:$0xff]
        %v4985 = vld [vmem:[%s10 + $0xb10] sm:$0xff]
        %v4986 = vld [vmem:[%s10 + $0xb18] sm:$0xff]
        %v4987 = vld [vmem:[%s10 + $0xb20] sm:$0xff]
        %v4988 = vld [vmem:[%s10 + $0xb28] sm:$0xff]
        %v4989 = vld [vmem:[%s10 + $0xb30] sm:$0xff]
        %v4990 = vld [vmem:[%s10 + $0xb38] sm:$0xff]
        %v4991 = vld [vmem:[%s10 + $0xb40] sm:$0xff]
        %v4992 = vld [vmem:[%s10 + $0xb48] sm:$0xff]
        %v4993 = vld [vmem:[%s10 + $0xb50] sm:$0xff]
        %v4994 = vld [vmem:[%s10 + $0xb58] sm:$0xff]
        %v4995 = vld [vmem:[%s10 + $0xb60] sm:$0xff]
        %v4996 = vld [vmem:[%s10 + $0xb68] sm:$0xff]
        %v4997 = vld [vmem:[%s10 + $0xb70] sm:$0xff]
        %v4998 = vld [vmem:[%s10 + $0xb78] sm:$0xff]
        %v4999 = vld [vmem:[%s10 + $0xb80] sm:$0xff]
        %v5000 = vld [vmem:[%s10 + $0xb88] sm:$0xff]
        %v5001 = vld [vmem:[%s10 + $0xb90] sm:$0xff]
        %v5002 = vld [vmem:[%s10 + $0xb98] sm:$0xff]
        %v5003 = vld [vmem:[%s10 + $0xba0] sm:$0xff]
        %v5004 = vld [vmem:[%s10 + $0xba8] sm:$0xff]
        %v5005 = vld [vmem:[%s10 + $0xbb0] sm:$0xff]
        %v5006 = vld [vmem:[%s10 + $0xbb8] sm:$0xff]
        %v5007 = vld [vmem:[%s10 + $0xbc0] sm:$0xff]
        %v5008 = vld [vmem:[%s10 + $0xbc8] sm:$0xff]
        %v5009 = vld [vmem:[%s10 + $0xbd0] sm:$0xff]
        %v5010 = vld [vmem:[%s10 + $0xbd8] sm:$0xff]
        %v5011 = vld [vmem:[%s10 + $0xbe0] sm:$0xff]
        %v5012 = vld [vmem:[%s10 + $0xbe8] sm:$0xff]
        %v5013 = vld [vmem:[%s10 + $0xbf0] sm:$0xff]
        %v5014 = vld [vmem:[%s10 + $0xbf8] sm:$0xff]
        %v5015 = vld [vmem:[%s10 + $0xc00] sm:$0xff]
        %v5016 = vld [vmem:[%s10 + $0xc08] sm:$0xff]
        %v5017 = vld [vmem:[%s10 + $0xc10] sm:$0xff]
        %v5018 = vld [vmem:[%s10 + $0xc18] sm:$0xff]
        %v5019 = vld [vmem:[%s10 + $0xc20] sm:$0xff]
        %v5020 = vld [vmem:[%s10 + $0xc28] sm:$0xff]
        %v5021 = vld [vmem:[%s10 + $0xc30] sm:$0xff]
        %v5022 = vld [vmem:[%s10 + $0xc38] sm:$0xff]
        %v5023 = vld [vmem:[%s10 + $0xc40] sm:$0xff]
        %v5024 = vld [vmem:[%s10 + $0xc48] sm:$0xff]
        %v5025 = vld [vmem:[%s10 + $0xc50] sm:$0xff]
        %v5026 = vld [vmem:[%s10 + $0xc58] sm:$0xff]
        %v5027 = vld [vmem:[%s10 + $0xc60] sm:$0xff]
        %v5028 = vld [vmem:[%s10 + $0xc68] sm:$0xff]
        %v5029 = vld [vmem:[%s10 + $0xc70] sm:$0xff]
        %v5030 = vld [vmem:[%s10 + $0xc78] sm:$0xff]
        %v5031 = vld [vmem:[%s10 + $0xc80] sm:$0xff]
        %v5032 = vld [vmem:[%s10 + $0xc88] sm:$0xff]
        %v5033 = vld [vmem:[%s10 + $0xc90] sm:$0xff]
        %v5034 = vld [vmem:[%s10 + $0xc98] sm:$0xff]
        %v5035 = vld [vmem:[%s10 + $0xca0] sm:$0xff]
        %v5036 = vld [vmem:[%s10 + $0xca8] sm:$0xff]
        %v5037 = vld [vmem:[%s10 + $0xcb0] sm:$0xff]
        %v5038 = vld [vmem:[%s10 + $0xcb8] sm:$0xff]
        %v5039 = vld [vmem:[%s10 + $0xcc0] sm:$0xff]
        %v5040 = vld [vmem:[%s10 + $0xcc8] sm:$0xff]
        %v5041 = vld [vmem:[%s10 + $0xcd0] sm:$0xff]
        %v5042 = vld [vmem:[%s10 + $0xcd8] sm:$0xff]
        %v5043 = vld [vmem:[%s10 + $0xce0] sm:$0xff]
        %v5044 = vld [vmem:[%s10 + $0xce8] sm:$0xff]
        %v5045 = vld [vmem:[%s10 + $0xcf0] sm:$0xff]
        %v5046 = vld [vmem:[%s10 + $0xcf8] sm:$0xff]
        %v5047 = vld [vmem:[%s10 + $0xd00] sm:$0xff]
        %v5048 = vld [vmem:[%s10 + $0xd08] sm:$0xff]
        %v5049 = vld [vmem:[%s10 + $0xd10] sm:$0xff]
        %v5050 = vld [vmem:[%s10 + $0xd18] sm:$0xff]
        %v5051 = vld [vmem:[%s10 + $0xd20] sm:$0xff]
        %v5052 = vld [vmem:[%s10 + $0xd28] sm:$0xff]
        %v5053 = vld [vmem:[%s10 + $0xd30] sm:$0xff]
        %v5054 = vld [vmem:[%s10 + $0xd38] sm:$0xff]
        %v5055 = vld [vmem:[%s10 + $0xd40] sm:$0xff]
        %v5056 = vld [vmem:[%s10 + $0xd48] sm:$0xff]
        %v5057 = vld [vmem:[%s10 + $0xd50] sm:$0xff]
        %v5058 = vld [vmem:[%s10 + $0xd58] sm:$0xff]
        %v5059 = vld [vmem:[%s10 + $0xd60] sm:$0xff]
        %v5060 = vld [vmem:[%s10 + $0xd68] sm:$0xff]
        %v5061 = vld [vmem:[%s10 + $0xd70] sm:$0xff]
        %v5062 = vld [vmem:[%s10 + $0xd78] sm:$0xff]
        %v5063 = vld [vmem:[%s10 + $0xd80] sm:$0xff]
        %v5064 = vld [vmem:[%s10 + $0xd88] sm:$0xff]
        %v5065 = vld [vmem:[%s10 + $0xd90] sm:$0xff]
        %v5066 = vld [vmem:[%s10 + $0xd98] sm:$0xff]
        %v5067 = vld [vmem:[%s10 + $0xda0] sm:$0xff]
        %v5068 = vld [vmem:[%s10 + $0xda8] sm:$0xff]
        %v5069 = vld [vmem:[%s10 + $0xdb0] sm:$0xff]
        %v5070 = vld [vmem:[%s10 + $0xdb8] sm:$0xff]
        %v5071 = vld [vmem:[%s10 + $0xdc0] sm:$0xff]
        %v5072 = vld [vmem:[%s10 + $0xdc8] sm:$0xff]
        %v5073 = vld [vmem:[%s10 + $0xdd0] sm:$0xff]
        %v5074 = vld [vmem:[%s10 + $0xdd8] sm:$0xff]
        %v5075 = vld [vmem:[%s10 + $0xde0] sm:$0xff]
        %v5076 = vld [vmem:[%s10 + $0xde8] sm:$0xff]
        %v5077 = vld [vmem:[%s10 + $0xdf0] sm:$0xff]
        %v5078 = vld [vmem:[%s10 + $0xdf8] sm:$0xff]
        %v5079 = vld [vmem:[%s10 + $0xe00] sm:$0xff]
        %v5080 = vld [vmem:[%s10 + $0xe08] sm:$0xff]
        %v5081 = vld [vmem:[%s10 + $0xe10] sm:$0xff]
        %v5082 = vld [vmem:[%s10 + $0xe18] sm:$0xff]
        %v5083 = vld [vmem:[%s10 + $0xe20] sm:$0xff]
        %v5084 = vld [vmem:[%s10 + $0xe28] sm:$0xff]
        %v5085 = vld [vmem:[%s10 + $0xe30] sm:$0xff]
        %v5086 = vld [vmem:[%s10 + $0xe38] sm:$0xff]
        %v5087 = vld [vmem:[%s10 + $0xe40] sm:$0xff]
        %v5088 = vld [vmem:[%s10 + $0xe48] sm:$0xff]
        %v5089 = vld [vmem:[%s10 + $0xe50] sm:$0xff]
        %v5090 = vld [vmem:[%s10 + $0xe58] sm:$0xff]
        %v5091 = vld [vmem:[%s10 + $0xe60] sm:$0xff]
        %v5092 = vld [vmem:[%s10 + $0xe68] sm:$0xff]
        %v5093 = vld [vmem:[%s10 + $0xe70] sm:$0xff]
        %v5094 = vld [vmem:[%s10 + $0xe78] sm:$0xff]
        %v5095 = vld [vmem:[%s10 + $0xe80] sm:$0xff]
        %v5096 = vld [vmem:[%s10 + $0xe88] sm:$0xff]
        %v5097 = vld [vmem:[%s10 + $0xe90] sm:$0xff]
        %v5098 = vld [vmem:[%s10 + $0xe98] sm:$0xff]
        %v5099 = vld [vmem:[%s10 + $0xea0] sm:$0xff]
        %v5100 = vld [vmem:[%s10 + $0xea8] sm:$0xff]
        %v5101 = vld [vmem:[%s10 + $0xeb0] sm:$0xff]
        %v5102 = vld [vmem:[%s10 + $0xeb8] sm:$0xff]
        %v5103 = vld [vmem:[%s10 + $0xec0] sm:$0xff]
        %v5104 = vld [vmem:[%s10 + $0xec8] sm:$0xff]
        %v5105 = vld [vmem:[%s10 + $0xed0] sm:$0xff]
        %v5106 = vld [vmem:[%s10 + $0xed8] sm:$0xff]
        %v5107 = vld [vmem:[%s10 + $0xee0] sm:$0xff]
        %v5108 = vld [vmem:[%s10 + $0xee8] sm:$0xff]
        %v5109 = vld [vmem:[%s10 + $0xef0] sm:$0xff]
        %v5110 = vld [vmem:[%s10 + $0xef8] sm:$0xff]
        %v5111 = vld [vmem:[%s10 + $0xf00] sm:$0xff]
        %v5112 = vld [vmem:[%s10 + $0xf08] sm:$0xff]
        %v5113 = vld [vmem:[%s10 + $0xf10] sm:$0xff]
        %v5114 = vld [vmem:[%s10 + $0xf18] sm:$0xff]
        %v5115 = vld [vmem:[%s10 + $0xf20] sm:$0xff]
        %v5116 = vld [vmem:[%s10 + $0xf28] sm:$0xff]
        %v5117 = vld [vmem:[%s10 + $0xf30] sm:$0xff]
        %v5118 = vld [vmem:[%s10 + $0xf38] sm:$0xff]
        %v5119 = vld [vmem:[%s10 + $0xf40] sm:$0xff]
        %v5120 = vld [vmem:[%s10 + $0xf48] sm:$0xff]
        %v5121 = vld [vmem:[%s10 + $0xf50] sm:$0xff]
        %v5122 = vld [vmem:[%s10 + $0xf58] sm:$0xff]
        %v5123 = vld [vmem:[%s10 + $0xf60] sm:$0xff]
        %v5124 = vld [vmem:[%s10 + $0xf68] sm:$0xff]
        %v5125 = vld [vmem:[%s10 + $0xf70] sm:$0xff]
        %v5126 = vld [vmem:[%s10 + $0xf78] sm:$0xff]
        %v5127 = vld [vmem:[%s10 + $0xf80] sm:$0xff]
        %v5128 = vld [vmem:[%s10 + $0xf88] sm:$0xff]
        %v5129 = vld [vmem:[%s10 + $0xf90] sm:$0xff]
        %v5130 = vld [vmem:[%s10 + $0xf98] sm:$0xff]
        %v5131 = vld [vmem:[%s10 + $0xfa0] sm:$0xff]
        %v5132 = vld [vmem:[%s10 + $0xfa8] sm:$0xff]
        %v5133 = vld [vmem:[%s10 + $0xfb0] sm:$0xff]
        %v5134 = vld [vmem:[%s10 + $0xfb8] sm:$0xff]
        %v5135 = vld [vmem:[%s10 + $0xfc0] sm:$0xff]
        %v5136 = vld [vmem:[%s10 + $0xfc8] sm:$0xff]
        %v5137 = vld [vmem:[%s10 + $0xfd0] sm:$0xff]
        %v5138 = vld [vmem:[%s10 + $0xfd8] sm:$0xff]
        %v5139 = vld [vmem:[%s10 + $0xfe0] sm:$0xff]
        %v5140 = vld [vmem:[%s10 + $0xfe8] sm:$0xff]
        %v5141 = vld [vmem:[%s10 + $0xff0] sm:$0xff]
        %v5142 = vld [vmem:[%s10 + $0xff8] sm:$0xff]
        %v5143 = vld [vmem:[%s10 + $0x1000] sm:$0xff]
        %v5144 = vld [vmem:[%s10 + $0x1008] sm:$0xff]
        %v5145 = vld [vmem:[%s10 + $0x1010] sm:$0xff]
        %v5146 = vld [vmem:[%s10 + $0x1018] sm:$0xff]
        %v5147 = vld [vmem:[%s10 + $0x1020] sm:$0xff]
        %v5148 = vld [vmem:[%s10 + $0x1028] sm:$0xff]
        %v5149 = vld [vmem:[%s10 + $0x1030] sm:$0xff]
        %v5150 = vld [vmem:[%s10 + $0x1038] sm:$0xff]
        %v5151 = vld [vmem:[%s10 + $0x1040] sm:$0xff]
        %v5152 = vld [vmem:[%s10 + $0x1048] sm:$0xff]
        %v5153 = vld [vmem:[%s10 + $0x1050] sm:$0xff]
        %v5154 = vld [vmem:[%s10 + $0x1058] sm:$0xff]
        %v5155 = vld [vmem:[%s10 + $0x1060] sm:$0xff]
        %v5156 = vld [vmem:[%s10 + $0x1068] sm:$0xff]
        %v5157 = vld [vmem:[%s10 + $0x1070] sm:$0xff]
        %v5158 = vld [vmem:[%s10 + $0x1078] sm:$0xff]
        %v5159 = vld [vmem:[%s10 + $0x1080] sm:$0xff]
        %v5160 = vld [vmem:[%s10 + $0x1088] sm:$0xff]
        %v5161 = vld [vmem:[%s10 + $0x1090] sm:$0xff]
        %v5162 = vld [vmem:[%s10 + $0x1098] sm:$0xff]
        %v5163 = vld [vmem:[%s10 + $0x10a0] sm:$0xff]
        %v5164 = vld [vmem:[%s10 + $0x10a8] sm:$0xff]
        %v5165 = vld [vmem:[%s10 + $0x10b0] sm:$0xff]
        %v5166 = vld [vmem:[%s10 + $0x10b8] sm:$0xff]
        %v5167 = vld [vmem:[%s10 + $0x10c0] sm:$0xff]
        %v5168 = vld [vmem:[%s10 + $0x10c8] sm:$0xff]
        %v5169 = vld [vmem:[%s10 + $0x10d0] sm:$0xff]
        %v5170 = vld [vmem:[%s10 + $0x10d8] sm:$0xff]
        %v5171 = vld [vmem:[%s10 + $0x10e0] sm:$0xff]
        %v5172 = vld [vmem:[%s10 + $0x10e8] sm:$0xff]
        %v5173 = vld [vmem:[%s10 + $0x10f0] sm:$0xff]
        %v5174 = vld [vmem:[%s10 + $0x10f8] sm:$0xff]
        %v5175 = vld [vmem:[%s10 + $0x1100] sm:$0xff]
        %v5176 = vld [vmem:[%s10 + $0x1108] sm:$0xff]
        %v5177 = vld [vmem:[%s10 + $0x1110] sm:$0xff]
        %v5178 = vld [vmem:[%s10 + $0x1118] sm:$0xff]
        %v5179 = vld [vmem:[%s10 + $0x1120] sm:$0xff]
        %v5180 = vld [vmem:[%s10 + $0x1128] sm:$0xff]
        %v5181 = vld [vmem:[%s10 + $0x1130] sm:$0xff]
        %v5182 = vld [vmem:[%s10 + $0x1138] sm:$0xff]
        %v5183 = vld [vmem:[%s10 + $0x1140] sm:$0xff]
        %v5184 = vld [vmem:[%s10 + $0x1148] sm:$0xff]
        %v5185 = vld [vmem:[%s10 + $0x1150] sm:$0xff]
        %v5186 = vld [vmem:[%s10 + $0x1158] sm:$0xff]
        %v5187 = vld [vmem:[%s10 + $0x1160] sm:$0xff]
        %v5188 = vld [vmem:[%s10 + $0x1168] sm:$0xff]
        %v5189 = vld [vmem:[%s10 + $0x1170] sm:$0xff]
        %v5190 = vld [vmem:[%s10 + $0x1178] sm:$0xff]
        %v5191 = vld [vmem:[%s10 + $0x1180] sm:$0xff]
        %v5192 = vld [vmem:[%s10 + $0x1188] sm:$0xff]
        %v5193 = vld [vmem:[%s10 + $0x1190] sm:$0xff]
        %v5194 = vld [vmem:[%s10 + $0x1198] sm:$0xff]
        %v5195 = vld [vmem:[%s10 + $0x11a0] sm:$0xff]
        %v5196 = vld [vmem:[%s10 + $0x11a8] sm:$0xff]
        %v5197 = vld [vmem:[%s10 + $0x11b0] sm:$0xff]
        %v5198 = vld [vmem:[%s10 + $0x11b8] sm:$0xff]
        %v5199 = vld [vmem:[%s10 + $0x11c0] sm:$0xff]
        %v5200 = vld [vmem:[%s10 + $0x11c8] sm:$0xff]
        %v5201 = vld [vmem:[%s10 + $0x11d0] sm:$0xff]
        %v5202 = vld [vmem:[%s10 + $0x11d8] sm:$0xff]
        %v5203 = vld [vmem:[%s10 + $0x11e0] sm:$0xff]
        %v5204 = vld [vmem:[%s10 + $0x11e8] sm:$0xff]
        %v5205 = vld [vmem:[%s10 + $0x11f0] sm:$0xff]
        %v5206 = vld [vmem:[%s10 + $0x11f8] sm:$0xff]
        %v5207 = vld [vmem:[%s10 + $0x1200] sm:$0xff]
        %v5208 = vld [vmem:[%s10 + $0x1208] sm:$0xff]
        %v5209 = vld [vmem:[%s10 + $0x1210] sm:$0xff]
        %v5210 = vld [vmem:[%s10 + $0x1218] sm:$0xff]
        %v5211 = vld [vmem:[%s10 + $0x1220] sm:$0xff]
        %v5212 = vld [vmem:[%s10 + $0x1228] sm:$0xff]
        %v5213 = vld [vmem:[%s10 + $0x1230] sm:$0xff]
        %v5214 = vld [vmem:[%s10 + $0x1238] sm:$0xff]
        %v5215 = vld [vmem:[%s10 + $0x1240] sm:$0xff]
        %v5216 = vld [vmem:[%s10 + $0x1248] sm:$0xff]
        %v5217 = vld [vmem:[%s10 + $0x1250] sm:$0xff]
        %v5218 = vld [vmem:[%s10 + $0x1258] sm:$0xff]
        %v5219 = vld [vmem:[%s10 + $0x1260] sm:$0xff]
        %v5220 = vld [vmem:[%s10 + $0x1268] sm:$0xff]
        %v5221 = vld [vmem:[%s10 + $0x1270] sm:$0xff]
        %v5222 = vld [vmem:[%s10 + $0x1278] sm:$0xff]
        %v5223 = vld [vmem:[%s10 + $0x1280] sm:$0xff]
        %v5224 = vld [vmem:[%s10 + $0x1288] sm:$0xff]
        %v5225 = vld [vmem:[%s10 + $0x1290] sm:$0xff]
        %v5226 = vld [vmem:[%s10 + $0x1298] sm:$0xff]
        %v5227 = vld [vmem:[%s10 + $0x12a0] sm:$0xff]
        %v5228 = vld [vmem:[%s10 + $0x12a8] sm:$0xff]
        %v5229 = vld [vmem:[%s10 + $0x12b0] sm:$0xff]
        %v5230 = vld [vmem:[%s10 + $0x12b8] sm:$0xff]
        %v5231 = vld [vmem:[%s10 + $0x12c0] sm:$0xff]
        %v5232 = vld [vmem:[%s10 + $0x12c8] sm:$0xff]
        %v5233 = vld [vmem:[%s10 + $0x12d0] sm:$0xff]
        %v5234 = vld [vmem:[%s10 + $0x12d8] sm:$0xff]
        %v5235 = vld [vmem:[%s10 + $0x12e0] sm:$0xff]
        %v5236 = vld [vmem:[%s10 + $0x12e8] sm:$0xff]
        %v5237 = vld [vmem:[%s10 + $0x12f0] sm:$0xff]
        %v5238 = vld [vmem:[%s10 + $0x12f8] sm:$0xff]
        %v5239 = vld [vmem:[%s10 + $0x1300] sm:$0xff]
        %v5240 = vld [vmem:[%s10 + $0x1308] sm:$0xff]
        %v5241 = vld [vmem:[%s10 + $0x1310] sm:$0xff]
        %v5242 = vld [vmem:[%s10 + $0x1318] sm:$0xff]
        %v5243 = vld [vmem:[%s10 + $0x1320] sm:$0xff]
        %v5244 = vld [vmem:[%s10 + $0x1328] sm:$0xff]
        %v5245 = vld [vmem:[%s10 + $0x1330] sm:$0xff]
        %v5246 = vld [vmem:[%s10 + $0x1338] sm:$0xff]
        %v5247 = vld [vmem:[%s10 + $0x1340] sm:$0xff]
        %v5248 = vld [vmem:[%s10 + $0x1348] sm:$0xff]
        %v5249 = vld [vmem:[%s10 + $0x1350] sm:$0xff]
        %v5250 = vld [vmem:[%s10 + $0x1358] sm:$0xff]
        %v5251 = vld [vmem:[%s10 + $0x1360] sm:$0xff]
        %v5252 = vld [vmem:[%s10 + $0x1368] sm:$0xff]
        %v5253 = vld [vmem:[%s10 + $0x1370] sm:$0xff]
        %v5254 = vld [vmem:[%s10 + $0x1378] sm:$0xff]
        %v5255 = vld [vmem:[%s10 + $0x1380] sm:$0xff]
        %v5256 = vld [vmem:[%s10 + $0x1388] sm:$0xff]
        %v5257 = vld [vmem:[%s10 + $0x1390] sm:$0xff]
        %v5258 = vld [vmem:[%s10 + $0x1398] sm:$0xff]
        %v5259 = vld [vmem:[%s10 + $0x13a0] sm:$0xff]
        %v5260 = vld [vmem:[%s10 + $0x13a8] sm:$0xff]
        %v5261 = vld [vmem:[%s10 + $0x13b0] sm:$0xff]
        %v5262 = vld [vmem:[%s10 + $0x13b8] sm:$0xff]
        %v5263 = vld [vmem:[%s10 + $0x13c0] sm:$0xff]
        %v5264 = vld [vmem:[%s10 + $0x13c8] sm:$0xff]
        %v5265 = vld [vmem:[%s10 + $0x13d0] sm:$0xff]
        %v5266 = vld [vmem:[%s10 + $0x13d8] sm:$0xff]
        %v5267 = vld [vmem:[%s10 + $0x13e0] sm:$0xff]
        %v5268 = vld [vmem:[%s10 + $0x13e8] sm:$0xff]
        %v5269 = vld [vmem:[%s10 + $0x13f0] sm:$0xff]
        %v5270 = vld [vmem:[%s10 + $0x13f8] sm:$0xff]
        %v5271 = vld [vmem:[%s10 + $0x1400] sm:$0xff]
        %v5272 = vld [vmem:[%s10 + $0x1408] sm:$0xff]
        %v5273 = vld [vmem:[%s10 + $0x1410] sm:$0xff]
        %v5274 = vld [vmem:[%s10 + $0x1418] sm:$0xff]
        %v5275 = vld [vmem:[%s10 + $0x1420] sm:$0xff]
        %v5276 = vld [vmem:[%s10 + $0x1428] sm:$0xff]
        %v5277 = vld [vmem:[%s10 + $0x1430] sm:$0xff]
        %v5278 = vld [vmem:[%s10 + $0x1438] sm:$0xff]
        %v5279 = vld [vmem:[%s10 + $0x1440] sm:$0xff]
        %v5280 = vld [vmem:[%s10 + $0x1448] sm:$0xff]
        %v5281 = vld [vmem:[%s10 + $0x1450] sm:$0xff]
        %v5282 = vld [vmem:[%s10 + $0x1458] sm:$0xff]
        %v5283 = vld [vmem:[%s10 + $0x1460] sm:$0xff]
        %v5284 = vld [vmem:[%s10 + $0x1468] sm:$0xff]
        %v5285 = vld [vmem:[%s10 + $0x1470] sm:$0xff]
        %v5286 = vld [vmem:[%s10 + $0x1478] sm:$0xff]
        %v5287 = vld [vmem:[%s10 + $0x1480] sm:$0xff]
        %v5288 = vld [vmem:[%s10 + $0x1488] sm:$0xff]
        %v5289 = vld [vmem:[%s10 + $0x1490] sm:$0xff]
        %v5290 = vld [vmem:[%s10 + $0x1498] sm:$0xff]
        %v5291 = vld [vmem:[%s10 + $0x14a0] sm:$0xff]
        %v5292 = vld [vmem:[%s10 + $0x14a8] sm:$0xff]
        %v5293 = vld [vmem:[%s10 + $0x14b0] sm:$0xff]
        %v5294 = vld [vmem:[%s10 + $0x14b8] sm:$0xff]
        %v5295 = vld [vmem:[%s10 + $0x14c0] sm:$0xff]
        %v5296 = vld [vmem:[%s10 + $0x14c8] sm:$0xff]
        %v5297 = vld [vmem:[%s10 + $0x14d0] sm:$0xff]
        %v5298 = vld [vmem:[%s10 + $0x14d8] sm:$0xff]
        %v5299 = vld [vmem:[%s10 + $0x14e0] sm:$0xff]
        %v5300 = vld [vmem:[%s10 + $0x14e8] sm:$0xff]
        %v5301 = vld [vmem:[%s10 + $0x14f0] sm:$0xff]
        %v5302 = vld [vmem:[%s10 + $0x14f8] sm:$0xff]
        %v5303 = vld [vmem:[%s10 + $0x1500] sm:$0xff]
        %v5304 = vld [vmem:[%s10 + $0x1508] sm:$0xff]
        %v5305 = vld [vmem:[%s10 + $0x1510] sm:$0xff]
        %v5306 = vld [vmem:[%s10 + $0x1518] sm:$0xff]
        %v5307 = vld [vmem:[%s10 + $0x1520] sm:$0xff]
        %v5308 = vld [vmem:[%s10 + $0x1528] sm:$0xff]
        %v5309 = vld [vmem:[%s10 + $0x1530] sm:$0xff]
        %v5310 = vld [vmem:[%s10 + $0x1538] sm:$0xff]
        %v5311 = vld [vmem:[%s10 + $0x1540] sm:$0xff]
        %v5312 = vld [vmem:[%s10 + $0x1548] sm:$0xff]
        %v5313 = vld [vmem:[%s10 + $0x1550] sm:$0xff]
        %v5314 = vld [vmem:[%s10 + $0x1558] sm:$0xff]
        %v5315 = vld [vmem:[%s10 + $0x1560] sm:$0xff]
        %v5316 = vld [vmem:[%s10 + $0x1568] sm:$0xff]
        %v5317 = vld [vmem:[%s10 + $0x1570] sm:$0xff]
        %v5318 = vld [vmem:[%s10 + $0x1578] sm:$0xff]
        %v5319 = vld [vmem:[%s10 + $0x1580] sm:$0xff]
        %v5320 = vld [vmem:[%s10 + $0x1588] sm:$0xff]
        %v5321 = vld [vmem:[%s10 + $0x1590] sm:$0xff]
        %v5322 = vld [vmem:[%s10 + $0x1598] sm:$0xff]
        %v5323 = vld [vmem:[%s10 + $0x15a0] sm:$0xff]
        %v5324 = vld [vmem:[%s10 + $0x15a8] sm:$0xff]
        %v5325 = vld [vmem:[%s10 + $0x15b0] sm:$0xff]
        %v5326 = vld [vmem:[%s10 + $0x15b8] sm:$0xff]
        %v5327 = vld [vmem:[%s10 + $0x15c0] sm:$0xff]
        %v5328 = vld [vmem:[%s10 + $0x15c8] sm:$0xff]
        %v5329 = vld [vmem:[%s10 + $0x15d0] sm:$0xff]
        %v5330 = vld [vmem:[%s10 + $0x15d8] sm:$0xff]
        %v5331 = vld [vmem:[%s10 + $0x15e0] sm:$0xff]
        %v5332 = vld [vmem:[%s10 + $0x15e8] sm:$0xff]
        %v5333 = vld [vmem:[%s10 + $0x15f0] sm:$0xff]
        %v5334 = vld [vmem:[%s10 + $0x15f8] sm:$0xff]
        %v5335 = vld [vmem:[%s10 + $0x1600] sm:$0xff]
        %v5336 = vld [vmem:[%s10 + $0x1608] sm:$0xff]
        %v5337 = vld [vmem:[%s10 + $0x1610] sm:$0xff]
        %v5338 = vld [vmem:[%s10 + $0x1618] sm:$0xff]
        %v5339 = vld [vmem:[%s10 + $0x1620] sm:$0xff]
        %v5340 = vld [vmem:[%s10 + $0x1628] sm:$0xff]
        %v5341 = vld [vmem:[%s10 + $0x1630] sm:$0xff]
        %v5342 = vld [vmem:[%s10 + $0x1638] sm:$0xff]
        %v5343 = vld [vmem:[%s10 + $0x1640] sm:$0xff]
        %v5344 = vld [vmem:[%s10 + $0x1648] sm:$0xff]
        %v5345 = vld [vmem:[%s10 + $0x1650] sm:$0xff]
        %v5346 = vld [vmem:[%s10 + $0x1658] sm:$0xff]
        %v5347 = vld [vmem:[%s10 + $0x1660] sm:$0xff]
        %v5348 = vld [vmem:[%s10 + $0x1668] sm:$0xff]
        %v5349 = vld [vmem:[%s10 + $0x1670] sm:$0xff]
        %v5350 = vld [vmem:[%s10 + $0x1678] sm:$0xff]
        %v5351 = vld [vmem:[%s10 + $0x1680] sm:$0xff]
        %v5352 = vld [vmem:[%s10 + $0x1688] sm:$0xff]
        %v5353 = vld [vmem:[%s10 + $0x1690] sm:$0xff]
        %v5354 = vld [vmem:[%s10 + $0x1698] sm:$0xff]
        %v5355 = vld [vmem:[%s10 + $0x16a0] sm:$0xff]
        %v5356 = vld [vmem:[%s10 + $0x16a8] sm:$0xff]
        %v5357 = vld [vmem:[%s10 + $0x16b0] sm:$0xff]
        %v5358 = vld [vmem:[%s10 + $0x16b8] sm:$0xff]
        %v5359 = vld [vmem:[%s10 + $0x16c0] sm:$0xff]
        %v5360 = vld [vmem:[%s10 + $0x16c8] sm:$0xff]
        %v5361 = vld [vmem:[%s10 + $0x16d0] sm:$0xff]
        %v5362 = vld [vmem:[%s10 + $0x16d8] sm:$0xff]
        %v5363 = vld [vmem:[%s10 + $0x16e0] sm:$0xff]
        %v5364 = vld [vmem:[%s10 + $0x16e8] sm:$0xff]
        %v5365 = vld [vmem:[%s10 + $0x16f0] sm:$0xff]
        %v5366 = vld [vmem:[%s10 + $0x16f8] sm:$0xff]
        %v5367 = vld [vmem:[%s10 + $0x1700] sm:$0xff]
        %v5368 = vld [vmem:[%s10 + $0x1708] sm:$0xff]
        %v5369 = vld [vmem:[%s10 + $0x1710] sm:$0xff]
        %v5370 = vld [vmem:[%s10 + $0x1718] sm:$0xff]
        %v5371 = vld [vmem:[%s10 + $0x1720] sm:$0xff]
        %v5372 = vld [vmem:[%s10 + $0x1728] sm:$0xff]
        %v5373 = vld [vmem:[%s10 + $0x1730] sm:$0xff]
        %v5374 = vld [vmem:[%s10 + $0x1738] sm:$0xff]
        %v5375 = vld [vmem:[%s10 + $0x1740] sm:$0xff]
        %v5376 = vld [vmem:[%s10 + $0x1748] sm:$0xff]
        %v5377 = vld [vmem:[%s10 + $0x1750] sm:$0xff]
        %v5378 = vld [vmem:[%s10 + $0x1758] sm:$0xff]
        %v5379 = vld [vmem:[%s10 + $0x1760] sm:$0xff]
        %v5380 = vld [vmem:[%s10 + $0x1768] sm:$0xff]
        %v5381 = vld [vmem:[%s10 + $0x1770] sm:$0xff]
        %v5382 = vld [vmem:[%s10 + $0x1778] sm:$0xff]
        %v5383 = vld [vmem:[%s10 + $0x1780] sm:$0xff]
        %v5384 = vld [vmem:[%s10 + $0x1788] sm:$0xff]
        %v5385 = vld [vmem:[%s10 + $0x1790] sm:$0xff]
        %v5386 = vld [vmem:[%s10 + $0x1798] sm:$0xff]
        %v5387 = vld [vmem:[%s10 + $0x17a0] sm:$0xff]
        %v5388 = vld [vmem:[%s10 + $0x17a8] sm:$0xff]
        %v5389 = vld [vmem:[%s10 + $0x17b0] sm:$0xff]
        %v5390 = vld [vmem:[%s10 + $0x17b8] sm:$0xff]
        %v5391 = vld [vmem:[%s10 + $0x17c0] sm:$0xff]
        %v5392 = vld [vmem:[%s10 + $0x17c8] sm:$0xff]
        %v5393 = vld [vmem:[%s10 + $0x17d0] sm:$0xff]
        %v5394 = vld [vmem:[%s10 + $0x17d8] sm:$0xff]
        %v5395 = vld [vmem:[%s10 + $0x17e0] sm:$0xff]
        %v5396 = vld [vmem:[%s10 + $0x17e8] sm:$0xff]
        %v5397 = vld [vmem:[%s10 + $0x17f0] sm:$0xff]
        %v5398 = vld [vmem:[%s10 + $0x17f8] sm:$0xff]
        %v5399 = vld [vmem:[%s11] sm:$0x1]
        %v5400 = vld [vmem:[%s11 + $0x1] sm:$0x1]
        %v5401 = vld [vmem:[%s11 + $0x2] sm:$0x1]
        %v5402 = vld [vmem:[%s11 + $0x3] sm:$0x1]
        %v5403 = vld [vmem:[%s11 + $0x4] sm:$0x1]
        %v5404 = vld [vmem:[%s11 + $0x5] sm:$0x1]
        %5405 = vmatprep.subr.mxu0 0.0
        %5406 = vmatpush1.msra.mxu0 %v4646
        %5407 = vmatprep.subr.mxu0 0.0
        %5408 = vmatpush1.msra.mxu0 %v4645
        %5409 = vmatprep.subr.mxu0 0.0
        %5410 = vmatpush1.msra.mxu0 %v4644
        %5411 = vmatprep.subr.mxu0 0.0
        %5412 = vmatpush1.msra.mxu0 %v4643
        %5413 = vmatprep.subr.mxu0 0.0
        %5414 = vmatpush1.msra.mxu0 %v4642
        %5415 = vmatprep.subr.mxu0 0.0
        %5416 = vmatpush1.msra.mxu0 %v4641
        %5417 = vmatprep.subr.mxu0 0.0
        %5418 = vmatpush1.msra.mxu0 %v4640
        %5419 = vmatprep.subr.mxu0 0.0
        %5420 = vmatpush1.msra.mxu0 %v4639
        %5421 = vmatprep.subr.mxu0 0.0
        %5422 = vmatpush1.msra.mxu0 %v4638
        %5423 = vmatprep.subr.mxu0 0.0
        %5424 = vmatpush1.msra.mxu0 %v4637
        %5425 = vmatprep.subr.mxu0 0.0
        %5426 = vmatpush1.msra.mxu0 %v4636
        %5427 = vmatprep.subr.mxu0 0.0
        %5428 = vmatpush1.msra.mxu0 %v4635
        %5429 = vmatprep.subr.mxu0 0.0
        %5430 = vmatpush1.msra.mxu0 %v4634
        %5431 = vmatprep.subr.mxu0 0.0
        %5432 = vmatpush1.msra.mxu0 %v4633
        %5433 = vmatprep.subr.mxu0 0.0
        %5434 = vmatpush1.msra.mxu0 %v4632
        %5435 = vmatprep.subr.mxu0 0.0
        %5436 = vmatpush1.msra.mxu0 %v4631
        %5437 = vmatprep.subr.mxu0 0.0
        %5438 = vmatpush2.msra.mxu0 %v4662
        %5439 = vmatprep.subr.mxu0 0.0
        %5440 = vmatpush2.msra.mxu0 %v4661
        %5441 = vmatprep.subr.mxu0 0.0
        %5442 = vmatpush2.msra.mxu0 %v4660
        %5443 = vmatprep.subr.mxu0 0.0
        %5444 = vmatpush2.msra.mxu0 %v4659
        %5445 = vmatprep.subr.mxu0 0.0
        %5446 = vmatpush2.msra.mxu0 %v4658
        %5447 = vmatprep.subr.mxu0 0.0
        %5448 = vmatpush2.msra.mxu0 %v4657
        %5449 = vmatprep.subr.mxu0 0.0
        %5450 = vmatpush2.msra.mxu0 %v4656
        %5451 = vmatprep.subr.mxu0 0.0
        %5452 = vmatpush2.msra.mxu0 %v4655
        %5453 = vmatprep.subr.mxu0 0.0
        %5454 = vmatpush2.msra.mxu0 %v4654
        %5455 = vmatprep.subr.mxu0 0.0
        %5456 = vmatpush2.msra.mxu0 %v4653
        %5457 = vmatprep.subr.mxu0 0.0
        %5458 = vmatpush2.msra.mxu0 %v4652
        %5459 = vmatprep.subr.mxu0 0.0
        %5460 = vmatpush2.msra.mxu0 %v4651
        %5461 = vmatprep.subr.mxu0 0.0
        %5462 = vmatpush2.msra.mxu0 %v4650
        %5463 = vmatprep.subr.mxu0 0.0
        %5464 = vmatpush2.msra.mxu0 %v4649
        %5465 = vmatprep.subr.mxu0 0.0
        %5466 = vmatpush2.msra.mxu0 %v4648
        %5467 = vmatprep.subr.mxu0 0.0
        %5468 = vmatpush2.msra.mxu0 %v4647
        %5469 = vmatprep.mubr.f32.mxu0 %v4542
        %5470 = vmatmul.mubr.f32.gmra.mxu0 %v2488
        %v5471 = vpop.f32.mrf.mxu0
        %v5472 = vadd.f32 %v5399, %v5471
        %v5473 = vpop.f32.mrf.mxu0
        %5474 = vdwg.mxu0
        %5475 = vmatprep.subr.mxu0 0.0
        %5476 = vmatpush1.msra.mxu0 %v4678
        %5477 = vmatprep.subr.mxu0 0.0
        %5478 = vmatpush1.msra.mxu0 %v4677
        %5479 = vmatprep.subr.mxu0 0.0
        %5480 = vmatpush1.msra.mxu0 %v4676
        %5481 = vmatprep.subr.mxu0 0.0
        %5482 = vmatpush1.msra.mxu0 %v4675
        %5483 = vmatprep.subr.mxu0 0.0
        %5484 = vmatpush1.msra.mxu0 %v4674
        %5485 = vmatprep.subr.mxu0 0.0
        %5486 = vmatpush1.msra.mxu0 %v4673
        %5487 = vmatprep.subr.mxu0 0.0
        %5488 = vmatpush1.msra.mxu0 %v4672
        %5489 = vmatprep.subr.mxu0 0.0
        %5490 = vmatpush1.msra.mxu0 %v4671
        %5491 = vmatprep.subr.mxu0 0.0
        %5492 = vmatpush1.msra.mxu0 %v4670
        %5493 = vmatprep.subr.mxu0 0.0
        %5494 = vmatpush1.msra.mxu0 %v4669
        %5495 = vmatprep.subr.mxu0 0.0
        %5496 = vmatpush1.msra.mxu0 %v4668
        %5497 = vmatprep.subr.mxu0 0.0
        %5498 = vmatpush1.msra.mxu0 %v4667
        %5499 = vmatprep.subr.mxu0 0.0
        %5500 = vmatpush1.msra.mxu0 %v4666
        %5501 = vmatprep.subr.mxu0 0.0
        %5502 = vmatpush1.msra.mxu0 %v4665
        %5503 = vmatprep.subr.mxu0 0.0
        %5504 = vmatpush1.msra.mxu0 %v4664
        %5505 = vmatprep.subr.mxu0 0.0
        %5506 = vmatpush1.msra.mxu0 %v4663
        %5507 = vmatprep.subr.mxu0 0.0
        %5508 = vmatpush2.msra.mxu0 %v4694
        %5509 = vmatprep.subr.mxu0 0.0
        %5510 = vmatpush2.msra.mxu0 %v4693
        %5511 = vmatprep.subr.mxu0 0.0
        %5512 = vmatpush2.msra.mxu0 %v4692
        %5513 = vmatprep.subr.mxu0 0.0
        %5514 = vmatpush2.msra.mxu0 %v4691
        %5515 = vmatprep.subr.mxu0 0.0
        %5516 = vmatpush2.msra.mxu0 %v4690
        %5517 = vmatprep.subr.mxu0 0.0
        %5518 = vmatpush2.msra.mxu0 %v4689
        %5519 = vmatprep.subr.mxu0 0.0
        %5520 = vmatpush2.msra.mxu0 %v4688
        %5521 = vmatprep.subr.mxu0 0.0
        %5522 = vmatpush2.msra.mxu0 %v4687
        %5523 = vmatprep.subr.mxu0 0.0
        %5524 = vmatpush2.msra.mxu0 %v4686
        %5525 = vmatprep.subr.mxu0 0.0
        %5526 = vmatpush2.msra.mxu0 %v4685
        %5527 = vmatprep.subr.mxu0 0.0
        %5528 = vmatpush2.msra.mxu0 %v4684
        %5529 = vmatprep.subr.mxu0 0.0
        %5530 = vmatpush2.msra.mxu0 %v4683
        %5531 = vmatprep.subr.mxu0 0.0
        %5532 = vmatpush2.msra.mxu0 %v4682
        %5533 = vmatprep.subr.mxu0 0.0
        %5534 = vmatpush2.msra.mxu0 %v4681
        %5535 = vmatprep.subr.mxu0 0.0
        %5536 = vmatpush2.msra.mxu0 %v4680
        %5537 = vmatprep.subr.mxu0 0.0
        %5538 = vmatpush2.msra.mxu0 %v4679
        %5539 = vmatprep.mubr.f32.mxu0 %v4546
        %5540 = vmatmul.mubr.f32.gmra.mxu0 %v4544
        %v5541 = vpop.f32.mrf.mxu0
        %v5542 = vadd.f32 %v5472, %v5541
        %v5543 = vpop.f32.mrf.mxu0
        %5544 = vdwg.mxu0
        %5545 = vmatprep.subr.mxu0 0.0
        %5546 = vmatpush1.msra.mxu0 %v4710
        %5547 = vmatprep.subr.mxu0 0.0
        %5548 = vmatpush1.msra.mxu0 %v4709
        %5549 = vmatprep.subr.mxu0 0.0
        %5550 = vmatpush1.msra.mxu0 %v4708
        %5551 = vmatprep.subr.mxu0 0.0
        %5552 = vmatpush1.msra.mxu0 %v4707
        %5553 = vmatprep.subr.mxu0 0.0
        %5554 = vmatpush1.msra.mxu0 %v4706
        %5555 = vmatprep.subr.mxu0 0.0
        %5556 = vmatpush1.msra.mxu0 %v4705
        %5557 = vmatprep.subr.mxu0 0.0
        %5558 = vmatpush1.msra.mxu0 %v4704
        %5559 = vmatprep.subr.mxu0 0.0
        %5560 = vmatpush1.msra.mxu0 %v4703
        %5561 = vmatprep.subr.mxu0 0.0
        %5562 = vmatpush1.msra.mxu0 %v4702
        %5563 = vmatprep.subr.mxu0 0.0
        %5564 = vmatpush1.msra.mxu0 %v4701
        %5565 = vmatprep.subr.mxu0 0.0
        %5566 = vmatpush1.msra.mxu0 %v4700
        %5567 = vmatprep.subr.mxu0 0.0
        %5568 = vmatpush1.msra.mxu0 %v4699
        %5569 = vmatprep.subr.mxu0 0.0
        %5570 = vmatpush1.msra.mxu0 %v4698
        %5571 = vmatprep.subr.mxu0 0.0
        %5572 = vmatpush1.msra.mxu0 %v4697
        %5573 = vmatprep.subr.mxu0 0.0
        %5574 = vmatpush1.msra.mxu0 %v4696
        %5575 = vmatprep.subr.mxu0 0.0
        %5576 = vmatpush1.msra.mxu0 %v4695
        %5577 = vmatprep.subr.mxu0 0.0
        %5578 = vmatpush2.msra.mxu0 %v4726
        %5579 = vmatprep.subr.mxu0 0.0
        %5580 = vmatpush2.msra.mxu0 %v4725
        %5581 = vmatprep.subr.mxu0 0.0
        %5582 = vmatpush2.msra.mxu0 %v4724
        %5583 = vmatprep.subr.mxu0 0.0
        %5584 = vmatpush2.msra.mxu0 %v4723
        %5585 = vmatprep.subr.mxu0 0.0
        %5586 = vmatpush2.msra.mxu0 %v4722
        %5587 = vmatprep.subr.mxu0 0.0
        %5588 = vmatpush2.msra.mxu0 %v4721
        %5589 = vmatprep.subr.mxu0 0.0
        %5590 = vmatpush2.msra.mxu0 %v4720
        %5591 = vmatprep.subr.mxu0 0.0
        %5592 = vmatpush2.msra.mxu0 %v4719
        %5593 = vmatprep.subr.mxu0 0.0
        %5594 = vmatpush2.msra.mxu0 %v4718
        %5595 = vmatprep.subr.mxu0 0.0
        %5596 = vmatpush2.msra.mxu0 %v4717
        %5597 = vmatprep.subr.mxu0 0.0
        %5598 = vmatpush2.msra.mxu0 %v4716
        %5599 = vmatprep.subr.mxu0 0.0
        %5600 = vmatpush2.msra.mxu0 %v4715
        %5601 = vmatprep.subr.mxu0 0.0
        %5602 = vmatpush2.msra.mxu0 %v4714
        %5603 = vmatprep.subr.mxu0 0.0
        %5604 = vmatpush2.msra.mxu0 %v4713
        %5605 = vmatprep.subr.mxu0 0.0
        %5606 = vmatpush2.msra.mxu0 %v4712
        %5607 = vmatprep.subr.mxu0 0.0
        %5608 = vmatpush2.msra.mxu0 %v4711
        %5609 = vmatprep.mubr.f32.mxu0 %v4550
        %5610 = vmatmul.mubr.f32.gmra.mxu0 %v4548
        %v5611 = vpop.f32.mrf.mxu0
        %v5612 = vadd.f32 %v5542, %v5611
        %v5613 = vpop.f32.mrf.mxu0
        %5614 = vdwg.mxu0
        %5615 = vmatprep.subr.mxu0 0.0
        %5616 = vmatpush1.msra.mxu0 %v4742
        %5617 = vmatprep.subr.mxu0 0.0
        %5618 = vmatpush1.msra.mxu0 %v4741
        %5619 = vmatprep.subr.mxu0 0.0
        %5620 = vmatpush1.msra.mxu0 %v4740
        %5621 = vmatprep.subr.mxu0 0.0
        %5622 = vmatpush1.msra.mxu0 %v4739
        %5623 = vmatprep.subr.mxu0 0.0
        %5624 = vmatpush1.msra.mxu0 %v4738
        %5625 = vmatprep.subr.mxu0 0.0
        %5626 = vmatpush1.msra.mxu0 %v4737
        %5627 = vmatprep.subr.mxu0 0.0
        %5628 = vmatpush1.msra.mxu0 %v4736
        %5629 = vmatprep.subr.mxu0 0.0
        %5630 = vmatpush1.msra.mxu0 %v4735
        %5631 = vmatprep.subr.mxu0 0.0
        %5632 = vmatpush1.msra.mxu0 %v4734
        %5633 = vmatprep.subr.mxu0 0.0
        %5634 = vmatpush1.msra.mxu0 %v4733
        %5635 = vmatprep.subr.mxu0 0.0
        %5636 = vmatpush1.msra.mxu0 %v4732
        %5637 = vmatprep.subr.mxu0 0.0
        %5638 = vmatpush1.msra.mxu0 %v4731
        %5639 = vmatprep.subr.mxu0 0.0
        %5640 = vmatpush1.msra.mxu0 %v4730
        %5641 = vmatprep.subr.mxu0 0.0
        %5642 = vmatpush1.msra.mxu0 %v4729
        %5643 = vmatprep.subr.mxu0 0.0
        %5644 = vmatpush1.msra.mxu0 %v4728
        %5645 = vmatprep.subr.mxu0 0.0
        %5646 = vmatpush1.msra.mxu0 %v4727
        %5647 = vmatprep.subr.mxu0 0.0
        %5648 = vmatpush2.msra.mxu0 %v4758
        %5649 = vmatprep.subr.mxu0 0.0
        %5650 = vmatpush2.msra.mxu0 %v4757
        %5651 = vmatprep.subr.mxu0 0.0
        %5652 = vmatpush2.msra.mxu0 %v4756
        %5653 = vmatprep.subr.mxu0 0.0
        %5654 = vmatpush2.msra.mxu0 %v4755
        %5655 = vmatprep.subr.mxu0 0.0
        %5656 = vmatpush2.msra.mxu0 %v4754
        %5657 = vmatprep.subr.mxu0 0.0
        %5658 = vmatpush2.msra.mxu0 %v4753
        %5659 = vmatprep.subr.mxu0 0.0
        %5660 = vmatpush2.msra.mxu0 %v4752
        %5661 = vmatprep.subr.mxu0 0.0
        %5662 = vmatpush2.msra.mxu0 %v4751
        %5663 = vmatprep.subr.mxu0 0.0
        %5664 = vmatpush2.msra.mxu0 %v4750
        %5665 = vmatprep.subr.mxu0 0.0
        %5666 = vmatpush2.msra.mxu0 %v4749
        %5667 = vmatprep.subr.mxu0 0.0
        %5668 = vmatpush2.msra.mxu0 %v4748
        %5669 = vmatprep.subr.mxu0 0.0
        %5670 = vmatpush2.msra.mxu0 %v4747
        %5671 = vmatprep.subr.mxu0 0.0
        %5672 = vmatpush2.msra.mxu0 %v4746
        %5673 = vmatprep.subr.mxu0 0.0
        %5674 = vmatpush2.msra.mxu0 %v4745
        %5675 = vmatprep.subr.mxu0 0.0
        %5676 = vmatpush2.msra.mxu0 %v4744
        %5677 = vmatprep.subr.mxu0 0.0
        %5678 = vmatpush2.msra.mxu0 %v4743
        %5679 = vmatprep.mubr.f32.mxu0 %v4554
        %5680 = vmatmul.mubr.f32.gmra.mxu0 %v4552
        %v5681 = vpop.f32.mrf.mxu0
        %v5682 = vadd.f32 %v5612, %v5681
        %v5683 = vpop.f32.mrf.mxu0
        %5684 = vdwg.mxu0
        %5685 = vmatprep.subr.mxu0 0.0
        %5686 = vmatpush1.msra.mxu0 %v4774
        %5687 = vmatprep.subr.mxu0 0.0
        %5688 = vmatpush1.msra.mxu0 %v4773
        %5689 = vmatprep.subr.mxu0 0.0
        %5690 = vmatpush1.msra.mxu0 %v4772
        %5691 = vmatprep.subr.mxu0 0.0
        %5692 = vmatpush1.msra.mxu0 %v4771
        %5693 = vmatprep.subr.mxu0 0.0
        %5694 = vmatpush1.msra.mxu0 %v4770
        %5695 = vmatprep.subr.mxu0 0.0
        %5696 = vmatpush1.msra.mxu0 %v4769
        %5697 = vmatprep.subr.mxu0 0.0
        %5698 = vmatpush1.msra.mxu0 %v4768
        %5699 = vmatprep.subr.mxu0 0.0
        %5700 = vmatpush1.msra.mxu0 %v4767
        %5701 = vmatprep.subr.mxu0 0.0
        %5702 = vmatpush1.msra.mxu0 %v4766
        %5703 = vmatprep.subr.mxu0 0.0
        %5704 = vmatpush1.msra.mxu0 %v4765
        %5705 = vmatprep.subr.mxu0 0.0
        %5706 = vmatpush1.msra.mxu0 %v4764
        %5707 = vmatprep.subr.mxu0 0.0
        %5708 = vmatpush1.msra.mxu0 %v4763
        %5709 = vmatprep.subr.mxu0 0.0
        %5710 = vmatpush1.msra.mxu0 %v4762
        %5711 = vmatprep.subr.mxu0 0.0
        %5712 = vmatpush1.msra.mxu0 %v4761
        %5713 = vmatprep.subr.mxu0 0.0
        %5714 = vmatpush1.msra.mxu0 %v4760
        %5715 = vmatprep.subr.mxu0 0.0
        %5716 = vmatpush1.msra.mxu0 %v4759
        %5717 = vmatprep.subr.mxu0 0.0
        %5718 = vmatpush2.msra.mxu0 %v4790
        %5719 = vmatprep.subr.mxu0 0.0
        %5720 = vmatpush2.msra.mxu0 %v4789
        %5721 = vmatprep.subr.mxu0 0.0
        %5722 = vmatpush2.msra.mxu0 %v4788
        %5723 = vmatprep.subr.mxu0 0.0
        %5724 = vmatpush2.msra.mxu0 %v4787
        %5725 = vmatprep.subr.mxu0 0.0
        %5726 = vmatpush2.msra.mxu0 %v4786
        %5727 = vmatprep.subr.mxu0 0.0
        %5728 = vmatpush2.msra.mxu0 %v4785
        %5729 = vmatprep.subr.mxu0 0.0
        %5730 = vmatpush2.msra.mxu0 %v4784
        %5731 = vmatprep.subr.mxu0 0.0
        %5732 = vmatpush2.msra.mxu0 %v4783
        %5733 = vmatprep.subr.mxu0 0.0
        %5734 = vmatpush2.msra.mxu0 %v4782
        %5735 = vmatprep.subr.mxu0 0.0
        %5736 = vmatpush2.msra.mxu0 %v4781
        %5737 = vmatprep.subr.mxu0 0.0
        %5738 = vmatpush2.msra.mxu0 %v4780
        %5739 = vmatprep.subr.mxu0 0.0
        %5740 = vmatpush2.msra.mxu0 %v4779
        %5741 = vmatprep.subr.mxu0 0.0
        %5742 = vmatpush2.msra.mxu0 %v4778
        %5743 = vmatprep.subr.mxu0 0.0
        %5744 = vmatpush2.msra.mxu0 %v4777
        %5745 = vmatprep.subr.mxu0 0.0
        %5746 = vmatpush2.msra.mxu0 %v4776
        %5747 = vmatprep.subr.mxu0 0.0
        %5748 = vmatpush2.msra.mxu0 %v4775
        %5749 = vmatprep.mubr.f32.mxu0 %v4557
        %5750 = vmatmul.mubr.f32.gmra.mxu0 %v2899
        %v5751 = vpop.f32.mrf.mxu0
        %v5752 = vadd.f32 %v5400, %v5751
        %v5753 = vpop.f32.mrf.mxu0
        %5754 = vdwg.mxu0
        %5755 = vmatprep.subr.mxu0 0.0
        %5756 = vmatpush1.msra.mxu0 %v4806
        %5757 = vmatprep.subr.mxu0 0.0
        %5758 = vmatpush1.msra.mxu0 %v4805
        %5759 = vmatprep.subr.mxu0 0.0
        %5760 = vmatpush1.msra.mxu0 %v4804
        %5761 = vmatprep.subr.mxu0 0.0
        %5762 = vmatpush1.msra.mxu0 %v4803
        %5763 = vmatprep.subr.mxu0 0.0
        %5764 = vmatpush1.msra.mxu0 %v4802
        %5765 = vmatprep.subr.mxu0 0.0
        %5766 = vmatpush1.msra.mxu0 %v4801
        %5767 = vmatprep.subr.mxu0 0.0
        %5768 = vmatpush1.msra.mxu0 %v4800
        %5769 = vmatprep.subr.mxu0 0.0
        %5770 = vmatpush1.msra.mxu0 %v4799
        %5771 = vmatprep.subr.mxu0 0.0
        %5772 = vmatpush1.msra.mxu0 %v4798
        %5773 = vmatprep.subr.mxu0 0.0
        %5774 = vmatpush1.msra.mxu0 %v4797
        %5775 = vmatprep.subr.mxu0 0.0
        %5776 = vmatpush1.msra.mxu0 %v4796
        %5777 = vmatprep.subr.mxu0 0.0
        %5778 = vmatpush1.msra.mxu0 %v4795
        %5779 = vmatprep.subr.mxu0 0.0
        %5780 = vmatpush1.msra.mxu0 %v4794
        %5781 = vmatprep.subr.mxu0 0.0
        %5782 = vmatpush1.msra.mxu0 %v4793
        %5783 = vmatprep.subr.mxu0 0.0
        %5784 = vmatpush1.msra.mxu0 %v4792
        %5785 = vmatprep.subr.mxu0 0.0
        %5786 = vmatpush1.msra.mxu0 %v4791
        %5787 = vmatprep.subr.mxu0 0.0
        %5788 = vmatpush2.msra.mxu0 %v4822
        %5789 = vmatprep.subr.mxu0 0.0
        %5790 = vmatpush2.msra.mxu0 %v4821
        %5791 = vmatprep.subr.mxu0 0.0
        %5792 = vmatpush2.msra.mxu0 %v4820
        %5793 = vmatprep.subr.mxu0 0.0
        %5794 = vmatpush2.msra.mxu0 %v4819
        %5795 = vmatprep.subr.mxu0 0.0
        %5796 = vmatpush2.msra.mxu0 %v4818
        %5797 = vmatprep.subr.mxu0 0.0
        %5798 = vmatpush2.msra.mxu0 %v4817
        %5799 = vmatprep.subr.mxu0 0.0
        %5800 = vmatpush2.msra.mxu0 %v4816
        %5801 = vmatprep.subr.mxu0 0.0
        %5802 = vmatpush2.msra.mxu0 %v4815
        %5803 = vmatprep.subr.mxu0 0.0
        %5804 = vmatpush2.msra.mxu0 %v4814
        %5805 = vmatprep.subr.mxu0 0.0
        %5806 = vmatpush2.msra.mxu0 %v4813
        %5807 = vmatprep.subr.mxu0 0.0
        %5808 = vmatpush2.msra.mxu0 %v4812
        %5809 = vmatprep.subr.mxu0 0.0
        %5810 = vmatpush2.msra.mxu0 %v4811
        %5811 = vmatprep.subr.mxu0 0.0
        %5812 = vmatpush2.msra.mxu0 %v4810
        %5813 = vmatprep.subr.mxu0 0.0
        %5814 = vmatpush2.msra.mxu0 %v4809
        %5815 = vmatprep.subr.mxu0 0.0
        %5816 = vmatpush2.msra.mxu0 %v4808
        %5817 = vmatprep.subr.mxu0 0.0
        %5818 = vmatpush2.msra.mxu0 %v4807
        %5819 = vmatprep.mubr.f32.mxu0 %v4561
        %5820 = vmatmul.mubr.f32.gmra.mxu0 %v4559
        %v5821 = vpop.f32.mrf.mxu0
        %v5822 = vadd.f32 %v5752, %v5821
        %v5823 = vpop.f32.mrf.mxu0
        %5824 = vdwg.mxu0
        %5825 = vmatprep.subr.mxu0 0.0
        %5826 = vmatpush1.msra.mxu0 %v4838
        %5827 = vmatprep.subr.mxu0 0.0
        %5828 = vmatpush1.msra.mxu0 %v4837
        %5829 = vmatprep.subr.mxu0 0.0
        %5830 = vmatpush1.msra.mxu0 %v4836
        %5831 = vmatprep.subr.mxu0 0.0
        %5832 = vmatpush1.msra.mxu0 %v4835
        %5833 = vmatprep.subr.mxu0 0.0
        %5834 = vmatpush1.msra.mxu0 %v4834
        %5835 = vmatprep.subr.mxu0 0.0
        %5836 = vmatpush1.msra.mxu0 %v4833
        %5837 = vmatprep.subr.mxu0 0.0
        %5838 = vmatpush1.msra.mxu0 %v4832
        %5839 = vmatprep.subr.mxu0 0.0
        %5840 = vmatpush1.msra.mxu0 %v4831
        %5841 = vmatprep.subr.mxu0 0.0
        %5842 = vmatpush1.msra.mxu0 %v4830
        %5843 = vmatprep.subr.mxu0 0.0
        %5844 = vmatpush1.msra.mxu0 %v4829
        %5845 = vmatprep.subr.mxu0 0.0
        %5846 = vmatpush1.msra.mxu0 %v4828
        %5847 = vmatprep.subr.mxu0 0.0
        %5848 = vmatpush1.msra.mxu0 %v4827
        %5849 = vmatprep.subr.mxu0 0.0
        %5850 = vmatpush1.msra.mxu0 %v4826
        %5851 = vmatprep.subr.mxu0 0.0
        %5852 = vmatpush1.msra.mxu0 %v4825
        %5853 = vmatprep.subr.mxu0 0.0
        %5854 = vmatpush1.msra.mxu0 %v4824
        %5855 = vmatprep.subr.mxu0 0.0
        %5856 = vmatpush1.msra.mxu0 %v4823
        %5857 = vmatprep.subr.mxu0 0.0
        %5858 = vmatpush2.msra.mxu0 %v4854
        %5859 = vmatprep.subr.mxu0 0.0
        %5860 = vmatpush2.msra.mxu0 %v4853
        %5861 = vmatprep.subr.mxu0 0.0
        %5862 = vmatpush2.msra.mxu0 %v4852
        %5863 = vmatprep.subr.mxu0 0.0
        %5864 = vmatpush2.msra.mxu0 %v4851
        %5865 = vmatprep.subr.mxu0 0.0
        %5866 = vmatpush2.msra.mxu0 %v4850
        %5867 = vmatprep.subr.mxu0 0.0
        %5868 = vmatpush2.msra.mxu0 %v4849
        %5869 = vmatprep.subr.mxu0 0.0
        %5870 = vmatpush2.msra.mxu0 %v4848
        %5871 = vmatprep.subr.mxu0 0.0
        %5872 = vmatpush2.msra.mxu0 %v4847
        %5873 = vmatprep.subr.mxu0 0.0
        %5874 = vmatpush2.msra.mxu0 %v4846
        %5875 = vmatprep.subr.mxu0 0.0
        %5876 = vmatpush2.msra.mxu0 %v4845
        %5877 = vmatprep.subr.mxu0 0.0
        %5878 = vmatpush2.msra.mxu0 %v4844
        %5879 = vmatprep.subr.mxu0 0.0
        %5880 = vmatpush2.msra.mxu0 %v4843
        %5881 = vmatprep.subr.mxu0 0.0
        %5882 = vmatpush2.msra.mxu0 %v4842
        %5883 = vmatprep.subr.mxu0 0.0
        %5884 = vmatpush2.msra.mxu0 %v4841
        %5885 = vmatprep.subr.mxu0 0.0
        %5886 = vmatpush2.msra.mxu0 %v4840
        %5887 = vmatprep.subr.mxu0 0.0
        %5888 = vmatpush2.msra.mxu0 %v4839
        %5889 = vmatprep.mubr.f32.mxu0 %v4565
        %5890 = vmatmul.mubr.f32.gmra.mxu0 %v4563
        %v5891 = vpop.f32.mrf.mxu0
        %v5892 = vadd.f32 %v5822, %v5891
        %v5893 = vpop.f32.mrf.mxu0
        %5894 = vdwg.mxu0
        %5895 = vmatprep.subr.mxu0 0.0
        %5896 = vmatpush1.msra.mxu0 %v4870
        %5897 = vmatprep.subr.mxu0 0.0
        %5898 = vmatpush1.msra.mxu0 %v4869
        %5899 = vmatprep.subr.mxu0 0.0
        %5900 = vmatpush1.msra.mxu0 %v4868
        %5901 = vmatprep.subr.mxu0 0.0
        %5902 = vmatpush1.msra.mxu0 %v4867
        %5903 = vmatprep.subr.mxu0 0.0
        %5904 = vmatpush1.msra.mxu0 %v4866
        %5905 = vmatprep.subr.mxu0 0.0
        %5906 = vmatpush1.msra.mxu0 %v4865
        %5907 = vmatprep.subr.mxu0 0.0
        %5908 = vmatpush1.msra.mxu0 %v4864
        %5909 = vmatprep.subr.mxu0 0.0
        %5910 = vmatpush1.msra.mxu0 %v4863
        %5911 = vmatprep.subr.mxu0 0.0
        %5912 = vmatpush1.msra.mxu0 %v4862
        %5913 = vmatprep.subr.mxu0 0.0
        %5914 = vmatpush1.msra.mxu0 %v4861
        %5915 = vmatprep.subr.mxu0 0.0
        %5916 = vmatpush1.msra.mxu0 %v4860
        %5917 = vmatprep.subr.mxu0 0.0
        %5918 = vmatpush1.msra.mxu0 %v4859
        %5919 = vmatprep.subr.mxu0 0.0
        %5920 = vmatpush1.msra.mxu0 %v4858
        %5921 = vmatprep.subr.mxu0 0.0
        %5922 = vmatpush1.msra.mxu0 %v4857
        %5923 = vmatprep.subr.mxu0 0.0
        %5924 = vmatpush1.msra.mxu0 %v4856
        %5925 = vmatprep.subr.mxu0 0.0
        %5926 = vmatpush1.msra.mxu0 %v4855
        %5927 = vmatprep.subr.mxu0 0.0
        %5928 = vmatpush2.msra.mxu0 %v4886
        %5929 = vmatprep.subr.mxu0 0.0
        %5930 = vmatpush2.msra.mxu0 %v4885
        %5931 = vmatprep.subr.mxu0 0.0
        %5932 = vmatpush2.msra.mxu0 %v4884
        %5933 = vmatprep.subr.mxu0 0.0
        %5934 = vmatpush2.msra.mxu0 %v4883
        %5935 = vmatprep.subr.mxu0 0.0
        %5936 = vmatpush2.msra.mxu0 %v4882
        %5937 = vmatprep.subr.mxu0 0.0
        %5938 = vmatpush2.msra.mxu0 %v4881
        %5939 = vmatprep.subr.mxu0 0.0
        %5940 = vmatpush2.msra.mxu0 %v4880
        %5941 = vmatprep.subr.mxu0 0.0
        %5942 = vmatpush2.msra.mxu0 %v4879
        %5943 = vmatprep.subr.mxu0 0.0
        %5944 = vmatpush2.msra.mxu0 %v4878
        %5945 = vmatprep.subr.mxu0 0.0
        %5946 = vmatpush2.msra.mxu0 %v4877
        %5947 = vmatprep.subr.mxu0 0.0
        %5948 = vmatpush2.msra.mxu0 %v4876
        %5949 = vmatprep.subr.mxu0 0.0
        %5950 = vmatpush2.msra.mxu0 %v4875
        %5951 = vmatprep.subr.mxu0 0.0
        %5952 = vmatpush2.msra.mxu0 %v4874
        %5953 = vmatprep.subr.mxu0 0.0
        %5954 = vmatpush2.msra.mxu0 %v4873
        %5955 = vmatprep.subr.mxu0 0.0
        %5956 = vmatpush2.msra.mxu0 %v4872
        %5957 = vmatprep.subr.mxu0 0.0
        %5958 = vmatpush2.msra.mxu0 %v4871
        %5959 = vmatprep.mubr.f32.mxu0 %v4569
        %5960 = vmatmul.mubr.f32.gmra.mxu0 %v4567
        %v5961 = vpop.f32.mrf.mxu0
        %v5962 = vadd.f32 %v5892, %v5961
        %v5963 = vpop.f32.mrf.mxu0
        %5964 = vdwg.mxu0
        %5965 = vmatprep.subr.mxu0 0.0
        %5966 = vmatpush1.msra.mxu0 %v4902
        %5967 = vmatprep.subr.mxu0 0.0
        %5968 = vmatpush1.msra.mxu0 %v4901
        %5969 = vmatprep.subr.mxu0 0.0
        %5970 = vmatpush1.msra.mxu0 %v4900
        %5971 = vmatprep.subr.mxu0 0.0
        %5972 = vmatpush1.msra.mxu0 %v4899
        %5973 = vmatprep.subr.mxu0 0.0
        %5974 = vmatpush1.msra.mxu0 %v4898
        %5975 = vmatprep.subr.mxu0 0.0
        %5976 = vmatpush1.msra.mxu0 %v4897
        %5977 = vmatprep.subr.mxu0 0.0
        %5978 = vmatpush1.msra.mxu0 %v4896
        %5979 = vmatprep.subr.mxu0 0.0
        %5980 = vmatpush1.msra.mxu0 %v4895
        %5981 = vmatprep.subr.mxu0 0.0
        %5982 = vmatpush1.msra.mxu0 %v4894
        %5983 = vmatprep.subr.mxu0 0.0
        %5984 = vmatpush1.msra.mxu0 %v4893
        %5985 = vmatprep.subr.mxu0 0.0
        %5986 = vmatpush1.msra.mxu0 %v4892
        %5987 = vmatprep.subr.mxu0 0.0
        %5988 = vmatpush1.msra.mxu0 %v4891
        %5989 = vmatprep.subr.mxu0 0.0
        %5990 = vmatpush1.msra.mxu0 %v4890
        %5991 = vmatprep.subr.mxu0 0.0
        %5992 = vmatpush1.msra.mxu0 %v4889
        %5993 = vmatprep.subr.mxu0 0.0
        %5994 = vmatpush1.msra.mxu0 %v4888
        %5995 = vmatprep.subr.mxu0 0.0
        %5996 = vmatpush1.msra.mxu0 %v4887
        %5997 = vmatprep.subr.mxu0 0.0
        %5998 = vmatpush2.msra.mxu0 %v4918
        %5999 = vmatprep.subr.mxu0 0.0
        %6000 = vmatpush2.msra.mxu0 %v4917
        %6001 = vmatprep.subr.mxu0 0.0
        %6002 = vmatpush2.msra.mxu0 %v4916
        %6003 = vmatprep.subr.mxu0 0.0
        %6004 = vmatpush2.msra.mxu0 %v4915
        %6005 = vmatprep.subr.mxu0 0.0
        %6006 = vmatpush2.msra.mxu0 %v4914
        %6007 = vmatprep.subr.mxu0 0.0
        %6008 = vmatpush2.msra.mxu0 %v4913
        %6009 = vmatprep.subr.mxu0 0.0
        %6010 = vmatpush2.msra.mxu0 %v4912
        %6011 = vmatprep.subr.mxu0 0.0
        %6012 = vmatpush2.msra.mxu0 %v4911
        %6013 = vmatprep.subr.mxu0 0.0
        %6014 = vmatpush2.msra.mxu0 %v4910
        %6015 = vmatprep.subr.mxu0 0.0
        %6016 = vmatpush2.msra.mxu0 %v4909
        %6017 = vmatprep.subr.mxu0 0.0
        %6018 = vmatpush2.msra.mxu0 %v4908
        %6019 = vmatprep.subr.mxu0 0.0
        %6020 = vmatpush2.msra.mxu0 %v4907
        %6021 = vmatprep.subr.mxu0 0.0
        %6022 = vmatpush2.msra.mxu0 %v4906
        %6023 = vmatprep.subr.mxu0 0.0
        %6024 = vmatpush2.msra.mxu0 %v4905
        %6025 = vmatprep.subr.mxu0 0.0
        %6026 = vmatpush2.msra.mxu0 %v4904
        %6027 = vmatprep.subr.mxu0 0.0
        %6028 = vmatpush2.msra.mxu0 %v4903
        %6029 = vmatprep.mubr.f32.mxu0 %v4572
        %6030 = vmatmul.mubr.f32.gmra.mxu0 %v3310
        %v6031 = vpop.f32.mrf.mxu0
        %v6032 = vadd.f32 %v5401, %v6031
        %v6033 = vpop.f32.mrf.mxu0
        %6034 = vdwg.mxu0
        %6035 = vmatprep.subr.mxu0 0.0
        %6036 = vmatpush1.msra.mxu0 %v4934
        %6037 = vmatprep.subr.mxu0 0.0
        %6038 = vmatpush1.msra.mxu0 %v4933
        %6039 = vmatprep.subr.mxu0 0.0
        %6040 = vmatpush1.msra.mxu0 %v4932
        %6041 = vmatprep.subr.mxu0 0.0
        %6042 = vmatpush1.msra.mxu0 %v4931
        %6043 = vmatprep.subr.mxu0 0.0
        %6044 = vmatpush1.msra.mxu0 %v4930
        %6045 = vmatprep.subr.mxu0 0.0
        %6046 = vmatpush1.msra.mxu0 %v4929
        %6047 = vmatprep.subr.mxu0 0.0
        %6048 = vmatpush1.msra.mxu0 %v4928
        %6049 = vmatprep.subr.mxu0 0.0
        %6050 = vmatpush1.msra.mxu0 %v4927
        %6051 = vmatprep.subr.mxu0 0.0
        %6052 = vmatpush1.msra.mxu0 %v4926
        %6053 = vmatprep.subr.mxu0 0.0
        %6054 = vmatpush1.msra.mxu0 %v4925
        %6055 = vmatprep.subr.mxu0 0.0
        %6056 = vmatpush1.msra.mxu0 %v4924
        %6057 = vmatprep.subr.mxu0 0.0
        %6058 = vmatpush1.msra.mxu0 %v4923
        %6059 = vmatprep.subr.mxu0 0.0
        %6060 = vmatpush1.msra.mxu0 %v4922
        %6061 = vmatprep.subr.mxu0 0.0
        %6062 = vmatpush1.msra.mxu0 %v4921
        %6063 = vmatprep.subr.mxu0 0.0
        %6064 = vmatpush1.msra.mxu0 %v4920
        %6065 = vmatprep.subr.mxu0 0.0
        %6066 = vmatpush1.msra.mxu0 %v4919
        %6067 = vmatprep.subr.mxu0 0.0
        %6068 = vmatpush2.msra.mxu0 %v4950
        %6069 = vmatprep.subr.mxu0 0.0
        %6070 = vmatpush2.msra.mxu0 %v4949
        %6071 = vmatprep.subr.mxu0 0.0
        %6072 = vmatpush2.msra.mxu0 %v4948
        %6073 = vmatprep.subr.mxu0 0.0
        %6074 = vmatpush2.msra.mxu0 %v4947
        %6075 = vmatprep.subr.mxu0 0.0
        %6076 = vmatpush2.msra.mxu0 %v4946
        %6077 = vmatprep.subr.mxu0 0.0
        %6078 = vmatpush2.msra.mxu0 %v4945
        %6079 = vmatprep.subr.mxu0 0.0
        %6080 = vmatpush2.msra.mxu0 %v4944
        %6081 = vmatprep.subr.mxu0 0.0
        %6082 = vmatpush2.msra.mxu0 %v4943
        %6083 = vmatprep.subr.mxu0 0.0
        %6084 = vmatpush2.msra.mxu0 %v4942
        %6085 = vmatprep.subr.mxu0 0.0
        %6086 = vmatpush2.msra.mxu0 %v4941
        %6087 = vmatprep.subr.mxu0 0.0
        %6088 = vmatpush2.msra.mxu0 %v4940
        %6089 = vmatprep.subr.mxu0 0.0
        %6090 = vmatpush2.msra.mxu0 %v4939
        %6091 = vmatprep.subr.mxu0 0.0
        %6092 = vmatpush2.msra.mxu0 %v4938
        %6093 = vmatprep.subr.mxu0 0.0
        %6094 = vmatpush2.msra.mxu0 %v4937
        %6095 = vmatprep.subr.mxu0 0.0
        %6096 = vmatpush2.msra.mxu0 %v4936
        %6097 = vmatprep.subr.mxu0 0.0
        %6098 = vmatpush2.msra.mxu0 %v4935
        %6099 = vmatprep.mubr.f32.mxu0 %v4576
        %6100 = vmatmul.mubr.f32.gmra.mxu0 %v4574
        %v6101 = vpop.f32.mrf.mxu0
        %v6102 = vadd.f32 %v6032, %v6101
        %v6103 = vpop.f32.mrf.mxu0
        %6104 = vdwg.mxu0
        %6105 = vmatprep.subr.mxu0 0.0
        %6106 = vmatpush1.msra.mxu0 %v4966
        %6107 = vmatprep.subr.mxu0 0.0
        %6108 = vmatpush1.msra.mxu0 %v4965
        %6109 = vmatprep.subr.mxu0 0.0
        %6110 = vmatpush1.msra.mxu0 %v4964
        %6111 = vmatprep.subr.mxu0 0.0
        %6112 = vmatpush1.msra.mxu0 %v4963
        %6113 = vmatprep.subr.mxu0 0.0
        %6114 = vmatpush1.msra.mxu0 %v4962
        %6115 = vmatprep.subr.mxu0 0.0
        %6116 = vmatpush1.msra.mxu0 %v4961
        %6117 = vmatprep.subr.mxu0 0.0
        %6118 = vmatpush1.msra.mxu0 %v4960
        %6119 = vmatprep.subr.mxu0 0.0
        %6120 = vmatpush1.msra.mxu0 %v4959
        %6121 = vmatprep.subr.mxu0 0.0
        %6122 = vmatpush1.msra.mxu0 %v4958
        %6123 = vmatprep.subr.mxu0 0.0
        %6124 = vmatpush1.msra.mxu0 %v4957
        %6125 = vmatprep.subr.mxu0 0.0
        %6126 = vmatpush1.msra.mxu0 %v4956
        %6127 = vmatprep.subr.mxu0 0.0
        %6128 = vmatpush1.msra.mxu0 %v4955
        %6129 = vmatprep.subr.mxu0 0.0
        %6130 = vmatpush1.msra.mxu0 %v4954
        %6131 = vmatprep.subr.mxu0 0.0
        %6132 = vmatpush1.msra.mxu0 %v4953
        %6133 = vmatprep.subr.mxu0 0.0
        %6134 = vmatpush1.msra.mxu0 %v4952
        %6135 = vmatprep.subr.mxu0 0.0
        %6136 = vmatpush1.msra.mxu0 %v4951
        %6137 = vmatprep.subr.mxu0 0.0
        %6138 = vmatpush2.msra.mxu0 %v4982
        %6139 = vmatprep.subr.mxu0 0.0
        %6140 = vmatpush2.msra.mxu0 %v4981
        %6141 = vmatprep.subr.mxu0 0.0
        %6142 = vmatpush2.msra.mxu0 %v4980
        %6143 = vmatprep.subr.mxu0 0.0
        %6144 = vmatpush2.msra.mxu0 %v4979
        %6145 = vmatprep.subr.mxu0 0.0
        %6146 = vmatpush2.msra.mxu0 %v4978
        %6147 = vmatprep.subr.mxu0 0.0
        %6148 = vmatpush2.msra.mxu0 %v4977
        %6149 = vmatprep.subr.mxu0 0.0
        %6150 = vmatpush2.msra.mxu0 %v4976
        %6151 = vmatprep.subr.mxu0 0.0
        %6152 = vmatpush2.msra.mxu0 %v4975
        %6153 = vmatprep.subr.mxu0 0.0
        %6154 = vmatpush2.msra.mxu0 %v4974
        %6155 = vmatprep.subr.mxu0 0.0
        %6156 = vmatpush2.msra.mxu0 %v4973
        %6157 = vmatprep.subr.mxu0 0.0
        %6158 = vmatpush2.msra.mxu0 %v4972
        %6159 = vmatprep.subr.mxu0 0.0
        %6160 = vmatpush2.msra.mxu0 %v4971
        %6161 = vmatprep.subr.mxu0 0.0
        %6162 = vmatpush2.msra.mxu0 %v4970
        %6163 = vmatprep.subr.mxu0 0.0
        %6164 = vmatpush2.msra.mxu0 %v4969
        %6165 = vmatprep.subr.mxu0 0.0
        %6166 = vmatpush2.msra.mxu0 %v4968
        %6167 = vmatprep.subr.mxu0 0.0
        %6168 = vmatpush2.msra.mxu0 %v4967
        %6169 = vmatprep.mubr.f32.mxu0 %v4580
        %6170 = vmatmul.mubr.f32.gmra.mxu0 %v4578
        %v6171 = vpop.f32.mrf.mxu0
        %v6172 = vadd.f32 %v6102, %v6171
        %v6173 = vpop.f32.mrf.mxu0
        %6174 = vdwg.mxu0
        %6175 = vmatprep.subr.mxu0 0.0
        %6176 = vmatpush1.msra.mxu0 %v4998
        %6177 = vmatprep.subr.mxu0 0.0
        %6178 = vmatpush1.msra.mxu0 %v4997
        %6179 = vmatprep.subr.mxu0 0.0
        %6180 = vmatpush1.msra.mxu0 %v4996
        %6181 = vmatprep.subr.mxu0 0.0
        %6182 = vmatpush1.msra.mxu0 %v4995
        %6183 = vmatprep.subr.mxu0 0.0
        %6184 = vmatpush1.msra.mxu0 %v4994
        %6185 = vmatprep.subr.mxu0 0.0
        %6186 = vmatpush1.msra.mxu0 %v4993
        %6187 = vmatprep.subr.mxu0 0.0
        %6188 = vmatpush1.msra.mxu0 %v4992
        %6189 = vmatprep.subr.mxu0 0.0
        %6190 = vmatpush1.msra.mxu0 %v4991
        %6191 = vmatprep.subr.mxu0 0.0
        %6192 = vmatpush1.msra.mxu0 %v4990
        %6193 = vmatprep.subr.mxu0 0.0
        %6194 = vmatpush1.msra.mxu0 %v4989
        %6195 = vmatprep.subr.mxu0 0.0
        %6196 = vmatpush1.msra.mxu0 %v4988
        %6197 = vmatprep.subr.mxu0 0.0
        %6198 = vmatpush1.msra.mxu0 %v4987
        %6199 = vmatprep.subr.mxu0 0.0
        %6200 = vmatpush1.msra.mxu0 %v4986
        %6201 = vmatprep.subr.mxu0 0.0
        %6202 = vmatpush1.msra.mxu0 %v4985
        %6203 = vmatprep.subr.mxu0 0.0
        %6204 = vmatpush1.msra.mxu0 %v4984
        %6205 = vmatprep.subr.mxu0 0.0
        %6206 = vmatpush1.msra.mxu0 %v4983
        %6207 = vmatprep.subr.mxu0 0.0
        %6208 = vmatpush2.msra.mxu0 %v5014
        %6209 = vmatprep.subr.mxu0 0.0
        %6210 = vmatpush2.msra.mxu0 %v5013
        %6211 = vmatprep.subr.mxu0 0.0
        %6212 = vmatpush2.msra.mxu0 %v5012
        %6213 = vmatprep.subr.mxu0 0.0
        %6214 = vmatpush2.msra.mxu0 %v5011
        %6215 = vmatprep.subr.mxu0 0.0
        %6216 = vmatpush2.msra.mxu0 %v5010
        %6217 = vmatprep.subr.mxu0 0.0
        %6218 = vmatpush2.msra.mxu0 %v5009
        %6219 = vmatprep.subr.mxu0 0.0
        %6220 = vmatpush2.msra.mxu0 %v5008
        %6221 = vmatprep.subr.mxu0 0.0
        %6222 = vmatpush2.msra.mxu0 %v5007
        %6223 = vmatprep.subr.mxu0 0.0
        %6224 = vmatpush2.msra.mxu0 %v5006
        %6225 = vmatprep.subr.mxu0 0.0
        %6226 = vmatpush2.msra.mxu0 %v5005
        %6227 = vmatprep.subr.mxu0 0.0
        %6228 = vmatpush2.msra.mxu0 %v5004
        %6229 = vmatprep.subr.mxu0 0.0
        %6230 = vmatpush2.msra.mxu0 %v5003
        %6231 = vmatprep.subr.mxu0 0.0
        %6232 = vmatpush2.msra.mxu0 %v5002
        %6233 = vmatprep.subr.mxu0 0.0
        %6234 = vmatpush2.msra.mxu0 %v5001
        %6235 = vmatprep.subr.mxu0 0.0
        %6236 = vmatpush2.msra.mxu0 %v5000
        %6237 = vmatprep.subr.mxu0 0.0
        %6238 = vmatpush2.msra.mxu0 %v4999
        %6239 = vmatprep.mubr.f32.mxu0 %v4584
        %6240 = vmatmul.mubr.f32.gmra.mxu0 %v4582
        %v6241 = vpop.f32.mrf.mxu0
        %v6242 = vadd.f32 %v6172, %v6241
        %v6243 = vpop.f32.mrf.mxu0
        %6244 = vdwg.mxu0
        %6245 = vmatprep.subr.mxu0 0.0
        %6246 = vmatpush1.msra.mxu0 %v5030
        %6247 = vmatprep.subr.mxu0 0.0
        %6248 = vmatpush1.msra.mxu0 %v5029
        %6249 = vmatprep.subr.mxu0 0.0
        %6250 = vmatpush1.msra.mxu0 %v5028
        %6251 = vmatprep.subr.mxu0 0.0
        %6252 = vmatpush1.msra.mxu0 %v5027
        %6253 = vmatprep.subr.mxu0 0.0
        %6254 = vmatpush1.msra.mxu0 %v5026
        %6255 = vmatprep.subr.mxu0 0.0
        %6256 = vmatpush1.msra.mxu0 %v5025
        %6257 = vmatprep.subr.mxu0 0.0
        %6258 = vmatpush1.msra.mxu0 %v5024
        %6259 = vmatprep.subr.mxu0 0.0
        %6260 = vmatpush1.msra.mxu0 %v5023
        %6261 = vmatprep.subr.mxu0 0.0
        %6262 = vmatpush1.msra.mxu0 %v5022
        %6263 = vmatprep.subr.mxu0 0.0
        %6264 = vmatpush1.msra.mxu0 %v5021
        %6265 = vmatprep.subr.mxu0 0.0
        %6266 = vmatpush1.msra.mxu0 %v5020
        %6267 = vmatprep.subr.mxu0 0.0
        %6268 = vmatpush1.msra.mxu0 %v5019
        %6269 = vmatprep.subr.mxu0 0.0
        %6270 = vmatpush1.msra.mxu0 %v5018
        %6271 = vmatprep.subr.mxu0 0.0
        %6272 = vmatpush1.msra.mxu0 %v5017
        %6273 = vmatprep.subr.mxu0 0.0
        %6274 = vmatpush1.msra.mxu0 %v5016
        %6275 = vmatprep.subr.mxu0 0.0
        %6276 = vmatpush1.msra.mxu0 %v5015
        %6277 = vmatprep.subr.mxu0 0.0
        %6278 = vmatpush2.msra.mxu0 %v5046
        %6279 = vmatprep.subr.mxu0 0.0
        %6280 = vmatpush2.msra.mxu0 %v5045
        %6281 = vmatprep.subr.mxu0 0.0
        %6282 = vmatpush2.msra.mxu0 %v5044
        %6283 = vmatprep.subr.mxu0 0.0
        %6284 = vmatpush2.msra.mxu0 %v5043
        %6285 = vmatprep.subr.mxu0 0.0
        %6286 = vmatpush2.msra.mxu0 %v5042
        %6287 = vmatprep.subr.mxu0 0.0
        %6288 = vmatpush2.msra.mxu0 %v5041
        %6289 = vmatprep.subr.mxu0 0.0
        %6290 = vmatpush2.msra.mxu0 %v5040
        %6291 = vmatprep.subr.mxu0 0.0
        %6292 = vmatpush2.msra.mxu0 %v5039
        %6293 = vmatprep.subr.mxu0 0.0
        %6294 = vmatpush2.msra.mxu0 %v5038
        %6295 = vmatprep.subr.mxu0 0.0
        %6296 = vmatpush2.msra.mxu0 %v5037
        %6297 = vmatprep.subr.mxu0 0.0
        %6298 = vmatpush2.msra.mxu0 %v5036
        %6299 = vmatprep.subr.mxu0 0.0
        %6300 = vmatpush2.msra.mxu0 %v5035
        %6301 = vmatprep.subr.mxu0 0.0
        %6302 = vmatpush2.msra.mxu0 %v5034
        %6303 = vmatprep.subr.mxu0 0.0
        %6304 = vmatpush2.msra.mxu0 %v5033
        %6305 = vmatprep.subr.mxu0 0.0
        %6306 = vmatpush2.msra.mxu0 %v5032
        %6307 = vmatprep.subr.mxu0 0.0
        %6308 = vmatpush2.msra.mxu0 %v5031
        %6309 = vmatprep.mubr.f32.mxu0 %v4587
        %6310 = vmatmul.mubr.f32.gmra.mxu0 %v3720
        %v6311 = vpop.f32.mrf.mxu0
        %v6312 = vadd.f32 %v5402, %v6311
        %v6313 = vpop.f32.mrf.mxu0
        %6314 = vdwg.mxu0
        %6315 = vmatprep.subr.mxu0 0.0
        %6316 = vmatpush1.msra.mxu0 %v5062
        %6317 = vmatprep.subr.mxu0 0.0
        %6318 = vmatpush1.msra.mxu0 %v5061
        %6319 = vmatprep.subr.mxu0 0.0
        %6320 = vmatpush1.msra.mxu0 %v5060
        %6321 = vmatprep.subr.mxu0 0.0
        %6322 = vmatpush1.msra.mxu0 %v5059
        %6323 = vmatprep.subr.mxu0 0.0
        %6324 = vmatpush1.msra.mxu0 %v5058
        %6325 = vmatprep.subr.mxu0 0.0
        %6326 = vmatpush1.msra.mxu0 %v5057
        %6327 = vmatprep.subr.mxu0 0.0
        %6328 = vmatpush1.msra.mxu0 %v5056
        %6329 = vmatprep.subr.mxu0 0.0
        %6330 = vmatpush1.msra.mxu0 %v5055
        %6331 = vmatprep.subr.mxu0 0.0
        %6332 = vmatpush1.msra.mxu0 %v5054
        %6333 = vmatprep.subr.mxu0 0.0
        %6334 = vmatpush1.msra.mxu0 %v5053
        %6335 = vmatprep.subr.mxu0 0.0
        %6336 = vmatpush1.msra.mxu0 %v5052
        %6337 = vmatprep.subr.mxu0 0.0
        %6338 = vmatpush1.msra.mxu0 %v5051
        %6339 = vmatprep.subr.mxu0 0.0
        %6340 = vmatpush1.msra.mxu0 %v5050
        %6341 = vmatprep.subr.mxu0 0.0
        %6342 = vmatpush1.msra.mxu0 %v5049
        %6343 = vmatprep.subr.mxu0 0.0
        %6344 = vmatpush1.msra.mxu0 %v5048
        %6345 = vmatprep.subr.mxu0 0.0
        %6346 = vmatpush1.msra.mxu0 %v5047
        %6347 = vmatprep.subr.mxu0 0.0
        %6348 = vmatpush2.msra.mxu0 %v5078
        %6349 = vmatprep.subr.mxu0 0.0
        %6350 = vmatpush2.msra.mxu0 %v5077
        %6351 = vmatprep.subr.mxu0 0.0
        %6352 = vmatpush2.msra.mxu0 %v5076
        %6353 = vmatprep.subr.mxu0 0.0
        %6354 = vmatpush2.msra.mxu0 %v5075
        %6355 = vmatprep.subr.mxu0 0.0
        %6356 = vmatpush2.msra.mxu0 %v5074
        %6357 = vmatprep.subr.mxu0 0.0
        %6358 = vmatpush2.msra.mxu0 %v5073
        %6359 = vmatprep.subr.mxu0 0.0
        %6360 = vmatpush2.msra.mxu0 %v5072
        %6361 = vmatprep.subr.mxu0 0.0
        %6362 = vmatpush2.msra.mxu0 %v5071
        %6363 = vmatprep.subr.mxu0 0.0
        %6364 = vmatpush2.msra.mxu0 %v5070
        %6365 = vmatprep.subr.mxu0 0.0
        %6366 = vmatpush2.msra.mxu0 %v5069
        %6367 = vmatprep.subr.mxu0 0.0
        %6368 = vmatpush2.msra.mxu0 %v5068
        %6369 = vmatprep.subr.mxu0 0.0
        %6370 = vmatpush2.msra.mxu0 %v5067
        %6371 = vmatprep.subr.mxu0 0.0
        %6372 = vmatpush2.msra.mxu0 %v5066
        %6373 = vmatprep.subr.mxu0 0.0
        %6374 = vmatpush2.msra.mxu0 %v5065
        %6375 = vmatprep.subr.mxu0 0.0
        %6376 = vmatpush2.msra.mxu0 %v5064
        %6377 = vmatprep.subr.mxu0 0.0
        %6378 = vmatpush2.msra.mxu0 %v5063
        %6379 = vmatprep.mubr.f32.mxu0 %v4591
        %6380 = vmatmul.mubr.f32.gmra.mxu0 %v4589
        %v6381 = vpop.f32.mrf.mxu0
        %v6382 = vadd.f32 %v6312, %v6381
        %v6383 = vpop.f32.mrf.mxu0
        %6384 = vdwg.mxu0
        %6385 = vmatprep.subr.mxu0 0.0
        %6386 = vmatpush1.msra.mxu0 %v5094
        %6387 = vmatprep.subr.mxu0 0.0
        %6388 = vmatpush1.msra.mxu0 %v5093
        %6389 = vmatprep.subr.mxu0 0.0
        %6390 = vmatpush1.msra.mxu0 %v5092
        %6391 = vmatprep.subr.mxu0 0.0
        %6392 = vmatpush1.msra.mxu0 %v5091
        %6393 = vmatprep.subr.mxu0 0.0
        %6394 = vmatpush1.msra.mxu0 %v5090
        %6395 = vmatprep.subr.mxu0 0.0
        %6396 = vmatpush1.msra.mxu0 %v5089
        %6397 = vmatprep.subr.mxu0 0.0
        %6398 = vmatpush1.msra.mxu0 %v5088
        %6399 = vmatprep.subr.mxu0 0.0
        %6400 = vmatpush1.msra.mxu0 %v5087
        %6401 = vmatprep.subr.mxu0 0.0
        %6402 = vmatpush1.msra.mxu0 %v5086
        %6403 = vmatprep.subr.mxu0 0.0
        %6404 = vmatpush1.msra.mxu0 %v5085
        %6405 = vmatprep.subr.mxu0 0.0
        %6406 = vmatpush1.msra.mxu0 %v5084
        %6407 = vmatprep.subr.mxu0 0.0
        %6408 = vmatpush1.msra.mxu0 %v5083
        %6409 = vmatprep.subr.mxu0 0.0
        %6410 = vmatpush1.msra.mxu0 %v5082
        %6411 = vmatprep.subr.mxu0 0.0
        %6412 = vmatpush1.msra.mxu0 %v5081
        %6413 = vmatprep.subr.mxu0 0.0
        %6414 = vmatpush1.msra.mxu0 %v5080
        %6415 = vmatprep.subr.mxu0 0.0
        %6416 = vmatpush1.msra.mxu0 %v5079
        %6417 = vmatprep.subr.mxu0 0.0
        %6418 = vmatpush2.msra.mxu0 %v5110
        %6419 = vmatprep.subr.mxu0 0.0
        %6420 = vmatpush2.msra.mxu0 %v5109
        %6421 = vmatprep.subr.mxu0 0.0
        %6422 = vmatpush2.msra.mxu0 %v5108
        %6423 = vmatprep.subr.mxu0 0.0
        %6424 = vmatpush2.msra.mxu0 %v5107
        %6425 = vmatprep.subr.mxu0 0.0
        %6426 = vmatpush2.msra.mxu0 %v5106
        %6427 = vmatprep.subr.mxu0 0.0
        %6428 = vmatpush2.msra.mxu0 %v5105
        %6429 = vmatprep.subr.mxu0 0.0
        %6430 = vmatpush2.msra.mxu0 %v5104
        %6431 = vmatprep.subr.mxu0 0.0
        %6432 = vmatpush2.msra.mxu0 %v5103
        %6433 = vmatprep.subr.mxu0 0.0
        %6434 = vmatpush2.msra.mxu0 %v5102
        %6435 = vmatprep.subr.mxu0 0.0
        %6436 = vmatpush2.msra.mxu0 %v5101
        %6437 = vmatprep.subr.mxu0 0.0
        %6438 = vmatpush2.msra.mxu0 %v5100
        %6439 = vmatprep.subr.mxu0 0.0
        %6440 = vmatpush2.msra.mxu0 %v5099
        %6441 = vmatprep.subr.mxu0 0.0
        %6442 = vmatpush2.msra.mxu0 %v5098
        %6443 = vmatprep.subr.mxu0 0.0
        %6444 = vmatpush2.msra.mxu0 %v5097
        %6445 = vmatprep.subr.mxu0 0.0
        %6446 = vmatpush2.msra.mxu0 %v5096
        %6447 = vmatprep.subr.mxu0 0.0
        %6448 = vmatpush2.msra.mxu0 %v5095
        %6449 = vmatprep.mubr.f32.mxu0 %v4595
        %6450 = vmatmul.mubr.f32.gmra.mxu0 %v4593
        %v6451 = vpop.f32.mrf.mxu0
        %v6452 = vadd.f32 %v6382, %v6451
        %v6453 = vpop.f32.mrf.mxu0
        %6454 = vdwg.mxu0
        %6455 = vmatprep.subr.mxu0 0.0
        %6456 = vmatpush1.msra.mxu0 %v5126
        %6457 = vmatprep.subr.mxu0 0.0
        %6458 = vmatpush1.msra.mxu0 %v5125
        %6459 = vmatprep.subr.mxu0 0.0
        %6460 = vmatpush1.msra.mxu0 %v5124
        %6461 = vmatprep.subr.mxu0 0.0
        %6462 = vmatpush1.msra.mxu0 %v5123
        %6463 = vmatprep.subr.mxu0 0.0
        %6464 = vmatpush1.msra.mxu0 %v5122
        %6465 = vmatprep.subr.mxu0 0.0
        %6466 = vmatpush1.msra.mxu0 %v5121
        %6467 = vmatprep.subr.mxu0 0.0
        %6468 = vmatpush1.msra.mxu0 %v5120
        %6469 = vmatprep.subr.mxu0 0.0
        %6470 = vmatpush1.msra.mxu0 %v5119
        %6471 = vmatprep.subr.mxu0 0.0
        %6472 = vmatpush1.msra.mxu0 %v5118
        %6473 = vmatprep.subr.mxu0 0.0
        %6474 = vmatpush1.msra.mxu0 %v5117
        %6475 = vmatprep.subr.mxu0 0.0
        %6476 = vmatpush1.msra.mxu0 %v5116
        %6477 = vmatprep.subr.mxu0 0.0
        %6478 = vmatpush1.msra.mxu0 %v5115
        %6479 = vmatprep.subr.mxu0 0.0
        %6480 = vmatpush1.msra.mxu0 %v5114
        %6481 = vmatprep.subr.mxu0 0.0
        %6482 = vmatpush1.msra.mxu0 %v5113
        %6483 = vmatprep.subr.mxu0 0.0
        %6484 = vmatpush1.msra.mxu0 %v5112
        %6485 = vmatprep.subr.mxu0 0.0
        %6486 = vmatpush1.msra.mxu0 %v5111
        %6487 = vmatprep.subr.mxu0 0.0
        %6488 = vmatpush2.msra.mxu0 %v5142
        %6489 = vmatprep.subr.mxu0 0.0
        %6490 = vmatpush2.msra.mxu0 %v5141
        %6491 = vmatprep.subr.mxu0 0.0
        %6492 = vmatpush2.msra.mxu0 %v5140
        %6493 = vmatprep.subr.mxu0 0.0
        %6494 = vmatpush2.msra.mxu0 %v5139
        %6495 = vmatprep.subr.mxu0 0.0
        %6496 = vmatpush2.msra.mxu0 %v5138
        %6497 = vmatprep.subr.mxu0 0.0
        %6498 = vmatpush2.msra.mxu0 %v5137
        %6499 = vmatprep.subr.mxu0 0.0
        %6500 = vmatpush2.msra.mxu0 %v5136
        %6501 = vmatprep.subr.mxu0 0.0
        %6502 = vmatpush2.msra.mxu0 %v5135
        %6503 = vmatprep.subr.mxu0 0.0
        %6504 = vmatpush2.msra.mxu0 %v5134
        %6505 = vmatprep.subr.mxu0 0.0
        %6506 = vmatpush2.msra.mxu0 %v5133
        %6507 = vmatprep.subr.mxu0 0.0
        %6508 = vmatpush2.msra.mxu0 %v5132
        %6509 = vmatprep.subr.mxu0 0.0
        %6510 = vmatpush2.msra.mxu0 %v5131
        %6511 = vmatprep.subr.mxu0 0.0
        %6512 = vmatpush2.msra.mxu0 %v5130
        %6513 = vmatprep.subr.mxu0 0.0
        %6514 = vmatpush2.msra.mxu0 %v5129
        %6515 = vmatprep.subr.mxu0 0.0
        %6516 = vmatpush2.msra.mxu0 %v5128
        %6517 = vmatprep.subr.mxu0 0.0
        %6518 = vmatpush2.msra.mxu0 %v5127
        %6519 = vmatprep.mubr.f32.mxu0 %v4599
        %6520 = vmatmul.mubr.f32.gmra.mxu0 %v4597
        %v6521 = vpop.f32.mrf.mxu0
        %v6522 = vadd.f32 %v6452, %v6521
        %v6523 = vpop.f32.mrf.mxu0
        %6524 = vdwg.mxu0
        %6525 = vmatprep.subr.mxu0 0.0
        %6526 = vmatpush1.msra.mxu0 %v5158
        %6527 = vmatprep.subr.mxu0 0.0
        %6528 = vmatpush1.msra.mxu0 %v5157
        %6529 = vmatprep.subr.mxu0 0.0
        %6530 = vmatpush1.msra.mxu0 %v5156
        %6531 = vmatprep.subr.mxu0 0.0
        %6532 = vmatpush1.msra.mxu0 %v5155
        %6533 = vmatprep.subr.mxu0 0.0
        %6534 = vmatpush1.msra.mxu0 %v5154
        %6535 = vmatprep.subr.mxu0 0.0
        %6536 = vmatpush1.msra.mxu0 %v5153
        %6537 = vmatprep.subr.mxu0 0.0
        %6538 = vmatpush1.msra.mxu0 %v5152
        %6539 = vmatprep.subr.mxu0 0.0
        %6540 = vmatpush1.msra.mxu0 %v5151
        %6541 = vmatprep.subr.mxu0 0.0
        %6542 = vmatpush1.msra.mxu0 %v5150
        %6543 = vmatprep.subr.mxu0 0.0
        %6544 = vmatpush1.msra.mxu0 %v5149
        %6545 = vmatprep.subr.mxu0 0.0
        %6546 = vmatpush1.msra.mxu0 %v5148
        %6547 = vmatprep.subr.mxu0 0.0
        %6548 = vmatpush1.msra.mxu0 %v5147
        %6549 = vmatprep.subr.mxu0 0.0
        %6550 = vmatpush1.msra.mxu0 %v5146
        %6551 = vmatprep.subr.mxu0 0.0
        %6552 = vmatpush1.msra.mxu0 %v5145
        %6553 = vmatprep.subr.mxu0 0.0
        %6554 = vmatpush1.msra.mxu0 %v5144
        %6555 = vmatprep.subr.mxu0 0.0
        %6556 = vmatpush1.msra.mxu0 %v5143
        %6557 = vmatprep.subr.mxu0 0.0
        %6558 = vmatpush2.msra.mxu0 %v5174
        %6559 = vmatprep.subr.mxu0 0.0
        %6560 = vmatpush2.msra.mxu0 %v5173
        %6561 = vmatprep.subr.mxu0 0.0
        %6562 = vmatpush2.msra.mxu0 %v5172
        %6563 = vmatprep.subr.mxu0 0.0
        %6564 = vmatpush2.msra.mxu0 %v5171
        %6565 = vmatprep.subr.mxu0 0.0
        %6566 = vmatpush2.msra.mxu0 %v5170
        %6567 = vmatprep.subr.mxu0 0.0
        %6568 = vmatpush2.msra.mxu0 %v5169
        %6569 = vmatprep.subr.mxu0 0.0
        %6570 = vmatpush2.msra.mxu0 %v5168
        %6571 = vmatprep.subr.mxu0 0.0
        %6572 = vmatpush2.msra.mxu0 %v5167
        %6573 = vmatprep.subr.mxu0 0.0
        %6574 = vmatpush2.msra.mxu0 %v5166
        %6575 = vmatprep.subr.mxu0 0.0
        %6576 = vmatpush2.msra.mxu0 %v5165
        %6577 = vmatprep.subr.mxu0 0.0
        %6578 = vmatpush2.msra.mxu0 %v5164
        %6579 = vmatprep.subr.mxu0 0.0
        %6580 = vmatpush2.msra.mxu0 %v5163
        %6581 = vmatprep.subr.mxu0 0.0
        %6582 = vmatpush2.msra.mxu0 %v5162
        %6583 = vmatprep.subr.mxu0 0.0
        %6584 = vmatpush2.msra.mxu0 %v5161
        %6585 = vmatprep.subr.mxu0 0.0
        %6586 = vmatpush2.msra.mxu0 %v5160
        %6587 = vmatprep.subr.mxu0 0.0
        %6588 = vmatpush2.msra.mxu0 %v5159
        %6589 = vmatprep.mubr.f32.mxu0 %v4602
        %6590 = vmatmul.mubr.f32.gmra.mxu0 %v4130
        %v6591 = vpop.f32.mrf.mxu0
        %v6592 = vadd.f32 %v5403, %v6591
        %v6593 = vpop.f32.mrf.mxu0
        %6594 = vdwg.mxu0
        %6595 = vmatprep.subr.mxu0 0.0
        %6596 = vmatpush1.msra.mxu0 %v5190
        %6597 = vmatprep.subr.mxu0 0.0
        %6598 = vmatpush1.msra.mxu0 %v5189
        %6599 = vmatprep.subr.mxu0 0.0
        %6600 = vmatpush1.msra.mxu0 %v5188
        %6601 = vmatprep.subr.mxu0 0.0
        %6602 = vmatpush1.msra.mxu0 %v5187
        %6603 = vmatprep.subr.mxu0 0.0
        %6604 = vmatpush1.msra.mxu0 %v5186
        %6605 = vmatprep.subr.mxu0 0.0
        %6606 = vmatpush1.msra.mxu0 %v5185
        %6607 = vmatprep.subr.mxu0 0.0
        %6608 = vmatpush1.msra.mxu0 %v5184
        %6609 = vmatprep.subr.mxu0 0.0
        %6610 = vmatpush1.msra.mxu0 %v5183
        %6611 = vmatprep.subr.mxu0 0.0
        %6612 = vmatpush1.msra.mxu0 %v5182
        %6613 = vmatprep.subr.mxu0 0.0
        %6614 = vmatpush1.msra.mxu0 %v5181
        %6615 = vmatprep.subr.mxu0 0.0
        %6616 = vmatpush1.msra.mxu0 %v5180
        %6617 = vmatprep.subr.mxu0 0.0
        %6618 = vmatpush1.msra.mxu0 %v5179
        %6619 = vmatprep.subr.mxu0 0.0
        %6620 = vmatpush1.msra.mxu0 %v5178
        %6621 = vmatprep.subr.mxu0 0.0
        %6622 = vmatpush1.msra.mxu0 %v5177
        %6623 = vmatprep.subr.mxu0 0.0
        %6624 = vmatpush1.msra.mxu0 %v5176
        %6625 = vmatprep.subr.mxu0 0.0
        %6626 = vmatpush1.msra.mxu0 %v5175
        %6627 = vmatprep.subr.mxu0 0.0
        %6628 = vmatpush2.msra.mxu0 %v5206
        %6629 = vmatprep.subr.mxu0 0.0
        %6630 = vmatpush2.msra.mxu0 %v5205
        %6631 = vmatprep.subr.mxu0 0.0
        %6632 = vmatpush2.msra.mxu0 %v5204
        %6633 = vmatprep.subr.mxu0 0.0
        %6634 = vmatpush2.msra.mxu0 %v5203
        %6635 = vmatprep.subr.mxu0 0.0
        %6636 = vmatpush2.msra.mxu0 %v5202
        %6637 = vmatprep.subr.mxu0 0.0
        %6638 = vmatpush2.msra.mxu0 %v5201
        %6639 = vmatprep.subr.mxu0 0.0
        %6640 = vmatpush2.msra.mxu0 %v5200
        %6641 = vmatprep.subr.mxu0 0.0
        %6642 = vmatpush2.msra.mxu0 %v5199
        %6643 = vmatprep.subr.mxu0 0.0
        %6644 = vmatpush2.msra.mxu0 %v5198
        %6645 = vmatprep.subr.mxu0 0.0
        %6646 = vmatpush2.msra.mxu0 %v5197
        %6647 = vmatprep.subr.mxu0 0.0
        %6648 = vmatpush2.msra.mxu0 %v5196
        %6649 = vmatprep.subr.mxu0 0.0
        %6650 = vmatpush2.msra.mxu0 %v5195
        %6651 = vmatprep.subr.mxu0 0.0
        %6652 = vmatpush2.msra.mxu0 %v5194
        %6653 = vmatprep.subr.mxu0 0.0
        %6654 = vmatpush2.msra.mxu0 %v5193
        %6655 = vmatprep.subr.mxu0 0.0
        %6656 = vmatpush2.msra.mxu0 %v5192
        %6657 = vmatprep.subr.mxu0 0.0
        %6658 = vmatpush2.msra.mxu0 %v5191
        %6659 = vmatprep.mubr.f32.mxu0 %v4606
        %6660 = vmatmul.mubr.f32.gmra.mxu0 %v4604
        %v6661 = vpop.f32.mrf.mxu0
        %v6662 = vadd.f32 %v6592, %v6661
        %v6663 = vpop.f32.mrf.mxu0
        %6664 = vdwg.mxu0
        %6665 = vmatprep.subr.mxu0 0.0
        %6666 = vmatpush1.msra.mxu0 %v5222
        %6667 = vmatprep.subr.mxu0 0.0
        %6668 = vmatpush1.msra.mxu0 %v5221
        %6669 = vmatprep.subr.mxu0 0.0
        %6670 = vmatpush1.msra.mxu0 %v5220
        %6671 = vmatprep.subr.mxu0 0.0
        %6672 = vmatpush1.msra.mxu0 %v5219
        %6673 = vmatprep.subr.mxu0 0.0
        %6674 = vmatpush1.msra.mxu0 %v5218
        %6675 = vmatprep.subr.mxu0 0.0
        %6676 = vmatpush1.msra.mxu0 %v5217
        %6677 = vmatprep.subr.mxu0 0.0
        %6678 = vmatpush1.msra.mxu0 %v5216
        %6679 = vmatprep.subr.mxu0 0.0
        %6680 = vmatpush1.msra.mxu0 %v5215
        %6681 = vmatprep.subr.mxu0 0.0
        %6682 = vmatpush1.msra.mxu0 %v5214
        %6683 = vmatprep.subr.mxu0 0.0
        %6684 = vmatpush1.msra.mxu0 %v5213
        %6685 = vmatprep.subr.mxu0 0.0
        %6686 = vmatpush1.msra.mxu0 %v5212
        %6687 = vmatprep.subr.mxu0 0.0
        %6688 = vmatpush1.msra.mxu0 %v5211
        %6689 = vmatprep.subr.mxu0 0.0
        %6690 = vmatpush1.msra.mxu0 %v5210
        %6691 = vmatprep.subr.mxu0 0.0
        %6692 = vmatpush1.msra.mxu0 %v5209
        %6693 = vmatprep.subr.mxu0 0.0
        %6694 = vmatpush1.msra.mxu0 %v5208
        %6695 = vmatprep.subr.mxu0 0.0
        %6696 = vmatpush1.msra.mxu0 %v5207
        %6697 = vmatprep.subr.mxu0 0.0
        %6698 = vmatpush2.msra.mxu0 %v5238
        %6699 = vmatprep.subr.mxu0 0.0
        %6700 = vmatpush2.msra.mxu0 %v5237
        %6701 = vmatprep.subr.mxu0 0.0
        %6702 = vmatpush2.msra.mxu0 %v5236
        %6703 = vmatprep.subr.mxu0 0.0
        %6704 = vmatpush2.msra.mxu0 %v5235
        %6705 = vmatprep.subr.mxu0 0.0
        %6706 = vmatpush2.msra.mxu0 %v5234
        %6707 = vmatprep.subr.mxu0 0.0
        %6708 = vmatpush2.msra.mxu0 %v5233
        %6709 = vmatprep.subr.mxu0 0.0
        %6710 = vmatpush2.msra.mxu0 %v5232
        %6711 = vmatprep.subr.mxu0 0.0
        %6712 = vmatpush2.msra.mxu0 %v5231
        %6713 = vmatprep.subr.mxu0 0.0
        %6714 = vmatpush2.msra.mxu0 %v5230
        %6715 = vmatprep.subr.mxu0 0.0
        %6716 = vmatpush2.msra.mxu0 %v5229
        %6717 = vmatprep.subr.mxu0 0.0
        %6718 = vmatpush2.msra.mxu0 %v5228
        %6719 = vmatprep.subr.mxu0 0.0
        %6720 = vmatpush2.msra.mxu0 %v5227
        %6721 = vmatprep.subr.mxu0 0.0
        %6722 = vmatpush2.msra.mxu0 %v5226
        %6723 = vmatprep.subr.mxu0 0.0
        %6724 = vmatpush2.msra.mxu0 %v5225
        %6725 = vmatprep.subr.mxu0 0.0
        %6726 = vmatpush2.msra.mxu0 %v5224
        %6727 = vmatprep.subr.mxu0 0.0
        %6728 = vmatpush2.msra.mxu0 %v5223
        %6729 = vmatprep.mubr.f32.mxu0 %v4610
        %6730 = vmatmul.mubr.f32.gmra.mxu0 %v4608
        %v6731 = vpop.f32.mrf.mxu0
        %v6732 = vadd.f32 %v6662, %v6731
        %v6733 = vpop.f32.mrf.mxu0
        %6734 = vdwg.mxu0
        %6735 = vmatprep.subr.mxu0 0.0
        %6736 = vmatpush1.msra.mxu0 %v5254
        %6737 = vmatprep.subr.mxu0 0.0
        %6738 = vmatpush1.msra.mxu0 %v5253
        %6739 = vmatprep.subr.mxu0 0.0
        %6740 = vmatpush1.msra.mxu0 %v5252
        %6741 = vmatprep.subr.mxu0 0.0
        %6742 = vmatpush1.msra.mxu0 %v5251
        %6743 = vmatprep.subr.mxu0 0.0
        %6744 = vmatpush1.msra.mxu0 %v5250
        %6745 = vmatprep.subr.mxu0 0.0
        %6746 = vmatpush1.msra.mxu0 %v5249
        %6747 = vmatprep.subr.mxu0 0.0
        %6748 = vmatpush1.msra.mxu0 %v5248
        %6749 = vmatprep.subr.mxu0 0.0
        %6750 = vmatpush1.msra.mxu0 %v5247
        %6751 = vmatprep.subr.mxu0 0.0
        %6752 = vmatpush1.msra.mxu0 %v5246
        %6753 = vmatprep.subr.mxu0 0.0
        %6754 = vmatpush1.msra.mxu0 %v5245
        %6755 = vmatprep.subr.mxu0 0.0
        %6756 = vmatpush1.msra.mxu0 %v5244
        %6757 = vmatprep.subr.mxu0 0.0
        %6758 = vmatpush1.msra.mxu0 %v5243
        %6759 = vmatprep.subr.mxu0 0.0
        %6760 = vmatpush1.msra.mxu0 %v5242
        %6761 = vmatprep.subr.mxu0 0.0
        %6762 = vmatpush1.msra.mxu0 %v5241
        %6763 = vmatprep.subr.mxu0 0.0
        %6764 = vmatpush1.msra.mxu0 %v5240
        %6765 = vmatprep.subr.mxu0 0.0
        %6766 = vmatpush1.msra.mxu0 %v5239
        %6767 = vmatprep.subr.mxu0 0.0
        %6768 = vmatpush2.msra.mxu0 %v5270
        %6769 = vmatprep.subr.mxu0 0.0
        %6770 = vmatpush2.msra.mxu0 %v5269
        %6771 = vmatprep.subr.mxu0 0.0
        %6772 = vmatpush2.msra.mxu0 %v5268
        %6773 = vmatprep.subr.mxu0 0.0
        %6774 = vmatpush2.msra.mxu0 %v5267
        %6775 = vmatprep.subr.mxu0 0.0
        %6776 = vmatpush2.msra.mxu0 %v5266
        %6777 = vmatprep.subr.mxu0 0.0
        %6778 = vmatpush2.msra.mxu0 %v5265
        %6779 = vmatprep.subr.mxu0 0.0
        %6780 = vmatpush2.msra.mxu0 %v5264
        %6781 = vmatprep.subr.mxu0 0.0
        %6782 = vmatpush2.msra.mxu0 %v5263
        %6783 = vmatprep.subr.mxu0 0.0
        %6784 = vmatpush2.msra.mxu0 %v5262
        %6785 = vmatprep.subr.mxu0 0.0
        %6786 = vmatpush2.msra.mxu0 %v5261
        %6787 = vmatprep.subr.mxu0 0.0
        %6788 = vmatpush2.msra.mxu0 %v5260
        %6789 = vmatprep.subr.mxu0 0.0
        %6790 = vmatpush2.msra.mxu0 %v5259
        %6791 = vmatprep.subr.mxu0 0.0
        %6792 = vmatpush2.msra.mxu0 %v5258
        %6793 = vmatprep.subr.mxu0 0.0
        %6794 = vmatpush2.msra.mxu0 %v5257
        %6795 = vmatprep.subr.mxu0 0.0
        %6796 = vmatpush2.msra.mxu0 %v5256
        %6797 = vmatprep.subr.mxu0 0.0
        %6798 = vmatpush2.msra.mxu0 %v5255
        %6799 = vmatprep.mubr.f32.mxu0 %v4614
        %6800 = vmatmul.mubr.f32.gmra.mxu0 %v4612
        %v6801 = vpop.f32.mrf.mxu0
        %v6802 = vadd.f32 %v6732, %v6801
        %v6803 = vpop.f32.mrf.mxu0
        %6804 = vdwg.mxu0
        %6805 = vmatprep.subr.mxu0 0.0
        %6806 = vmatpush1.msra.mxu0 %v5286
        %6807 = vmatprep.subr.mxu0 0.0
        %6808 = vmatpush1.msra.mxu0 %v5285
        %6809 = vmatprep.subr.mxu0 0.0
        %6810 = vmatpush1.msra.mxu0 %v5284
        %6811 = vmatprep.subr.mxu0 0.0
        %6812 = vmatpush1.msra.mxu0 %v5283
        %6813 = vmatprep.subr.mxu0 0.0
        %6814 = vmatpush1.msra.mxu0 %v5282
        %6815 = vmatprep.subr.mxu0 0.0
        %6816 = vmatpush1.msra.mxu0 %v5281
        %6817 = vmatprep.subr.mxu0 0.0
        %6818 = vmatpush1.msra.mxu0 %v5280
        %6819 = vmatprep.subr.mxu0 0.0
        %6820 = vmatpush1.msra.mxu0 %v5279
        %6821 = vmatprep.subr.mxu0 0.0
        %6822 = vmatpush1.msra.mxu0 %v5278
        %6823 = vmatprep.subr.mxu0 0.0
        %6824 = vmatpush1.msra.mxu0 %v5277
        %6825 = vmatprep.subr.mxu0 0.0
        %6826 = vmatpush1.msra.mxu0 %v5276
        %6827 = vmatprep.subr.mxu0 0.0
        %6828 = vmatpush1.msra.mxu0 %v5275
        %6829 = vmatprep.subr.mxu0 0.0
        %6830 = vmatpush1.msra.mxu0 %v5274
        %6831 = vmatprep.subr.mxu0 0.0
        %6832 = vmatpush1.msra.mxu0 %v5273
        %6833 = vmatprep.subr.mxu0 0.0
        %6834 = vmatpush1.msra.mxu0 %v5272
        %6835 = vmatprep.subr.mxu0 0.0
        %6836 = vmatpush1.msra.mxu0 %v5271
        %6837 = vmatprep.subr.mxu0 0.0
        %6838 = vmatpush2.msra.mxu0 %v5302
        %6839 = vmatprep.subr.mxu0 0.0
        %6840 = vmatpush2.msra.mxu0 %v5301
        %6841 = vmatprep.subr.mxu0 0.0
        %6842 = vmatpush2.msra.mxu0 %v5300
        %6843 = vmatprep.subr.mxu0 0.0
        %6844 = vmatpush2.msra.mxu0 %v5299
        %6845 = vmatprep.subr.mxu0 0.0
        %6846 = vmatpush2.msra.mxu0 %v5298
        %6847 = vmatprep.subr.mxu0 0.0
        %6848 = vmatpush2.msra.mxu0 %v5297
        %6849 = vmatprep.subr.mxu0 0.0
        %6850 = vmatpush2.msra.mxu0 %v5296
        %6851 = vmatprep.subr.mxu0 0.0
        %6852 = vmatpush2.msra.mxu0 %v5295
        %6853 = vmatprep.subr.mxu0 0.0
        %6854 = vmatpush2.msra.mxu0 %v5294
        %6855 = vmatprep.subr.mxu0 0.0
        %6856 = vmatpush2.msra.mxu0 %v5293
        %6857 = vmatprep.subr.mxu0 0.0
        %6858 = vmatpush2.msra.mxu0 %v5292
        %6859 = vmatprep.subr.mxu0 0.0
        %6860 = vmatpush2.msra.mxu0 %v5291
        %6861 = vmatprep.subr.mxu0 0.0
        %6862 = vmatpush2.msra.mxu0 %v5290
        %6863 = vmatprep.subr.mxu0 0.0
        %6864 = vmatpush2.msra.mxu0 %v5289
        %6865 = vmatprep.subr.mxu0 0.0
        %6866 = vmatpush2.msra.mxu0 %v5288
        %6867 = vmatprep.subr.mxu0 0.0
        %6868 = vmatpush2.msra.mxu0 %v5287
        %6869 = vmatprep.mubr.f32.mxu0 %v4617
        %6870 = vmatmul.mubr.f32.gmra.mxu0 %v4540
        %v6871 = vpop.f32.mrf.mxu0
        %v6872 = vadd.f32 %v5404, %v6871
        %v6873 = vpop.f32.mrf.mxu0
        %6874 = vdwg.mxu0
        %6875 = vmatprep.subr.mxu0 0.0
        %6876 = vmatpush1.msra.mxu0 %v5318
        %6877 = vmatprep.subr.mxu0 0.0
        %6878 = vmatpush1.msra.mxu0 %v5317
        %6879 = vmatprep.subr.mxu0 0.0
        %6880 = vmatpush1.msra.mxu0 %v5316
        %6881 = vmatprep.subr.mxu0 0.0
        %6882 = vmatpush1.msra.mxu0 %v5315
        %6883 = vmatprep.subr.mxu0 0.0
        %6884 = vmatpush1.msra.mxu0 %v5314
        %6885 = vmatprep.subr.mxu0 0.0
        %6886 = vmatpush1.msra.mxu0 %v5313
        %6887 = vmatprep.subr.mxu0 0.0
        %6888 = vmatpush1.msra.mxu0 %v5312
        %6889 = vmatprep.subr.mxu0 0.0
        %6890 = vmatpush1.msra.mxu0 %v5311
        %6891 = vmatprep.subr.mxu0 0.0
        %6892 = vmatpush1.msra.mxu0 %v5310
        %6893 = vmatprep.subr.mxu0 0.0
        %6894 = vmatpush1.msra.mxu0 %v5309
        %6895 = vmatprep.subr.mxu0 0.0
        %6896 = vmatpush1.msra.mxu0 %v5308
        %6897 = vmatprep.subr.mxu0 0.0
        %6898 = vmatpush1.msra.mxu0 %v5307
        %6899 = vmatprep.subr.mxu0 0.0
        %6900 = vmatpush1.msra.mxu0 %v5306
        %6901 = vmatprep.subr.mxu0 0.0
        %6902 = vmatpush1.msra.mxu0 %v5305
        %6903 = vmatprep.subr.mxu0 0.0
        %6904 = vmatpush1.msra.mxu0 %v5304
        %6905 = vmatprep.subr.mxu0 0.0
        %6906 = vmatpush1.msra.mxu0 %v5303
        %6907 = vmatprep.subr.mxu0 0.0
        %6908 = vmatpush2.msra.mxu0 %v5334
        %6909 = vmatprep.subr.mxu0 0.0
        %6910 = vmatpush2.msra.mxu0 %v5333
        %6911 = vmatprep.subr.mxu0 0.0
        %6912 = vmatpush2.msra.mxu0 %v5332
        %6913 = vmatprep.subr.mxu0 0.0
        %6914 = vmatpush2.msra.mxu0 %v5331
        %6915 = vmatprep.subr.mxu0 0.0
        %6916 = vmatpush2.msra.mxu0 %v5330
        %6917 = vmatprep.subr.mxu0 0.0
        %6918 = vmatpush2.msra.mxu0 %v5329
        %6919 = vmatprep.subr.mxu0 0.0
        %6920 = vmatpush2.msra.mxu0 %v5328
        %6921 = vmatprep.subr.mxu0 0.0
        %6922 = vmatpush2.msra.mxu0 %v5327
        %6923 = vmatprep.subr.mxu0 0.0
        %6924 = vmatpush2.msra.mxu0 %v5326
        %6925 = vmatprep.subr.mxu0 0.0
        %6926 = vmatpush2.msra.mxu0 %v5325
        %6927 = vmatprep.subr.mxu0 0.0
        %6928 = vmatpush2.msra.mxu0 %v5324
        %6929 = vmatprep.subr.mxu0 0.0
        %6930 = vmatpush2.msra.mxu0 %v5323
        %6931 = vmatprep.subr.mxu0 0.0
        %6932 = vmatpush2.msra.mxu0 %v5322
        %6933 = vmatprep.subr.mxu0 0.0
        %6934 = vmatpush2.msra.mxu0 %v5321
        %6935 = vmatprep.subr.mxu0 0.0
        %6936 = vmatpush2.msra.mxu0 %v5320
        %6937 = vmatprep.subr.mxu0 0.0
        %6938 = vmatpush2.msra.mxu0 %v5319
        %6939 = vmatprep.mubr.f32.mxu0 %v4621
        %6940 = vmatmul.mubr.f32.gmra.mxu0 %v4619
        %v6941 = vpop.f32.mrf.mxu0
        %v6942 = vadd.f32 %v6872, %v6941
        %v6943 = vpop.f32.mrf.mxu0
        %6944 = vdwg.mxu0
        %6945 = vmatprep.subr.mxu0 0.0
        %6946 = vmatpush1.msra.mxu0 %v5350
        %6947 = vmatprep.subr.mxu0 0.0
        %6948 = vmatpush1.msra.mxu0 %v5349
        %6949 = vmatprep.subr.mxu0 0.0
        %6950 = vmatpush1.msra.mxu0 %v5348
        %6951 = vmatprep.subr.mxu0 0.0
        %6952 = vmatpush1.msra.mxu0 %v5347
        %6953 = vmatprep.subr.mxu0 0.0
        %6954 = vmatpush1.msra.mxu0 %v5346
        %6955 = vmatprep.subr.mxu0 0.0
        %6956 = vmatpush1.msra.mxu0 %v5345
        %6957 = vmatprep.subr.mxu0 0.0
        %6958 = vmatpush1.msra.mxu0 %v5344
        %6959 = vmatprep.subr.mxu0 0.0
        %6960 = vmatpush1.msra.mxu0 %v5343
        %6961 = vmatprep.subr.mxu0 0.0
        %6962 = vmatpush1.msra.mxu0 %v5342
        %6963 = vmatprep.subr.mxu0 0.0
        %6964 = vmatpush1.msra.mxu0 %v5341
        %6965 = vmatprep.subr.mxu0 0.0
        %6966 = vmatpush1.msra.mxu0 %v5340
        %6967 = vmatprep.subr.mxu0 0.0
        %6968 = vmatpush1.msra.mxu0 %v5339
        %6969 = vmatprep.subr.mxu0 0.0
        %6970 = vmatpush1.msra.mxu0 %v5338
        %6971 = vmatprep.subr.mxu0 0.0
        %6972 = vmatpush1.msra.mxu0 %v5337
        %6973 = vmatprep.subr.mxu0 0.0
        %6974 = vmatpush1.msra.mxu0 %v5336
        %6975 = vmatprep.subr.mxu0 0.0
        %6976 = vmatpush1.msra.mxu0 %v5335
        %6977 = vmatprep.subr.mxu0 0.0
        %6978 = vmatpush2.msra.mxu0 %v5366
        %6979 = vmatprep.subr.mxu0 0.0
        %6980 = vmatpush2.msra.mxu0 %v5365
        %6981 = vmatprep.subr.mxu0 0.0
        %6982 = vmatpush2.msra.mxu0 %v5364
        %6983 = vmatprep.subr.mxu0 0.0
        %6984 = vmatpush2.msra.mxu0 %v5363
        %6985 = vmatprep.subr.mxu0 0.0
        %6986 = vmatpush2.msra.mxu0 %v5362
        %6987 = vmatprep.subr.mxu0 0.0
        %6988 = vmatpush2.msra.mxu0 %v5361
        %6989 = vmatprep.subr.mxu0 0.0
        %6990 = vmatpush2.msra.mxu0 %v5360
        %6991 = vmatprep.subr.mxu0 0.0
        %6992 = vmatpush2.msra.mxu0 %v5359
        %6993 = vmatprep.subr.mxu0 0.0
        %6994 = vmatpush2.msra.mxu0 %v5358
        %6995 = vmatprep.subr.mxu0 0.0
        %6996 = vmatpush2.msra.mxu0 %v5357
        %6997 = vmatprep.subr.mxu0 0.0
        %6998 = vmatpush2.msra.mxu0 %v5356
        %6999 = vmatprep.subr.mxu0 0.0
        %7000 = vmatpush2.msra.mxu0 %v5355
        %7001 = vmatprep.subr.mxu0 0.0
        %7002 = vmatpush2.msra.mxu0 %v5354
        %7003 = vmatprep.subr.mxu0 0.0
        %7004 = vmatpush2.msra.mxu0 %v5353
        %7005 = vmatprep.subr.mxu0 0.0
        %7006 = vmatpush2.msra.mxu0 %v5352
        %7007 = vmatprep.subr.mxu0 0.0
        %7008 = vmatpush2.msra.mxu0 %v5351
        %7009 = vmatprep.mubr.f32.mxu0 %v4625
        %7010 = vmatmul.mubr.f32.gmra.mxu0 %v4623
        %v7011 = vpop.f32.mrf.mxu0
        %v7012 = vadd.f32 %v6942, %v7011
        %v7013 = vpop.f32.mrf.mxu0
        %7014 = vdwg.mxu0
        %7015 = vmatprep.subr.mxu0 0.0
        %7016 = vmatpush1.msra.mxu0 %v5382
        %7017 = vmatprep.subr.mxu0 0.0
        %7018 = vmatpush1.msra.mxu0 %v5381
        %7019 = vmatprep.subr.mxu0 0.0
        %7020 = vmatpush1.msra.mxu0 %v5380
        %7021 = vmatprep.subr.mxu0 0.0
        %7022 = vmatpush1.msra.mxu0 %v5379
        %7023 = vmatprep.subr.mxu0 0.0
        %7024 = vmatpush1.msra.mxu0 %v5378
        %7025 = vmatprep.subr.mxu0 0.0
        %7026 = vmatpush1.msra.mxu0 %v5377
        %7027 = vmatprep.subr.mxu0 0.0
        %7028 = vmatpush1.msra.mxu0 %v5376
        %7029 = vmatprep.subr.mxu0 0.0
        %7030 = vmatpush1.msra.mxu0 %v5375
        %7031 = vmatprep.subr.mxu0 0.0
        %7032 = vmatpush1.msra.mxu0 %v5374
        %7033 = vmatprep.subr.mxu0 0.0
        %7034 = vmatpush1.msra.mxu0 %v5373
        %7035 = vmatprep.subr.mxu0 0.0
        %7036 = vmatpush1.msra.mxu0 %v5372
        %7037 = vmatprep.subr.mxu0 0.0
        %7038 = vmatpush1.msra.mxu0 %v5371
        %7039 = vmatprep.subr.mxu0 0.0
        %7040 = vmatpush1.msra.mxu0 %v5370
        %7041 = vmatprep.subr.mxu0 0.0
        %7042 = vmatpush1.msra.mxu0 %v5369
        %7043 = vmatprep.subr.mxu0 0.0
        %7044 = vmatpush1.msra.mxu0 %v5368
        %7045 = vmatprep.subr.mxu0 0.0
        %7046 = vmatpush1.msra.mxu0 %v5367
        %7047 = vmatprep.subr.mxu0 0.0
        %7048 = vmatpush2.msra.mxu0 %v5398
        %7049 = vmatprep.subr.mxu0 0.0
        %7050 = vmatpush2.msra.mxu0 %v5397
        %7051 = vmatprep.subr.mxu0 0.0
        %7052 = vmatpush2.msra.mxu0 %v5396
        %7053 = vmatprep.subr.mxu0 0.0
        %7054 = vmatpush2.msra.mxu0 %v5395
        %7055 = vmatprep.subr.mxu0 0.0
        %7056 = vmatpush2.msra.mxu0 %v5394
        %7057 = vmatprep.subr.mxu0 0.0
        %7058 = vmatpush2.msra.mxu0 %v5393
        %7059 = vmatprep.subr.mxu0 0.0
        %7060 = vmatpush2.msra.mxu0 %v5392
        %7061 = vmatprep.subr.mxu0 0.0
        %7062 = vmatpush2.msra.mxu0 %v5391
        %7063 = vmatprep.subr.mxu0 0.0
        %7064 = vmatpush2.msra.mxu0 %v5390
        %7065 = vmatprep.subr.mxu0 0.0
        %7066 = vmatpush2.msra.mxu0 %v5389
        %7067 = vmatprep.subr.mxu0 0.0
        %7068 = vmatpush2.msra.mxu0 %v5388
        %7069 = vmatprep.subr.mxu0 0.0
        %7070 = vmatpush2.msra.mxu0 %v5387
        %7071 = vmatprep.subr.mxu0 0.0
        %7072 = vmatpush2.msra.mxu0 %v5386
        %7073 = vmatprep.subr.mxu0 0.0
        %7074 = vmatpush2.msra.mxu0 %v5385
        %7075 = vmatprep.subr.mxu0 0.0
        %7076 = vmatpush2.msra.mxu0 %v5384
        %7077 = vmatprep.subr.mxu0 0.0
        %7078 = vmatpush2.msra.mxu0 %v5383
        %7079 = vmatprep.mubr.f32.mxu0 %v4629
        %7080 = vmatmul.mubr.f32.gmra.mxu0 %v4627
        %v7081 = vpop.f32.mrf.mxu0
        %v7082 = vadd.f32 %v7012, %v7081
        %v7083 = vpop.f32.mrf.mxu0
        %7084 = vdwg.mxu0
        %v7085 = vxor.u32 %v5682, 2147483648
        %v7086 = vxor.u32 %v5962, 2147483648
        %v7087 = vxor.u32 %v6242, 2147483648
        %v7088 = vxor.u32 %v6522, 2147483648
        %v7089 = vxor.u32 %v6802, 2147483648
        %v7090 = vxor.u32 %v7082, 2147483648
        %v7091 = vmul.f32 %v7085, 1.442695
        %v7092 = vpow.pop %v7091
        %v7093 = vmul.f32 %v7086, 1.442695
        %v7094 = vpow.pop %v7093
        %v7095 = vmul.f32 %v7087, 1.442695
        %v7096 = vpow.pop %v7095
        %v7097 = vmul.f32 %v7088, 1.442695
        %v7098 = vpow.pop %v7097
        %v7099 = vmul.f32 %v7089, 1.442695
        %v7100 = vpow.pop %v7099
        %v7101 = vmul.f32 %v7090, 1.442695
        %v7102 = vpow.pop %v7101
        %v7103 = vadd.f32 %v7092, 1.0
        %v7104 = vadd.f32 %v7094, 1.0
        %v7105 = vadd.f32 %v7096, 1.0
        %v7106 = vadd.f32 %v7098, 1.0
        %v7107 = vadd.f32 %v7100, 1.0
        %v7108 = vadd.f32 %v7102, 1.0
        %v7109 = vrcp.pop %v7103
        %v7110 = vmul.f32 1.0, %v7109
        %v7111 = vrcp.pop %v7104
        %v7112 = vmul.f32 1.0, %v7111
        %v7113 = vrcp.pop %v7105
        %v7114 = vmul.f32 1.0, %v7113
        %v7115 = vrcp.pop %v7106
        %v7116 = vmul.f32 1.0, %v7115
        %v7117 = vrcp.pop %v7107
        %v7118 = vmul.f32 1.0, %v7117
        %v7119 = vrcp.pop %v7108
        %v7120 = vmul.f32 1.0, %v7119
        %v7121 = vmul.f32 %v5682, %v7110
        %v7122 = vmul.f32 %v5962, %v7112
        %v7123 = vmul.f32 %v6242, %v7114
        %v7124 = vmul.f32 %v6522, %v7116
        %v7125 = vmul.f32 %v6802, %v7118
        %v7126 = vmul.f32 %v7082, %v7120
        %v7127 = vxor.u32 %v7121, 2147483648
        %v7128 = vxor.u32 %v7122, 2147483648
        %v7129 = vxor.u32 %v7123, 2147483648
        %v7130 = vxor.u32 %v7124, 2147483648
        %v7131 = vxor.u32 %v7125, 2147483648
        %v7132 = vxor.u32 %v7126, 2147483648
        %v7133 = vmul.f32 %v7127, 1.442695
        %v7134 = vpow.pop %v7133
        %v7135 = vmul.f32 %v7128, 1.442695
        %v7136 = vpow.pop %v7135
        %v7137 = vmul.f32 %v7129, 1.442695
        %v7138 = vpow.pop %v7137
        %v7139 = vmul.f32 %v7130, 1.442695
        %v7140 = vpow.pop %v7139
        %v7141 = vmul.f32 %v7131, 1.442695
        %v7142 = vpow.pop %v7141
        %v7143 = vmul.f32 %v7132, 1.442695
        %v7144 = vpow.pop %v7143
        %v7145 = vadd.f32 %v7134, 1.0
        %v7146 = vadd.f32 %v7136, 1.0
        %v7147 = vadd.f32 %v7138, 1.0
        %v7148 = vadd.f32 %v7140, 1.0
        %v7149 = vadd.f32 %v7142, 1.0
        %v7150 = vadd.f32 %v7144, 1.0
        %v7151 = vrcp.pop %v7145
        %v7152 = vmul.f32 1.0, %v7151
        %v7153 = vrcp.pop %v7146
        %v7154 = vmul.f32 1.0, %v7153
        %v7155 = vrcp.pop %v7147
        %v7156 = vmul.f32 1.0, %v7155
        %v7157 = vrcp.pop %v7148
        %v7158 = vmul.f32 1.0, %v7157
        %v7159 = vrcp.pop %v7149
        %v7160 = vmul.f32 1.0, %v7159
        %v7161 = vrcp.pop %v7150
        %v7162 = vmul.f32 1.0, %v7161
        %v7163 = vmul.f32 %v7121, %v7152
        %v7164 = vmul.f32 %v7122, %v7154
        %v7165 = vmul.f32 %v7123, %v7156
        %v7166 = vmul.f32 %v7124, %v7158
        %v7167 = vmul.f32 %v7125, %v7160
        %v7168 = vmul.f32 %v7126, %v7162
        %v7169 = vld [vmem:[%s12] sm:$0xff]
        %v7170 = vld [vmem:[%s12 + $0x8] sm:$0xff]
        %v7171 = vld [vmem:[%s12 + $0x10] sm:$0xff]
        %v7172 = vld [vmem:[%s12 + $0x18] sm:$0xff]
        %v7173 = vld [vmem:[%s12 + $0x20] sm:$0xff]
        %v7174 = vld [vmem:[%s12 + $0x28] sm:$0xff]
        %v7175 = vld [vmem:[%s12 + $0x30] sm:$0xff]
        %v7176 = vld [vmem:[%s12 + $0x38] sm:$0xff]
        %v7177 = vld [vmem:[%s12 + $0x40] sm:$0xff]
        %v7178 = vld [vmem:[%s12 + $0x48] sm:$0xff]
        %v7179 = vld [vmem:[%s12 + $0x50] sm:$0xff]
        %v7180 = vld [vmem:[%s12 + $0x58] sm:$0xff]
        %v7181 = vld [vmem:[%s12 + $0x60] sm:$0xff]
        %v7182 = vld [vmem:[%s12 + $0x68] sm:$0xff]
        %v7183 = vld [vmem:[%s12 + $0x70] sm:$0xff]
        %v7184 = vld [vmem:[%s12 + $0x78] sm:$0xff]
        %v7185 = vld [vmem:[%s12 + $0x80] sm:$0xff]
        %v7186 = vld [vmem:[%s12 + $0x88] sm:$0xff]
        %v7187 = vld [vmem:[%s12 + $0x90] sm:$0xff]
        %v7188 = vld [vmem:[%s12 + $0x98] sm:$0xff]
        %v7189 = vld [vmem:[%s12 + $0xa0] sm:$0xff]
        %v7190 = vld [vmem:[%s12 + $0xa8] sm:$0xff]
        %v7191 = vld [vmem:[%s12 + $0xb0] sm:$0xff]
        %v7192 = vld [vmem:[%s12 + $0xb8] sm:$0xff]
        %v7194 = vsel %vm1634, %v7163, 0
        %7196 = vmatprep.subr.mxu0 0.0
        %7197 = vmatpush1.msra.mxu0 0.0
        %7198 = vmatprep.subr.mxu0 0.0
        %7199 = vmatpush1.msra.mxu0 0.0
        %7200 = vmatprep.subr.mxu0 0.0
        %7201 = vmatpush1.msra.mxu0 0.0
        %7202 = vmatprep.subr.mxu0 0.0
        %7203 = vmatpush1.msra.mxu0 0.0
        %7204 = vmatprep.subr.mxu0 0.0
        %7205 = vmatpush1.msra.mxu0 0.0
        %7206 = vmatprep.subr.mxu0 0.0
        %7207 = vmatpush1.msra.mxu0 0.0
        %7208 = vmatprep.subr.mxu0 0.0
        %7209 = vmatpush1.msra.mxu0 0.0
        %7210 = vmatprep.subr.mxu0 0.0
        %7211 = vmatpush1.msra.mxu0 0.0
        %7212 = vmatprep.subr.mxu0 0.0
        %7213 = vmatpush1.msra.mxu0 0.0
        %7214 = vmatprep.subr.mxu0 0.0
        %7215 = vmatpush1.msra.mxu0 0.0
        %7216 = vmatprep.subr.mxu0 0.0
        %7217 = vmatpush1.msra.mxu0 0.0
        %7218 = vmatprep.subr.mxu0 0.0
        %7219 = vmatpush1.msra.mxu0 0.0
        %7220 = vmatprep.subr.mxu0 0.0
        %7221 = vmatpush1.msra.mxu0 %v7172
        %7222 = vmatprep.subr.mxu0 0.0
        %7223 = vmatpush1.msra.mxu0 %v7171
        %7224 = vmatprep.subr.mxu0 0.0
        %7225 = vmatpush1.msra.mxu0 %v7170
        %7226 = vmatprep.subr.mxu0 0.0
        %7227 = vmatpush1.msra.mxu0 %v7169
        %7228 = vmatprep.subr.mxu0 0.0
        %7229 = vmatpush2.msra.mxu0 0.0
        %7230 = vmatprep.subr.mxu0 0.0
        %7231 = vmatpush2.msra.mxu0 0.0
        %7232 = vmatprep.subr.mxu0 0.0
        %7233 = vmatpush2.msra.mxu0 0.0
        %7234 = vmatprep.subr.mxu0 0.0
        %7235 = vmatpush2.msra.mxu0 0.0
        %7236 = vmatprep.subr.mxu0 0.0
        %7237 = vmatpush2.msra.mxu0 0.0
        %7238 = vmatprep.subr.mxu0 0.0
        %7239 = vmatpush2.msra.mxu0 0.0
        %7240 = vmatprep.subr.mxu0 0.0
        %7241 = vmatpush2.msra.mxu0 0.0
        %7242 = vmatprep.subr.mxu0 0.0
        %7243 = vmatpush2.msra.mxu0 0.0
        %7244 = vmatprep.subr.mxu0 0.0
        %7245 = vmatpush2.msra.mxu0 0.0
        %7246 = vmatprep.subr.mxu0 0.0
        %7247 = vmatpush2.msra.mxu0 0.0
        %7248 = vmatprep.subr.mxu0 0.0
        %7249 = vmatpush2.msra.mxu0 0.0
        %7250 = vmatprep.subr.mxu0 0.0
        %7251 = vmatpush2.msra.mxu0 0.0
        %7252 = vmatprep.subr.mxu0 0.0
        %7253 = vmatpush2.msra.mxu0 0.0
        %7254 = vmatprep.subr.mxu0 0.0
        %7255 = vmatpush2.msra.mxu0 0.0
        %7256 = vmatprep.subr.mxu0 0.0
        %7257 = vmatpush2.msra.mxu0 0.0
        %7258 = vmatprep.subr.mxu0 0.0
        %7259 = vmatpush2.msra.mxu0 0.0
        %7260 = vmatprep.mubr.f32.mxu0 0.0
        %7261 = vmatmul.mubr.f32.gmra.mxu0 %v7194
        %v7262 = vpop.f32.mrf.mxu0
        %v7263 = vadd.f32 0.0, %v7262
        %v7264 = vpop.f32.mrf.mxu0
        %7265 = vdwg.mxu0
        %v7267 = vsel %vm1634, %v7164, 0
        %7269 = vmatprep.subr.mxu0 0.0
        %7270 = vmatpush1.msra.mxu0 0.0
        %7271 = vmatprep.subr.mxu0 0.0
        %7272 = vmatpush1.msra.mxu0 0.0
        %7273 = vmatprep.subr.mxu0 0.0
        %7274 = vmatpush1.msra.mxu0 0.0
        %7275 = vmatprep.subr.mxu0 0.0
        %7276 = vmatpush1.msra.mxu0 0.0
        %7277 = vmatprep.subr.mxu0 0.0
        %7278 = vmatpush1.msra.mxu0 0.0
        %7279 = vmatprep.subr.mxu0 0.0
        %7280 = vmatpush1.msra.mxu0 0.0
        %7281 = vmatprep.subr.mxu0 0.0
        %7282 = vmatpush1.msra.mxu0 0.0
        %7283 = vmatprep.subr.mxu0 0.0
        %7284 = vmatpush1.msra.mxu0 0.0
        %7285 = vmatprep.subr.mxu0 0.0
        %7286 = vmatpush1.msra.mxu0 0.0
        %7287 = vmatprep.subr.mxu0 0.0
        %7288 = vmatpush1.msra.mxu0 0.0
        %7289 = vmatprep.subr.mxu0 0.0
        %7290 = vmatpush1.msra.mxu0 0.0
        %7291 = vmatprep.subr.mxu0 0.0
        %7292 = vmatpush1.msra.mxu0 0.0
        %7293 = vmatprep.subr.mxu0 0.0
        %7294 = vmatpush1.msra.mxu0 %v7176
        %7295 = vmatprep.subr.mxu0 0.0
        %7296 = vmatpush1.msra.mxu0 %v7175
        %7297 = vmatprep.subr.mxu0 0.0
        %7298 = vmatpush1.msra.mxu0 %v7174
        %7299 = vmatprep.subr.mxu0 0.0
        %7300 = vmatpush1.msra.mxu0 %v7173
        %7301 = vmatprep.subr.mxu0 0.0
        %7302 = vmatpush2.msra.mxu0 0.0
        %7303 = vmatprep.subr.mxu0 0.0
        %7304 = vmatpush2.msra.mxu0 0.0
        %7305 = vmatprep.subr.mxu0 0.0
        %7306 = vmatpush2.msra.mxu0 0.0
        %7307 = vmatprep.subr.mxu0 0.0
        %7308 = vmatpush2.msra.mxu0 0.0
        %7309 = vmatprep.subr.mxu0 0.0
        %7310 = vmatpush2.msra.mxu0 0.0
        %7311 = vmatprep.subr.mxu0 0.0
        %7312 = vmatpush2.msra.mxu0 0.0
        %7313 = vmatprep.subr.mxu0 0.0
        %7314 = vmatpush2.msra.mxu0 0.0
        %7315 = vmatprep.subr.mxu0 0.0
        %7316 = vmatpush2.msra.mxu0 0.0
        %7317 = vmatprep.subr.mxu0 0.0
        %7318 = vmatpush2.msra.mxu0 0.0
        %7319 = vmatprep.subr.mxu0 0.0
        %7320 = vmatpush2.msra.mxu0 0.0
        %7321 = vmatprep.subr.mxu0 0.0
        %7322 = vmatpush2.msra.mxu0 0.0
        %7323 = vmatprep.subr.mxu0 0.0
        %7324 = vmatpush2.msra.mxu0 0.0
        %7325 = vmatprep.subr.mxu0 0.0
        %7326 = vmatpush2.msra.mxu0 0.0
        %7327 = vmatprep.subr.mxu0 0.0
        %7328 = vmatpush2.msra.mxu0 0.0
        %7329 = vmatprep.subr.mxu0 0.0
        %7330 = vmatpush2.msra.mxu0 0.0
        %7331 = vmatprep.subr.mxu0 0.0
        %7332 = vmatpush2.msra.mxu0 0.0
        %7333 = vmatprep.mubr.f32.mxu0 0.0
        %7334 = vmatmul.mubr.f32.gmra.mxu0 %v7267
        %v7335 = vpop.f32.mrf.mxu0
        %v7336 = vadd.f32 0.0, %v7335
        %v7337 = vpop.f32.mrf.mxu0
        %7338 = vdwg.mxu0
        %v7340 = vsel %vm1634, %v7165, 0
        %7342 = vmatprep.subr.mxu0 0.0
        %7343 = vmatpush1.msra.mxu0 0.0
        %7344 = vmatprep.subr.mxu0 0.0
        %7345 = vmatpush1.msra.mxu0 0.0
        %7346 = vmatprep.subr.mxu0 0.0
        %7347 = vmatpush1.msra.mxu0 0.0
        %7348 = vmatprep.subr.mxu0 0.0
        %7349 = vmatpush1.msra.mxu0 0.0
        %7350 = vmatprep.subr.mxu0 0.0
        %7351 = vmatpush1.msra.mxu0 0.0
        %7352 = vmatprep.subr.mxu0 0.0
        %7353 = vmatpush1.msra.mxu0 0.0
        %7354 = vmatprep.subr.mxu0 0.0
        %7355 = vmatpush1.msra.mxu0 0.0
        %7356 = vmatprep.subr.mxu0 0.0
        %7357 = vmatpush1.msra.mxu0 0.0
        %7358 = vmatprep.subr.mxu0 0.0
        %7359 = vmatpush1.msra.mxu0 0.0
        %7360 = vmatprep.subr.mxu0 0.0
        %7361 = vmatpush1.msra.mxu0 0.0
        %7362 = vmatprep.subr.mxu0 0.0
        %7363 = vmatpush1.msra.mxu0 0.0
        %7364 = vmatprep.subr.mxu0 0.0
        %7365 = vmatpush1.msra.mxu0 0.0
        %7366 = vmatprep.subr.mxu0 0.0
        %7367 = vmatpush1.msra.mxu0 %v7180
        %7368 = vmatprep.subr.mxu0 0.0
        %7369 = vmatpush1.msra.mxu0 %v7179
        %7370 = vmatprep.subr.mxu0 0.0
        %7371 = vmatpush1.msra.mxu0 %v7178
        %7372 = vmatprep.subr.mxu0 0.0
        %7373 = vmatpush1.msra.mxu0 %v7177
        %7374 = vmatprep.subr.mxu0 0.0
        %7375 = vmatpush2.msra.mxu0 0.0
        %7376 = vmatprep.subr.mxu0 0.0
        %7377 = vmatpush2.msra.mxu0 0.0
        %7378 = vmatprep.subr.mxu0 0.0
        %7379 = vmatpush2.msra.mxu0 0.0
        %7380 = vmatprep.subr.mxu0 0.0
        %7381 = vmatpush2.msra.mxu0 0.0
        %7382 = vmatprep.subr.mxu0 0.0
        %7383 = vmatpush2.msra.mxu0 0.0
        %7384 = vmatprep.subr.mxu0 0.0
        %7385 = vmatpush2.msra.mxu0 0.0
        %7386 = vmatprep.subr.mxu0 0.0
        %7387 = vmatpush2.msra.mxu0 0.0
        %7388 = vmatprep.subr.mxu0 0.0
        %7389 = vmatpush2.msra.mxu0 0.0
        %7390 = vmatprep.subr.mxu0 0.0
        %7391 = vmatpush2.msra.mxu0 0.0
        %7392 = vmatprep.subr.mxu0 0.0
        %7393 = vmatpush2.msra.mxu0 0.0
        %7394 = vmatprep.subr.mxu0 0.0
        %7395 = vmatpush2.msra.mxu0 0.0
        %7396 = vmatprep.subr.mxu0 0.0
        %7397 = vmatpush2.msra.mxu0 0.0
        %7398 = vmatprep.subr.mxu0 0.0
        %7399 = vmatpush2.msra.mxu0 0.0
        %7400 = vmatprep.subr.mxu0 0.0
        %7401 = vmatpush2.msra.mxu0 0.0
        %7402 = vmatprep.subr.mxu0 0.0
        %7403 = vmatpush2.msra.mxu0 0.0
        %7404 = vmatprep.subr.mxu0 0.0
        %7405 = vmatpush2.msra.mxu0 0.0
        %7406 = vmatprep.mubr.f32.mxu0 0.0
        %7407 = vmatmul.mubr.f32.gmra.mxu0 %v7340
        %v7408 = vpop.f32.mrf.mxu0
        %v7409 = vadd.f32 0.0, %v7408
        %v7410 = vpop.f32.mrf.mxu0
        %7411 = vdwg.mxu0
        %v7413 = vsel %vm1634, %v7166, 0
        %7415 = vmatprep.subr.mxu0 0.0
        %7416 = vmatpush1.msra.mxu0 0.0
        %7417 = vmatprep.subr.mxu0 0.0
        %7418 = vmatpush1.msra.mxu0 0.0
        %7419 = vmatprep.subr.mxu0 0.0
        %7420 = vmatpush1.msra.mxu0 0.0
        %7421 = vmatprep.subr.mxu0 0.0
        %7422 = vmatpush1.msra.mxu0 0.0
        %7423 = vmatprep.subr.mxu0 0.0
        %7424 = vmatpush1.msra.mxu0 0.0
        %7425 = vmatprep.subr.mxu0 0.0
        %7426 = vmatpush1.msra.mxu0 0.0
        %7427 = vmatprep.subr.mxu0 0.0
        %7428 = vmatpush1.msra.mxu0 0.0
        %7429 = vmatprep.subr.mxu0 0.0
        %7430 = vmatpush1.msra.mxu0 0.0
        %7431 = vmatprep.subr.mxu0 0.0
        %7432 = vmatpush1.msra.mxu0 0.0
        %7433 = vmatprep.subr.mxu0 0.0
        %7434 = vmatpush1.msra.mxu0 0.0
        %7435 = vmatprep.subr.mxu0 0.0
        %7436 = vmatpush1.msra.mxu0 0.0
        %7437 = vmatprep.subr.mxu0 0.0
        %7438 = vmatpush1.msra.mxu0 0.0
        %7439 = vmatprep.subr.mxu0 0.0
        %7440 = vmatpush1.msra.mxu0 %v7184
        %7441 = vmatprep.subr.mxu0 0.0
        %7442 = vmatpush1.msra.mxu0 %v7183
        %7443 = vmatprep.subr.mxu0 0.0
        %7444 = vmatpush1.msra.mxu0 %v7182
        %7445 = vmatprep.subr.mxu0 0.0
        %7446 = vmatpush1.msra.mxu0 %v7181
        %7447 = vmatprep.subr.mxu0 0.0
        %7448 = vmatpush2.msra.mxu0 0.0
        %7449 = vmatprep.subr.mxu0 0.0
        %7450 = vmatpush2.msra.mxu0 0.0
        %7451 = vmatprep.subr.mxu0 0.0
        %7452 = vmatpush2.msra.mxu0 0.0
        %7453 = vmatprep.subr.mxu0 0.0
        %7454 = vmatpush2.msra.mxu0 0.0
        %7455 = vmatprep.subr.mxu0 0.0
        %7456 = vmatpush2.msra.mxu0 0.0
        %7457 = vmatprep.subr.mxu0 0.0
        %7458 = vmatpush2.msra.mxu0 0.0
        %7459 = vmatprep.subr.mxu0 0.0
        %7460 = vmatpush2.msra.mxu0 0.0
        %7461 = vmatprep.subr.mxu0 0.0
        %7462 = vmatpush2.msra.mxu0 0.0
        %7463 = vmatprep.subr.mxu0 0.0
        %7464 = vmatpush2.msra.mxu0 0.0
        %7465 = vmatprep.subr.mxu0 0.0
        %7466 = vmatpush2.msra.mxu0 0.0
        %7467 = vmatprep.subr.mxu0 0.0
        %7468 = vmatpush2.msra.mxu0 0.0
        %7469 = vmatprep.subr.mxu0 0.0
        %7470 = vmatpush2.msra.mxu0 0.0
        %7471 = vmatprep.subr.mxu0 0.0
        %7472 = vmatpush2.msra.mxu0 0.0
        %7473 = vmatprep.subr.mxu0 0.0
        %7474 = vmatpush2.msra.mxu0 0.0
        %7475 = vmatprep.subr.mxu0 0.0
        %7476 = vmatpush2.msra.mxu0 0.0
        %7477 = vmatprep.subr.mxu0 0.0
        %7478 = vmatpush2.msra.mxu0 0.0
        %7479 = vmatprep.mubr.f32.mxu0 0.0
        %7480 = vmatmul.mubr.f32.gmra.mxu0 %v7413
        %v7481 = vpop.f32.mrf.mxu0
        %v7482 = vadd.f32 0.0, %v7481
        %v7483 = vpop.f32.mrf.mxu0
        %7484 = vdwg.mxu0
        %v7486 = vsel %vm1634, %v7167, 0
        %7488 = vmatprep.subr.mxu0 0.0
        %7489 = vmatpush1.msra.mxu0 0.0
        %7490 = vmatprep.subr.mxu0 0.0
        %7491 = vmatpush1.msra.mxu0 0.0
        %7492 = vmatprep.subr.mxu0 0.0
        %7493 = vmatpush1.msra.mxu0 0.0
        %7494 = vmatprep.subr.mxu0 0.0
        %7495 = vmatpush1.msra.mxu0 0.0
        %7496 = vmatprep.subr.mxu0 0.0
        %7497 = vmatpush1.msra.mxu0 0.0
        %7498 = vmatprep.subr.mxu0 0.0
        %7499 = vmatpush1.msra.mxu0 0.0
        %7500 = vmatprep.subr.mxu0 0.0
        %7501 = vmatpush1.msra.mxu0 0.0
        %7502 = vmatprep.subr.mxu0 0.0
        %7503 = vmatpush1.msra.mxu0 0.0
        %7504 = vmatprep.subr.mxu0 0.0
        %7505 = vmatpush1.msra.mxu0 0.0
        %7506 = vmatprep.subr.mxu0 0.0
        %7507 = vmatpush1.msra.mxu0 0.0
        %7508 = vmatprep.subr.mxu0 0.0
        %7509 = vmatpush1.msra.mxu0 0.0
        %7510 = vmatprep.subr.mxu0 0.0
        %7511 = vmatpush1.msra.mxu0 0.0
        %7512 = vmatprep.subr.mxu0 0.0
        %7513 = vmatpush1.msra.mxu0 %v7188
        %7514 = vmatprep.subr.mxu0 0.0
        %7515 = vmatpush1.msra.mxu0 %v7187
        %7516 = vmatprep.subr.mxu0 0.0
        %7517 = vmatpush1.msra.mxu0 %v7186
        %7518 = vmatprep.subr.mxu0 0.0
        %7519 = vmatpush1.msra.mxu0 %v7185
        %7520 = vmatprep.subr.mxu0 0.0
        %7521 = vmatpush2.msra.mxu0 0.0
        %7522 = vmatprep.subr.mxu0 0.0
        %7523 = vmatpush2.msra.mxu0 0.0
        %7524 = vmatprep.subr.mxu0 0.0
        %7525 = vmatpush2.msra.mxu0 0.0
        %7526 = vmatprep.subr.mxu0 0.0
        %7527 = vmatpush2.msra.mxu0 0.0
        %7528 = vmatprep.subr.mxu0 0.0
        %7529 = vmatpush2.msra.mxu0 0.0
        %7530 = vmatprep.subr.mxu0 0.0
        %7531 = vmatpush2.msra.mxu0 0.0
        %7532 = vmatprep.subr.mxu0 0.0
        %7533 = vmatpush2.msra.mxu0 0.0
        %7534 = vmatprep.subr.mxu0 0.0
        %7535 = vmatpush2.msra.mxu0 0.0
        %7536 = vmatprep.subr.mxu0 0.0
        %7537 = vmatpush2.msra.mxu0 0.0
        %7538 = vmatprep.subr.mxu0 0.0
        %7539 = vmatpush2.msra.mxu0 0.0
        %7540 = vmatprep.subr.mxu0 0.0
        %7541 = vmatpush2.msra.mxu0 0.0
        %7542 = vmatprep.subr.mxu0 0.0
        %7543 = vmatpush2.msra.mxu0 0.0
        %7544 = vmatprep.subr.mxu0 0.0
        %7545 = vmatpush2.msra.mxu0 0.0
        %7546 = vmatprep.subr.mxu0 0.0
        %7547 = vmatpush2.msra.mxu0 0.0
        %7548 = vmatprep.subr.mxu0 0.0
        %7549 = vmatpush2.msra.mxu0 0.0
        %7550 = vmatprep.subr.mxu0 0.0
        %7551 = vmatpush2.msra.mxu0 0.0
        %7552 = vmatprep.mubr.f32.mxu0 0.0
        %7553 = vmatmul.mubr.f32.gmra.mxu0 %v7486
        %v7554 = vpop.f32.mrf.mxu0
        %v7555 = vadd.f32 0.0, %v7554
        %v7556 = vpop.f32.mrf.mxu0
        %7557 = vdwg.mxu0
        %v7559 = vsel %vm1634, %v7168, 0
        %7561 = vmatprep.subr.mxu0 0.0
        %7562 = vmatpush1.msra.mxu0 0.0
        %7563 = vmatprep.subr.mxu0 0.0
        %7564 = vmatpush1.msra.mxu0 0.0
        %7565 = vmatprep.subr.mxu0 0.0
        %7566 = vmatpush1.msra.mxu0 0.0
        %7567 = vmatprep.subr.mxu0 0.0
        %7568 = vmatpush1.msra.mxu0 0.0
        %7569 = vmatprep.subr.mxu0 0.0
        %7570 = vmatpush1.msra.mxu0 0.0
        %7571 = vmatprep.subr.mxu0 0.0
        %7572 = vmatpush1.msra.mxu0 0.0
        %7573 = vmatprep.subr.mxu0 0.0
        %7574 = vmatpush1.msra.mxu0 0.0
        %7575 = vmatprep.subr.mxu0 0.0
        %7576 = vmatpush1.msra.mxu0 0.0
        %7577 = vmatprep.subr.mxu0 0.0
        %7578 = vmatpush1.msra.mxu0 0.0
        %7579 = vmatprep.subr.mxu0 0.0
        %7580 = vmatpush1.msra.mxu0 0.0
        %7581 = vmatprep.subr.mxu0 0.0
        %7582 = vmatpush1.msra.mxu0 0.0
        %7583 = vmatprep.subr.mxu0 0.0
        %7584 = vmatpush1.msra.mxu0 0.0
        %7585 = vmatprep.subr.mxu0 0.0
        %7586 = vmatpush1.msra.mxu0 %v7192
        %7587 = vmatprep.subr.mxu0 0.0
        %7588 = vmatpush1.msra.mxu0 %v7191
        %7589 = vmatprep.subr.mxu0 0.0
        %7590 = vmatpush1.msra.mxu0 %v7190
        %7591 = vmatprep.subr.mxu0 0.0
        %7592 = vmatpush1.msra.mxu0 %v7189
        %7593 = vmatprep.subr.mxu0 0.0
        %7594 = vmatpush2.msra.mxu0 0.0
        %7595 = vmatprep.subr.mxu0 0.0
        %7596 = vmatpush2.msra.mxu0 0.0
        %7597 = vmatprep.subr.mxu0 0.0
        %7598 = vmatpush2.msra.mxu0 0.0
        %7599 = vmatprep.subr.mxu0 0.0
        %7600 = vmatpush2.msra.mxu0 0.0
        %7601 = vmatprep.subr.mxu0 0.0
        %7602 = vmatpush2.msra.mxu0 0.0
        %7603 = vmatprep.subr.mxu0 0.0
        %7604 = vmatpush2.msra.mxu0 0.0
        %7605 = vmatprep.subr.mxu0 0.0
        %7606 = vmatpush2.msra.mxu0 0.0
        %7607 = vmatprep.subr.mxu0 0.0
        %7608 = vmatpush2.msra.mxu0 0.0
        %7609 = vmatprep.subr.mxu0 0.0
        %7610 = vmatpush2.msra.mxu0 0.0
        %7611 = vmatprep.subr.mxu0 0.0
        %7612 = vmatpush2.msra.mxu0 0.0
        %7613 = vmatprep.subr.mxu0 0.0
        %7614 = vmatpush2.msra.mxu0 0.0
        %7615 = vmatprep.subr.mxu0 0.0
        %7616 = vmatpush2.msra.mxu0 0.0
        %7617 = vmatprep.subr.mxu0 0.0
        %7618 = vmatpush2.msra.mxu0 0.0
        %7619 = vmatprep.subr.mxu0 0.0
        %7620 = vmatpush2.msra.mxu0 0.0
        %7621 = vmatprep.subr.mxu0 0.0
        %7622 = vmatpush2.msra.mxu0 0.0
        %7623 = vmatprep.subr.mxu0 0.0
        %7624 = vmatpush2.msra.mxu0 0.0
        %7625 = vmatprep.mubr.f32.mxu0 0.0
        %7626 = vmatmul.mubr.f32.gmra.mxu0 %v7559
        %v7627 = vpop.f32.mrf.mxu0
        %v7628 = vadd.f32 0.0, %v7627
        %v7629 = vpop.f32.mrf.mxu0
        %7630 = vdwg.mxu0
        %vm7631 = vcmask 122880
        %v7632 = vsel %vm7631, %v7263, 0.0
        %v7633 = vsel %vm7631, %v7336, 0.0
        %v7634 = vadd.f32 %v7632, %v7633
        %v7635 = vsel %vm7631, %v7409, 0.0
        %v7636 = vadd.f32 %v7634, %v7635
        %v7637 = vsel %vm7631, %v7482, 0.0
        %v7638 = vadd.f32 %v7636, %v7637
        %v7639 = vsel %vm7631, %v7555, 0.0
        %v7640 = vadd.f32 %v7638, %v7639
        %v7641 = vsel %vm7631, %v7628, 0.0
        %v7642 = vadd.f32 %v7640, %v7641
        %v7643 = vld [vmem:[%s13] sm:$0x1]
        %v7644 = vadd.f32 %v7642, %v7643
        %vm7645 = vcmp.lt.f32.partialorder %v7644, 0.0
        %vm7646 = vcmp.gt.f32.partialorder %v7644, 1.0
        %v7647 = vmul.f32 %v7644, 3.1415927
        %v7648 = vand.u32 2147483647, %v7647
        %vm7649 = vcmp.le.f32.partialorder %v7648, 0.7853982
        %vm7650 = vcmp.lt.s32.totalorder %v7647, 0
        %v7651 = vand.u32 %v7647, 2139095040
        %v7652 = vshrl.u32 %v7651, 23
        %v7653 = vsub.s32 %v7652, 127
        %v7654 = vand.u32 2147483647, %v7647
        %v7655 = vand.u32 %v7654, 8388607
        %v7656 = vor.u32 %v7655, 8388608
        %v7657 = vsub.s32 0, %v7656
        %v7658 = vadd.s32 %v7653, 1
        %vm7659 = vcmp.gt.s32.totalorder %v7658, 0
        %v7660 = vsel %vm7659, %v7658, 0
        %v7661 = vshrl.u32 %v7660, 5
        %v7662 = vand.u32 %v7660, 31
        %v7663 = vsub.s32 32, %v7662
        %v7664 = vshrl.u32 683565275, %v7663
        %v7665 = vshll.u32 683565275, %v7662
        %v7666 = vshrl.u32 2475754826, %v7663
        %v7667 = vor.u32 %v7665, %v7666
        %v7668 = vshll.u32 2475754826, %v7662
        %v7669 = vshrl.u32 2131351028, %v7663
        %v7670 = vor.u32 %v7668, %v7669
        %v7671 = vshll.u32 2131351028, %v7662
        %v7672 = vshrl.u32 2102212464, %v7663
        %v7673 = vor.u32 %v7671, %v7672
        %v7674 = vshll.u32 2102212464, %v7662
        %v7675 = vshrl.u32 920167782, %v7663
        %v7676 = vor.u32 %v7674, %v7675
        %v7677 = vshll.u32 920167782, %v7662
        %v7678 = vshrl.u32 1326507024, %v7663
        %v7679 = vor.u32 %v7677, %v7678
        %vm7680 = vcmp.lt.s32.totalorder %v7661, 1
        %vm7681 = vcmp.lt.s32.totalorder %v7661, 2
        %vm7682 = vcmp.lt.s32.totalorder %v7661, 3
        %vm7683 = vcmp.lt.s32.totalorder %v7661, 4
        %v7684 = vsel %vm7680, %v7664, %v7667
        %v7685 = vsel %vm7683, %v7673, 2102212464
        %v7686 = vsel %vm7682, %v7670, %v7685
        %v7687 = vsel %vm7681, %v7684, %v7686
        %v7688 = vsel %vm7680, %v7667, %v7670
        %v7689 = vsel %vm7683, %v7676, 920167782
        %v7690 = vsel %vm7682, %v7673, %v7689
        %v7691 = vsel %vm7681, %v7688, %v7690
        %v7692 = vsel %vm7680, %v7670, %v7673
        %v7693 = vsel %vm7683, %v7679, 1326507024
        %v7694 = vsel %vm7682, %v7676, %v7693
        %v7695 = vsel %vm7681, %v7692, %v7694
        %v7696 = vshll.u32 %v7656, 8
        %v7697 = vmul.u32.u64.compose %v7696, %v7695
        %v7698 = vextract.low.u32 %v7697
        %v7699 = vextract.high.u32 %v7697
        %v7700 = vmul.u32.u64.compose %v7696, %v7691
        %v7701 = vextract.low.u32 %v7700
        %v7702 = vextract.high.u32 %v7700
        %v7703 = vmul.u32 %v7696, %v7687
        %v7704 = vadd.s32 %v7699, %v7701
        %vm7705 = vc.u32 %v7699, %v7701
        %v7706 = vadd.s32 %v7702, 1
        %v7707 = vsel %vm7705, %v7706, %v7702
        %v7708 = vadd.s32 %v7703, %v7707
        %v7709 = vadd.s32 %v7708, 536870912
        %v7710 = vshrl.u32 %v7709, 30
        %v7711 = vshll.u32 %v7710, 30
        %v7712 = vsub.s32 %v7708, %v7711
        %vm7713 = vcmp.lt.s32.totalorder %v7712, 0
        %v7714 = vsub.s32 0, %v7712
        %v7715 = vsel %vm7713, %v7714, %v7712
        %v7716 = vclz %v7715
        %v7717 = vsub.s32 %v7716, 2
        %vm7718 = vcmp.gt.s32.totalorder 0, %v7717
        %v7719 = vsel %vm7718, 0, %v7717
        %v7720 = vsub.s32 32, %v7719
        %v7721 = vshll.u32 %v7712, %v7719
        %v7722 = vshrl.u32 %v7704, %v7720
        %v7723 = vor.u32 %v7721, %v7722
        %v7724 = vsub.s32 4294967266, %v7719
        %v7725 = vadd.s32 %v7724, 127
        %v7726 = vshll.u32 %v7725, 23
        %v7727 = vor.u32 4788187, %v7726
        %v7728 = vand.u32 2147483647, %v7727
        %v7730 = vcvt.s32.f32 %v7723
        %v7731 = vmul.f32 %v7730, %v7728
        %v7732 = vxor.u32 %v7731, 2147483648
        %v7733 = vsel %vm7650, %v7732, %v7731
        %v7734 = vsub.s32 4, %v7710
        %v7735 = vsel %vm7650, %v7734, %v7710
        %v7736 = vsel %vm7649, %v7647, %v7733
        %v7737 = vsel %vm7649, 0, %v7735
        %v7738 = vcosq.f32.pop %v7736
        %v7739 = vsinq.f32.pop %v7736
        %vm7740 = vweird.f32 %v7647
        %v7741 = vand.u32 %v7737, 3
        %vm7742 = vcmp.lt.s32.totalorder %v7741, 2
        %vm7743 = vcmp.eq.s32.totalorder %v7741, 0
        %v7744 = vxor.u32 %v7739, 2147483648
        %v7745 = vsel %vm7743, %v7738, %v7744
        %vm7746 = vcmp.eq.s32.totalorder %v7741, 2
        %v7747 = vxor.u32 %v7738, 2147483648
        %v7748 = vsel %vm7746, %v7747, %v7739
        %v7749 = vsel %vm7742, %v7745, %v7748
        %v7750 = vsel %vm7740, nan, %v7749
        %v7751 = vsub.f32 1.0, %v7750
        %v7752 = vmul.f32 %v7751, 0.5
        %v7753 = vsel %vm7646, 1.0, %v7752
        %v7754 = vsel %vm7645, 0.0, %v7753
        %v7755 = vld [vmem:[%s14] sm:$0xff]
        %v7756 = vld [vmem:[%s14 + $0x8] sm:$0xff]
        %v7757 = vld [vmem:[%s15] sm:$0x1]
        %v7759 = vsel %vm600, %v7754, 0
        %7761 = vmatprep.subr.mxu0 0.0
        %7762 = vmatpush1.msra.mxu0 0.0
        %7763 = vmatprep.subr.mxu0 0.0
        %7764 = vmatpush1.msra.mxu0 0.0
        %7765 = vmatprep.subr.mxu0 0.0
        %7766 = vmatpush1.msra.mxu0 0.0
        %7767 = vmatprep.subr.mxu0 0.0
        %7768 = vmatpush1.msra.mxu0 0.0
        %7769 = vmatprep.subr.mxu0 0.0
        %7770 = vmatpush1.msra.mxu0 0.0
        %7771 = vmatprep.subr.mxu0 0.0
        %7772 = vmatpush1.msra.mxu0 0.0
        %7773 = vmatprep.subr.mxu0 0.0
        %7774 = vmatpush1.msra.mxu0 0.0
        %7775 = vmatprep.subr.mxu0 0.0
        %7776 = vmatpush1.msra.mxu0 0.0
        %7777 = vmatprep.subr.mxu0 0.0
        %7778 = vmatpush1.msra.mxu0 0.0
        %7779 = vmatprep.subr.mxu0 0.0
        %7780 = vmatpush1.msra.mxu0 0.0
        %7781 = vmatprep.subr.mxu0 0.0
        %7782 = vmatpush1.msra.mxu0 0.0
        %7783 = vmatprep.subr.mxu0 0.0
        %7784 = vmatpush1.msra.mxu0 0.0
        %7785 = vmatprep.subr.mxu0 0.0
        %7786 = vmatpush1.msra.mxu0 0.0
        %7787 = vmatprep.subr.mxu0 0.0
        %7788 = vmatpush1.msra.mxu0 0.0
        %7789 = vmatprep.subr.mxu0 0.0
        %7790 = vmatpush1.msra.mxu0 %v7756
        %7791 = vmatprep.subr.mxu0 0.0
        %7792 = vmatpush1.msra.mxu0 %v7755
        %7793 = vmatprep.subr.mxu0 0.0
        %7794 = vmatpush2.msra.mxu0 0.0
        %7795 = vmatprep.subr.mxu0 0.0
        %7796 = vmatpush2.msra.mxu0 0.0
        %7797 = vmatprep.subr.mxu0 0.0
        %7798 = vmatpush2.msra.mxu0 0.0
        %7799 = vmatprep.subr.mxu0 0.0
        %7800 = vmatpush2.msra.mxu0 0.0
        %7801 = vmatprep.subr.mxu0 0.0
        %7802 = vmatpush2.msra.mxu0 0.0
        %7803 = vmatprep.subr.mxu0 0.0
        %7804 = vmatpush2.msra.mxu0 0.0
        %7805 = vmatprep.subr.mxu0 0.0
        %7806 = vmatpush2.msra.mxu0 0.0
        %7807 = vmatprep.subr.mxu0 0.0
        %7808 = vmatpush2.msra.mxu0 0.0
        %7809 = vmatprep.subr.mxu0 0.0
        %7810 = vmatpush2.msra.mxu0 0.0
        %7811 = vmatprep.subr.mxu0 0.0
        %7812 = vmatpush2.msra.mxu0 0.0
        %7813 = vmatprep.subr.mxu0 0.0
        %7814 = vmatpush2.msra.mxu0 0.0
        %7815 = vmatprep.subr.mxu0 0.0
        %7816 = vmatpush2.msra.mxu0 0.0
        %7817 = vmatprep.subr.mxu0 0.0
        %7818 = vmatpush2.msra.mxu0 0.0
        %7819 = vmatprep.subr.mxu0 0.0
        %7820 = vmatpush2.msra.mxu0 0.0
        %7821 = vmatprep.subr.mxu0 0.0
        %7822 = vmatpush2.msra.mxu0 0.0
        %7823 = vmatprep.subr.mxu0 0.0
        %7824 = vmatpush2.msra.mxu0 0.0
        %7825 = vmatprep.mubr.f32.mxu0 0.0
        %7826 = vmatmul.mubr.f32.gmra.mxu0 %v7759
        %v7827 = vpop.f32.mrf.mxu0
        %v7828 = vadd.f32 %v7757, %v7827
        %v7829 = vpop.f32.mrf.mxu0
        %7830 = vdwg.mxu0
        %vm7831 = vcmask 8192
        %7832 = vst.msk [vmem:[%s531] sm:$0x1] %vm7831, %v7828
        %s7833 = sand.u32 %s389, 1
        %s7834 = scalar_lea.sflag [#allocation4], %s7833
        %s7835 = sand.u32 %s389, 1
        %s7836 = scalar_lea.vmem [#allocation3], %s7835
        // Predicated region
        $region85: #{forward.1} parent=83 // pred_check
          %p7837 = pneg %p399
        $region86: #{forward.1} parent=83 // pred_check_branch
          %7839 = sbr.rel (%p7837) target = $region88
        $region87: #{forward.1} parent=83 // pred_region
          %s7841 = ssub.s32 16, 16
          %7842 = vsyncadd %s7834, %s7841
          %s7843 = smul.addr %s30, 16
          %s7844 = scalar_lea.hbm %s16, %s7843
          %s7846 = sshll.u32 %s7836, 4
          %s7847 = int_to_ptr.vmem [resolvable:$true] %s7846
          %7849 = dma.vmem_to_hbm [thread:$0]  %s7847, 16, %s7844, %s7834
        $region88: #{forward.1} parent=83 // pred_fallthru
          _
      $region84: #{forward.1} parent=5 // pred_fallthru
        _
      %p7850 = scmp.le.s32.totalorder 2, %s25
      // Predicated region
      $region89: #{forward.1} parent=5 // pred_check
        %p7851 = pneg %p7850
      $region90: #{forward.1} parent=5 // pred_check_branch
        %7853 = sbr.rel (%p7851) target = $region92
      $region91: #{forward.1} parent=5 // pred_region
        %s7854 = ssub.s32 %s25, 2
        // Predicated region
        $region93: #{forward.1} parent=91 // pred_check
          %p7855 = pneg %p405
        $region94: #{forward.1} parent=91 // pred_check_branch
          %7857 = sbr.rel (%p7855) target = $region96
        $region95: #{forward.1} parent=91 // pred_region
          %s7858 = sand.u32 %s390, 1
          %s7859 = scalar_lea.sflag [#allocation4], %s7858
          %s7860 = sand.u32 %s390, 1
          %s7861 = scalar_lea.vmem [#allocation3], %s7860
          %7862 = dma.done %s7859, 16
        $region96: #{forward.1} parent=91 // pred_fallthru
          _
      $region92: #{forward.1} parent=5 // pred_fallthru
        _
    $region6: #{forward.1} parent=1 // loop_footer
      %s29 = sadd.s32 1, %s25
    $region7: #{forward.1} parent=1 // loop_footer_branch
      %24 = sbr.rel target = $region3
    $region8: #{forward.1} parent=1 // loop_exit
      _
    %7863 = vsyncpa [#allocation4], 1
    %s7864 = scalar_lea.sflag [#allocation4], 1
    %7865 = vsyncpa %s7864, 1

</llo_original>
